<compile_context>
chip_gen: v7x
topology: tpu7x:2x2x1
jax: 0.10.0
libtpu: 0.0.40
codegen_flags: <defaults>
</compile_context>

<pallas_src>
import functools

import jax
import jax.numpy as jnp
import numpy as np
from jax.experimental import pallas as pl
from jax.experimental.pallas import tpu as pltpu


def _conv_same_im2col(xpad_ref, w_ref, *, K, H, W, Cin):
    """One 'same' conv as a single deep matmul.

    xpad_ref: (H+K-1, W+K-1, Cin) bf16 zero-padded input in VMEM.
    w_ref:    (K*K*Cin, Cout)     bf16 fused-tap weights.
    returns:  (H*W, Cout)         f32 accumulator.
    """
    taps = []
    for kh in range(K):
        for kw in range(K):
            # NOTE: the kw slice + reshape costs a small relayout per tap; at
            # K=3 (9 taps) this is negligible next to the 576-deep matmul.
            taps.append(xpad_ref[kh:kh + H, kw:kw + W, :].reshape(H * W, Cin))
    im2col = jnp.concatenate(taps, axis=-1)              # (H*W, K*K*Cin) bf16
    return jnp.dot(im2col, w_ref[...], preferred_element_type=jnp.float32)


def _residual_block_kernel(x_ref, w1_ref, w2_ref, o_ref, xpad_ref, *, K, H, W, Cn):
    # x_ref: (1, H, W, Cn) bf16      w1_ref/w2_ref: (K*K*Cn, Cn) bf16
    # o_ref: (1, H, W, Cn) f32       xpad_ref: (H+K-1, W+K-1, Cn) bf16 scratch
    pad = K // 2

    # In-kernel 'same' padding: zero the halo, fill the interior.
    xpad_ref[...] = jnp.zeros_like(xpad_ref)
    xpad_ref[pad:pad + H, pad:pad + W, :] = x_ref[0]

    # conv1 (bias-free) + ReLU: f32 accumulate on MXU, f32 ReLU on VPU.
    h = _conv_same_im2col(xpad_ref, w1_ref, K=K, H=H, W=W, Cin=Cn)
    h = jnp.maximum(h, 0.0)

    # Keep the activation VMEM-resident: re-pad it into the same scratch
    # (halo is still zero; only the interior is overwritten).
    xpad_ref[pad:pad + H, pad:pad + W, :] = h.astype(jnp.bfloat16).reshape(H, W, Cn)

    # conv2 (bias-free) + residual add (residual in f32).
    out = _conv_same_im2col(xpad_ref, w2_ref, K=K, H=H, W=W, Cin=Cn)
    out = out + x_ref[0].astype(jnp.float32).reshape(H * W, Cn)

    o_ref[...] = out.reshape(1, H, W, Cn).astype(o_ref.dtype)


def residual_block(x_nchw, w1, w2):
    """x: (B, Cn, H, W) f32; w1, w2: (Cn, Cn, K, K) PyTorch-layout f32."""
    B, Cn, H, W = x_nchw.shape
    K = w1.shape[-1]

    # NCHW -> NHWC, bf16 activations (halves DMA / VMEM; accumulation is f32).
    x = jnp.transpose(x_nchw, (0, 2, 3, 1)).astype(jnp.bfloat16)

    def prep(w):  # (Cout, Cin, K, K) -> (K, K, Cin, Cout) -> (K*K*Cin, Cout)
        return (jnp.transpose(w, (2, 3, 1, 0))
                .reshape(K * K * Cn, Cn).astype(jnp.bfloat16))

    w1r, w2r = prep(w1), prep(w2)

    kernel = functools.partial(_residual_block_kernel, K=K, H=H, W=W, Cn=Cn)
    # NOTE: for production H,W, tile H into row strips (multiple of 8) with a
    # K-1 halo so double-buffered blocks fit v7x's 64 MiB VMEM; whole-image
    # blocks are fine at these test sizes on all generations.
    y = pl.pallas_call(
        kernel,
        out_shape=jax.ShapeDtypeStruct((B, H, W, Cn), jnp.float32),
        grid=(B,),
        in_specs=[
            pl.BlockSpec((1, H, W, Cn), lambda i: (i, 0, 0, 0)),
            pl.BlockSpec((K * K * Cn, Cn), lambda i: (0, 0)),
            pl.BlockSpec((K * K * Cn, Cn), lambda i: (0, 0)),
        ],
        out_specs=pl.BlockSpec((1, H, W, Cn), lambda i: (i, 0, 0, 0)),
        scratch_shapes=[pltpu.VMEM((H + K - 1, W + K - 1, Cn), jnp.bfloat16)],
        compiler_params=pltpu.CompilerParams(
            dimension_semantics=("parallel",)),
    )(x, w1r, w2r)

    return jnp.transpose(y, (0, 3, 1, 2))                 # back to NCHW


def _reference(x, w1, w2):
    """f32 reference with lax.conv (matches the PyTorch forward)."""
    dn = ("NCHW", "OIHW", "NCHW")
    h = jax.lax.conv_general_dilated(x, w1, (1, 1), "SAME", dimension_numbers=dn)
    h = jnp.maximum(h, 0.0)
    y = jax.lax.conv_general_dilated(h, w2, (1, 1), "SAME", dimension_numbers=dn)
    return y + x


if __name__ == "__main__":
    B, Cn, H, W, K = 2, 64, 16, 16, 3        # module defaults: Cn=64, ksize=3

    root = jax.random.PRNGKey(0)
    kx, k1, k2 = jax.random.split(root, 3)
    scale = 1.0 / np.sqrt(K * K * Cn)
    x = jax.random.normal(kx, (B, Cn, H, W), jnp.float32)
    w1 = jax.random.normal(k1, (Cn, Cn, K, K), jnp.float32) * scale
    w2 = jax.random.normal(k2, (Cn, Cn, K, K), jnp.float32) * scale

    out = jax.block_until_ready(residual_block(x, w1, w2))
    assert out.shape == (B, Cn, H, W), out.shape

    # Loose tolerance: kernel uses bf16 operands on the MXU (f32 accumulate).
    ref = jax.block_until_ready(_reference(x, w1, w2))
    np.testing.assert_allclose(np.asarray(out), np.asarray(ref),
                               rtol=1e-1, atol=1e-1)
    print("KERNEL_OK")
</pallas_src>

<mosaic_0001>
module attributes {stable_mosaic.version = 11 : i64} {
  func.func @_residual_block_kernel(%arg0: i32, %arg1: memref<1x16x16x64xbf16, #tpu.memory_space<vmem>>, %arg2: memref<576x64xbf16, #tpu.memory_space<vmem>>, %arg3: memref<576x64xbf16, #tpu.memory_space<vmem>>, %arg4: memref<1x16x16x64xf32, #tpu.memory_space<vmem>>, %arg5: memref<18x18x64xbf16, #tpu.memory_space<vmem>>) attributes {dimension_semantics = [#tpu.dimension_semantics<parallel>], iteration_bounds = array<i64: 2>, scalar_prefetch = 0 : i64, scratch_operands = 1 : i64, tpu.core_type = #tpu.core_type<tc>, window_params = [{transform_indices = @transform_0, window_bounds = array<i64: 1, 16, 16, 64>}, {pipeline_mode = #tpu.pipeline_mode<synchronous>, transform_indices = @transform_1, window_bounds = array<i64: 576, 64>}, {pipeline_mode = #tpu.pipeline_mode<synchronous>, transform_indices = @transform_2, window_bounds = array<i64: 576, 64>}, {transform_indices = @transform_3, window_bounds = array<i64: 1, 16, 16, 64>}]} {
    %cst = arith.constant 0.000000e+00 : bf16
    %0 = vector.broadcast %cst : bf16 to vector<18x18x64xbf16>
    %c0 = arith.constant 0 : index
    %c0_0 = arith.constant 0 : index
    %c0_1 = arith.constant 0 : index
    %1 = vector.load %arg5[%c0, %c0_0, %c0_1] : memref<18x18x64xbf16, #tpu.memory_space<vmem>>, vector<18x18x64xbf16>
    tpu.vector_store %arg5[%c0, %c0_0, %c0_1], %0 {strides = array<i32>} : memref<18x18x64xbf16, #tpu.memory_space<vmem>>, vector<18x18x64xbf16>,
    %c0_2 = arith.constant 0 : index
    %c0_3 = arith.constant 0 : index
    %c0_4 = arith.constant 0 : index
    %c0_5 = arith.constant 0 : index
    %2 = vector.load %arg1[%c0_2, %c0_3, %c0_4, %c0_5] : memref<1x16x16x64xbf16, #tpu.memory_space<vmem>>, vector<1x16x16x64xbf16>
    %3 = vector.shape_cast %2 : vector<1x16x16x64xbf16> to vector<16x16x64xbf16>
    %c1 = arith.constant 1 : index
    %c1_6 = arith.constant 1 : index
    %c0_7 = arith.constant 0 : index
    %4 = vector.load %arg5[%c1, %c1_6, %c0_7] : memref<18x18x64xbf16, #tpu.memory_space<vmem>>, vector<16x16x64xbf16>
    tpu.vector_store %arg5[%c1, %c1_6, %c0_7], %3 {strides = array<i32>} : memref<18x18x64xbf16, #tpu.memory_space<vmem>>, vector<16x16x64xbf16>,
    %c0_8 = arith.constant 0 : index
    %c0_9 = arith.constant 0 : index
    %c0_10 = arith.constant 0 : index
    %5 = vector.load %arg5[%c0_8, %c0_9, %c0_10] : memref<18x18x64xbf16, #tpu.memory_space<vmem>>, vector<16x16x64xbf16>
    %6 = vector.shape_cast %5 : vector<16x16x64xbf16> to vector<256x64xbf16>
    %c0_11 = arith.constant 0 : index
    %c1_12 = arith.constant 1 : index
    %c0_13 = arith.constant 0 : index
    %7 = vector.load %arg5[%c0_11, %c1_12, %c0_13] : memref<18x18x64xbf16, #tpu.memory_space<vmem>>, vector<16x16x64xbf16>
    %8 = vector.shape_cast %7 : vector<16x16x64xbf16> to vector<256x64xbf16>
    %c0_14 = arith.constant 0 : index
    %c2 = arith.constant 2 : index
    %c0_15 = arith.constant 0 : index
    %9 = vector.load %arg5[%c0_14, %c2, %c0_15] : memref<18x18x64xbf16, #tpu.memory_space<vmem>>, vector<16x16x64xbf16>
    %10 = vector.shape_cast %9 : vector<16x16x64xbf16> to vector<256x64xbf16>
    %c1_16 = arith.constant 1 : index
    %c0_17 = arith.constant 0 : index
    %c0_18 = arith.constant 0 : index
    %11 = vector.load %arg5[%c1_16, %c0_17, %c0_18] : memref<18x18x64xbf16, #tpu.memory_space<vmem>>, vector<16x16x64xbf16>
    %12 = vector.shape_cast %11 : vector<16x16x64xbf16> to vector<256x64xbf16>
    %c1_19 = arith.constant 1 : index
    %c1_20 = arith.constant 1 : index
    %c0_21 = arith.constant 0 : index
    %13 = vector.load %arg5[%c1_19, %c1_20, %c0_21] : memref<18x18x64xbf16, #tpu.memory_space<vmem>>, vector<16x16x64xbf16>
    %14 = vector.shape_cast %13 : vector<16x16x64xbf16> to vector<256x64xbf16>
    %c1_22 = arith.constant 1 : index
    %c2_23 = arith.constant 2 : index
    %c0_24 = arith.constant 0 : index
    %15 = vector.load %arg5[%c1_22, %c2_23, %c0_24] : memref<18x18x64xbf16, #tpu.memory_space<vmem>>, vector<16x16x64xbf16>
    %16 = vector.shape_cast %15 : vector<16x16x64xbf16> to vector<256x64xbf16>
    %c2_25 = arith.constant 2 : index
    %c0_26 = arith.constant 0 : index
    %c0_27 = arith.constant 0 : index
    %17 = vector.load %arg5[%c2_25, %c0_26, %c0_27] : memref<18x18x64xbf16, #tpu.memory_space<vmem>>, vector<16x16x64xbf16>
    %18 = vector.shape_cast %17 : vector<16x16x64xbf16> to vector<256x64xbf16>
    %c2_28 = arith.constant 2 : index
    %c1_29 = arith.constant 1 : index
    %c0_30 = arith.constant 0 : index
    %19 = vector.load %arg5[%c2_28, %c1_29, %c0_30] : memref<18x18x64xbf16, #tpu.memory_space<vmem>>, vector<16x16x64xbf16>
    %20 = vector.shape_cast %19 : vector<16x16x64xbf16> to vector<256x64xbf16>
    %c2_31 = arith.constant 2 : index
    %c2_32 = arith.constant 2 : index
    %c0_33 = arith.constant 0 : index
    %21 = vector.load %arg5[%c2_31, %c2_32, %c0_33] : memref<18x18x64xbf16, #tpu.memory_space<vmem>>, vector<16x16x64xbf16>
    %22 = vector.shape_cast %21 : vector<16x16x64xbf16> to vector<256x64xbf16>
    %23 = tpu.concatenate %6, %8, %10, %12, %14, %16, %18, %20, %22 in 1 : vector<256x64xbf16>, vector<256x64xbf16>, vector<256x64xbf16>, vector<256x64xbf16>, vector<256x64xbf16>, vector<256x64xbf16>, vector<256x64xbf16>, vector<256x64xbf16>, vector<256x64xbf16> -> vector<256x576xbf16>
    %c0_34 = arith.constant 0 : index
    %c0_35 = arith.constant 0 : index
    %24 = vector.load %arg2[%c0_34, %c0_35] : memref<576x64xbf16, #tpu.memory_space<vmem>>, vector<576x64xbf16>
    %cst_36 = arith.constant dense<0.000000e+00> : vector<256x64xf32>
    %25 = tpu.matmul %23, %24, %cst_36 {dimension_numbers = #tpu.dot_dimension_numbers<[1], [0], [0], [1], [0, 0, 1, 1], [], []>} : vector<256x576xbf16>, vector<576x64xbf16>, vector<256x64xf32> -> vector<256x64xf32>
    %cst_37 = arith.constant 0.000000e+00 : f32
    %26 = vector.broadcast %cst_37 : f32 to vector<256x64xf32>
    %27 = arith.maximumf %25, %26 : vector<256x64xf32>
    %28 = arith.truncf %27 : vector<256x64xf32> to vector<256x64xbf16>
    %29 = vector.shape_cast %28 : vector<256x64xbf16> to vector<16x16x64xbf16>
    %c1_38 = arith.constant 1 : index
    %c1_39 = arith.constant 1 : index
    %c0_40 = arith.constant 0 : index
    %30 = vector.load %arg5[%c1_38, %c1_39, %c0_40] : memref<18x18x64xbf16, #tpu.memory_space<vmem>>, vector<16x16x64xbf16>
    tpu.vector_store %arg5[%c1_38, %c1_39, %c0_40], %29 {strides = array<i32>} : memref<18x18x64xbf16, #tpu.memory_space<vmem>>, vector<16x16x64xbf16>,
    %c0_41 = arith.constant 0 : index
    %c0_42 = arith.constant 0 : index
    %c0_43 = arith.constant 0 : index
    %31 = vector.load %arg5[%c0_41, %c0_42, %c0_43] : memref<18x18x64xbf16, #tpu.memory_space<vmem>>, vector<16x16x64xbf16>
    %32 = vector.shape_cast %31 : vector<16x16x64xbf16> to vector<256x64xbf16>
    %c0_44 = arith.constant 0 : index
    %c1_45 = arith.constant 1 : index
    %c0_46 = arith.constant 0 : index
    %33 = vector.load %arg5[%c0_44, %c1_45, %c0_46] : memref<18x18x64xbf16, #tpu.memory_space<vmem>>, vector<16x16x64xbf16>
    %34 = vector.shape_cast %33 : vector<16x16x64xbf16> to vector<256x64xbf16>
    %c0_47 = arith.constant 0 : index
    %c2_48 = arith.constant 2 : index
    %c0_49 = arith.constant 0 : index
    %35 = vector.load %arg5[%c0_47, %c2_48, %c0_49] : memref<18x18x64xbf16, #tpu.memory_space<vmem>>, vector<16x16x64xbf16>
    %36 = vector.shape_cast %35 : vector<16x16x64xbf16> to vector<256x64xbf16>
    %c1_50 = arith.constant 1 : index
    %c0_51 = arith.constant 0 : index
    %c0_52 = arith.constant 0 : index
    %37 = vector.load %arg5[%c1_50, %c0_51, %c0_52] : memref<18x18x64xbf16, #tpu.memory_space<vmem>>, vector<16x16x64xbf16>
    %38 = vector.shape_cast %37 : vector<16x16x64xbf16> to vector<256x64xbf16>
    %c1_53 = arith.constant 1 : index
    %c1_54 = arith.constant 1 : index
    %c0_55 = arith.constant 0 : index
    %39 = vector.load %arg5[%c1_53, %c1_54, %c0_55] : memref<18x18x64xbf16, #tpu.memory_space<vmem>>, vector<16x16x64xbf16>
    %40 = vector.shape_cast %39 : vector<16x16x64xbf16> to vector<256x64xbf16>
    %c1_56 = arith.constant 1 : index
    %c2_57 = arith.constant 2 : index
    %c0_58 = arith.constant 0 : index
    %41 = vector.load %arg5[%c1_56, %c2_57, %c0_58] : memref<18x18x64xbf16, #tpu.memory_space<vmem>>, vector<16x16x64xbf16>
    %42 = vector.shape_cast %41 : vector<16x16x64xbf16> to vector<256x64xbf16>
    %c2_59 = arith.constant 2 : index
    %c0_60 = arith.constant 0 : index
    %c0_61 = arith.constant 0 : index
    %43 = vector.load %arg5[%c2_59, %c0_60, %c0_61] : memref<18x18x64xbf16, #tpu.memory_space<vmem>>, vector<16x16x64xbf16>
    %44 = vector.shape_cast %43 : vector<16x16x64xbf16> to vector<256x64xbf16>
    %c2_62 = arith.constant 2 : index
    %c1_63 = arith.constant 1 : index
    %c0_64 = arith.constant 0 : index
    %45 = vector.load %arg5[%c2_62, %c1_63, %c0_64] : memref<18x18x64xbf16, #tpu.memory_space<vmem>>, vector<16x16x64xbf16>
    %46 = vector.shape_cast %45 : vector<16x16x64xbf16> to vector<256x64xbf16>
    %c2_65 = arith.constant 2 : index
    %c2_66 = arith.constant 2 : index
    %c0_67 = arith.constant 0 : index
    %47 = vector.load %arg5[%c2_65, %c2_66, %c0_67] : memref<18x18x64xbf16, #tpu.memory_space<vmem>>, vector<16x16x64xbf16>
    %48 = vector.shape_cast %47 : vector<16x16x64xbf16> to vector<256x64xbf16>
    %49 = tpu.concatenate %32, %34, %36, %38, %40, %42, %44, %46, %48 in 1 : vector<256x64xbf16>, vector<256x64xbf16>, vector<256x64xbf16>, vector<256x64xbf16>, vector<256x64xbf16>, vector<256x64xbf16>, vector<256x64xbf16>, vector<256x64xbf16>, vector<256x64xbf16> -> vector<256x576xbf16>
    %c0_68 = arith.constant 0 : index
    %c0_69 = arith.constant 0 : index
    %50 = vector.load %arg3[%c0_68, %c0_69] : memref<576x64xbf16, #tpu.memory_space<vmem>>, vector<576x64xbf16>
    %cst_70 = arith.constant dense<0.000000e+00> : vector<256x64xf32>
    %51 = tpu.matmul %49, %50, %cst_70 {dimension_numbers = #tpu.dot_dimension_numbers<[1], [0], [0], [1], [0, 0, 1, 1], [], []>} : vector<256x576xbf16>, vector<576x64xbf16>, vector<256x64xf32> -> vector<256x64xf32>
    %c0_71 = arith.constant 0 : index
    %c0_72 = arith.constant 0 : index
    %c0_73 = arith.constant 0 : index
    %c0_74 = arith.constant 0 : index
    %52 = vector.load %arg1[%c0_71, %c0_72, %c0_73, %c0_74] : memref<1x16x16x64xbf16, #tpu.memory_space<vmem>>, vector<1x16x16x64xbf16>
    %53 = vector.shape_cast %52 : vector<1x16x16x64xbf16> to vector<16x16x64xbf16>
    %54 = arith.extf %53 : vector<16x16x64xbf16> to vector<16x16x64xf32>
    %55 = vector.shape_cast %54 : vector<16x16x64xf32> to vector<256x64xf32>
    %56 = arith.addf %51, %55 : vector<256x64xf32>
    %57 = vector.shape_cast %56 : vector<256x64xf32> to vector<1x16x16x64xf32>
    %c0_75 = arith.constant 0 : index
    %c0_76 = arith.constant 0 : index
    %c0_77 = arith.constant 0 : index
    %c0_78 = arith.constant 0 : index
    %58 = vector.load %arg4[%c0_75, %c0_76, %c0_77, %c0_78] : memref<1x16x16x64xf32, #tpu.memory_space<vmem>>, vector<1x16x16x64xf32>
    tpu.vector_store %arg4[%c0_75, %c0_76, %c0_77, %c0_78], %57 {strides = array<i32>} : memref<1x16x16x64xf32, #tpu.memory_space<vmem>>, vector<1x16x16x64xf32>,
    return
  }
  func.func @transform_0(%arg0: i32) -> (i32, i32, i32, i32) {
    %c0_i32 = arith.constant 0 : i32
    %c0_i32_0 = arith.constant 0 : i32
    %c0_i32_1 = arith.constant 0 : i32
    %c0_i32_2 = arith.constant 0 : i32
    return %arg0, %c0_i32, %c0_i32_0, %c0_i32_1 : i32, i32, i32, i32
  }
  func.func @transform_1(%arg0: i32) -> (i32, i32) {
    %c0_i32 = arith.constant 0 : i32
    %c0_i32_0 = arith.constant 0 : i32
    %c0_i32_1 = arith.constant 0 : i32
    return %c0_i32, %c0_i32_0 : i32, i32
  }
  func.func @transform_2(%arg0: i32) -> (i32, i32) {
    %c0_i32 = arith.constant 0 : i32
    %c0_i32_0 = arith.constant 0 : i32
    %c0_i32_1 = arith.constant 0 : i32
    return %c0_i32, %c0_i32_0 : i32, i32
  }
  func.func @transform_3(%arg0: i32) -> (i32, i32, i32, i32) {
    %c0_i32 = arith.constant 0 : i32
    %c0_i32_0 = arith.constant 0 : i32
    %c0_i32_1 = arith.constant 0 : i32
    %c0_i32_2 = arith.constant 0 : i32
    return %arg0, %c0_i32, %c0_i32_0, %c0_i32_1 : i32, i32, i32, i32
  }
}

</mosaic_0001>

<llo_original>
// kernel: tpu_custom_call.1
$region0: #{tpu_custom_call.1}
  #allocation0 [shape = 'u32[]', space=smem, size = 0x4, offset = 0x4, fixed_abs, tag = 'smem constant byte address 0x4 - core index']
  #allocation1 [shape = 'u32[144,128]{1,0:T(1,128)}', space=vmem, size = 0x12000, scoped, tag = 'internal scratch']
  #allocation2 [shape = 'bf16[18,18,64]{2,1,0:T(8,128)(2,1)}', space=vmem, size = 0x1b000, scoped, tag = 'scratch operand']
  %s0 = inlined_call_operand.vmem [shape: bf16[2,16,16,64], index: 0, kind: input, shape index: {}]
  %s1 = inlined_call_operand.vmem [shape: bf16[576,64], index: 1, kind: input, shape index: {}]
  %s2 = inlined_call_operand.vmem [shape: bf16[576,64], index: 2, kind: input, shape index: {}]
  %s3 = inlined_call_operand.hbm [shape: f32[2,16,16,64], index: 3, kind: output, shape index: {}]
  %s4 = sld [smem:[#allocation0]]
  $region45: #{tpu_custom_call.1} parent=0
    _
  %s6 = ssub.s32 1, %s4
  %s7 = scalar_select 0, %s6, %s4
  $region1: #{tpu_custom_call.1} parent=0
    #allocation3 [shape = 'u8[262144]{0}', space=vmem, size = 0x40000, scoped, tag = 'output window, operand 0']
    #allocation4 [shape = 's32[2]{0}', space=sflag, size = 0x8, scoped, tag = 'scoped memory for tpu_custom_call.1']
    %8 = vsyncpa [#allocation4], 0
    %s9 = scalar_lea.sflag [#allocation4], 1
    %10 = vsyncpa %s9, 0
    loop: start=0, step=1, limit=4
    $region2: #{tpu_custom_call.1} parent=1 // loop_pre_header
      _
    $region3: #{tpu_custom_call.1} parent=1 // loop_header
      %s12 = sphi 0, %s16
      %p13 = scmp.ge.s32.totalorder %s12, 4
      %s22 = sphi 0, %s24
      %s25 = sphi 0, %s22
      %s26 = sphi 0, %s25
      %s42 = sphi 0, %s26
      %s46 = sphi 0, %s46
      %s48 = sphi 0, %s46
      %s49 = sphi 0, %s48
      %s63 = sphi 0, %s49
      %s67 = sphi 0, %s67
      %s69 = sphi 0, %s67
      %s70 = sphi 0, %s69
      %s84 = sphi 0, %s70
      %s90 = sphi 0, %s92
      %s93 = sphi 0, %s90
      %s94 = sphi 0, %s93
      %s110 = sphi 0, %s94
    $region4: #{tpu_custom_call.1} parent=1 // loop_header_branch
      %15 = sbr.rel (%p13) target = $region8
    $region5: #{tpu_custom_call.1} parent=1 // loop_body
      %s17 = ssub.s32 %s12, 1
      %s18 = ssub.s32 %s12, 2
      %s19 = sadd.s32 %s12, 1
      %s20 = ssub.s32 %s12, %s19
      %p21 = scmp.eq.s32.totalorder %s20, 0
      %s23 = sadd.s32 %s22, 1
      %s24 = scalar_select %p21, %s22, %s23
      %p27 = pneg %p21
      %p28 = scmp.eq.s32.totalorder %s12, 1
      %p29 = por %p27, %p28
      %p30 = scmp.ne.s32.totalorder %s22, %s25
      %p31 = scmp.eq.s32.totalorder %s12, 0
      %p32 = por %p30, %p31
      %p33 = scmp.ne.s32.totalorder %s22, %s25
      %p34 = scmp.eq.s32.totalorder %s17, 1
      %p35 = por %p33, %p34
      %p36 = scmp.ne.s32.totalorder %s25, %s26
      %p37 = scmp.eq.s32.totalorder %s17, 0
      %p38 = por %p36, %p37
      %p39 = scmp.ne.s32.totalorder %s25, %s26
      %p40 = scmp.eq.s32.totalorder %s18, 1
      %p41 = por %p39, %p40
      %p43 = scmp.ne.s32.totalorder %s26, %s42
      %p44 = scmp.eq.s32.totalorder %s18, 0
      %p45 = por %p43, %p44
      %s47 = sadd.s32 %s46, 1
      %p50 = scmp.eq.s32.totalorder %s12, 1
      %p51 = scmp.ne.s32.totalorder %s46, %s48
      %p52 = scmp.eq.s32.totalorder %s12, 0
      %p53 = por %p51, %p52
      %p54 = scmp.ne.s32.totalorder %s46, %s48
      %p55 = scmp.eq.s32.totalorder %s17, 1
      %p56 = por %p54, %p55
      %p57 = scmp.ne.s32.totalorder %s48, %s49
      %p58 = scmp.eq.s32.totalorder %s17, 0
      %p59 = por %p57, %p58
      %p60 = scmp.ne.s32.totalorder %s48, %s49
      %p61 = scmp.eq.s32.totalorder %s18, 1
      %p62 = por %p60, %p61
      %p64 = scmp.ne.s32.totalorder %s49, %s63
      %p65 = scmp.eq.s32.totalorder %s18, 0
      %p66 = por %p64, %p65
      %s68 = sadd.s32 %s67, 1
      %p71 = scmp.eq.s32.totalorder %s12, 1
      %p72 = scmp.ne.s32.totalorder %s67, %s69
      %p73 = scmp.eq.s32.totalorder %s12, 0
      %p74 = por %p72, %p73
      %p75 = scmp.ne.s32.totalorder %s67, %s69
      %p76 = scmp.eq.s32.totalorder %s17, 1
      %p77 = por %p75, %p76
      %p78 = scmp.ne.s32.totalorder %s69, %s70
      %p79 = scmp.eq.s32.totalorder %s17, 0
      %p80 = por %p78, %p79
      %p81 = scmp.ne.s32.totalorder %s69, %s70
      %p82 = scmp.eq.s32.totalorder %s18, 1
      %p83 = por %p81, %p82
      %p85 = scmp.ne.s32.totalorder %s70, %s84
      %p86 = scmp.eq.s32.totalorder %s18, 0
      %p87 = por %p85, %p86
      %s88 = ssub.s32 %s12, %s19
      %p89 = scmp.eq.s32.totalorder %s88, 0
      %s91 = sadd.s32 %s90, 1
      %s92 = scalar_select %p89, %s90, %s91
      %p95 = pneg %p89
      %p96 = scmp.eq.s32.totalorder %s12, 1
      %p97 = por %p95, %p96
      %p98 = scmp.ne.s32.totalorder %s90, %s93
      %p99 = scmp.eq.s32.totalorder %s12, 0
      %p100 = por %p98, %p99
      %p101 = scmp.ne.s32.totalorder %s90, %s93
      %p102 = scmp.eq.s32.totalorder %s17, 1
      %p103 = por %p101, %p102
      %p104 = scmp.ne.s32.totalorder %s93, %s94
      %p105 = scmp.eq.s32.totalorder %s17, 0
      %p106 = por %p104, %p105
      %p107 = scmp.ne.s32.totalorder %s93, %s94
      %p108 = scmp.eq.s32.totalorder %s18, 1
      %p109 = por %p107, %p108
      %p111 = scmp.ne.s32.totalorder %s94, %s110
      %p112 = scmp.eq.s32.totalorder %s18, 0
      %p113 = por %p111, %p112
      %p114 = scmp.le.s32.totalorder 1, %s12
      %p115 = scmp.lt.s32.totalorder %s12, 3
      %p116 = pnand %p114, %p115
      %p117 = pneg %p116
      // Predicated region
      $region9: #{tpu_custom_call.1} parent=5 // pred_check
        _
      $region10: #{tpu_custom_call.1} parent=5 // pred_check_branch
        %119 = sbr.rel (%p116) target = $region12
      $region11: #{tpu_custom_call.1} parent=5 // pred_region
        %s120 = ssub.s32 %s12, 1
        // Predicated region
        $region13: #{tpu_custom_call.1} parent=11 // pred_check
          %p121 = pneg %p59
        $region14: #{tpu_custom_call.1} parent=11 // pred_check_branch
          %123 = sbr.rel (%p121) target = $region16
        $region15: #{tpu_custom_call.1} parent=11 // pred_region
          _
        $region16: #{tpu_custom_call.1} parent=11 // pred_fallthru
          _
        // Predicated region
        $region17: #{tpu_custom_call.1} parent=11 // pred_check
          %p124 = pneg %p80
        $region18: #{tpu_custom_call.1} parent=11 // pred_check_branch
          %126 = sbr.rel (%p124) target = $region20
        $region19: #{tpu_custom_call.1} parent=11 // pred_region
          _
        $region20: #{tpu_custom_call.1} parent=11 // pred_fallthru
          _
      $region12: #{tpu_custom_call.1} parent=5 // pred_fallthru
        _
      %p127 = scmp.lt.s32.totalorder %s12, 2
      // Predicated region
      $region21: #{tpu_custom_call.1} parent=5 // pred_check
        %p128 = pneg %p127
      $region22: #{tpu_custom_call.1} parent=5 // pred_check_branch
        %130 = sbr.rel (%p128) target = $region24
      $region23: #{tpu_custom_call.1} parent=5 // pred_region
        // Predicated region
        $region25: #{tpu_custom_call.1} parent=23 // pred_check
          %p131 = pneg %p32
        $region26: #{tpu_custom_call.1} parent=23 // pred_check_branch
          %133 = sbr.rel (%p131) target = $region28
        $region27: #{tpu_custom_call.1} parent=23 // pred_region
          %p134 = scmp.lt.s32.totalorder %s12, 1
          %s135 = scalar_select %p134, %s12, 1
          %s136 = smul.addr %s135, 32
          %s137 = smul.addr %s136, 4
          %s138 = scalar_lea.vmem %s0, %s137
        $region28: #{tpu_custom_call.1} parent=23 // pred_fallthru
          _
      $region24: #{tpu_custom_call.1} parent=5 // pred_fallthru
        _
      %p139 = scmp.le.s32.totalorder 1, %s12
      %p140 = scmp.lt.s32.totalorder %s12, 3
      %p141 = pnand %p139, %p140
      %p142 = pneg %p141
      // Predicated region
      $region29: #{tpu_custom_call.1} parent=5 // pred_check
        _
      $region30: #{tpu_custom_call.1} parent=5 // pred_check_branch
        %144 = sbr.rel (%p141) target = $region32
      $region31: #{tpu_custom_call.1} parent=5 // pred_region
        %s145 = ssub.s32 %s12, 1
        %p146 = scmp.lt.s32.totalorder %s17, 1
        %s147 = scalar_select %p146, %s17, 1
        %s148 = smul.addr %s147, 32
        %s149 = smul.addr %s148, 4
        %s150 = scalar_lea.vmem %s0, %s149
        %p151 = pneg %p38
        %p152 = pneg %p35
        %p153 = pneg %p59
        %p154 = pneg %p56
        %p155 = pneg %p80
        %p156 = pneg %p77
        %p157 = pneg %p106
        %p158 = pneg %p103
        %s159 = sand.u32 %s93, 1
        %s160 = scalar_lea.sflag [#allocation4], %s159
        %s161 = sand.u32 %s93, 1
        %s162 = smul.addr %s161, 256
        %s163 = scalar_lea.vmem [#allocation3], %s162
        %p164 = scmp.lt.s32.totalorder %s17, 1
        %s165 = scalar_select %p164, %s17, 1
        %s166 = smul.addr %s165, 32
        %s167 = smul.addr %s166, 4
        %s168 = scalar_lea.vmem %s0, %s167
        %vm170 = vcmask 519168
        %171 = vst.msk [vmem:[#allocation2] sm:$0xf] %vm170, 0
        %172 = vst.msk [vmem:[#allocation2 + $0x4] sm:$0xf] %vm170, 0
        %vm173 = vcmask 516096
        %174 = vst.msk [vmem:[#allocation2 + $0x8] sm:$0x1] %vm173, 0
        %175 = vst.msk [vmem:[#allocation2 + $0xc] sm:$0xf] %vm170, 0
        %176 = vst.msk [vmem:[#allocation2 + $0x10] sm:$0xf] %vm170, 0
        %177 = vst.msk [vmem:[#allocation2 + $0x14] sm:$0x1] %vm173, 0
        %178 = vst.msk [vmem:[#allocation2 + $0x18] sm:$0xf] %vm170, 0
        %179 = vst.msk [vmem:[#allocation2 + $0x1c] sm:$0xf] %vm170, 0
        %180 = vst.msk [vmem:[#allocation2 + $0x20] sm:$0x1] %vm173, 0
        %181 = vst.msk [vmem:[#allocation2 + $0x24] sm:$0xf] %vm170, 0
        %182 = vst.msk [vmem:[#allocation2 + $0x28] sm:$0xf] %vm170, 0
        %183 = vst.msk [vmem:[#allocation2 + $0x2c] sm:$0x1] %vm173, 0
        %184 = vst.msk [vmem:[#allocation2 + $0x30] sm:$0xf] %vm170, 0
        %185 = vst.msk [vmem:[#allocation2 + $0x34] sm:$0xf] %vm170, 0
        %186 = vst.msk [vmem:[#allocation2 + $0x38] sm:$0x1] %vm173, 0
        %187 = vst.msk [vmem:[#allocation2 + $0x3c] sm:$0xf] %vm170, 0
        %188 = vst.msk [vmem:[#allocation2 + $0x40] sm:$0xf] %vm170, 0
        %189 = vst.msk [vmem:[#allocation2 + $0x44] sm:$0x1] %vm173, 0
        %190 = vst.msk [vmem:[#allocation2 + $0x48] sm:$0xf] %vm170, 0
        %191 = vst.msk [vmem:[#allocation2 + $0x4c] sm:$0xf] %vm170, 0
        %192 = vst.msk [vmem:[#allocation2 + $0x50] sm:$0x1] %vm173, 0
        %193 = vst.msk [vmem:[#allocation2 + $0x54] sm:$0xf] %vm170, 0
        %194 = vst.msk [vmem:[#allocation2 + $0x58] sm:$0xf] %vm170, 0
        %195 = vst.msk [vmem:[#allocation2 + $0x5c] sm:$0x1] %vm173, 0
        %196 = vst.msk [vmem:[#allocation2 + $0x60] sm:$0xf] %vm170, 0
        %197 = vst.msk [vmem:[#allocation2 + $0x64] sm:$0xf] %vm170, 0
        %198 = vst.msk [vmem:[#allocation2 + $0x68] sm:$0x1] %vm173, 0
        %199 = vst.msk [vmem:[#allocation2 + $0x6c] sm:$0xf] %vm170, 0
        %200 = vst.msk [vmem:[#allocation2 + $0x70] sm:$0xf] %vm170, 0
        %201 = vst.msk [vmem:[#allocation2 + $0x74] sm:$0x1] %vm173, 0
        %202 = vst.msk [vmem:[#allocation2 + $0x78] sm:$0xf] %vm170, 0
        %203 = vst.msk [vmem:[#allocation2 + $0x7c] sm:$0xf] %vm170, 0
        %204 = vst.msk [vmem:[#allocation2 + $0x80] sm:$0x1] %vm173, 0
        %205 = vst.msk [vmem:[#allocation2 + $0x84] sm:$0xf] %vm170, 0
        %206 = vst.msk [vmem:[#allocation2 + $0x88] sm:$0xf] %vm170, 0
        %207 = vst.msk [vmem:[#allocation2 + $0x8c] sm:$0x1] %vm173, 0
        %208 = vst.msk [vmem:[#allocation2 + $0x90] sm:$0xf] %vm170, 0
        %209 = vst.msk [vmem:[#allocation2 + $0x94] sm:$0xf] %vm170, 0
        %210 = vst.msk [vmem:[#allocation2 + $0x98] sm:$0x1] %vm173, 0
        %211 = vst.msk [vmem:[#allocation2 + $0x9c] sm:$0xf] %vm170, 0
        %212 = vst.msk [vmem:[#allocation2 + $0xa0] sm:$0xf] %vm170, 0
        %213 = vst.msk [vmem:[#allocation2 + $0xa4] sm:$0x1] %vm173, 0
        %214 = vst.msk [vmem:[#allocation2 + $0xa8] sm:$0xf] %vm170, 0
        %215 = vst.msk [vmem:[#allocation2 + $0xac] sm:$0xf] %vm170, 0
        %216 = vst.msk [vmem:[#allocation2 + $0xb0] sm:$0x1] %vm173, 0
        %217 = vst.msk [vmem:[#allocation2 + $0xb4] sm:$0xf] %vm170, 0
        %218 = vst.msk [vmem:[#allocation2 + $0xb8] sm:$0xf] %vm170, 0
        %219 = vst.msk [vmem:[#allocation2 + $0xbc] sm:$0x1] %vm173, 0
        %220 = vst.msk [vmem:[#allocation2 + $0xc0] sm:$0xf] %vm170, 0
        %221 = vst.msk [vmem:[#allocation2 + $0xc4] sm:$0xf] %vm170, 0
        %222 = vst.msk [vmem:[#allocation2 + $0xc8] sm:$0x1] %vm173, 0
        %223 = vst.msk [vmem:[#allocation2 + $0xcc] sm:$0xf] %vm170, 0
        %224 = vst.msk [vmem:[#allocation2 + $0xd0] sm:$0xf] %vm170, 0
        %225 = vst.msk [vmem:[#allocation2 + $0xd4] sm:$0x1] %vm173, 0
        %v226 = vld [vmem:[%s168] sm:$0xf]
        %v227 = vld [vmem:[%s168 + $0x4] sm:$0xf]
        %v228 = vld [vmem:[%s168 + $0x8] sm:$0xf]
        %v229 = vld [vmem:[%s168 + $0xc] sm:$0xf]
        %v230 = vld [vmem:[%s168 + $0x10] sm:$0xf]
        %v231 = vld [vmem:[%s168 + $0x14] sm:$0xf]
        %v232 = vld [vmem:[%s168 + $0x18] sm:$0xf]
        %v233 = vld [vmem:[%s168 + $0x1c] sm:$0xf]
        %v234 = vld [vmem:[%s168 + $0x20] sm:$0xf]
        %v235 = vld [vmem:[%s168 + $0x24] sm:$0xf]
        %v236 = vld [vmem:[%s168 + $0x28] sm:$0xf]
        %v237 = vld [vmem:[%s168 + $0x2c] sm:$0xf]
        %v238 = vld [vmem:[%s168 + $0x30] sm:$0xf]
        %v239 = vld [vmem:[%s168 + $0x34] sm:$0xf]
        %v240 = vld [vmem:[%s168 + $0x38] sm:$0xf]
        %v241 = vld [vmem:[%s168 + $0x3c] sm:$0xf]
        %v242 = vld [vmem:[%s168 + $0x40] sm:$0xf]
        %v243 = vld [vmem:[%s168 + $0x44] sm:$0xf]
        %v244 = vld [vmem:[%s168 + $0x48] sm:$0xf]
        %v245 = vld [vmem:[%s168 + $0x4c] sm:$0xf]
        %v246 = vld [vmem:[%s168 + $0x50] sm:$0xf]
        %v247 = vld [vmem:[%s168 + $0x54] sm:$0xf]
        %v248 = vld [vmem:[%s168 + $0x58] sm:$0xf]
        %v249 = vld [vmem:[%s168 + $0x5c] sm:$0xf]
        %v250 = vld [vmem:[%s168 + $0x60] sm:$0xf]
        %v251 = vld [vmem:[%s168 + $0x64] sm:$0xf]
        %v252 = vld [vmem:[%s168 + $0x68] sm:$0xf]
        %v253 = vld [vmem:[%s168 + $0x6c] sm:$0xf]
        %v254 = vld [vmem:[%s168 + $0x70] sm:$0xf]
        %v255 = vld [vmem:[%s168 + $0x74] sm:$0xf]
        %v256 = vld [vmem:[%s168 + $0x78] sm:$0xf]
        %v257 = vld [vmem:[%s168 + $0x7c] sm:$0xf]
        %vm258 = vsmask.f32 256
        %vm259 = vsmask.f32 4368
        %vm260 = vmor %vm258, %vm259
        %v262 = vshrl.u32 %v226, 16
        %v264 = vrot.slane %v262, 7
        %v265 = vshll.u32 %v226, 16
        %v267 = vor.u32 %v264, %v265
        %v268 = vrot.slane %v264, 4
        %v270 = vshrl.u32 %v227, 16
        %v272 = vrot.slane %v270, 7
        %v273 = vshll.u32 %v227, 16
        %v275 = vor.u32 %v272, %v273
        %v276 = vsel %vm260, %v268, %v275
        %v277 = vrot.slane %v272, 4
        %v279 = vshrl.u32 %v228, 16
        %v281 = vrot.slane %v279, 7
        %v282 = vshll.u32 %v228, 16
        %v284 = vor.u32 %v281, %v282
        %v285 = vrot.slane %v281, 4
        %v287 = vshrl.u32 %v229, 16
        %v289 = vrot.slane %v287, 7
        %v290 = vshll.u32 %v229, 16
        %v292 = vor.u32 %v289, %v290
        %v293 = vsel %vm260, %v285, %v292
        %v294 = vrot.slane %v289, 4
        %v296 = vshrl.u32 %v230, 16
        %v298 = vrot.slane %v296, 7
        %v299 = vshll.u32 %v230, 16
        %v301 = vor.u32 %v298, %v299
        %v302 = vrot.slane %v298, 4
        %v304 = vshrl.u32 %v231, 16
        %v306 = vrot.slane %v304, 7
        %v307 = vshll.u32 %v231, 16
        %v309 = vor.u32 %v306, %v307
        %v310 = vsel %vm260, %v302, %v309
        %v311 = vrot.slane %v306, 4
        %v313 = vshrl.u32 %v232, 16
        %v315 = vrot.slane %v313, 7
        %v316 = vshll.u32 %v232, 16
        %v318 = vor.u32 %v315, %v316
        %v319 = vrot.slane %v315, 4
        %v321 = vshrl.u32 %v233, 16
        %v323 = vrot.slane %v321, 7
        %v324 = vshll.u32 %v233, 16
        %v326 = vor.u32 %v323, %v324
        %v327 = vsel %vm260, %v319, %v326
        %v328 = vrot.slane %v323, 4
        %v330 = vshrl.u32 %v234, 16
        %v332 = vrot.slane %v330, 7
        %v333 = vshll.u32 %v234, 16
        %v335 = vor.u32 %v332, %v333
        %v336 = vrot.slane %v332, 4
        %v338 = vshrl.u32 %v235, 16
        %v340 = vrot.slane %v338, 7
        %v341 = vshll.u32 %v235, 16
        %v343 = vor.u32 %v340, %v341
        %v344 = vsel %vm260, %v336, %v343
        %v345 = vrot.slane %v340, 4
        %v347 = vshrl.u32 %v236, 16
        %v349 = vrot.slane %v347, 7
        %v350 = vshll.u32 %v236, 16
        %v352 = vor.u32 %v349, %v350
        %v353 = vrot.slane %v349, 4
        %v355 = vshrl.u32 %v237, 16
        %v357 = vrot.slane %v355, 7
        %v358 = vshll.u32 %v237, 16
        %v360 = vor.u32 %v357, %v358
        %v361 = vsel %vm260, %v353, %v360
        %v362 = vrot.slane %v357, 4
        %v364 = vshrl.u32 %v238, 16
        %v366 = vrot.slane %v364, 7
        %v367 = vshll.u32 %v238, 16
        %v369 = vor.u32 %v366, %v367
        %v370 = vrot.slane %v366, 4
        %v372 = vshrl.u32 %v239, 16
        %v374 = vrot.slane %v372, 7
        %v375 = vshll.u32 %v239, 16
        %v377 = vor.u32 %v374, %v375
        %v378 = vsel %vm260, %v370, %v377
        %v379 = vrot.slane %v374, 4
        %v381 = vshrl.u32 %v240, 16
        %v383 = vrot.slane %v381, 7
        %v384 = vshll.u32 %v240, 16
        %v386 = vor.u32 %v383, %v384
        %v387 = vrot.slane %v383, 4
        %v389 = vshrl.u32 %v241, 16
        %v391 = vrot.slane %v389, 7
        %v392 = vshll.u32 %v241, 16
        %v394 = vor.u32 %v391, %v392
        %v395 = vsel %vm260, %v387, %v394
        %v396 = vrot.slane %v391, 4
        %v398 = vshrl.u32 %v242, 16
        %v400 = vrot.slane %v398, 7
        %v401 = vshll.u32 %v242, 16
        %v403 = vor.u32 %v400, %v401
        %v404 = vrot.slane %v400, 4
        %v406 = vshrl.u32 %v243, 16
        %v408 = vrot.slane %v406, 7
        %v409 = vshll.u32 %v243, 16
        %v411 = vor.u32 %v408, %v409
        %v412 = vsel %vm260, %v404, %v411
        %v413 = vrot.slane %v408, 4
        %v415 = vshrl.u32 %v244, 16
        %v417 = vrot.slane %v415, 7
        %v418 = vshll.u32 %v244, 16
        %v420 = vor.u32 %v417, %v418
        %v421 = vrot.slane %v417, 4
        %v423 = vshrl.u32 %v245, 16
        %v425 = vrot.slane %v423, 7
        %v426 = vshll.u32 %v245, 16
        %v428 = vor.u32 %v425, %v426
        %v429 = vsel %vm260, %v421, %v428
        %v430 = vrot.slane %v425, 4
        %v432 = vshrl.u32 %v246, 16
        %v434 = vrot.slane %v432, 7
        %v435 = vshll.u32 %v246, 16
        %v437 = vor.u32 %v434, %v435
        %v438 = vrot.slane %v434, 4
        %v440 = vshrl.u32 %v247, 16
        %v442 = vrot.slane %v440, 7
        %v443 = vshll.u32 %v247, 16
        %v445 = vor.u32 %v442, %v443
        %v446 = vsel %vm260, %v438, %v445
        %v447 = vrot.slane %v442, 4
        %v449 = vshrl.u32 %v248, 16
        %v451 = vrot.slane %v449, 7
        %v452 = vshll.u32 %v248, 16
        %v454 = vor.u32 %v451, %v452
        %v455 = vrot.slane %v451, 4
        %v457 = vshrl.u32 %v249, 16
        %v459 = vrot.slane %v457, 7
        %v460 = vshll.u32 %v249, 16
        %v462 = vor.u32 %v459, %v460
        %v463 = vsel %vm260, %v455, %v462
        %v464 = vrot.slane %v459, 4
        %v466 = vshrl.u32 %v250, 16
        %v468 = vrot.slane %v466, 7
        %v469 = vshll.u32 %v250, 16
        %v471 = vor.u32 %v468, %v469
        %v472 = vrot.slane %v468, 4
        %v474 = vshrl.u32 %v251, 16
        %v476 = vrot.slane %v474, 7
        %v477 = vshll.u32 %v251, 16
        %v479 = vor.u32 %v476, %v477
        %v480 = vsel %vm260, %v472, %v479
        %v481 = vrot.slane %v476, 4
        %v483 = vshrl.u32 %v252, 16
        %v485 = vrot.slane %v483, 7
        %v486 = vshll.u32 %v252, 16
        %v488 = vor.u32 %v485, %v486
        %v489 = vrot.slane %v485, 4
        %v491 = vshrl.u32 %v253, 16
        %v493 = vrot.slane %v491, 7
        %v494 = vshll.u32 %v253, 16
        %v496 = vor.u32 %v493, %v494
        %v497 = vsel %vm260, %v489, %v496
        %v498 = vrot.slane %v493, 4
        %v500 = vshrl.u32 %v254, 16
        %v502 = vrot.slane %v500, 7
        %v503 = vshll.u32 %v254, 16
        %v505 = vor.u32 %v502, %v503
        %v506 = vrot.slane %v502, 4
        %v508 = vshrl.u32 %v255, 16
        %v510 = vrot.slane %v508, 7
        %v511 = vshll.u32 %v255, 16
        %v513 = vor.u32 %v510, %v511
        %v514 = vsel %vm260, %v506, %v513
        %v515 = vrot.slane %v510, 4
        %v517 = vshrl.u32 %v256, 16
        %v519 = vrot.slane %v517, 7
        %v520 = vshll.u32 %v256, 16
        %v522 = vor.u32 %v519, %v520
        %v523 = vrot.slane %v519, 4
        %v525 = vshrl.u32 %v257, 16
        %v527 = vrot.slane %v525, 7
        %v528 = vshll.u32 %v257, 16
        %v530 = vor.u32 %v527, %v528
        %v531 = vsel %vm260, %v523, %v530
        %v532 = vrot.slane %v527, 4
        %s581 = scalar_lea.vmem [#allocation2], 12
        %vm582 = vcmask 519168
        %vm583 = vsmask.f32 7938
        %vm584 = vmand %vm582, %vm583
        %v585 = vld [vmem:[%s581] sm:$0xf]
        %v586 = vsel %vm584, %v267, %v585
        %587 = vst [vmem:[%s581] sm:$0xf] %v586
        %588 = vst.msk [vmem:[%s581 + $0x4] sm:$0xf] %vm170, %v276
        %vm589 = vcmask 516096
        %vm590 = vmand %vm589, %vm258
        %v591 = vld [vmem:[%s581 + $0x8] sm:$0x1]
        %v592 = vsel %vm590, %v277, %v591
        %593 = vst [vmem:[%s581 + $0x8] sm:$0x1] %v592
        %v594 = vld [vmem:[%s581 + $0xc] sm:$0xf]
        %v595 = vsel %vm584, %v284, %v594
        %596 = vst [vmem:[%s581 + $0xc] sm:$0xf] %v595
        %597 = vst.msk [vmem:[%s581 + $0x10] sm:$0xf] %vm170, %v293
        %v598 = vld [vmem:[%s581 + $0x14] sm:$0x1]
        %v599 = vsel %vm590, %v294, %v598
        %600 = vst [vmem:[%s581 + $0x14] sm:$0x1] %v599
        %v601 = vld [vmem:[%s581 + $0x18] sm:$0xf]
        %v602 = vsel %vm584, %v301, %v601
        %603 = vst [vmem:[%s581 + $0x18] sm:$0xf] %v602
        %604 = vst.msk [vmem:[%s581 + $0x1c] sm:$0xf] %vm170, %v310
        %v605 = vld [vmem:[%s581 + $0x20] sm:$0x1]
        %v606 = vsel %vm590, %v311, %v605
        %607 = vst [vmem:[%s581 + $0x20] sm:$0x1] %v606
        %v608 = vld [vmem:[%s581 + $0x24] sm:$0xf]
        %v609 = vsel %vm584, %v318, %v608
        %610 = vst [vmem:[%s581 + $0x24] sm:$0xf] %v609
        %611 = vst.msk [vmem:[%s581 + $0x28] sm:$0xf] %vm170, %v327
        %v612 = vld [vmem:[%s581 + $0x2c] sm:$0x1]
        %v613 = vsel %vm590, %v328, %v612
        %614 = vst [vmem:[%s581 + $0x2c] sm:$0x1] %v613
        %v615 = vld [vmem:[%s581 + $0x30] sm:$0xf]
        %v616 = vsel %vm584, %v335, %v615
        %617 = vst [vmem:[%s581 + $0x30] sm:$0xf] %v616
        %618 = vst.msk [vmem:[%s581 + $0x34] sm:$0xf] %vm170, %v344
        %v619 = vld [vmem:[%s581 + $0x38] sm:$0x1]
        %v620 = vsel %vm590, %v345, %v619
        %621 = vst [vmem:[%s581 + $0x38] sm:$0x1] %v620
        %v622 = vld [vmem:[%s581 + $0x3c] sm:$0xf]
        %v623 = vsel %vm584, %v352, %v622
        %624 = vst [vmem:[%s581 + $0x3c] sm:$0xf] %v623
        %625 = vst.msk [vmem:[%s581 + $0x40] sm:$0xf] %vm170, %v361
        %v626 = vld [vmem:[%s581 + $0x44] sm:$0x1]
        %v627 = vsel %vm590, %v362, %v626
        %628 = vst [vmem:[%s581 + $0x44] sm:$0x1] %v627
        %v629 = vld [vmem:[%s581 + $0x48] sm:$0xf]
        %v630 = vsel %vm584, %v369, %v629
        %631 = vst [vmem:[%s581 + $0x48] sm:$0xf] %v630
        %632 = vst.msk [vmem:[%s581 + $0x4c] sm:$0xf] %vm170, %v378
        %v633 = vld [vmem:[%s581 + $0x50] sm:$0x1]
        %v634 = vsel %vm590, %v379, %v633
        %635 = vst [vmem:[%s581 + $0x50] sm:$0x1] %v634
        %v636 = vld [vmem:[%s581 + $0x54] sm:$0xf]
        %v637 = vsel %vm584, %v386, %v636
        %638 = vst [vmem:[%s581 + $0x54] sm:$0xf] %v637
        %639 = vst.msk [vmem:[%s581 + $0x58] sm:$0xf] %vm170, %v395
        %v640 = vld [vmem:[%s581 + $0x5c] sm:$0x1]
        %v641 = vsel %vm590, %v396, %v640
        %642 = vst [vmem:[%s581 + $0x5c] sm:$0x1] %v641
        %v643 = vld [vmem:[%s581 + $0x60] sm:$0xf]
        %v644 = vsel %vm584, %v403, %v643
        %645 = vst [vmem:[%s581 + $0x60] sm:$0xf] %v644
        %646 = vst.msk [vmem:[%s581 + $0x64] sm:$0xf] %vm170, %v412
        %v647 = vld [vmem:[%s581 + $0x68] sm:$0x1]
        %v648 = vsel %vm590, %v413, %v647
        %649 = vst [vmem:[%s581 + $0x68] sm:$0x1] %v648
        %v650 = vld [vmem:[%s581 + $0x6c] sm:$0xf]
        %v651 = vsel %vm584, %v420, %v650
        %652 = vst [vmem:[%s581 + $0x6c] sm:$0xf] %v651
        %653 = vst.msk [vmem:[%s581 + $0x70] sm:$0xf] %vm170, %v429
        %v654 = vld [vmem:[%s581 + $0x74] sm:$0x1]
        %v655 = vsel %vm590, %v430, %v654
        %656 = vst [vmem:[%s581 + $0x74] sm:$0x1] %v655
        %v657 = vld [vmem:[%s581 + $0x78] sm:$0xf]
        %v658 = vsel %vm584, %v437, %v657
        %659 = vst [vmem:[%s581 + $0x78] sm:$0xf] %v658
        %660 = vst.msk [vmem:[%s581 + $0x7c] sm:$0xf] %vm170, %v446
        %v661 = vld [vmem:[%s581 + $0x80] sm:$0x1]
        %v662 = vsel %vm590, %v447, %v661
        %663 = vst [vmem:[%s581 + $0x80] sm:$0x1] %v662
        %v664 = vld [vmem:[%s581 + $0x84] sm:$0xf]
        %v665 = vsel %vm584, %v454, %v664
        %666 = vst [vmem:[%s581 + $0x84] sm:$0xf] %v665
        %667 = vst.msk [vmem:[%s581 + $0x88] sm:$0xf] %vm170, %v463
        %v668 = vld [vmem:[%s581 + $0x8c] sm:$0x1]
        %v669 = vsel %vm590, %v464, %v668
        %670 = vst [vmem:[%s581 + $0x8c] sm:$0x1] %v669
        %v671 = vld [vmem:[%s581 + $0x90] sm:$0xf]
        %v672 = vsel %vm584, %v471, %v671
        %673 = vst [vmem:[%s581 + $0x90] sm:$0xf] %v672
        %674 = vst.msk [vmem:[%s581 + $0x94] sm:$0xf] %vm170, %v480
        %v675 = vld [vmem:[%s581 + $0x98] sm:$0x1]
        %v676 = vsel %vm590, %v481, %v675
        %677 = vst [vmem:[%s581 + $0x98] sm:$0x1] %v676
        %v678 = vld [vmem:[%s581 + $0x9c] sm:$0xf]
        %v679 = vsel %vm584, %v488, %v678
        %680 = vst [vmem:[%s581 + $0x9c] sm:$0xf] %v679
        %681 = vst.msk [vmem:[%s581 + $0xa0] sm:$0xf] %vm170, %v497
        %v682 = vld [vmem:[%s581 + $0xa4] sm:$0x1]
        %v683 = vsel %vm590, %v498, %v682
        %684 = vst [vmem:[%s581 + $0xa4] sm:$0x1] %v683
        %v685 = vld [vmem:[%s581 + $0xa8] sm:$0xf]
        %v686 = vsel %vm584, %v505, %v685
        %687 = vst [vmem:[%s581 + $0xa8] sm:$0xf] %v686
        %688 = vst.msk [vmem:[%s581 + $0xac] sm:$0xf] %vm170, %v514
        %v689 = vld [vmem:[%s581 + $0xb0] sm:$0x1]
        %v690 = vsel %vm590, %v515, %v689
        %691 = vst [vmem:[%s581 + $0xb0] sm:$0x1] %v690
        %v692 = vld [vmem:[%s581 + $0xb4] sm:$0xf]
        %v693 = vsel %vm584, %v522, %v692
        %694 = vst [vmem:[%s581 + $0xb4] sm:$0xf] %v693
        %695 = vst.msk [vmem:[%s581 + $0xb8] sm:$0xf] %vm170, %v531
        %v696 = vld [vmem:[%s581 + $0xbc] sm:$0x1]
        %v697 = vsel %vm590, %v532, %v696
        %698 = vst [vmem:[%s581 + $0xbc] sm:$0x1] %v697
        %v699 = vld [vmem:[#allocation2] sm:$0xf]
        %v700 = vld [vmem:[#allocation2 + $0x4] sm:$0xf]
        %v701 = vld [vmem:[#allocation2 + $0xc] sm:$0xf]
        %v702 = vld [vmem:[#allocation2 + $0x10] sm:$0xf]
        %v703 = vld [vmem:[#allocation2 + $0x18] sm:$0xf]
        %v704 = vld [vmem:[#allocation2 + $0x1c] sm:$0xf]
        %v705 = vld [vmem:[#allocation2 + $0x24] sm:$0xf]
        %v706 = vld [vmem:[#allocation2 + $0x28] sm:$0xf]
        %v707 = vld [vmem:[#allocation2 + $0x30] sm:$0xf]
        %v708 = vld [vmem:[#allocation2 + $0x34] sm:$0xf]
        %v709 = vld [vmem:[#allocation2 + $0x3c] sm:$0xf]
        %v710 = vld [vmem:[#allocation2 + $0x40] sm:$0xf]
        %v711 = vld [vmem:[#allocation2 + $0x48] sm:$0xf]
        %v712 = vld [vmem:[#allocation2 + $0x4c] sm:$0xf]
        %v713 = vld [vmem:[#allocation2 + $0x54] sm:$0xf]
        %v714 = vld [vmem:[#allocation2 + $0x58] sm:$0xf]
        %v715 = vld [vmem:[#allocation2 + $0x60] sm:$0xf]
        %v716 = vld [vmem:[#allocation2 + $0x64] sm:$0xf]
        %v717 = vld [vmem:[#allocation2 + $0x6c] sm:$0xf]
        %v718 = vld [vmem:[#allocation2 + $0x70] sm:$0xf]
        %v719 = vld [vmem:[#allocation2 + $0x78] sm:$0xf]
        %v720 = vld [vmem:[#allocation2 + $0x7c] sm:$0xf]
        %v721 = vld [vmem:[#allocation2 + $0x84] sm:$0xf]
        %v722 = vld [vmem:[#allocation2 + $0x88] sm:$0xf]
        %v723 = vld [vmem:[#allocation2 + $0x90] sm:$0xf]
        %v724 = vld [vmem:[#allocation2 + $0x94] sm:$0xf]
        %v725 = vld [vmem:[#allocation2 + $0x9c] sm:$0xf]
        %v726 = vld [vmem:[#allocation2 + $0xa0] sm:$0xf]
        %v727 = vld [vmem:[#allocation2 + $0xa8] sm:$0xf]
        %v728 = vld [vmem:[#allocation2 + $0xac] sm:$0xf]
        %v729 = vld [vmem:[#allocation2 + $0xb4] sm:$0xf]
        %v730 = vld [vmem:[#allocation2 + $0xb8] sm:$0xf]
        %v731 = vld [vmem:[#allocation2 + $0x8] sm:$0x1]
        %v732 = vld [vmem:[#allocation2 + $0x14] sm:$0x1]
        %v733 = vld [vmem:[#allocation2 + $0x20] sm:$0x1]
        %v734 = vld [vmem:[#allocation2 + $0x2c] sm:$0x1]
        %v735 = vld [vmem:[#allocation2 + $0x38] sm:$0x1]
        %v736 = vld [vmem:[#allocation2 + $0x44] sm:$0x1]
        %v737 = vld [vmem:[#allocation2 + $0x50] sm:$0x1]
        %v738 = vld [vmem:[#allocation2 + $0x5c] sm:$0x1]
        %v739 = vld [vmem:[#allocation2 + $0x68] sm:$0x1]
        %v740 = vld [vmem:[#allocation2 + $0x74] sm:$0x1]
        %v741 = vld [vmem:[#allocation2 + $0x80] sm:$0x1]
        %v742 = vld [vmem:[#allocation2 + $0x8c] sm:$0x1]
        %v743 = vld [vmem:[#allocation2 + $0x98] sm:$0x1]
        %v744 = vld [vmem:[#allocation2 + $0xa4] sm:$0x1]
        %v745 = vld [vmem:[#allocation2 + $0xb0] sm:$0x1]
        %v746 = vld [vmem:[#allocation2 + $0xbc] sm:$0x1]
        %vm747 = vsmask.f32 3328
        %vm748 = vsmask.f32 7440
        %vm749 = vmor %vm747, %vm748
        %v751 = vshrl.u32 %v699, 16
        %v753 = vrot.slane %v751, 4
        %v754 = vshll.u32 %v699, 16
        %v756 = vrot.slane %v754, 5
        %v757 = vor.u32 %v753, %v756
        %v758 = vrot.slane %v757, 4
        %v760 = vshll.u32 %v700, 16
        %v762 = vrot.slane %v760, 5
        %v763 = vsel %vm749, %v758, %v762
        %v764 = vshrl.u32 %v700, 16
        %v766 = vrot.slane %v764, 4
        %v767 = vor.u32 %v766, %v762
        %v768 = vrot.slane %v767, 4
        %v770 = vshll.u32 %v731, 16
        %v772 = vrot.slane %v770, 5
        %v773 = vsel %vm749, %v768, %v772
        %v775 = vshrl.u32 %v701, 16
        %v777 = vrot.slane %v775, 4
        %v778 = vshll.u32 %v701, 16
        %v780 = vrot.slane %v778, 5
        %v781 = vor.u32 %v777, %v780
        %v782 = vrot.slane %v781, 4
        %v784 = vshll.u32 %v702, 16
        %v786 = vrot.slane %v784, 5
        %v787 = vsel %vm749, %v782, %v786
        %v788 = vshrl.u32 %v702, 16
        %v790 = vrot.slane %v788, 4
        %v791 = vor.u32 %v790, %v786
        %v792 = vrot.slane %v791, 4
        %v794 = vshll.u32 %v732, 16
        %v796 = vrot.slane %v794, 5
        %v797 = vsel %vm749, %v792, %v796
        %v799 = vshrl.u32 %v703, 16
        %v801 = vrot.slane %v799, 4
        %v802 = vshll.u32 %v703, 16
        %v804 = vrot.slane %v802, 5
        %v805 = vor.u32 %v801, %v804
        %v806 = vrot.slane %v805, 4
        %v808 = vshll.u32 %v704, 16
        %v810 = vrot.slane %v808, 5
        %v811 = vsel %vm749, %v806, %v810
        %v812 = vshrl.u32 %v704, 16
        %v814 = vrot.slane %v812, 4
        %v815 = vor.u32 %v814, %v810
        %v816 = vrot.slane %v815, 4
        %v818 = vshll.u32 %v733, 16
        %v820 = vrot.slane %v818, 5
        %v821 = vsel %vm749, %v816, %v820
        %v823 = vshrl.u32 %v705, 16
        %v825 = vrot.slane %v823, 4
        %v826 = vshll.u32 %v705, 16
        %v828 = vrot.slane %v826, 5
        %v829 = vor.u32 %v825, %v828
        %v830 = vrot.slane %v829, 4
        %v832 = vshll.u32 %v706, 16
        %v834 = vrot.slane %v832, 5
        %v835 = vsel %vm749, %v830, %v834
        %v836 = vshrl.u32 %v706, 16
        %v838 = vrot.slane %v836, 4
        %v839 = vor.u32 %v838, %v834
        %v840 = vrot.slane %v839, 4
        %v842 = vshll.u32 %v734, 16
        %v844 = vrot.slane %v842, 5
        %v845 = vsel %vm749, %v840, %v844
        %v847 = vshrl.u32 %v707, 16
        %v849 = vrot.slane %v847, 4
        %v850 = vshll.u32 %v707, 16
        %v852 = vrot.slane %v850, 5
        %v853 = vor.u32 %v849, %v852
        %v854 = vrot.slane %v853, 4
        %v856 = vshll.u32 %v708, 16
        %v858 = vrot.slane %v856, 5
        %v859 = vsel %vm749, %v854, %v858
        %v860 = vshrl.u32 %v708, 16
        %v862 = vrot.slane %v860, 4
        %v863 = vor.u32 %v862, %v858
        %v864 = vrot.slane %v863, 4
        %v866 = vshll.u32 %v735, 16
        %v868 = vrot.slane %v866, 5
        %v869 = vsel %vm749, %v864, %v868
        %v871 = vshrl.u32 %v709, 16
        %v873 = vrot.slane %v871, 4
        %v874 = vshll.u32 %v709, 16
        %v876 = vrot.slane %v874, 5
        %v877 = vor.u32 %v873, %v876
        %v878 = vrot.slane %v877, 4
        %v880 = vshll.u32 %v710, 16
        %v882 = vrot.slane %v880, 5
        %v883 = vsel %vm749, %v878, %v882
        %v884 = vshrl.u32 %v710, 16
        %v886 = vrot.slane %v884, 4
        %v887 = vor.u32 %v886, %v882
        %v888 = vrot.slane %v887, 4
        %v890 = vshll.u32 %v736, 16
        %v892 = vrot.slane %v890, 5
        %v893 = vsel %vm749, %v888, %v892
        %v895 = vshrl.u32 %v711, 16
        %v897 = vrot.slane %v895, 4
        %v898 = vshll.u32 %v711, 16
        %v900 = vrot.slane %v898, 5
        %v901 = vor.u32 %v897, %v900
        %v902 = vrot.slane %v901, 4
        %v904 = vshll.u32 %v712, 16
        %v906 = vrot.slane %v904, 5
        %v907 = vsel %vm749, %v902, %v906
        %v908 = vshrl.u32 %v712, 16
        %v910 = vrot.slane %v908, 4
        %v911 = vor.u32 %v910, %v906
        %v912 = vrot.slane %v911, 4
        %v914 = vshll.u32 %v737, 16
        %v916 = vrot.slane %v914, 5
        %v917 = vsel %vm749, %v912, %v916
        %v919 = vshrl.u32 %v713, 16
        %v921 = vrot.slane %v919, 4
        %v922 = vshll.u32 %v713, 16
        %v924 = vrot.slane %v922, 5
        %v925 = vor.u32 %v921, %v924
        %v926 = vrot.slane %v925, 4
        %v928 = vshll.u32 %v714, 16
        %v930 = vrot.slane %v928, 5
        %v931 = vsel %vm749, %v926, %v930
        %v932 = vshrl.u32 %v714, 16
        %v934 = vrot.slane %v932, 4
        %v935 = vor.u32 %v934, %v930
        %v936 = vrot.slane %v935, 4
        %v938 = vshll.u32 %v738, 16
        %v940 = vrot.slane %v938, 5
        %v941 = vsel %vm749, %v936, %v940
        %v943 = vshrl.u32 %v715, 16
        %v945 = vrot.slane %v943, 4
        %v946 = vshll.u32 %v715, 16
        %v948 = vrot.slane %v946, 5
        %v949 = vor.u32 %v945, %v948
        %v950 = vrot.slane %v949, 4
        %v952 = vshll.u32 %v716, 16
        %v954 = vrot.slane %v952, 5
        %v955 = vsel %vm749, %v950, %v954
        %v956 = vshrl.u32 %v716, 16
        %v958 = vrot.slane %v956, 4
        %v959 = vor.u32 %v958, %v954
        %v960 = vrot.slane %v959, 4
        %v962 = vshll.u32 %v739, 16
        %v964 = vrot.slane %v962, 5
        %v965 = vsel %vm749, %v960, %v964
        %v967 = vshrl.u32 %v717, 16
        %v969 = vrot.slane %v967, 4
        %v970 = vshll.u32 %v717, 16
        %v972 = vrot.slane %v970, 5
        %v973 = vor.u32 %v969, %v972
        %v974 = vrot.slane %v973, 4
        %v976 = vshll.u32 %v718, 16
        %v978 = vrot.slane %v976, 5
        %v979 = vsel %vm749, %v974, %v978
        %v980 = vshrl.u32 %v718, 16
        %v982 = vrot.slane %v980, 4
        %v983 = vor.u32 %v982, %v978
        %v984 = vrot.slane %v983, 4
        %v986 = vshll.u32 %v740, 16
        %v988 = vrot.slane %v986, 5
        %v989 = vsel %vm749, %v984, %v988
        %v991 = vshrl.u32 %v719, 16
        %v993 = vrot.slane %v991, 4
        %v994 = vshll.u32 %v719, 16
        %v996 = vrot.slane %v994, 5
        %v997 = vor.u32 %v993, %v996
        %v998 = vrot.slane %v997, 4
        %v1000 = vshll.u32 %v720, 16
        %v1002 = vrot.slane %v1000, 5
        %v1003 = vsel %vm749, %v998, %v1002
        %v1004 = vshrl.u32 %v720, 16
        %v1006 = vrot.slane %v1004, 4
        %v1007 = vor.u32 %v1006, %v1002
        %v1008 = vrot.slane %v1007, 4
        %v1010 = vshll.u32 %v741, 16
        %v1012 = vrot.slane %v1010, 5
        %v1013 = vsel %vm749, %v1008, %v1012
        %v1015 = vshrl.u32 %v721, 16
        %v1017 = vrot.slane %v1015, 4
        %v1018 = vshll.u32 %v721, 16
        %v1020 = vrot.slane %v1018, 5
        %v1021 = vor.u32 %v1017, %v1020
        %v1022 = vrot.slane %v1021, 4
        %v1024 = vshll.u32 %v722, 16
        %v1026 = vrot.slane %v1024, 5
        %v1027 = vsel %vm749, %v1022, %v1026
        %v1028 = vshrl.u32 %v722, 16
        %v1030 = vrot.slane %v1028, 4
        %v1031 = vor.u32 %v1030, %v1026
        %v1032 = vrot.slane %v1031, 4
        %v1034 = vshll.u32 %v742, 16
        %v1036 = vrot.slane %v1034, 5
        %v1037 = vsel %vm749, %v1032, %v1036
        %v1039 = vshrl.u32 %v723, 16
        %v1041 = vrot.slane %v1039, 4
        %v1042 = vshll.u32 %v723, 16
        %v1044 = vrot.slane %v1042, 5
        %v1045 = vor.u32 %v1041, %v1044
        %v1046 = vrot.slane %v1045, 4
        %v1048 = vshll.u32 %v724, 16
        %v1050 = vrot.slane %v1048, 5
        %v1051 = vsel %vm749, %v1046, %v1050
        %v1052 = vshrl.u32 %v724, 16
        %v1054 = vrot.slane %v1052, 4
        %v1055 = vor.u32 %v1054, %v1050
        %v1056 = vrot.slane %v1055, 4
        %v1058 = vshll.u32 %v743, 16
        %v1060 = vrot.slane %v1058, 5
        %v1061 = vsel %vm749, %v1056, %v1060
        %v1063 = vshrl.u32 %v725, 16
        %v1065 = vrot.slane %v1063, 4
        %v1066 = vshll.u32 %v725, 16
        %v1068 = vrot.slane %v1066, 5
        %v1069 = vor.u32 %v1065, %v1068
        %v1070 = vrot.slane %v1069, 4
        %v1072 = vshll.u32 %v726, 16
        %v1074 = vrot.slane %v1072, 5
        %v1075 = vsel %vm749, %v1070, %v1074
        %v1076 = vshrl.u32 %v726, 16
        %v1078 = vrot.slane %v1076, 4
        %v1079 = vor.u32 %v1078, %v1074
        %v1080 = vrot.slane %v1079, 4
        %v1082 = vshll.u32 %v744, 16
        %v1084 = vrot.slane %v1082, 5
        %v1085 = vsel %vm749, %v1080, %v1084
        %v1087 = vshrl.u32 %v727, 16
        %v1089 = vrot.slane %v1087, 4
        %v1090 = vshll.u32 %v727, 16
        %v1092 = vrot.slane %v1090, 5
        %v1093 = vor.u32 %v1089, %v1092
        %v1094 = vrot.slane %v1093, 4
        %v1096 = vshll.u32 %v728, 16
        %v1098 = vrot.slane %v1096, 5
        %v1099 = vsel %vm749, %v1094, %v1098
        %v1100 = vshrl.u32 %v728, 16
        %v1102 = vrot.slane %v1100, 4
        %v1103 = vor.u32 %v1102, %v1098
        %v1104 = vrot.slane %v1103, 4
        %v1106 = vshll.u32 %v745, 16
        %v1108 = vrot.slane %v1106, 5
        %v1109 = vsel %vm749, %v1104, %v1108
        %v1111 = vshrl.u32 %v729, 16
        %v1113 = vrot.slane %v1111, 4
        %v1114 = vshll.u32 %v729, 16
        %v1116 = vrot.slane %v1114, 5
        %v1117 = vor.u32 %v1113, %v1116
        %v1118 = vrot.slane %v1117, 4
        %v1120 = vshll.u32 %v730, 16
        %v1122 = vrot.slane %v1120, 5
        %v1123 = vsel %vm749, %v1118, %v1122
        %v1124 = vshrl.u32 %v730, 16
        %v1126 = vrot.slane %v1124, 4
        %v1127 = vor.u32 %v1126, %v1122
        %v1128 = vrot.slane %v1127, 4
        %v1130 = vshll.u32 %v746, 16
        %v1132 = vrot.slane %v1130, 5
        %v1133 = vsel %vm749, %v1128, %v1132
        %v1134 = vld [vmem:[#allocation2] sm:$0xe]
        %v1135 = vld [vmem:[#allocation2 + $0xc] sm:$0xe]
        %v1136 = vld [vmem:[#allocation2 + $0x18] sm:$0xe]
        %v1137 = vld [vmem:[#allocation2 + $0x24] sm:$0xe]
        %v1138 = vld [vmem:[#allocation2 + $0x30] sm:$0xe]
        %v1139 = vld [vmem:[#allocation2 + $0x3c] sm:$0xe]
        %v1140 = vld [vmem:[#allocation2 + $0x48] sm:$0xe]
        %v1141 = vld [vmem:[#allocation2 + $0x54] sm:$0xe]
        %v1142 = vld [vmem:[#allocation2 + $0x60] sm:$0xe]
        %v1143 = vld [vmem:[#allocation2 + $0x6c] sm:$0xe]
        %v1144 = vld [vmem:[#allocation2 + $0x78] sm:$0xe]
        %v1145 = vld [vmem:[#allocation2 + $0x84] sm:$0xe]
        %v1146 = vld [vmem:[#allocation2 + $0x90] sm:$0xe]
        %v1147 = vld [vmem:[#allocation2 + $0x9c] sm:$0xe]
        %v1148 = vld [vmem:[#allocation2 + $0xa8] sm:$0xe]
        %v1149 = vld [vmem:[#allocation2 + $0xb4] sm:$0xe]
        %vm1198 = vcmask 1042432
        %vm1199 = vcmask 1046532
        %vm1200 = vmor %vm1198, %vm1199
        %v1201 = vrot.slane %v1134, 5
        %v1202 = vrot.slane %v1201, 4
        %v1203 = vrot.slane %v700, 5
        %v1204 = vsel %vm1200, %v1202, %v1203
        %v1205 = vrot.slane %v1203, 4
        %v1206 = vrot.slane %v731, 5
        %v1207 = vsel %vm1200, %v1205, %v1206
        %v1208 = vrot.slane %v1135, 5
        %v1209 = vrot.slane %v1208, 4
        %v1210 = vrot.slane %v702, 5
        %v1211 = vsel %vm1200, %v1209, %v1210
        %v1212 = vrot.slane %v1210, 4
        %v1213 = vrot.slane %v732, 5
        %v1214 = vsel %vm1200, %v1212, %v1213
        %v1215 = vrot.slane %v1136, 5
        %v1216 = vrot.slane %v1215, 4
        %v1217 = vrot.slane %v704, 5
        %v1218 = vsel %vm1200, %v1216, %v1217
        %v1219 = vrot.slane %v1217, 4
        %v1220 = vrot.slane %v733, 5
        %v1221 = vsel %vm1200, %v1219, %v1220
        %v1222 = vrot.slane %v1137, 5
        %v1223 = vrot.slane %v1222, 4
        %v1224 = vrot.slane %v706, 5
        %v1225 = vsel %vm1200, %v1223, %v1224
        %v1226 = vrot.slane %v1224, 4
        %v1227 = vrot.slane %v734, 5
        %v1228 = vsel %vm1200, %v1226, %v1227
        %v1229 = vrot.slane %v1138, 5
        %v1230 = vrot.slane %v1229, 4
        %v1231 = vrot.slane %v708, 5
        %v1232 = vsel %vm1200, %v1230, %v1231
        %v1233 = vrot.slane %v1231, 4
        %v1234 = vrot.slane %v735, 5
        %v1235 = vsel %vm1200, %v1233, %v1234
        %v1236 = vrot.slane %v1139, 5
        %v1237 = vrot.slane %v1236, 4
        %v1238 = vrot.slane %v710, 5
        %v1239 = vsel %vm1200, %v1237, %v1238
        %v1240 = vrot.slane %v1238, 4
        %v1241 = vrot.slane %v736, 5
        %v1242 = vsel %vm1200, %v1240, %v1241
        %v1243 = vrot.slane %v1140, 5
        %v1244 = vrot.slane %v1243, 4
        %v1245 = vrot.slane %v712, 5
        %v1246 = vsel %vm1200, %v1244, %v1245
        %v1247 = vrot.slane %v1245, 4
        %v1248 = vrot.slane %v737, 5
        %v1249 = vsel %vm1200, %v1247, %v1248
        %v1250 = vrot.slane %v1141, 5
        %v1251 = vrot.slane %v1250, 4
        %v1252 = vrot.slane %v714, 5
        %v1253 = vsel %vm1200, %v1251, %v1252
        %v1254 = vrot.slane %v1252, 4
        %v1255 = vrot.slane %v738, 5
        %v1256 = vsel %vm1200, %v1254, %v1255
        %v1257 = vrot.slane %v1142, 5
        %v1258 = vrot.slane %v1257, 4
        %v1259 = vrot.slane %v716, 5
        %v1260 = vsel %vm1200, %v1258, %v1259
        %v1261 = vrot.slane %v1259, 4
        %v1262 = vrot.slane %v739, 5
        %v1263 = vsel %vm1200, %v1261, %v1262
        %v1264 = vrot.slane %v1143, 5
        %v1265 = vrot.slane %v1264, 4
        %v1266 = vrot.slane %v718, 5
        %v1267 = vsel %vm1200, %v1265, %v1266
        %v1268 = vrot.slane %v1266, 4
        %v1269 = vrot.slane %v740, 5
        %v1270 = vsel %vm1200, %v1268, %v1269
        %v1271 = vrot.slane %v1144, 5
        %v1272 = vrot.slane %v1271, 4
        %v1273 = vrot.slane %v720, 5
        %v1274 = vsel %vm1200, %v1272, %v1273
        %v1275 = vrot.slane %v1273, 4
        %v1276 = vrot.slane %v741, 5
        %v1277 = vsel %vm1200, %v1275, %v1276
        %v1278 = vrot.slane %v1145, 5
        %v1279 = vrot.slane %v1278, 4
        %v1280 = vrot.slane %v722, 5
        %v1281 = vsel %vm1200, %v1279, %v1280
        %v1282 = vrot.slane %v1280, 4
        %v1283 = vrot.slane %v742, 5
        %v1284 = vsel %vm1200, %v1282, %v1283
        %v1285 = vrot.slane %v1146, 5
        %v1286 = vrot.slane %v1285, 4
        %v1287 = vrot.slane %v724, 5
        %v1288 = vsel %vm1200, %v1286, %v1287
        %v1289 = vrot.slane %v1287, 4
        %v1290 = vrot.slane %v743, 5
        %v1291 = vsel %vm1200, %v1289, %v1290
        %v1292 = vrot.slane %v1147, 5
        %v1293 = vrot.slane %v1292, 4
        %v1294 = vrot.slane %v726, 5
        %v1295 = vsel %vm1200, %v1293, %v1294
        %v1296 = vrot.slane %v1294, 4
        %v1297 = vrot.slane %v744, 5
        %v1298 = vsel %vm1200, %v1296, %v1297
        %v1299 = vrot.slane %v1148, 5
        %v1300 = vrot.slane %v1299, 4
        %v1301 = vrot.slane %v728, 5
        %v1302 = vsel %vm1200, %v1300, %v1301
        %v1303 = vrot.slane %v1301, 4
        %v1304 = vrot.slane %v745, 5
        %v1305 = vsel %vm1200, %v1303, %v1304
        %v1306 = vrot.slane %v1149, 5
        %v1307 = vrot.slane %v1306, 4
        %v1308 = vrot.slane %v730, 5
        %v1309 = vsel %vm1200, %v1307, %v1308
        %v1310 = vrot.slane %v1308, 4
        %v1311 = vrot.slane %v746, 5
        %v1312 = vsel %vm1200, %v1310, %v1311
        %v1313 = vld [vmem:[%s581] sm:$0xf]
        %v1314 = vld [vmem:[%s581 + $0x4] sm:$0xf]
        %v1315 = vld [vmem:[%s581 + $0xc] sm:$0xf]
        %v1316 = vld [vmem:[%s581 + $0x10] sm:$0xf]
        %v1317 = vld [vmem:[%s581 + $0x18] sm:$0xf]
        %v1318 = vld [vmem:[%s581 + $0x1c] sm:$0xf]
        %v1319 = vld [vmem:[%s581 + $0x24] sm:$0xf]
        %v1320 = vld [vmem:[%s581 + $0x28] sm:$0xf]
        %v1321 = vld [vmem:[%s581 + $0x30] sm:$0xf]
        %v1322 = vld [vmem:[%s581 + $0x34] sm:$0xf]
        %v1323 = vld [vmem:[%s581 + $0x3c] sm:$0xf]
        %v1324 = vld [vmem:[%s581 + $0x40] sm:$0xf]
        %v1325 = vld [vmem:[%s581 + $0x48] sm:$0xf]
        %v1326 = vld [vmem:[%s581 + $0x4c] sm:$0xf]
        %v1327 = vld [vmem:[%s581 + $0x54] sm:$0xf]
        %v1328 = vld [vmem:[%s581 + $0x58] sm:$0xf]
        %v1329 = vld [vmem:[%s581 + $0x60] sm:$0xf]
        %v1330 = vld [vmem:[%s581 + $0x64] sm:$0xf]
        %v1331 = vld [vmem:[%s581 + $0x6c] sm:$0xf]
        %v1332 = vld [vmem:[%s581 + $0x70] sm:$0xf]
        %v1333 = vld [vmem:[%s581 + $0x78] sm:$0xf]
        %v1334 = vld [vmem:[%s581 + $0x7c] sm:$0xf]
        %v1335 = vld [vmem:[%s581 + $0x84] sm:$0xf]
        %v1336 = vld [vmem:[%s581 + $0x88] sm:$0xf]
        %v1337 = vld [vmem:[%s581 + $0x90] sm:$0xf]
        %v1338 = vld [vmem:[%s581 + $0x94] sm:$0xf]
        %v1339 = vld [vmem:[%s581 + $0x9c] sm:$0xf]
        %v1340 = vld [vmem:[%s581 + $0xa0] sm:$0xf]
        %v1341 = vld [vmem:[%s581 + $0xa8] sm:$0xf]
        %v1342 = vld [vmem:[%s581 + $0xac] sm:$0xf]
        %v1343 = vld [vmem:[%s581 + $0xb4] sm:$0xf]
        %v1344 = vld [vmem:[%s581 + $0xb8] sm:$0xf]
        %v1345 = vld [vmem:[%s581 + $0x8] sm:$0x1]
        %v1346 = vld [vmem:[%s581 + $0x14] sm:$0x1]
        %v1347 = vld [vmem:[%s581 + $0x20] sm:$0x1]
        %v1348 = vld [vmem:[%s581 + $0x2c] sm:$0x1]
        %v1349 = vld [vmem:[%s581 + $0x38] sm:$0x1]
        %v1350 = vld [vmem:[%s581 + $0x44] sm:$0x1]
        %v1351 = vld [vmem:[%s581 + $0x50] sm:$0x1]
        %v1352 = vld [vmem:[%s581 + $0x5c] sm:$0x1]
        %v1353 = vld [vmem:[%s581 + $0x68] sm:$0x1]
        %v1354 = vld [vmem:[%s581 + $0x74] sm:$0x1]
        %v1355 = vld [vmem:[%s581 + $0x80] sm:$0x1]
        %v1356 = vld [vmem:[%s581 + $0x8c] sm:$0x1]
        %v1357 = vld [vmem:[%s581 + $0x98] sm:$0x1]
        %v1358 = vld [vmem:[%s581 + $0xa4] sm:$0x1]
        %v1359 = vld [vmem:[%s581 + $0xb0] sm:$0x1]
        %v1360 = vld [vmem:[%s581 + $0xbc] sm:$0x1]
        %v1362 = vshrl.u32 %v1313, 16
        %v1364 = vrot.slane %v1362, 4
        %v1365 = vshll.u32 %v1313, 16
        %v1367 = vrot.slane %v1365, 5
        %v1368 = vor.u32 %v1364, %v1367
        %v1369 = vrot.slane %v1368, 4
        %v1371 = vshll.u32 %v1314, 16
        %v1373 = vrot.slane %v1371, 5
        %v1374 = vsel %vm749, %v1369, %v1373
        %v1375 = vshrl.u32 %v1314, 16
        %v1377 = vrot.slane %v1375, 4
        %v1378 = vor.u32 %v1377, %v1373
        %v1379 = vrot.slane %v1378, 4
        %v1381 = vshll.u32 %v1345, 16
        %v1383 = vrot.slane %v1381, 5
        %v1384 = vsel %vm749, %v1379, %v1383
        %v1386 = vshrl.u32 %v1315, 16
        %v1388 = vrot.slane %v1386, 4
        %v1389 = vshll.u32 %v1315, 16
        %v1391 = vrot.slane %v1389, 5
        %v1392 = vor.u32 %v1388, %v1391
        %v1393 = vrot.slane %v1392, 4
        %v1395 = vshll.u32 %v1316, 16
        %v1397 = vrot.slane %v1395, 5
        %v1398 = vsel %vm749, %v1393, %v1397
        %v1399 = vshrl.u32 %v1316, 16
        %v1401 = vrot.slane %v1399, 4
        %v1402 = vor.u32 %v1401, %v1397
        %v1403 = vrot.slane %v1402, 4
        %v1405 = vshll.u32 %v1346, 16
        %v1407 = vrot.slane %v1405, 5
        %v1408 = vsel %vm749, %v1403, %v1407
        %v1410 = vshrl.u32 %v1317, 16
        %v1412 = vrot.slane %v1410, 4
        %v1413 = vshll.u32 %v1317, 16
        %v1415 = vrot.slane %v1413, 5
        %v1416 = vor.u32 %v1412, %v1415
        %v1417 = vrot.slane %v1416, 4
        %v1419 = vshll.u32 %v1318, 16
        %v1421 = vrot.slane %v1419, 5
        %v1422 = vsel %vm749, %v1417, %v1421
        %v1423 = vshrl.u32 %v1318, 16
        %v1425 = vrot.slane %v1423, 4
        %v1426 = vor.u32 %v1425, %v1421
        %v1427 = vrot.slane %v1426, 4
        %v1429 = vshll.u32 %v1347, 16
        %v1431 = vrot.slane %v1429, 5
        %v1432 = vsel %vm749, %v1427, %v1431
        %v1434 = vshrl.u32 %v1319, 16
        %v1436 = vrot.slane %v1434, 4
        %v1437 = vshll.u32 %v1319, 16
        %v1439 = vrot.slane %v1437, 5
        %v1440 = vor.u32 %v1436, %v1439
        %v1441 = vrot.slane %v1440, 4
        %v1443 = vshll.u32 %v1320, 16
        %v1445 = vrot.slane %v1443, 5
        %v1446 = vsel %vm749, %v1441, %v1445
        %v1447 = vshrl.u32 %v1320, 16
        %v1449 = vrot.slane %v1447, 4
        %v1450 = vor.u32 %v1449, %v1445
        %v1451 = vrot.slane %v1450, 4
        %v1453 = vshll.u32 %v1348, 16
        %v1455 = vrot.slane %v1453, 5
        %v1456 = vsel %vm749, %v1451, %v1455
        %v1458 = vshrl.u32 %v1321, 16
        %v1460 = vrot.slane %v1458, 4
        %v1461 = vshll.u32 %v1321, 16
        %v1463 = vrot.slane %v1461, 5
        %v1464 = vor.u32 %v1460, %v1463
        %v1465 = vrot.slane %v1464, 4
        %v1467 = vshll.u32 %v1322, 16
        %v1469 = vrot.slane %v1467, 5
        %v1470 = vsel %vm749, %v1465, %v1469
        %v1471 = vshrl.u32 %v1322, 16
        %v1473 = vrot.slane %v1471, 4
        %v1474 = vor.u32 %v1473, %v1469
        %v1475 = vrot.slane %v1474, 4
        %v1477 = vshll.u32 %v1349, 16
        %v1479 = vrot.slane %v1477, 5
        %v1480 = vsel %vm749, %v1475, %v1479
        %v1482 = vshrl.u32 %v1323, 16
        %v1484 = vrot.slane %v1482, 4
        %v1485 = vshll.u32 %v1323, 16
        %v1487 = vrot.slane %v1485, 5
        %v1488 = vor.u32 %v1484, %v1487
        %v1489 = vrot.slane %v1488, 4
        %v1491 = vshll.u32 %v1324, 16
        %v1493 = vrot.slane %v1491, 5
        %v1494 = vsel %vm749, %v1489, %v1493
        %v1495 = vshrl.u32 %v1324, 16
        %v1497 = vrot.slane %v1495, 4
        %v1498 = vor.u32 %v1497, %v1493
        %v1499 = vrot.slane %v1498, 4
        %v1501 = vshll.u32 %v1350, 16
        %v1503 = vrot.slane %v1501, 5
        %v1504 = vsel %vm749, %v1499, %v1503
        %v1506 = vshrl.u32 %v1325, 16
        %v1508 = vrot.slane %v1506, 4
        %v1509 = vshll.u32 %v1325, 16
        %v1511 = vrot.slane %v1509, 5
        %v1512 = vor.u32 %v1508, %v1511
        %v1513 = vrot.slane %v1512, 4
        %v1515 = vshll.u32 %v1326, 16
        %v1517 = vrot.slane %v1515, 5
        %v1518 = vsel %vm749, %v1513, %v1517
        %v1519 = vshrl.u32 %v1326, 16
        %v1521 = vrot.slane %v1519, 4
        %v1522 = vor.u32 %v1521, %v1517
        %v1523 = vrot.slane %v1522, 4
        %v1525 = vshll.u32 %v1351, 16
        %v1527 = vrot.slane %v1525, 5
        %v1528 = vsel %vm749, %v1523, %v1527
        %v1530 = vshrl.u32 %v1327, 16
        %v1532 = vrot.slane %v1530, 4
        %v1533 = vshll.u32 %v1327, 16
        %v1535 = vrot.slane %v1533, 5
        %v1536 = vor.u32 %v1532, %v1535
        %v1537 = vrot.slane %v1536, 4
        %v1539 = vshll.u32 %v1328, 16
        %v1541 = vrot.slane %v1539, 5
        %v1542 = vsel %vm749, %v1537, %v1541
        %v1543 = vshrl.u32 %v1328, 16
        %v1545 = vrot.slane %v1543, 4
        %v1546 = vor.u32 %v1545, %v1541
        %v1547 = vrot.slane %v1546, 4
        %v1549 = vshll.u32 %v1352, 16
        %v1551 = vrot.slane %v1549, 5
        %v1552 = vsel %vm749, %v1547, %v1551
        %v1554 = vshrl.u32 %v1329, 16
        %v1556 = vrot.slane %v1554, 4
        %v1557 = vshll.u32 %v1329, 16
        %v1559 = vrot.slane %v1557, 5
        %v1560 = vor.u32 %v1556, %v1559
        %v1561 = vrot.slane %v1560, 4
        %v1563 = vshll.u32 %v1330, 16
        %v1565 = vrot.slane %v1563, 5
        %v1566 = vsel %vm749, %v1561, %v1565
        %v1567 = vshrl.u32 %v1330, 16
        %v1569 = vrot.slane %v1567, 4
        %v1570 = vor.u32 %v1569, %v1565
        %v1571 = vrot.slane %v1570, 4
        %v1573 = vshll.u32 %v1353, 16
        %v1575 = vrot.slane %v1573, 5
        %v1576 = vsel %vm749, %v1571, %v1575
        %v1578 = vshrl.u32 %v1331, 16
        %v1580 = vrot.slane %v1578, 4
        %v1581 = vshll.u32 %v1331, 16
        %v1583 = vrot.slane %v1581, 5
        %v1584 = vor.u32 %v1580, %v1583
        %v1585 = vrot.slane %v1584, 4
        %v1587 = vshll.u32 %v1332, 16
        %v1589 = vrot.slane %v1587, 5
        %v1590 = vsel %vm749, %v1585, %v1589
        %v1591 = vshrl.u32 %v1332, 16
        %v1593 = vrot.slane %v1591, 4
        %v1594 = vor.u32 %v1593, %v1589
        %v1595 = vrot.slane %v1594, 4
        %v1597 = vshll.u32 %v1354, 16
        %v1599 = vrot.slane %v1597, 5
        %v1600 = vsel %vm749, %v1595, %v1599
        %v1602 = vshrl.u32 %v1333, 16
        %v1604 = vrot.slane %v1602, 4
        %v1605 = vshll.u32 %v1333, 16
        %v1607 = vrot.slane %v1605, 5
        %v1608 = vor.u32 %v1604, %v1607
        %v1609 = vrot.slane %v1608, 4
        %v1611 = vshll.u32 %v1334, 16
        %v1613 = vrot.slane %v1611, 5
        %v1614 = vsel %vm749, %v1609, %v1613
        %v1615 = vshrl.u32 %v1334, 16
        %v1617 = vrot.slane %v1615, 4
        %v1618 = vor.u32 %v1617, %v1613
        %v1619 = vrot.slane %v1618, 4
        %v1621 = vshll.u32 %v1355, 16
        %v1623 = vrot.slane %v1621, 5
        %v1624 = vsel %vm749, %v1619, %v1623
        %v1626 = vshrl.u32 %v1335, 16
        %v1628 = vrot.slane %v1626, 4
        %v1629 = vshll.u32 %v1335, 16
        %v1631 = vrot.slane %v1629, 5
        %v1632 = vor.u32 %v1628, %v1631
        %v1633 = vrot.slane %v1632, 4
        %v1635 = vshll.u32 %v1336, 16
        %v1637 = vrot.slane %v1635, 5
        %v1638 = vsel %vm749, %v1633, %v1637
        %v1639 = vshrl.u32 %v1336, 16
        %v1641 = vrot.slane %v1639, 4
        %v1642 = vor.u32 %v1641, %v1637
        %v1643 = vrot.slane %v1642, 4
        %v1645 = vshll.u32 %v1356, 16
        %v1647 = vrot.slane %v1645, 5
        %v1648 = vsel %vm749, %v1643, %v1647
        %v1650 = vshrl.u32 %v1337, 16
        %v1652 = vrot.slane %v1650, 4
        %v1653 = vshll.u32 %v1337, 16
        %v1655 = vrot.slane %v1653, 5
        %v1656 = vor.u32 %v1652, %v1655
        %v1657 = vrot.slane %v1656, 4
        %v1659 = vshll.u32 %v1338, 16
        %v1661 = vrot.slane %v1659, 5
        %v1662 = vsel %vm749, %v1657, %v1661
        %v1663 = vshrl.u32 %v1338, 16
        %v1665 = vrot.slane %v1663, 4
        %v1666 = vor.u32 %v1665, %v1661
        %v1667 = vrot.slane %v1666, 4
        %v1669 = vshll.u32 %v1357, 16
        %v1671 = vrot.slane %v1669, 5
        %v1672 = vsel %vm749, %v1667, %v1671
        %v1674 = vshrl.u32 %v1339, 16
        %v1676 = vrot.slane %v1674, 4
        %v1677 = vshll.u32 %v1339, 16
        %v1679 = vrot.slane %v1677, 5
        %v1680 = vor.u32 %v1676, %v1679
        %v1681 = vrot.slane %v1680, 4
        %v1683 = vshll.u32 %v1340, 16
        %v1685 = vrot.slane %v1683, 5
        %v1686 = vsel %vm749, %v1681, %v1685
        %v1687 = vshrl.u32 %v1340, 16
        %v1689 = vrot.slane %v1687, 4
        %v1690 = vor.u32 %v1689, %v1685
        %v1691 = vrot.slane %v1690, 4
        %v1693 = vshll.u32 %v1358, 16
        %v1695 = vrot.slane %v1693, 5
        %v1696 = vsel %vm749, %v1691, %v1695
        %v1698 = vshrl.u32 %v1341, 16
        %v1700 = vrot.slane %v1698, 4
        %v1701 = vshll.u32 %v1341, 16
        %v1703 = vrot.slane %v1701, 5
        %v1704 = vor.u32 %v1700, %v1703
        %v1705 = vrot.slane %v1704, 4
        %v1707 = vshll.u32 %v1342, 16
        %v1709 = vrot.slane %v1707, 5
        %v1710 = vsel %vm749, %v1705, %v1709
        %v1711 = vshrl.u32 %v1342, 16
        %v1713 = vrot.slane %v1711, 4
        %v1714 = vor.u32 %v1713, %v1709
        %v1715 = vrot.slane %v1714, 4
        %v1717 = vshll.u32 %v1359, 16
        %v1719 = vrot.slane %v1717, 5
        %v1720 = vsel %vm749, %v1715, %v1719
        %v1722 = vshrl.u32 %v1343, 16
        %v1724 = vrot.slane %v1722, 4
        %v1725 = vshll.u32 %v1343, 16
        %v1727 = vrot.slane %v1725, 5
        %v1728 = vor.u32 %v1724, %v1727
        %v1729 = vrot.slane %v1728, 4
        %v1731 = vshll.u32 %v1344, 16
        %v1733 = vrot.slane %v1731, 5
        %v1734 = vsel %vm749, %v1729, %v1733
        %v1735 = vshrl.u32 %v1344, 16
        %v1737 = vrot.slane %v1735, 4
        %v1738 = vor.u32 %v1737, %v1733
        %v1739 = vrot.slane %v1738, 4
        %v1741 = vshll.u32 %v1360, 16
        %v1743 = vrot.slane %v1741, 5
        %v1744 = vsel %vm749, %v1739, %v1743
        %v1745 = vld [vmem:[%s581] sm:$0xe]
        %v1746 = vld [vmem:[%s581 + $0xc] sm:$0xe]
        %v1747 = vld [vmem:[%s581 + $0x18] sm:$0xe]
        %v1748 = vld [vmem:[%s581 + $0x24] sm:$0xe]
        %v1749 = vld [vmem:[%s581 + $0x30] sm:$0xe]
        %v1750 = vld [vmem:[%s581 + $0x3c] sm:$0xe]
        %v1751 = vld [vmem:[%s581 + $0x48] sm:$0xe]
        %v1752 = vld [vmem:[%s581 + $0x54] sm:$0xe]
        %v1753 = vld [vmem:[%s581 + $0x60] sm:$0xe]
        %v1754 = vld [vmem:[%s581 + $0x6c] sm:$0xe]
        %v1755 = vld [vmem:[%s581 + $0x78] sm:$0xe]
        %v1756 = vld [vmem:[%s581 + $0x84] sm:$0xe]
        %v1757 = vld [vmem:[%s581 + $0x90] sm:$0xe]
        %v1758 = vld [vmem:[%s581 + $0x9c] sm:$0xe]
        %v1759 = vld [vmem:[%s581 + $0xa8] sm:$0xe]
        %v1760 = vld [vmem:[%s581 + $0xb4] sm:$0xe]
        %v1809 = vrot.slane %v1745, 5
        %v1810 = vrot.slane %v1809, 4
        %v1811 = vrot.slane %v1314, 5
        %v1812 = vsel %vm1200, %v1810, %v1811
        %v1813 = vrot.slane %v1811, 4
        %v1814 = vrot.slane %v1345, 5
        %v1815 = vsel %vm1200, %v1813, %v1814
        %v1816 = vrot.slane %v1746, 5
        %v1817 = vrot.slane %v1816, 4
        %v1818 = vrot.slane %v1316, 5
        %v1819 = vsel %vm1200, %v1817, %v1818
        %v1820 = vrot.slane %v1818, 4
        %v1821 = vrot.slane %v1346, 5
        %v1822 = vsel %vm1200, %v1820, %v1821
        %v1823 = vrot.slane %v1747, 5
        %v1824 = vrot.slane %v1823, 4
        %v1825 = vrot.slane %v1318, 5
        %v1826 = vsel %vm1200, %v1824, %v1825
        %v1827 = vrot.slane %v1825, 4
        %v1828 = vrot.slane %v1347, 5
        %v1829 = vsel %vm1200, %v1827, %v1828
        %v1830 = vrot.slane %v1748, 5
        %v1831 = vrot.slane %v1830, 4
        %v1832 = vrot.slane %v1320, 5
        %v1833 = vsel %vm1200, %v1831, %v1832
        %v1834 = vrot.slane %v1832, 4
        %v1835 = vrot.slane %v1348, 5
        %v1836 = vsel %vm1200, %v1834, %v1835
        %v1837 = vrot.slane %v1749, 5
        %v1838 = vrot.slane %v1837, 4
        %v1839 = vrot.slane %v1322, 5
        %v1840 = vsel %vm1200, %v1838, %v1839
        %v1841 = vrot.slane %v1839, 4
        %v1842 = vrot.slane %v1349, 5
        %v1843 = vsel %vm1200, %v1841, %v1842
        %v1844 = vrot.slane %v1750, 5
        %v1845 = vrot.slane %v1844, 4
        %v1846 = vrot.slane %v1324, 5
        %v1847 = vsel %vm1200, %v1845, %v1846
        %v1848 = vrot.slane %v1846, 4
        %v1849 = vrot.slane %v1350, 5
        %v1850 = vsel %vm1200, %v1848, %v1849
        %v1851 = vrot.slane %v1751, 5
        %v1852 = vrot.slane %v1851, 4
        %v1853 = vrot.slane %v1326, 5
        %v1854 = vsel %vm1200, %v1852, %v1853
        %v1855 = vrot.slane %v1853, 4
        %v1856 = vrot.slane %v1351, 5
        %v1857 = vsel %vm1200, %v1855, %v1856
        %v1858 = vrot.slane %v1752, 5
        %v1859 = vrot.slane %v1858, 4
        %v1860 = vrot.slane %v1328, 5
        %v1861 = vsel %vm1200, %v1859, %v1860
        %v1862 = vrot.slane %v1860, 4
        %v1863 = vrot.slane %v1352, 5
        %v1864 = vsel %vm1200, %v1862, %v1863
        %v1865 = vrot.slane %v1753, 5
        %v1866 = vrot.slane %v1865, 4
        %v1867 = vrot.slane %v1330, 5
        %v1868 = vsel %vm1200, %v1866, %v1867
        %v1869 = vrot.slane %v1867, 4
        %v1870 = vrot.slane %v1353, 5
        %v1871 = vsel %vm1200, %v1869, %v1870
        %v1872 = vrot.slane %v1754, 5
        %v1873 = vrot.slane %v1872, 4
        %v1874 = vrot.slane %v1332, 5
        %v1875 = vsel %vm1200, %v1873, %v1874
        %v1876 = vrot.slane %v1874, 4
        %v1877 = vrot.slane %v1354, 5
        %v1878 = vsel %vm1200, %v1876, %v1877
        %v1879 = vrot.slane %v1755, 5
        %v1880 = vrot.slane %v1879, 4
        %v1881 = vrot.slane %v1334, 5
        %v1882 = vsel %vm1200, %v1880, %v1881
        %v1883 = vrot.slane %v1881, 4
        %v1884 = vrot.slane %v1355, 5
        %v1885 = vsel %vm1200, %v1883, %v1884
        %v1886 = vrot.slane %v1756, 5
        %v1887 = vrot.slane %v1886, 4
        %v1888 = vrot.slane %v1336, 5
        %v1889 = vsel %vm1200, %v1887, %v1888
        %v1890 = vrot.slane %v1888, 4
        %v1891 = vrot.slane %v1356, 5
        %v1892 = vsel %vm1200, %v1890, %v1891
        %v1893 = vrot.slane %v1757, 5
        %v1894 = vrot.slane %v1893, 4
        %v1895 = vrot.slane %v1338, 5
        %v1896 = vsel %vm1200, %v1894, %v1895
        %v1897 = vrot.slane %v1895, 4
        %v1898 = vrot.slane %v1357, 5
        %v1899 = vsel %vm1200, %v1897, %v1898
        %v1900 = vrot.slane %v1758, 5
        %v1901 = vrot.slane %v1900, 4
        %v1902 = vrot.slane %v1340, 5
        %v1903 = vsel %vm1200, %v1901, %v1902
        %v1904 = vrot.slane %v1902, 4
        %v1905 = vrot.slane %v1358, 5
        %v1906 = vsel %vm1200, %v1904, %v1905
        %v1907 = vrot.slane %v1759, 5
        %v1908 = vrot.slane %v1907, 4
        %v1909 = vrot.slane %v1342, 5
        %v1910 = vsel %vm1200, %v1908, %v1909
        %v1911 = vrot.slane %v1909, 4
        %v1912 = vrot.slane %v1359, 5
        %v1913 = vsel %vm1200, %v1911, %v1912
        %v1914 = vrot.slane %v1760, 5
        %v1915 = vrot.slane %v1914, 4
        %v1916 = vrot.slane %v1344, 5
        %v1917 = vsel %vm1200, %v1915, %v1916
        %v1918 = vrot.slane %v1916, 4
        %v1919 = vrot.slane %v1360, 5
        %v1920 = vsel %vm1200, %v1918, %v1919
        %s1921 = scalar_lea.vmem [#allocation2], 24
        %v1922 = vld [vmem:[%s1921] sm:$0xf]
        %v1923 = vld [vmem:[%s1921 + $0x4] sm:$0xf]
        %v1924 = vld [vmem:[%s1921 + $0xc] sm:$0xf]
        %v1925 = vld [vmem:[%s1921 + $0x10] sm:$0xf]
        %v1926 = vld [vmem:[%s1921 + $0x18] sm:$0xf]
        %v1927 = vld [vmem:[%s1921 + $0x1c] sm:$0xf]
        %v1928 = vld [vmem:[%s1921 + $0x24] sm:$0xf]
        %v1929 = vld [vmem:[%s1921 + $0x28] sm:$0xf]
        %v1930 = vld [vmem:[%s1921 + $0x30] sm:$0xf]
        %v1931 = vld [vmem:[%s1921 + $0x34] sm:$0xf]
        %v1932 = vld [vmem:[%s1921 + $0x3c] sm:$0xf]
        %v1933 = vld [vmem:[%s1921 + $0x40] sm:$0xf]
        %v1934 = vld [vmem:[%s1921 + $0x48] sm:$0xf]
        %v1935 = vld [vmem:[%s1921 + $0x4c] sm:$0xf]
        %v1936 = vld [vmem:[%s1921 + $0x54] sm:$0xf]
        %v1937 = vld [vmem:[%s1921 + $0x58] sm:$0xf]
        %v1938 = vld [vmem:[%s1921 + $0x60] sm:$0xf]
        %v1939 = vld [vmem:[%s1921 + $0x64] sm:$0xf]
        %v1940 = vld [vmem:[%s1921 + $0x6c] sm:$0xf]
        %v1941 = vld [vmem:[%s1921 + $0x70] sm:$0xf]
        %v1942 = vld [vmem:[%s1921 + $0x78] sm:$0xf]
        %v1943 = vld [vmem:[%s1921 + $0x7c] sm:$0xf]
        %v1944 = vld [vmem:[%s1921 + $0x84] sm:$0xf]
        %v1945 = vld [vmem:[%s1921 + $0x88] sm:$0xf]
        %v1946 = vld [vmem:[%s1921 + $0x90] sm:$0xf]
        %v1947 = vld [vmem:[%s1921 + $0x94] sm:$0xf]
        %v1948 = vld [vmem:[%s1921 + $0x9c] sm:$0xf]
        %v1949 = vld [vmem:[%s1921 + $0xa0] sm:$0xf]
        %v1950 = vld [vmem:[%s1921 + $0xa8] sm:$0xf]
        %v1951 = vld [vmem:[%s1921 + $0xac] sm:$0xf]
        %v1952 = vld [vmem:[%s1921 + $0xb4] sm:$0xf]
        %v1953 = vld [vmem:[%s1921 + $0xb8] sm:$0xf]
        %v1954 = vld [vmem:[%s1921 + $0x8] sm:$0x1]
        %v1955 = vld [vmem:[%s1921 + $0x14] sm:$0x1]
        %v1956 = vld [vmem:[%s1921 + $0x20] sm:$0x1]
        %v1957 = vld [vmem:[%s1921 + $0x2c] sm:$0x1]
        %v1958 = vld [vmem:[%s1921 + $0x38] sm:$0x1]
        %v1959 = vld [vmem:[%s1921 + $0x44] sm:$0x1]
        %v1960 = vld [vmem:[%s1921 + $0x50] sm:$0x1]
        %v1961 = vld [vmem:[%s1921 + $0x5c] sm:$0x1]
        %v1962 = vld [vmem:[%s1921 + $0x68] sm:$0x1]
        %v1963 = vld [vmem:[%s1921 + $0x74] sm:$0x1]
        %v1964 = vld [vmem:[%s1921 + $0x80] sm:$0x1]
        %v1965 = vld [vmem:[%s1921 + $0x8c] sm:$0x1]
        %v1966 = vld [vmem:[%s1921 + $0x98] sm:$0x1]
        %v1967 = vld [vmem:[%s1921 + $0xa4] sm:$0x1]
        %v1968 = vld [vmem:[%s1921 + $0xb0] sm:$0x1]
        %v1969 = vld [vmem:[%s1921 + $0xbc] sm:$0x1]
        %v1971 = vshrl.u32 %v1922, 16
        %v1973 = vrot.slane %v1971, 4
        %v1974 = vshll.u32 %v1922, 16
        %v1976 = vrot.slane %v1974, 5
        %v1977 = vor.u32 %v1973, %v1976
        %v1978 = vrot.slane %v1977, 4
        %v1980 = vshll.u32 %v1923, 16
        %v1982 = vrot.slane %v1980, 5
        %v1983 = vsel %vm749, %v1978, %v1982
        %v1984 = vshrl.u32 %v1923, 16
        %v1986 = vrot.slane %v1984, 4
        %v1987 = vor.u32 %v1986, %v1982
        %v1988 = vrot.slane %v1987, 4
        %v1990 = vshll.u32 %v1954, 16
        %v1992 = vrot.slane %v1990, 5
        %v1993 = vsel %vm749, %v1988, %v1992
        %v1995 = vshrl.u32 %v1924, 16
        %v1997 = vrot.slane %v1995, 4
        %v1998 = vshll.u32 %v1924, 16
        %v2000 = vrot.slane %v1998, 5
        %v2001 = vor.u32 %v1997, %v2000
        %v2002 = vrot.slane %v2001, 4
        %v2004 = vshll.u32 %v1925, 16
        %v2006 = vrot.slane %v2004, 5
        %v2007 = vsel %vm749, %v2002, %v2006
        %v2008 = vshrl.u32 %v1925, 16
        %v2010 = vrot.slane %v2008, 4
        %v2011 = vor.u32 %v2010, %v2006
        %v2012 = vrot.slane %v2011, 4
        %v2014 = vshll.u32 %v1955, 16
        %v2016 = vrot.slane %v2014, 5
        %v2017 = vsel %vm749, %v2012, %v2016
        %v2019 = vshrl.u32 %v1926, 16
        %v2021 = vrot.slane %v2019, 4
        %v2022 = vshll.u32 %v1926, 16
        %v2024 = vrot.slane %v2022, 5
        %v2025 = vor.u32 %v2021, %v2024
        %v2026 = vrot.slane %v2025, 4
        %v2028 = vshll.u32 %v1927, 16
        %v2030 = vrot.slane %v2028, 5
        %v2031 = vsel %vm749, %v2026, %v2030
        %v2032 = vshrl.u32 %v1927, 16
        %v2034 = vrot.slane %v2032, 4
        %v2035 = vor.u32 %v2034, %v2030
        %v2036 = vrot.slane %v2035, 4
        %v2038 = vshll.u32 %v1956, 16
        %v2040 = vrot.slane %v2038, 5
        %v2041 = vsel %vm749, %v2036, %v2040
        %v2043 = vshrl.u32 %v1928, 16
        %v2045 = vrot.slane %v2043, 4
        %v2046 = vshll.u32 %v1928, 16
        %v2048 = vrot.slane %v2046, 5
        %v2049 = vor.u32 %v2045, %v2048
        %v2050 = vrot.slane %v2049, 4
        %v2052 = vshll.u32 %v1929, 16
        %v2054 = vrot.slane %v2052, 5
        %v2055 = vsel %vm749, %v2050, %v2054
        %v2056 = vshrl.u32 %v1929, 16
        %v2058 = vrot.slane %v2056, 4
        %v2059 = vor.u32 %v2058, %v2054
        %v2060 = vrot.slane %v2059, 4
        %v2062 = vshll.u32 %v1957, 16
        %v2064 = vrot.slane %v2062, 5
        %v2065 = vsel %vm749, %v2060, %v2064
        %v2067 = vshrl.u32 %v1930, 16
        %v2069 = vrot.slane %v2067, 4
        %v2070 = vshll.u32 %v1930, 16
        %v2072 = vrot.slane %v2070, 5
        %v2073 = vor.u32 %v2069, %v2072
        %v2074 = vrot.slane %v2073, 4
        %v2076 = vshll.u32 %v1931, 16
        %v2078 = vrot.slane %v2076, 5
        %v2079 = vsel %vm749, %v2074, %v2078
        %v2080 = vshrl.u32 %v1931, 16
        %v2082 = vrot.slane %v2080, 4
        %v2083 = vor.u32 %v2082, %v2078
        %v2084 = vrot.slane %v2083, 4
        %v2086 = vshll.u32 %v1958, 16
        %v2088 = vrot.slane %v2086, 5
        %v2089 = vsel %vm749, %v2084, %v2088
        %v2091 = vshrl.u32 %v1932, 16
        %v2093 = vrot.slane %v2091, 4
        %v2094 = vshll.u32 %v1932, 16
        %v2096 = vrot.slane %v2094, 5
        %v2097 = vor.u32 %v2093, %v2096
        %v2098 = vrot.slane %v2097, 4
        %v2100 = vshll.u32 %v1933, 16
        %v2102 = vrot.slane %v2100, 5
        %v2103 = vsel %vm749, %v2098, %v2102
        %v2104 = vshrl.u32 %v1933, 16
        %v2106 = vrot.slane %v2104, 4
        %v2107 = vor.u32 %v2106, %v2102
        %v2108 = vrot.slane %v2107, 4
        %v2110 = vshll.u32 %v1959, 16
        %v2112 = vrot.slane %v2110, 5
        %v2113 = vsel %vm749, %v2108, %v2112
        %v2115 = vshrl.u32 %v1934, 16
        %v2117 = vrot.slane %v2115, 4
        %v2118 = vshll.u32 %v1934, 16
        %v2120 = vrot.slane %v2118, 5
        %v2121 = vor.u32 %v2117, %v2120
        %v2122 = vrot.slane %v2121, 4
        %v2124 = vshll.u32 %v1935, 16
        %v2126 = vrot.slane %v2124, 5
        %v2127 = vsel %vm749, %v2122, %v2126
        %v2128 = vshrl.u32 %v1935, 16
        %v2130 = vrot.slane %v2128, 4
        %v2131 = vor.u32 %v2130, %v2126
        %v2132 = vrot.slane %v2131, 4
        %v2134 = vshll.u32 %v1960, 16
        %v2136 = vrot.slane %v2134, 5
        %v2137 = vsel %vm749, %v2132, %v2136
        %v2139 = vshrl.u32 %v1936, 16
        %v2141 = vrot.slane %v2139, 4
        %v2142 = vshll.u32 %v1936, 16
        %v2144 = vrot.slane %v2142, 5
        %v2145 = vor.u32 %v2141, %v2144
        %v2146 = vrot.slane %v2145, 4
        %v2148 = vshll.u32 %v1937, 16
        %v2150 = vrot.slane %v2148, 5
        %v2151 = vsel %vm749, %v2146, %v2150
        %v2152 = vshrl.u32 %v1937, 16
        %v2154 = vrot.slane %v2152, 4
        %v2155 = vor.u32 %v2154, %v2150
        %v2156 = vrot.slane %v2155, 4
        %v2158 = vshll.u32 %v1961, 16
        %v2160 = vrot.slane %v2158, 5
        %v2161 = vsel %vm749, %v2156, %v2160
        %v2163 = vshrl.u32 %v1938, 16
        %v2165 = vrot.slane %v2163, 4
        %v2166 = vshll.u32 %v1938, 16
        %v2168 = vrot.slane %v2166, 5
        %v2169 = vor.u32 %v2165, %v2168
        %v2170 = vrot.slane %v2169, 4
        %v2172 = vshll.u32 %v1939, 16
        %v2174 = vrot.slane %v2172, 5
        %v2175 = vsel %vm749, %v2170, %v2174
        %v2176 = vshrl.u32 %v1939, 16
        %v2178 = vrot.slane %v2176, 4
        %v2179 = vor.u32 %v2178, %v2174
        %v2180 = vrot.slane %v2179, 4
        %v2182 = vshll.u32 %v1962, 16
        %v2184 = vrot.slane %v2182, 5
        %v2185 = vsel %vm749, %v2180, %v2184
        %v2187 = vshrl.u32 %v1940, 16
        %v2189 = vrot.slane %v2187, 4
        %v2190 = vshll.u32 %v1940, 16
        %v2192 = vrot.slane %v2190, 5
        %v2193 = vor.u32 %v2189, %v2192
        %v2194 = vrot.slane %v2193, 4
        %v2196 = vshll.u32 %v1941, 16
        %v2198 = vrot.slane %v2196, 5
        %v2199 = vsel %vm749, %v2194, %v2198
        %v2200 = vshrl.u32 %v1941, 16
        %v2202 = vrot.slane %v2200, 4
        %v2203 = vor.u32 %v2202, %v2198
        %v2204 = vrot.slane %v2203, 4
        %v2206 = vshll.u32 %v1963, 16
        %v2208 = vrot.slane %v2206, 5
        %v2209 = vsel %vm749, %v2204, %v2208
        %v2211 = vshrl.u32 %v1942, 16
        %v2213 = vrot.slane %v2211, 4
        %v2214 = vshll.u32 %v1942, 16
        %v2216 = vrot.slane %v2214, 5
        %v2217 = vor.u32 %v2213, %v2216
        %v2218 = vrot.slane %v2217, 4
        %v2220 = vshll.u32 %v1943, 16
        %v2222 = vrot.slane %v2220, 5
        %v2223 = vsel %vm749, %v2218, %v2222
        %v2224 = vshrl.u32 %v1943, 16
        %v2226 = vrot.slane %v2224, 4
        %v2227 = vor.u32 %v2226, %v2222
        %v2228 = vrot.slane %v2227, 4
        %v2230 = vshll.u32 %v1964, 16
        %v2232 = vrot.slane %v2230, 5
        %v2233 = vsel %vm749, %v2228, %v2232
        %v2235 = vshrl.u32 %v1944, 16
        %v2237 = vrot.slane %v2235, 4
        %v2238 = vshll.u32 %v1944, 16
        %v2240 = vrot.slane %v2238, 5
        %v2241 = vor.u32 %v2237, %v2240
        %v2242 = vrot.slane %v2241, 4
        %v2244 = vshll.u32 %v1945, 16
        %v2246 = vrot.slane %v2244, 5
        %v2247 = vsel %vm749, %v2242, %v2246
        %v2248 = vshrl.u32 %v1945, 16
        %v2250 = vrot.slane %v2248, 4
        %v2251 = vor.u32 %v2250, %v2246
        %v2252 = vrot.slane %v2251, 4
        %v2254 = vshll.u32 %v1965, 16
        %v2256 = vrot.slane %v2254, 5
        %v2257 = vsel %vm749, %v2252, %v2256
        %v2259 = vshrl.u32 %v1946, 16
        %v2261 = vrot.slane %v2259, 4
        %v2262 = vshll.u32 %v1946, 16
        %v2264 = vrot.slane %v2262, 5
        %v2265 = vor.u32 %v2261, %v2264
        %v2266 = vrot.slane %v2265, 4
        %v2268 = vshll.u32 %v1947, 16
        %v2270 = vrot.slane %v2268, 5
        %v2271 = vsel %vm749, %v2266, %v2270
        %v2272 = vshrl.u32 %v1947, 16
        %v2274 = vrot.slane %v2272, 4
        %v2275 = vor.u32 %v2274, %v2270
        %v2276 = vrot.slane %v2275, 4
        %v2278 = vshll.u32 %v1966, 16
        %v2280 = vrot.slane %v2278, 5
        %v2281 = vsel %vm749, %v2276, %v2280
        %v2283 = vshrl.u32 %v1948, 16
        %v2285 = vrot.slane %v2283, 4
        %v2286 = vshll.u32 %v1948, 16
        %v2288 = vrot.slane %v2286, 5
        %v2289 = vor.u32 %v2285, %v2288
        %v2290 = vrot.slane %v2289, 4
        %v2292 = vshll.u32 %v1949, 16
        %v2294 = vrot.slane %v2292, 5
        %v2295 = vsel %vm749, %v2290, %v2294
        %v2296 = vshrl.u32 %v1949, 16
        %v2298 = vrot.slane %v2296, 4
        %v2299 = vor.u32 %v2298, %v2294
        %v2300 = vrot.slane %v2299, 4
        %v2302 = vshll.u32 %v1967, 16
        %v2304 = vrot.slane %v2302, 5
        %v2305 = vsel %vm749, %v2300, %v2304
        %v2307 = vshrl.u32 %v1950, 16
        %v2309 = vrot.slane %v2307, 4
        %v2310 = vshll.u32 %v1950, 16
        %v2312 = vrot.slane %v2310, 5
        %v2313 = vor.u32 %v2309, %v2312
        %v2314 = vrot.slane %v2313, 4
        %v2316 = vshll.u32 %v1951, 16
        %v2318 = vrot.slane %v2316, 5
        %v2319 = vsel %vm749, %v2314, %v2318
        %v2320 = vshrl.u32 %v1951, 16
        %v2322 = vrot.slane %v2320, 4
        %v2323 = vor.u32 %v2322, %v2318
        %v2324 = vrot.slane %v2323, 4
        %v2326 = vshll.u32 %v1968, 16
        %v2328 = vrot.slane %v2326, 5
        %v2329 = vsel %vm749, %v2324, %v2328
        %v2331 = vshrl.u32 %v1952, 16
        %v2333 = vrot.slane %v2331, 4
        %v2334 = vshll.u32 %v1952, 16
        %v2336 = vrot.slane %v2334, 5
        %v2337 = vor.u32 %v2333, %v2336
        %v2338 = vrot.slane %v2337, 4
        %v2340 = vshll.u32 %v1953, 16
        %v2342 = vrot.slane %v2340, 5
        %v2343 = vsel %vm749, %v2338, %v2342
        %v2344 = vshrl.u32 %v1953, 16
        %v2346 = vrot.slane %v2344, 4
        %v2347 = vor.u32 %v2346, %v2342
        %v2348 = vrot.slane %v2347, 4
        %v2350 = vshll.u32 %v1969, 16
        %v2352 = vrot.slane %v2350, 5
        %v2353 = vsel %vm749, %v2348, %v2352
        %v2354 = vld [vmem:[%s1921] sm:$0xe]
        %v2355 = vld [vmem:[%s1921 + $0xc] sm:$0xe]
        %v2356 = vld [vmem:[%s1921 + $0x18] sm:$0xe]
        %v2357 = vld [vmem:[%s1921 + $0x24] sm:$0xe]
        %v2358 = vld [vmem:[%s1921 + $0x30] sm:$0xe]
        %v2359 = vld [vmem:[%s1921 + $0x3c] sm:$0xe]
        %v2360 = vld [vmem:[%s1921 + $0x48] sm:$0xe]
        %v2361 = vld [vmem:[%s1921 + $0x54] sm:$0xe]
        %v2362 = vld [vmem:[%s1921 + $0x60] sm:$0xe]
        %v2363 = vld [vmem:[%s1921 + $0x6c] sm:$0xe]
        %v2364 = vld [vmem:[%s1921 + $0x78] sm:$0xe]
        %v2365 = vld [vmem:[%s1921 + $0x84] sm:$0xe]
        %v2366 = vld [vmem:[%s1921 + $0x90] sm:$0xe]
        %v2367 = vld [vmem:[%s1921 + $0x9c] sm:$0xe]
        %v2368 = vld [vmem:[%s1921 + $0xa8] sm:$0xe]
        %v2369 = vld [vmem:[%s1921 + $0xb4] sm:$0xe]
        %v2418 = vrot.slane %v2354, 5
        %v2419 = vrot.slane %v2418, 4
        %v2420 = vrot.slane %v1923, 5
        %v2421 = vsel %vm1200, %v2419, %v2420
        %v2422 = vrot.slane %v2420, 4
        %v2423 = vrot.slane %v1954, 5
        %v2424 = vsel %vm1200, %v2422, %v2423
        %v2425 = vrot.slane %v2355, 5
        %v2426 = vrot.slane %v2425, 4
        %v2427 = vrot.slane %v1925, 5
        %v2428 = vsel %vm1200, %v2426, %v2427
        %v2429 = vrot.slane %v2427, 4
        %v2430 = vrot.slane %v1955, 5
        %v2431 = vsel %vm1200, %v2429, %v2430
        %v2432 = vrot.slane %v2356, 5
        %v2433 = vrot.slane %v2432, 4
        %v2434 = vrot.slane %v1927, 5
        %v2435 = vsel %vm1200, %v2433, %v2434
        %v2436 = vrot.slane %v2434, 4
        %v2437 = vrot.slane %v1956, 5
        %v2438 = vsel %vm1200, %v2436, %v2437
        %v2439 = vrot.slane %v2357, 5
        %v2440 = vrot.slane %v2439, 4
        %v2441 = vrot.slane %v1929, 5
        %v2442 = vsel %vm1200, %v2440, %v2441
        %v2443 = vrot.slane %v2441, 4
        %v2444 = vrot.slane %v1957, 5
        %v2445 = vsel %vm1200, %v2443, %v2444
        %v2446 = vrot.slane %v2358, 5
        %v2447 = vrot.slane %v2446, 4
        %v2448 = vrot.slane %v1931, 5
        %v2449 = vsel %vm1200, %v2447, %v2448
        %v2450 = vrot.slane %v2448, 4
        %v2451 = vrot.slane %v1958, 5
        %v2452 = vsel %vm1200, %v2450, %v2451
        %v2453 = vrot.slane %v2359, 5
        %v2454 = vrot.slane %v2453, 4
        %v2455 = vrot.slane %v1933, 5
        %v2456 = vsel %vm1200, %v2454, %v2455
        %v2457 = vrot.slane %v2455, 4
        %v2458 = vrot.slane %v1959, 5
        %v2459 = vsel %vm1200, %v2457, %v2458
        %v2460 = vrot.slane %v2360, 5
        %v2461 = vrot.slane %v2460, 4
        %v2462 = vrot.slane %v1935, 5
        %v2463 = vsel %vm1200, %v2461, %v2462
        %v2464 = vrot.slane %v2462, 4
        %v2465 = vrot.slane %v1960, 5
        %v2466 = vsel %vm1200, %v2464, %v2465
        %v2467 = vrot.slane %v2361, 5
        %v2468 = vrot.slane %v2467, 4
        %v2469 = vrot.slane %v1937, 5
        %v2470 = vsel %vm1200, %v2468, %v2469
        %v2471 = vrot.slane %v2469, 4
        %v2472 = vrot.slane %v1961, 5
        %v2473 = vsel %vm1200, %v2471, %v2472
        %v2474 = vrot.slane %v2362, 5
        %v2475 = vrot.slane %v2474, 4
        %v2476 = vrot.slane %v1939, 5
        %v2477 = vsel %vm1200, %v2475, %v2476
        %v2478 = vrot.slane %v2476, 4
        %v2479 = vrot.slane %v1962, 5
        %v2480 = vsel %vm1200, %v2478, %v2479
        %v2481 = vrot.slane %v2363, 5
        %v2482 = vrot.slane %v2481, 4
        %v2483 = vrot.slane %v1941, 5
        %v2484 = vsel %vm1200, %v2482, %v2483
        %v2485 = vrot.slane %v2483, 4
        %v2486 = vrot.slane %v1963, 5
        %v2487 = vsel %vm1200, %v2485, %v2486
        %v2488 = vrot.slane %v2364, 5
        %v2489 = vrot.slane %v2488, 4
        %v2490 = vrot.slane %v1943, 5
        %v2491 = vsel %vm1200, %v2489, %v2490
        %v2492 = vrot.slane %v2490, 4
        %v2493 = vrot.slane %v1964, 5
        %v2494 = vsel %vm1200, %v2492, %v2493
        %v2495 = vrot.slane %v2365, 5
        %v2496 = vrot.slane %v2495, 4
        %v2497 = vrot.slane %v1945, 5
        %v2498 = vsel %vm1200, %v2496, %v2497
        %v2499 = vrot.slane %v2497, 4
        %v2500 = vrot.slane %v1965, 5
        %v2501 = vsel %vm1200, %v2499, %v2500
        %v2502 = vrot.slane %v2366, 5
        %v2503 = vrot.slane %v2502, 4
        %v2504 = vrot.slane %v1947, 5
        %v2505 = vsel %vm1200, %v2503, %v2504
        %v2506 = vrot.slane %v2504, 4
        %v2507 = vrot.slane %v1966, 5
        %v2508 = vsel %vm1200, %v2506, %v2507
        %v2509 = vrot.slane %v2367, 5
        %v2510 = vrot.slane %v2509, 4
        %v2511 = vrot.slane %v1949, 5
        %v2512 = vsel %vm1200, %v2510, %v2511
        %v2513 = vrot.slane %v2511, 4
        %v2514 = vrot.slane %v1967, 5
        %v2515 = vsel %vm1200, %v2513, %v2514
        %v2516 = vrot.slane %v2368, 5
        %v2517 = vrot.slane %v2516, 4
        %v2518 = vrot.slane %v1951, 5
        %v2519 = vsel %vm1200, %v2517, %v2518
        %v2520 = vrot.slane %v2518, 4
        %v2521 = vrot.slane %v1968, 5
        %v2522 = vsel %vm1200, %v2520, %v2521
        %v2523 = vrot.slane %v2369, 5
        %v2524 = vrot.slane %v2523, 4
        %v2525 = vrot.slane %v1953, 5
        %v2526 = vsel %vm1200, %v2524, %v2525
        %v2527 = vrot.slane %v2525, 4
        %v2528 = vrot.slane %v1969, 5
        %v2529 = vsel %vm1200, %v2527, %v2528
        %v2546 = vunpack.c.l.b16 %v699
        %v2547 = vunpack.c.l.b16 %v700
        %v2548 = vunpack.c.l.b16 %v701
        %v2549 = vunpack.c.l.b16 %v702
        %v2550 = vunpack.c.l.b16 %v703
        %v2551 = vunpack.c.l.b16 %v704
        %v2552 = vunpack.c.l.b16 %v705
        %v2553 = vunpack.c.l.b16 %v706
        %v2554 = vunpack.c.l.b16 %v707
        %v2555 = vunpack.c.l.b16 %v708
        %v2556 = vunpack.c.l.b16 %v709
        %v2557 = vunpack.c.l.b16 %v710
        %v2558 = vunpack.c.l.b16 %v711
        %v2559 = vunpack.c.l.b16 %v712
        %v2560 = vunpack.c.l.b16 %v713
        %v2561 = vunpack.c.l.b16 %v714
        %v2562 = vunpack.c.l.b16 %v715
        %v2563 = vunpack.c.l.b16 %v716
        %v2564 = vunpack.c.l.b16 %v717
        %v2565 = vunpack.c.l.b16 %v718
        %v2566 = vunpack.c.l.b16 %v719
        %v2567 = vunpack.c.l.b16 %v720
        %v2568 = vunpack.c.l.b16 %v721
        %v2569 = vunpack.c.l.b16 %v722
        %v2570 = vunpack.c.l.b16 %v723
        %v2571 = vunpack.c.l.b16 %v724
        %v2572 = vunpack.c.l.b16 %v725
        %v2573 = vunpack.c.l.b16 %v726
        %v2574 = vunpack.c.l.b16 %v727
        %v2575 = vunpack.c.l.b16 %v728
        %v2576 = vunpack.c.l.b16 %v729
        %v2577 = vunpack.c.l.b16 %v730
        %v2578 = vpack.c.b16 %v2547, %v2546
        %v2579 = vpack.c.b16 %v2549, %v2548
        %v2580 = vpack.c.b16 %v2551, %v2550
        %v2581 = vpack.c.b16 %v2553, %v2552
        %v2582 = vpack.c.b16 %v2555, %v2554
        %v2583 = vpack.c.b16 %v2557, %v2556
        %v2584 = vpack.c.b16 %v2559, %v2558
        %v2585 = vpack.c.b16 %v2561, %v2560
        %v2586 = vpack.c.b16 %v2563, %v2562
        %v2587 = vpack.c.b16 %v2565, %v2564
        %v2588 = vpack.c.b16 %v2567, %v2566
        %v2589 = vpack.c.b16 %v2569, %v2568
        %v2590 = vpack.c.b16 %v2571, %v2570
        %v2591 = vpack.c.b16 %v2573, %v2572
        %v2592 = vpack.c.b16 %v2575, %v2574
        %v2593 = vpack.c.b16 %v2577, %v2576
        %v2594 = vunpack.c.l.b16 %v763
        %v2595 = vunpack.c.l.b16 %v773
        %v2596 = vunpack.c.l.b16 %v787
        %v2597 = vunpack.c.l.b16 %v797
        %v2598 = vunpack.c.l.b16 %v811
        %v2599 = vunpack.c.l.b16 %v821
        %v2600 = vunpack.c.l.b16 %v835
        %v2601 = vunpack.c.l.b16 %v845
        %v2602 = vunpack.c.l.b16 %v859
        %v2603 = vunpack.c.l.b16 %v869
        %v2604 = vunpack.c.l.b16 %v883
        %v2605 = vunpack.c.l.b16 %v893
        %v2606 = vunpack.c.l.b16 %v907
        %v2607 = vunpack.c.l.b16 %v917
        %v2608 = vunpack.c.l.b16 %v931
        %v2609 = vunpack.c.l.b16 %v941
        %v2610 = vunpack.c.l.b16 %v955
        %v2611 = vunpack.c.l.b16 %v965
        %v2612 = vunpack.c.l.b16 %v979
        %v2613 = vunpack.c.l.b16 %v989
        %v2614 = vunpack.c.l.b16 %v1003
        %v2615 = vunpack.c.l.b16 %v1013
        %v2616 = vunpack.c.l.b16 %v1027
        %v2617 = vunpack.c.l.b16 %v1037
        %v2618 = vunpack.c.l.b16 %v1051
        %v2619 = vunpack.c.l.b16 %v1061
        %v2620 = vunpack.c.l.b16 %v1075
        %v2621 = vunpack.c.l.b16 %v1085
        %v2622 = vunpack.c.l.b16 %v1099
        %v2623 = vunpack.c.l.b16 %v1109
        %v2624 = vunpack.c.l.b16 %v1123
        %v2625 = vunpack.c.l.b16 %v1133
        %v2626 = vpack.c.b16 %v2595, %v2594
        %v2627 = vpack.c.b16 %v2597, %v2596
        %v2628 = vpack.c.b16 %v2599, %v2598
        %v2629 = vpack.c.b16 %v2601, %v2600
        %v2630 = vpack.c.b16 %v2603, %v2602
        %v2631 = vpack.c.b16 %v2605, %v2604
        %v2632 = vpack.c.b16 %v2607, %v2606
        %v2633 = vpack.c.b16 %v2609, %v2608
        %v2634 = vpack.c.b16 %v2611, %v2610
        %v2635 = vpack.c.b16 %v2613, %v2612
        %v2636 = vpack.c.b16 %v2615, %v2614
        %v2637 = vpack.c.b16 %v2617, %v2616
        %v2638 = vpack.c.b16 %v2619, %v2618
        %v2639 = vpack.c.b16 %v2621, %v2620
        %v2640 = vpack.c.b16 %v2623, %v2622
        %v2641 = vpack.c.b16 %v2625, %v2624
        %2642 = vrot.lane.b32.xlu0 %v2626, 64
        %v2643 = vpop.permute.xlu0 %2642
        %2644 = vrot.lane.b32.xlu0 %v2627, 64
        %v2645 = vpop.permute.xlu0 %2644
        %2646 = vrot.lane.b32.xlu0 %v2628, 64
        %v2647 = vpop.permute.xlu0 %2646
        %2648 = vrot.lane.b32.xlu0 %v2629, 64
        %v2649 = vpop.permute.xlu0 %2648
        %2650 = vrot.lane.b32.xlu0 %v2630, 64
        %v2651 = vpop.permute.xlu0 %2650
        %2652 = vrot.lane.b32.xlu0 %v2631, 64
        %v2653 = vpop.permute.xlu0 %2652
        %2654 = vrot.lane.b32.xlu0 %v2632, 64
        %v2655 = vpop.permute.xlu0 %2654
        %2656 = vrot.lane.b32.xlu0 %v2633, 64
        %v2657 = vpop.permute.xlu0 %2656
        %2658 = vrot.lane.b32.xlu0 %v2634, 64
        %v2659 = vpop.permute.xlu0 %2658
        %2660 = vrot.lane.b32.xlu0 %v2635, 64
        %v2661 = vpop.permute.xlu0 %2660
        %2662 = vrot.lane.b32.xlu0 %v2636, 64
        %v2663 = vpop.permute.xlu0 %2662
        %2664 = vrot.lane.b32.xlu0 %v2637, 64
        %v2665 = vpop.permute.xlu0 %2664
        %2666 = vrot.lane.b32.xlu0 %v2638, 64
        %v2667 = vpop.permute.xlu0 %2666
        %2668 = vrot.lane.b32.xlu0 %v2639, 64
        %v2669 = vpop.permute.xlu0 %2668
        %2670 = vrot.lane.b32.xlu0 %v2640, 64
        %v2671 = vpop.permute.xlu0 %2670
        %2672 = vrot.lane.b32.xlu0 %v2641, 64
        %v2673 = vpop.permute.xlu0 %2672
        %v2674 = vunpack.c.l.b16 %v1204
        %v2675 = vunpack.c.l.b16 %v1207
        %v2676 = vunpack.c.l.b16 %v1211
        %v2677 = vunpack.c.l.b16 %v1214
        %v2678 = vunpack.c.l.b16 %v1218
        %v2679 = vunpack.c.l.b16 %v1221
        %v2680 = vunpack.c.l.b16 %v1225
        %v2681 = vunpack.c.l.b16 %v1228
        %v2682 = vunpack.c.l.b16 %v1232
        %v2683 = vunpack.c.l.b16 %v1235
        %v2684 = vunpack.c.l.b16 %v1239
        %v2685 = vunpack.c.l.b16 %v1242
        %v2686 = vunpack.c.l.b16 %v1246
        %v2687 = vunpack.c.l.b16 %v1249
        %v2688 = vunpack.c.l.b16 %v1253
        %v2689 = vunpack.c.l.b16 %v1256
        %v2690 = vunpack.c.l.b16 %v1260
        %v2691 = vunpack.c.l.b16 %v1263
        %v2692 = vunpack.c.l.b16 %v1267
        %v2693 = vunpack.c.l.b16 %v1270
        %v2694 = vunpack.c.l.b16 %v1274
        %v2695 = vunpack.c.l.b16 %v1277
        %v2696 = vunpack.c.l.b16 %v1281
        %v2697 = vunpack.c.l.b16 %v1284
        %v2698 = vunpack.c.l.b16 %v1288
        %v2699 = vunpack.c.l.b16 %v1291
        %v2700 = vunpack.c.l.b16 %v1295
        %v2701 = vunpack.c.l.b16 %v1298
        %v2702 = vunpack.c.l.b16 %v1302
        %v2703 = vunpack.c.l.b16 %v1305
        %v2704 = vunpack.c.l.b16 %v1309
        %v2705 = vunpack.c.l.b16 %v1312
        %v2706 = vpack.c.b16 %v2675, %v2674
        %v2707 = vpack.c.b16 %v2677, %v2676
        %v2708 = vpack.c.b16 %v2679, %v2678
        %v2709 = vpack.c.b16 %v2681, %v2680
        %v2710 = vpack.c.b16 %v2683, %v2682
        %v2711 = vpack.c.b16 %v2685, %v2684
        %v2712 = vpack.c.b16 %v2687, %v2686
        %v2713 = vpack.c.b16 %v2689, %v2688
        %v2714 = vpack.c.b16 %v2691, %v2690
        %v2715 = vpack.c.b16 %v2693, %v2692
        %v2716 = vpack.c.b16 %v2695, %v2694
        %v2717 = vpack.c.b16 %v2697, %v2696
        %v2718 = vpack.c.b16 %v2699, %v2698
        %v2719 = vpack.c.b16 %v2701, %v2700
        %v2720 = vpack.c.b16 %v2703, %v2702
        %v2721 = vpack.c.b16 %v2705, %v2704
        %v2738 = vunpack.c.l.b16 %v1313
        %v2739 = vunpack.c.l.b16 %v1314
        %v2740 = vunpack.c.l.b16 %v1315
        %v2741 = vunpack.c.l.b16 %v1316
        %v2742 = vunpack.c.l.b16 %v1317
        %v2743 = vunpack.c.l.b16 %v1318
        %v2744 = vunpack.c.l.b16 %v1319
        %v2745 = vunpack.c.l.b16 %v1320
        %v2746 = vunpack.c.l.b16 %v1321
        %v2747 = vunpack.c.l.b16 %v1322
        %v2748 = vunpack.c.l.b16 %v1323
        %v2749 = vunpack.c.l.b16 %v1324
        %v2750 = vunpack.c.l.b16 %v1325
        %v2751 = vunpack.c.l.b16 %v1326
        %v2752 = vunpack.c.l.b16 %v1327
        %v2753 = vunpack.c.l.b16 %v1328
        %v2754 = vunpack.c.l.b16 %v1329
        %v2755 = vunpack.c.l.b16 %v1330
        %v2756 = vunpack.c.l.b16 %v1331
        %v2757 = vunpack.c.l.b16 %v1332
        %v2758 = vunpack.c.l.b16 %v1333
        %v2759 = vunpack.c.l.b16 %v1334
        %v2760 = vunpack.c.l.b16 %v1335
        %v2761 = vunpack.c.l.b16 %v1336
        %v2762 = vunpack.c.l.b16 %v1337
        %v2763 = vunpack.c.l.b16 %v1338
        %v2764 = vunpack.c.l.b16 %v1339
        %v2765 = vunpack.c.l.b16 %v1340
        %v2766 = vunpack.c.l.b16 %v1341
        %v2767 = vunpack.c.l.b16 %v1342
        %v2768 = vunpack.c.l.b16 %v1343
        %v2769 = vunpack.c.l.b16 %v1344
        %v2770 = vpack.c.b16 %v2739, %v2738
        %v2771 = vpack.c.b16 %v2741, %v2740
        %v2772 = vpack.c.b16 %v2743, %v2742
        %v2773 = vpack.c.b16 %v2745, %v2744
        %v2774 = vpack.c.b16 %v2747, %v2746
        %v2775 = vpack.c.b16 %v2749, %v2748
        %v2776 = vpack.c.b16 %v2751, %v2750
        %v2777 = vpack.c.b16 %v2753, %v2752
        %v2778 = vpack.c.b16 %v2755, %v2754
        %v2779 = vpack.c.b16 %v2757, %v2756
        %v2780 = vpack.c.b16 %v2759, %v2758
        %v2781 = vpack.c.b16 %v2761, %v2760
        %v2782 = vpack.c.b16 %v2763, %v2762
        %v2783 = vpack.c.b16 %v2765, %v2764
        %v2784 = vpack.c.b16 %v2767, %v2766
        %v2785 = vpack.c.b16 %v2769, %v2768
        %2786 = vrot.lane.b32.xlu0 %v2770, 64
        %v2787 = vpop.permute.xlu0 %2786
        %2788 = vrot.lane.b32.xlu0 %v2771, 64
        %v2789 = vpop.permute.xlu0 %2788
        %2790 = vrot.lane.b32.xlu0 %v2772, 64
        %v2791 = vpop.permute.xlu0 %2790
        %2792 = vrot.lane.b32.xlu0 %v2773, 64
        %v2793 = vpop.permute.xlu0 %2792
        %2794 = vrot.lane.b32.xlu0 %v2774, 64
        %v2795 = vpop.permute.xlu0 %2794
        %2796 = vrot.lane.b32.xlu0 %v2775, 64
        %v2797 = vpop.permute.xlu0 %2796
        %2798 = vrot.lane.b32.xlu0 %v2776, 64
        %v2799 = vpop.permute.xlu0 %2798
        %2800 = vrot.lane.b32.xlu0 %v2777, 64
        %v2801 = vpop.permute.xlu0 %2800
        %2802 = vrot.lane.b32.xlu0 %v2778, 64
        %v2803 = vpop.permute.xlu0 %2802
        %2804 = vrot.lane.b32.xlu0 %v2779, 64
        %v2805 = vpop.permute.xlu0 %2804
        %2806 = vrot.lane.b32.xlu0 %v2780, 64
        %v2807 = vpop.permute.xlu0 %2806
        %2808 = vrot.lane.b32.xlu0 %v2781, 64
        %v2809 = vpop.permute.xlu0 %2808
        %2810 = vrot.lane.b32.xlu0 %v2782, 64
        %v2811 = vpop.permute.xlu0 %2810
        %2812 = vrot.lane.b32.xlu0 %v2783, 64
        %v2813 = vpop.permute.xlu0 %2812
        %2814 = vrot.lane.b32.xlu0 %v2784, 64
        %v2815 = vpop.permute.xlu0 %2814
        %2816 = vrot.lane.b32.xlu0 %v2785, 64
        %v2817 = vpop.permute.xlu0 %2816
        %v2818 = vunpack.c.l.b16 %v1374
        %v2819 = vunpack.c.l.b16 %v1384
        %v2820 = vunpack.c.l.b16 %v1398
        %v2821 = vunpack.c.l.b16 %v1408
        %v2822 = vunpack.c.l.b16 %v1422
        %v2823 = vunpack.c.l.b16 %v1432
        %v2824 = vunpack.c.l.b16 %v1446
        %v2825 = vunpack.c.l.b16 %v1456
        %v2826 = vunpack.c.l.b16 %v1470
        %v2827 = vunpack.c.l.b16 %v1480
        %v2828 = vunpack.c.l.b16 %v1494
        %v2829 = vunpack.c.l.b16 %v1504
        %v2830 = vunpack.c.l.b16 %v1518
        %v2831 = vunpack.c.l.b16 %v1528
        %v2832 = vunpack.c.l.b16 %v1542
        %v2833 = vunpack.c.l.b16 %v1552
        %v2834 = vunpack.c.l.b16 %v1566
        %v2835 = vunpack.c.l.b16 %v1576
        %v2836 = vunpack.c.l.b16 %v1590
        %v2837 = vunpack.c.l.b16 %v1600
        %v2838 = vunpack.c.l.b16 %v1614
        %v2839 = vunpack.c.l.b16 %v1624
        %v2840 = vunpack.c.l.b16 %v1638
        %v2841 = vunpack.c.l.b16 %v1648
        %v2842 = vunpack.c.l.b16 %v1662
        %v2843 = vunpack.c.l.b16 %v1672
        %v2844 = vunpack.c.l.b16 %v1686
        %v2845 = vunpack.c.l.b16 %v1696
        %v2846 = vunpack.c.l.b16 %v1710
        %v2847 = vunpack.c.l.b16 %v1720
        %v2848 = vunpack.c.l.b16 %v1734
        %v2849 = vunpack.c.l.b16 %v1744
        %v2850 = vpack.c.b16 %v2819, %v2818
        %v2851 = vpack.c.b16 %v2821, %v2820
        %v2852 = vpack.c.b16 %v2823, %v2822
        %v2853 = vpack.c.b16 %v2825, %v2824
        %v2854 = vpack.c.b16 %v2827, %v2826
        %v2855 = vpack.c.b16 %v2829, %v2828
        %v2856 = vpack.c.b16 %v2831, %v2830
        %v2857 = vpack.c.b16 %v2833, %v2832
        %v2858 = vpack.c.b16 %v2835, %v2834
        %v2859 = vpack.c.b16 %v2837, %v2836
        %v2860 = vpack.c.b16 %v2839, %v2838
        %v2861 = vpack.c.b16 %v2841, %v2840
        %v2862 = vpack.c.b16 %v2843, %v2842
        %v2863 = vpack.c.b16 %v2845, %v2844
        %v2864 = vpack.c.b16 %v2847, %v2846
        %v2865 = vpack.c.b16 %v2849, %v2848
        %v2866 = vunpack.c.l.b16 %v1812
        %v2867 = vunpack.c.l.b16 %v1815
        %v2868 = vunpack.c.l.b16 %v1819
        %v2869 = vunpack.c.l.b16 %v1822
        %v2870 = vunpack.c.l.b16 %v1826
        %v2871 = vunpack.c.l.b16 %v1829
        %v2872 = vunpack.c.l.b16 %v1833
        %v2873 = vunpack.c.l.b16 %v1836
        %v2874 = vunpack.c.l.b16 %v1840
        %v2875 = vunpack.c.l.b16 %v1843
        %v2876 = vunpack.c.l.b16 %v1847
        %v2877 = vunpack.c.l.b16 %v1850
        %v2878 = vunpack.c.l.b16 %v1854
        %v2879 = vunpack.c.l.b16 %v1857
        %v2880 = vunpack.c.l.b16 %v1861
        %v2881 = vunpack.c.l.b16 %v1864
        %v2882 = vunpack.c.l.b16 %v1868
        %v2883 = vunpack.c.l.b16 %v1871
        %v2884 = vunpack.c.l.b16 %v1875
        %v2885 = vunpack.c.l.b16 %v1878
        %v2886 = vunpack.c.l.b16 %v1882
        %v2887 = vunpack.c.l.b16 %v1885
        %v2888 = vunpack.c.l.b16 %v1889
        %v2889 = vunpack.c.l.b16 %v1892
        %v2890 = vunpack.c.l.b16 %v1896
        %v2891 = vunpack.c.l.b16 %v1899
        %v2892 = vunpack.c.l.b16 %v1903
        %v2893 = vunpack.c.l.b16 %v1906
        %v2894 = vunpack.c.l.b16 %v1910
        %v2895 = vunpack.c.l.b16 %v1913
        %v2896 = vunpack.c.l.b16 %v1917
        %v2897 = vunpack.c.l.b16 %v1920
        %v2898 = vpack.c.b16 %v2867, %v2866
        %v2899 = vpack.c.b16 %v2869, %v2868
        %v2900 = vpack.c.b16 %v2871, %v2870
        %v2901 = vpack.c.b16 %v2873, %v2872
        %v2902 = vpack.c.b16 %v2875, %v2874
        %v2903 = vpack.c.b16 %v2877, %v2876
        %v2904 = vpack.c.b16 %v2879, %v2878
        %v2905 = vpack.c.b16 %v2881, %v2880
        %v2906 = vpack.c.b16 %v2883, %v2882
        %v2907 = vpack.c.b16 %v2885, %v2884
        %v2908 = vpack.c.b16 %v2887, %v2886
        %v2909 = vpack.c.b16 %v2889, %v2888
        %v2910 = vpack.c.b16 %v2891, %v2890
        %v2911 = vpack.c.b16 %v2893, %v2892
        %v2912 = vpack.c.b16 %v2895, %v2894
        %v2913 = vpack.c.b16 %v2897, %v2896
        %2914 = vrot.lane.b32.xlu0 %v2898, 64
        %v2915 = vpop.permute.xlu0 %2914
        %2916 = vrot.lane.b32.xlu0 %v2899, 64
        %v2917 = vpop.permute.xlu0 %2916
        %2918 = vrot.lane.b32.xlu0 %v2900, 64
        %v2919 = vpop.permute.xlu0 %2918
        %2920 = vrot.lane.b32.xlu0 %v2901, 64
        %v2921 = vpop.permute.xlu0 %2920
        %2922 = vrot.lane.b32.xlu0 %v2902, 64
        %v2923 = vpop.permute.xlu0 %2922
        %2924 = vrot.lane.b32.xlu0 %v2903, 64
        %v2925 = vpop.permute.xlu0 %2924
        %2926 = vrot.lane.b32.xlu0 %v2904, 64
        %v2927 = vpop.permute.xlu0 %2926
        %2928 = vrot.lane.b32.xlu0 %v2905, 64
        %v2929 = vpop.permute.xlu0 %2928
        %2930 = vrot.lane.b32.xlu0 %v2906, 64
        %v2931 = vpop.permute.xlu0 %2930
        %2932 = vrot.lane.b32.xlu0 %v2907, 64
        %v2933 = vpop.permute.xlu0 %2932
        %2934 = vrot.lane.b32.xlu0 %v2908, 64
        %v2935 = vpop.permute.xlu0 %2934
        %2936 = vrot.lane.b32.xlu0 %v2909, 64
        %v2937 = vpop.permute.xlu0 %2936
        %2938 = vrot.lane.b32.xlu0 %v2910, 64
        %v2939 = vpop.permute.xlu0 %2938
        %2940 = vrot.lane.b32.xlu0 %v2911, 64
        %v2941 = vpop.permute.xlu0 %2940
        %2942 = vrot.lane.b32.xlu0 %v2912, 64
        %v2943 = vpop.permute.xlu0 %2942
        %2944 = vrot.lane.b32.xlu0 %v2913, 64
        %v2945 = vpop.permute.xlu0 %2944
        %v2962 = vunpack.c.l.b16 %v1922
        %v2963 = vunpack.c.l.b16 %v1923
        %v2964 = vunpack.c.l.b16 %v1924
        %v2965 = vunpack.c.l.b16 %v1925
        %v2966 = vunpack.c.l.b16 %v1926
        %v2967 = vunpack.c.l.b16 %v1927
        %v2968 = vunpack.c.l.b16 %v1928
        %v2969 = vunpack.c.l.b16 %v1929
        %v2970 = vunpack.c.l.b16 %v1930
        %v2971 = vunpack.c.l.b16 %v1931
        %v2972 = vunpack.c.l.b16 %v1932
        %v2973 = vunpack.c.l.b16 %v1933
        %v2974 = vunpack.c.l.b16 %v1934
        %v2975 = vunpack.c.l.b16 %v1935
        %v2976 = vunpack.c.l.b16 %v1936
        %v2977 = vunpack.c.l.b16 %v1937
        %v2978 = vunpack.c.l.b16 %v1938
        %v2979 = vunpack.c.l.b16 %v1939
        %v2980 = vunpack.c.l.b16 %v1940
        %v2981 = vunpack.c.l.b16 %v1941
        %v2982 = vunpack.c.l.b16 %v1942
        %v2983 = vunpack.c.l.b16 %v1943
        %v2984 = vunpack.c.l.b16 %v1944
        %v2985 = vunpack.c.l.b16 %v1945
        %v2986 = vunpack.c.l.b16 %v1946
        %v2987 = vunpack.c.l.b16 %v1947
        %v2988 = vunpack.c.l.b16 %v1948
        %v2989 = vunpack.c.l.b16 %v1949
        %v2990 = vunpack.c.l.b16 %v1950
        %v2991 = vunpack.c.l.b16 %v1951
        %v2992 = vunpack.c.l.b16 %v1952
        %v2993 = vunpack.c.l.b16 %v1953
        %v2994 = vpack.c.b16 %v2963, %v2962
        %v2995 = vpack.c.b16 %v2965, %v2964
        %v2996 = vpack.c.b16 %v2967, %v2966
        %v2997 = vpack.c.b16 %v2969, %v2968
        %v2998 = vpack.c.b16 %v2971, %v2970
        %v2999 = vpack.c.b16 %v2973, %v2972
        %v3000 = vpack.c.b16 %v2975, %v2974
        %v3001 = vpack.c.b16 %v2977, %v2976
        %v3002 = vpack.c.b16 %v2979, %v2978
        %v3003 = vpack.c.b16 %v2981, %v2980
        %v3004 = vpack.c.b16 %v2983, %v2982
        %v3005 = vpack.c.b16 %v2985, %v2984
        %v3006 = vpack.c.b16 %v2987, %v2986
        %v3007 = vpack.c.b16 %v2989, %v2988
        %v3008 = vpack.c.b16 %v2991, %v2990
        %v3009 = vpack.c.b16 %v2993, %v2992
        %v3010 = vunpack.c.l.b16 %v1983
        %v3011 = vunpack.c.l.b16 %v1993
        %v3012 = vunpack.c.l.b16 %v2007
        %v3013 = vunpack.c.l.b16 %v2017
        %v3014 = vunpack.c.l.b16 %v2031
        %v3015 = vunpack.c.l.b16 %v2041
        %v3016 = vunpack.c.l.b16 %v2055
        %v3017 = vunpack.c.l.b16 %v2065
        %v3018 = vunpack.c.l.b16 %v2079
        %v3019 = vunpack.c.l.b16 %v2089
        %v3020 = vunpack.c.l.b16 %v2103
        %v3021 = vunpack.c.l.b16 %v2113
        %v3022 = vunpack.c.l.b16 %v2127
        %v3023 = vunpack.c.l.b16 %v2137
        %v3024 = vunpack.c.l.b16 %v2151
        %v3025 = vunpack.c.l.b16 %v2161
        %v3026 = vunpack.c.l.b16 %v2175
        %v3027 = vunpack.c.l.b16 %v2185
        %v3028 = vunpack.c.l.b16 %v2199
        %v3029 = vunpack.c.l.b16 %v2209
        %v3030 = vunpack.c.l.b16 %v2223
        %v3031 = vunpack.c.l.b16 %v2233
        %v3032 = vunpack.c.l.b16 %v2247
        %v3033 = vunpack.c.l.b16 %v2257
        %v3034 = vunpack.c.l.b16 %v2271
        %v3035 = vunpack.c.l.b16 %v2281
        %v3036 = vunpack.c.l.b16 %v2295
        %v3037 = vunpack.c.l.b16 %v2305
        %v3038 = vunpack.c.l.b16 %v2319
        %v3039 = vunpack.c.l.b16 %v2329
        %v3040 = vunpack.c.l.b16 %v2343
        %v3041 = vunpack.c.l.b16 %v2353
        %v3042 = vpack.c.b16 %v3011, %v3010
        %v3043 = vpack.c.b16 %v3013, %v3012
        %v3044 = vpack.c.b16 %v3015, %v3014
        %v3045 = vpack.c.b16 %v3017, %v3016
        %v3046 = vpack.c.b16 %v3019, %v3018
        %v3047 = vpack.c.b16 %v3021, %v3020
        %v3048 = vpack.c.b16 %v3023, %v3022
        %v3049 = vpack.c.b16 %v3025, %v3024
        %v3050 = vpack.c.b16 %v3027, %v3026
        %v3051 = vpack.c.b16 %v3029, %v3028
        %v3052 = vpack.c.b16 %v3031, %v3030
        %v3053 = vpack.c.b16 %v3033, %v3032
        %v3054 = vpack.c.b16 %v3035, %v3034
        %v3055 = vpack.c.b16 %v3037, %v3036
        %v3056 = vpack.c.b16 %v3039, %v3038
        %v3057 = vpack.c.b16 %v3041, %v3040
        %3058 = vrot.lane.b32.xlu0 %v3042, 64
        %v3059 = vpop.permute.xlu0 %3058
        %3060 = vrot.lane.b32.xlu0 %v3043, 64
        %v3061 = vpop.permute.xlu0 %3060
        %3062 = vrot.lane.b32.xlu0 %v3044, 64
        %v3063 = vpop.permute.xlu0 %3062
        %3064 = vrot.lane.b32.xlu0 %v3045, 64
        %v3065 = vpop.permute.xlu0 %3064
        %3066 = vrot.lane.b32.xlu0 %v3046, 64
        %v3067 = vpop.permute.xlu0 %3066
        %3068 = vrot.lane.b32.xlu0 %v3047, 64
        %v3069 = vpop.permute.xlu0 %3068
        %3070 = vrot.lane.b32.xlu0 %v3048, 64
        %v3071 = vpop.permute.xlu0 %3070
        %3072 = vrot.lane.b32.xlu0 %v3049, 64
        %v3073 = vpop.permute.xlu0 %3072
        %3074 = vrot.lane.b32.xlu0 %v3050, 64
        %v3075 = vpop.permute.xlu0 %3074
        %3076 = vrot.lane.b32.xlu0 %v3051, 64
        %v3077 = vpop.permute.xlu0 %3076
        %3078 = vrot.lane.b32.xlu0 %v3052, 64
        %v3079 = vpop.permute.xlu0 %3078
        %3080 = vrot.lane.b32.xlu0 %v3053, 64
        %v3081 = vpop.permute.xlu0 %3080
        %3082 = vrot.lane.b32.xlu0 %v3054, 64
        %v3083 = vpop.permute.xlu0 %3082
        %3084 = vrot.lane.b32.xlu0 %v3055, 64
        %v3085 = vpop.permute.xlu0 %3084
        %3086 = vrot.lane.b32.xlu0 %v3056, 64
        %v3087 = vpop.permute.xlu0 %3086
        %3088 = vrot.lane.b32.xlu0 %v3057, 64
        %v3089 = vpop.permute.xlu0 %3088
        %v3090 = vunpack.c.l.b16 %v2421
        %v3091 = vunpack.c.l.b16 %v2424
        %v3092 = vunpack.c.l.b16 %v2428
        %v3093 = vunpack.c.l.b16 %v2431
        %v3094 = vunpack.c.l.b16 %v2435
        %v3095 = vunpack.c.l.b16 %v2438
        %v3096 = vunpack.c.l.b16 %v2442
        %v3097 = vunpack.c.l.b16 %v2445
        %v3098 = vunpack.c.l.b16 %v2449
        %v3099 = vunpack.c.l.b16 %v2452
        %v3100 = vunpack.c.l.b16 %v2456
        %v3101 = vunpack.c.l.b16 %v2459
        %v3102 = vunpack.c.l.b16 %v2463
        %v3103 = vunpack.c.l.b16 %v2466
        %v3104 = vunpack.c.l.b16 %v2470
        %v3105 = vunpack.c.l.b16 %v2473
        %v3106 = vunpack.c.l.b16 %v2477
        %v3107 = vunpack.c.l.b16 %v2480
        %v3108 = vunpack.c.l.b16 %v2484
        %v3109 = vunpack.c.l.b16 %v2487
        %v3110 = vunpack.c.l.b16 %v2491
        %v3111 = vunpack.c.l.b16 %v2494
        %v3112 = vunpack.c.l.b16 %v2498
        %v3113 = vunpack.c.l.b16 %v2501
        %v3114 = vunpack.c.l.b16 %v2505
        %v3115 = vunpack.c.l.b16 %v2508
        %v3116 = vunpack.c.l.b16 %v2512
        %v3117 = vunpack.c.l.b16 %v2515
        %v3118 = vunpack.c.l.b16 %v2519
        %v3119 = vunpack.c.l.b16 %v2522
        %v3120 = vunpack.c.l.b16 %v2526
        %v3121 = vunpack.c.l.b16 %v2529
        %v3122 = vpack.c.b16 %v3091, %v3090
        %v3123 = vpack.c.b16 %v3093, %v3092
        %v3124 = vpack.c.b16 %v3095, %v3094
        %v3125 = vpack.c.b16 %v3097, %v3096
        %v3126 = vpack.c.b16 %v3099, %v3098
        %v3127 = vpack.c.b16 %v3101, %v3100
        %v3128 = vpack.c.b16 %v3103, %v3102
        %v3129 = vpack.c.b16 %v3105, %v3104
        %v3130 = vpack.c.b16 %v3107, %v3106
        %v3131 = vpack.c.b16 %v3109, %v3108
        %v3132 = vpack.c.b16 %v3111, %v3110
        %v3133 = vpack.c.b16 %v3113, %v3112
        %v3134 = vpack.c.b16 %v3115, %v3114
        %v3135 = vpack.c.b16 %v3117, %v3116
        %v3136 = vpack.c.b16 %v3119, %v3118
        %v3137 = vpack.c.b16 %v3121, %v3120
        %vm3138 = vcmask 523264
        %v3141 = vsel %vm3138, %v2578, %v2643
        %v3145 = vsel %vm3138, %v2579, %v2645
        %v3149 = vsel %vm3138, %v2580, %v2647
        %v3153 = vsel %vm3138, %v2581, %v2649
        %v3157 = vsel %vm3138, %v2582, %v2651
        %v3161 = vsel %vm3138, %v2583, %v2653
        %v3165 = vsel %vm3138, %v2584, %v2655
        %v3169 = vsel %vm3138, %v2585, %v2657
        %v3173 = vsel %vm3138, %v2586, %v2659
        %v3177 = vsel %vm3138, %v2587, %v2661
        %v3181 = vsel %vm3138, %v2588, %v2663
        %v3185 = vsel %vm3138, %v2589, %v2665
        %v3189 = vsel %vm3138, %v2590, %v2667
        %v3193 = vsel %vm3138, %v2591, %v2669
        %v3197 = vsel %vm3138, %v2592, %v2671
        %v3201 = vsel %vm3138, %v2593, %v2673
        %v3205 = vsel %vm3138, %v2706, %v2787
        %v3209 = vsel %vm3138, %v2707, %v2789
        %v3213 = vsel %vm3138, %v2708, %v2791
        %v3217 = vsel %vm3138, %v2709, %v2793
        %v3221 = vsel %vm3138, %v2710, %v2795
        %v3225 = vsel %vm3138, %v2711, %v2797
        %v3229 = vsel %vm3138, %v2712, %v2799
        %v3233 = vsel %vm3138, %v2713, %v2801
        %v3237 = vsel %vm3138, %v2714, %v2803
        %v3241 = vsel %vm3138, %v2715, %v2805
        %v3245 = vsel %vm3138, %v2716, %v2807
        %v3249 = vsel %vm3138, %v2717, %v2809
        %v3253 = vsel %vm3138, %v2718, %v2811
        %v3257 = vsel %vm3138, %v2719, %v2813
        %v3261 = vsel %vm3138, %v2720, %v2815
        %v3265 = vsel %vm3138, %v2721, %v2817
        %v3269 = vsel %vm3138, %v2850, %v2915
        %v3273 = vsel %vm3138, %v2851, %v2917
        %v3277 = vsel %vm3138, %v2852, %v2919
        %v3281 = vsel %vm3138, %v2853, %v2921
        %v3285 = vsel %vm3138, %v2854, %v2923
        %v3289 = vsel %vm3138, %v2855, %v2925
        %v3293 = vsel %vm3138, %v2856, %v2927
        %v3297 = vsel %vm3138, %v2857, %v2929
        %v3301 = vsel %vm3138, %v2858, %v2931
        %v3305 = vsel %vm3138, %v2859, %v2933
        %v3309 = vsel %vm3138, %v2860, %v2935
        %v3313 = vsel %vm3138, %v2861, %v2937
        %v3317 = vsel %vm3138, %v2862, %v2939
        %v3321 = vsel %vm3138, %v2863, %v2941
        %v3325 = vsel %vm3138, %v2864, %v2943
        %v3329 = vsel %vm3138, %v2865, %v2945
        %v3333 = vsel %vm3138, %v2994, %v3059
        %v3337 = vsel %vm3138, %v2995, %v3061
        %v3341 = vsel %vm3138, %v2996, %v3063
        %v3345 = vsel %vm3138, %v2997, %v3065
        %v3349 = vsel %vm3138, %v2998, %v3067
        %v3353 = vsel %vm3138, %v2999, %v3069
        %v3357 = vsel %vm3138, %v3000, %v3071
        %v3361 = vsel %vm3138, %v3001, %v3073
        %v3365 = vsel %vm3138, %v3002, %v3075
        %v3369 = vsel %vm3138, %v3003, %v3077
        %v3373 = vsel %vm3138, %v3004, %v3079
        %v3377 = vsel %vm3138, %v3005, %v3081
        %v3381 = vsel %vm3138, %v3006, %v3083
        %v3385 = vsel %vm3138, %v3007, %v3085
        %v3389 = vsel %vm3138, %v3008, %v3087
        %v3393 = vsel %vm3138, %v3009, %v3089
        %v3395 = vld [vmem:[%s1] sm:$0xf]
        %v3396 = vld [vmem:[%s1 + $0x4] sm:$0xf]
        %v3397 = vld [vmem:[%s1 + $0x8] sm:$0xf]
        %v3398 = vld [vmem:[%s1 + $0xc] sm:$0xf]
        %v3399 = vld [vmem:[%s1 + $0x10] sm:$0xf]
        %v3400 = vld [vmem:[%s1 + $0x14] sm:$0xf]
        %v3401 = vld [vmem:[%s1 + $0x18] sm:$0xf]
        %v3402 = vld [vmem:[%s1 + $0x1c] sm:$0xf]
        %v3403 = vld [vmem:[%s1 + $0x20] sm:$0xf]
        %v3404 = vld [vmem:[%s1 + $0x24] sm:$0xf]
        %v3405 = vld [vmem:[%s1 + $0x28] sm:$0xf]
        %v3406 = vld [vmem:[%s1 + $0x2c] sm:$0xf]
        %v3407 = vld [vmem:[%s1 + $0x30] sm:$0xf]
        %v3408 = vld [vmem:[%s1 + $0x34] sm:$0xf]
        %v3409 = vld [vmem:[%s1 + $0x38] sm:$0xf]
        %v3410 = vld [vmem:[%s1 + $0x3c] sm:$0xf]
        %v3411 = vld [vmem:[%s1 + $0x40] sm:$0xf]
        %v3412 = vld [vmem:[%s1 + $0x44] sm:$0xf]
        %v3413 = vld [vmem:[%s1 + $0x48] sm:$0xf]
        %v3414 = vld [vmem:[%s1 + $0x4c] sm:$0xf]
        %v3415 = vld [vmem:[%s1 + $0x50] sm:$0xf]
        %v3416 = vld [vmem:[%s1 + $0x54] sm:$0xf]
        %v3417 = vld [vmem:[%s1 + $0x58] sm:$0xf]
        %v3418 = vld [vmem:[%s1 + $0x5c] sm:$0xf]
        %v3419 = vld [vmem:[%s1 + $0x60] sm:$0xf]
        %v3420 = vld [vmem:[%s1 + $0x64] sm:$0xf]
        %v3421 = vld [vmem:[%s1 + $0x68] sm:$0xf]
        %v3422 = vld [vmem:[%s1 + $0x6c] sm:$0xf]
        %v3423 = vld [vmem:[%s1 + $0x70] sm:$0xf]
        %v3424 = vld [vmem:[%s1 + $0x74] sm:$0xf]
        %v3425 = vld [vmem:[%s1 + $0x78] sm:$0xf]
        %v3426 = vld [vmem:[%s1 + $0x7c] sm:$0xf]
        %v3427 = vld [vmem:[%s1 + $0x80] sm:$0xf]
        %v3428 = vld [vmem:[%s1 + $0x84] sm:$0xf]
        %v3429 = vld [vmem:[%s1 + $0x88] sm:$0xf]
        %v3430 = vld [vmem:[%s1 + $0x8c] sm:$0xf]
        %v3431 = vld [vmem:[%s1 + $0x90] sm:$0xf]
        %v3432 = vld [vmem:[%s1 + $0x94] sm:$0xf]
        %v3433 = vld [vmem:[%s1 + $0x98] sm:$0xf]
        %v3434 = vld [vmem:[%s1 + $0x9c] sm:$0xf]
        %v3435 = vld [vmem:[%s1 + $0xa0] sm:$0xf]
        %v3436 = vld [vmem:[%s1 + $0xa4] sm:$0xf]
        %v3437 = vld [vmem:[%s1 + $0xa8] sm:$0xf]
        %v3438 = vld [vmem:[%s1 + $0xac] sm:$0xf]
        %v3439 = vld [vmem:[%s1 + $0xb0] sm:$0xf]
        %v3440 = vld [vmem:[%s1 + $0xb4] sm:$0xf]
        %v3441 = vld [vmem:[%s1 + $0xb8] sm:$0xf]
        %v3442 = vld [vmem:[%s1 + $0xbc] sm:$0xf]
        %v3443 = vld [vmem:[%s1 + $0xc0] sm:$0xf]
        %v3444 = vld [vmem:[%s1 + $0xc4] sm:$0xf]
        %v3445 = vld [vmem:[%s1 + $0xc8] sm:$0xf]
        %v3446 = vld [vmem:[%s1 + $0xcc] sm:$0xf]
        %v3447 = vld [vmem:[%s1 + $0xd0] sm:$0xf]
        %v3448 = vld [vmem:[%s1 + $0xd4] sm:$0xf]
        %v3449 = vld [vmem:[%s1 + $0xd8] sm:$0xf]
        %v3450 = vld [vmem:[%s1 + $0xdc] sm:$0xf]
        %v3451 = vld [vmem:[%s1 + $0xe0] sm:$0xf]
        %v3452 = vld [vmem:[%s1 + $0xe4] sm:$0xf]
        %v3453 = vld [vmem:[%s1 + $0xe8] sm:$0xf]
        %v3454 = vld [vmem:[%s1 + $0xec] sm:$0xf]
        %v3455 = vld [vmem:[%s1 + $0xf0] sm:$0xf]
        %v3456 = vld [vmem:[%s1 + $0xf4] sm:$0xf]
        %v3457 = vld [vmem:[%s1 + $0xf8] sm:$0xf]
        %v3458 = vld [vmem:[%s1 + $0xfc] sm:$0xf]
        %v3459 = vld [vmem:[%s1 + $0x100] sm:$0xf]
        %v3460 = vld [vmem:[%s1 + $0x104] sm:$0xf]
        %v3461 = vld [vmem:[%s1 + $0x108] sm:$0xf]
        %v3462 = vld [vmem:[%s1 + $0x10c] sm:$0xf]
        %v3463 = vld [vmem:[%s1 + $0x110] sm:$0xf]
        %v3464 = vld [vmem:[%s1 + $0x114] sm:$0xf]
        %v3465 = vld [vmem:[%s1 + $0x118] sm:$0xf]
        %v3466 = vld [vmem:[%s1 + $0x11c] sm:$0xf]
        %v3539 = vunpack.c.l.b16 %v3395
        %v3540 = vunpack.c.l.b16 %v3396
        %v3541 = vunpack.c.l.b16 %v3397
        %v3542 = vunpack.c.l.b16 %v3398
        %v3543 = vunpack.c.l.b16 %v3399
        %v3544 = vunpack.c.l.b16 %v3400
        %v3545 = vunpack.c.l.b16 %v3401
        %v3546 = vunpack.c.l.b16 %v3402
        %v3547 = vunpack.c.l.b16 %v3403
        %v3548 = vunpack.c.l.b16 %v3404
        %v3549 = vunpack.c.l.b16 %v3405
        %v3550 = vunpack.c.l.b16 %v3406
        %v3551 = vunpack.c.l.b16 %v3407
        %v3552 = vunpack.c.l.b16 %v3408
        %v3553 = vunpack.c.l.b16 %v3409
        %v3554 = vunpack.c.l.b16 %v3410
        %v3555 = vunpack.c.l.b16 %v3411
        %v3556 = vunpack.c.l.b16 %v3412
        %v3557 = vunpack.c.l.b16 %v3413
        %v3558 = vunpack.c.l.b16 %v3414
        %v3559 = vunpack.c.l.b16 %v3415
        %v3560 = vunpack.c.l.b16 %v3416
        %v3561 = vunpack.c.l.b16 %v3417
        %v3562 = vunpack.c.l.b16 %v3418
        %v3563 = vunpack.c.l.b16 %v3419
        %v3564 = vunpack.c.l.b16 %v3420
        %v3565 = vunpack.c.l.b16 %v3421
        %v3566 = vunpack.c.l.b16 %v3422
        %v3567 = vunpack.c.l.b16 %v3423
        %v3568 = vunpack.c.l.b16 %v3424
        %v3569 = vunpack.c.l.b16 %v3425
        %v3570 = vunpack.c.l.b16 %v3426
        %v3571 = vunpack.c.l.b16 %v3427
        %v3572 = vunpack.c.l.b16 %v3428
        %v3573 = vunpack.c.l.b16 %v3429
        %v3574 = vunpack.c.l.b16 %v3430
        %v3575 = vunpack.c.l.b16 %v3431
        %v3576 = vunpack.c.l.b16 %v3432
        %v3577 = vunpack.c.l.b16 %v3433
        %v3578 = vunpack.c.l.b16 %v3434
        %v3579 = vunpack.c.l.b16 %v3435
        %v3580 = vunpack.c.l.b16 %v3436
        %v3581 = vunpack.c.l.b16 %v3437
        %v3582 = vunpack.c.l.b16 %v3438
        %v3583 = vunpack.c.l.b16 %v3439
        %v3584 = vunpack.c.l.b16 %v3440
        %v3585 = vunpack.c.l.b16 %v3441
        %v3586 = vunpack.c.l.b16 %v3442
        %v3587 = vunpack.c.l.b16 %v3443
        %v3588 = vunpack.c.l.b16 %v3444
        %v3589 = vunpack.c.l.b16 %v3445
        %v3590 = vunpack.c.l.b16 %v3446
        %v3591 = vunpack.c.l.b16 %v3447
        %v3592 = vunpack.c.l.b16 %v3448
        %v3593 = vunpack.c.l.b16 %v3449
        %v3594 = vunpack.c.l.b16 %v3450
        %v3595 = vunpack.c.l.b16 %v3451
        %v3596 = vunpack.c.l.b16 %v3452
        %v3597 = vunpack.c.l.b16 %v3453
        %v3598 = vunpack.c.l.b16 %v3454
        %v3599 = vunpack.c.l.b16 %v3455
        %v3600 = vunpack.c.l.b16 %v3456
        %v3601 = vunpack.c.l.b16 %v3457
        %v3602 = vunpack.c.l.b16 %v3458
        %v3603 = vunpack.c.l.b16 %v3459
        %v3604 = vunpack.c.l.b16 %v3460
        %v3605 = vunpack.c.l.b16 %v3461
        %v3606 = vunpack.c.l.b16 %v3462
        %v3607 = vunpack.c.l.b16 %v3463
        %v3608 = vunpack.c.l.b16 %v3464
        %v3609 = vunpack.c.l.b16 %v3465
        %v3610 = vunpack.c.l.b16 %v3466
        %v3611 = vpack.c.b16 %v3540, %v3539
        %v3612 = vpack.c.b16 %v3542, %v3541
        %v3613 = vpack.c.b16 %v3544, %v3543
        %v3614 = vpack.c.b16 %v3546, %v3545
        %v3615 = vpack.c.b16 %v3548, %v3547
        %v3616 = vpack.c.b16 %v3550, %v3549
        %v3617 = vpack.c.b16 %v3552, %v3551
        %v3618 = vpack.c.b16 %v3554, %v3553
        %v3619 = vpack.c.b16 %v3556, %v3555
        %v3620 = vpack.c.b16 %v3558, %v3557
        %v3621 = vpack.c.b16 %v3560, %v3559
        %v3622 = vpack.c.b16 %v3562, %v3561
        %v3623 = vpack.c.b16 %v3564, %v3563
        %v3624 = vpack.c.b16 %v3566, %v3565
        %v3625 = vpack.c.b16 %v3568, %v3567
        %v3626 = vpack.c.b16 %v3570, %v3569
        %v3627 = vpack.c.b16 %v3572, %v3571
        %v3628 = vpack.c.b16 %v3574, %v3573
        %v3629 = vpack.c.b16 %v3576, %v3575
        %v3630 = vpack.c.b16 %v3578, %v3577
        %v3631 = vpack.c.b16 %v3580, %v3579
        %v3632 = vpack.c.b16 %v3582, %v3581
        %v3633 = vpack.c.b16 %v3584, %v3583
        %v3634 = vpack.c.b16 %v3586, %v3585
        %v3635 = vpack.c.b16 %v3588, %v3587
        %v3636 = vpack.c.b16 %v3590, %v3589
        %v3637 = vpack.c.b16 %v3592, %v3591
        %v3638 = vpack.c.b16 %v3594, %v3593
        %v3639 = vpack.c.b16 %v3596, %v3595
        %v3640 = vpack.c.b16 %v3598, %v3597
        %v3641 = vpack.c.b16 %v3600, %v3599
        %v3642 = vpack.c.b16 %v3602, %v3601
        %v3643 = vpack.c.b16 %v3604, %v3603
        %v3644 = vpack.c.b16 %v3606, %v3605
        %v3645 = vpack.c.b16 %v3608, %v3607
        %v3646 = vpack.c.b16 %v3610, %v3609
        %v3684 = vsel %vm3138, %v3122, 0
        %v3687 = vsel %vm3138, %v3123, 0
        %v3690 = vsel %vm3138, %v3124, 0
        %v3693 = vsel %vm3138, %v3125, 0
        %v3696 = vsel %vm3138, %v3126, 0
        %v3699 = vsel %vm3138, %v3127, 0
        %v3702 = vsel %vm3138, %v3128, 0
        %v3705 = vsel %vm3138, %v3129, 0
        %v3708 = vsel %vm3138, %v3130, 0
        %v3711 = vsel %vm3138, %v3131, 0
        %v3714 = vsel %vm3138, %v3132, 0
        %v3717 = vsel %vm3138, %v3133, 0
        %v3720 = vsel %vm3138, %v3134, 0
        %v3723 = vsel %vm3138, %v3135, 0
        %v3726 = vsel %vm3138, %v3136, 0
        %v3729 = vsel %vm3138, %v3137, 0
        %3731 = vmatprep.subr.bf16.mxu0 0
        %3732 = vmatpush1.bf16.msra.mxu0 %v3611
        %3733 = vmatprep.subr.bf16.mxu0 0
        %3734 = vmatpush1.bf16.msra.mxu0 %v3612
        %3735 = vmatprep.subr.bf16.mxu0 0
        %3736 = vmatpush1.bf16.msra.mxu0 %v3613
        %3737 = vmatprep.subr.bf16.mxu0 0
        %3738 = vmatpush1.bf16.msra.mxu0 %v3614
        %3739 = vmatprep.subr.bf16.mxu0 0
        %3740 = vmatpush1.bf16.msra.mxu0 %v3615
        %3741 = vmatprep.subr.bf16.mxu0 0
        %3742 = vmatpush1.bf16.msra.mxu0 %v3616
        %3743 = vmatprep.subr.bf16.mxu0 0
        %3744 = vmatpush1.bf16.msra.mxu0 %v3617
        %3745 = vmatprep.subr.bf16.mxu0 0
        %3746 = vmatpush1.bf16.msra.mxu0 %v3618
        %3747 = vmatprep.subr.bf16.mxu0 0
        %3748 = vmatpush1.bf16.msra.mxu0 %v3619
        %3749 = vmatprep.subr.bf16.mxu0 0
        %3750 = vmatpush1.bf16.msra.mxu0 %v3620
        %3751 = vmatprep.subr.bf16.mxu0 0
        %3752 = vmatpush1.bf16.msra.mxu0 %v3621
        %3753 = vmatprep.subr.bf16.mxu0 0
        %3754 = vmatpush1.bf16.msra.mxu0 %v3622
        %3755 = vmatprep.subr.bf16.mxu0 0
        %3756 = vmatpush1.bf16.msra.mxu0 %v3623
        %3757 = vmatprep.subr.bf16.mxu0 0
        %3758 = vmatpush1.bf16.msra.mxu0 %v3624
        %3759 = vmatprep.subr.bf16.mxu0 0
        %3760 = vmatpush1.bf16.msra.mxu0 %v3625
        %3761 = vmatprep.subr.bf16.mxu0 0
        %3762 = vmatpush1.bf16.msra.mxu0 %v3626
        %3763 = vmatprep.mubr.bf16.mxu0 %v3205
        %3764 = vmatmul.mubr.bf16.gmra.mrb[0].mxu0 %v3141
        %v3765 = vpop.f32.mrb[0].mxu0
        %v3766 = vadd.f32 0.0, %v3765
        %v3767 = vpop.f32.mrb[0].mxu0
        %v3768 = vpop.f32.mrb[0].mxu0
        %v3769 = vadd.f32 0.0, %v3768
        %v3770 = vpop.f32.mrb[0].mxu0
        %3771 = vmatprep.mubr.bf16.mxu0 %v3209
        %3772 = vmatmul.mubr.bf16.gmra.mrb[0].mxu0 %v3145
        %v3773 = vpop.f32.mrb[0].mxu0
        %v3774 = vadd.f32 0.0, %v3773
        %v3775 = vpop.f32.mrb[0].mxu0
        %v3776 = vpop.f32.mrb[0].mxu0
        %v3777 = vadd.f32 0.0, %v3776
        %v3778 = vpop.f32.mrb[0].mxu0
        %3779 = vmatprep.mubr.bf16.mxu0 %v3213
        %3780 = vmatmul.mubr.bf16.gmra.mrb[0].mxu0 %v3149
        %v3781 = vpop.f32.mrb[0].mxu0
        %v3782 = vadd.f32 0.0, %v3781
        %v3783 = vpop.f32.mrb[0].mxu0
        %v3784 = vpop.f32.mrb[0].mxu0
        %v3785 = vadd.f32 0.0, %v3784
        %v3786 = vpop.f32.mrb[0].mxu0
        %3787 = vmatprep.mubr.bf16.mxu0 %v3217
        %3788 = vmatmul.mubr.bf16.gmra.mrb[0].mxu0 %v3153
        %v3789 = vpop.f32.mrb[0].mxu0
        %v3790 = vadd.f32 0.0, %v3789
        %v3791 = vpop.f32.mrb[0].mxu0
        %v3792 = vpop.f32.mrb[0].mxu0
        %v3793 = vadd.f32 0.0, %v3792
        %v3794 = vpop.f32.mrb[0].mxu0
        %3795 = vmatprep.mubr.bf16.mxu0 %v3221
        %3796 = vmatmul.mubr.bf16.gmra.mrb[0].mxu0 %v3157
        %v3797 = vpop.f32.mrb[0].mxu0
        %v3798 = vadd.f32 0.0, %v3797
        %v3799 = vpop.f32.mrb[0].mxu0
        %v3800 = vpop.f32.mrb[0].mxu0
        %v3801 = vadd.f32 0.0, %v3800
        %v3802 = vpop.f32.mrb[0].mxu0
        %3803 = vmatprep.mubr.bf16.mxu0 %v3225
        %3804 = vmatmul.mubr.bf16.gmra.mrb[0].mxu0 %v3161
        %v3805 = vpop.f32.mrb[0].mxu0
        %v3806 = vadd.f32 0.0, %v3805
        %v3807 = vpop.f32.mrb[0].mxu0
        %v3808 = vpop.f32.mrb[0].mxu0
        %v3809 = vadd.f32 0.0, %v3808
        %v3810 = vpop.f32.mrb[0].mxu0
        %3811 = vmatprep.mubr.bf16.mxu0 %v3229
        %3812 = vmatmul.mubr.bf16.gmra.mrb[0].mxu0 %v3165
        %v3813 = vpop.f32.mrb[0].mxu0
        %v3814 = vadd.f32 0.0, %v3813
        %v3815 = vpop.f32.mrb[0].mxu0
        %v3816 = vpop.f32.mrb[0].mxu0
        %v3817 = vadd.f32 0.0, %v3816
        %v3818 = vpop.f32.mrb[0].mxu0
        %3819 = vmatprep.mubr.bf16.mxu0 %v3233
        %3820 = vmatmul.mubr.bf16.gmra.mrb[0].mxu0 %v3169
        %v3821 = vpop.f32.mrb[0].mxu0
        %v3822 = vadd.f32 0.0, %v3821
        %v3823 = vpop.f32.mrb[0].mxu0
        %v3824 = vpop.f32.mrb[0].mxu0
        %v3825 = vadd.f32 0.0, %v3824
        %v3826 = vpop.f32.mrb[0].mxu0
        %3827 = vmatprep.mubr.bf16.mxu0 %v3237
        %3828 = vmatmul.mubr.bf16.gmra.mrb[0].mxu0 %v3173
        %v3829 = vpop.f32.mrb[0].mxu0
        %v3830 = vadd.f32 0.0, %v3829
        %v3831 = vpop.f32.mrb[0].mxu0
        %v3832 = vpop.f32.mrb[0].mxu0
        %v3833 = vadd.f32 0.0, %v3832
        %v3834 = vpop.f32.mrb[0].mxu0
        %3835 = vmatprep.mubr.bf16.mxu0 %v3241
        %3836 = vmatmul.mubr.bf16.gmra.mrb[0].mxu0 %v3177
        %v3837 = vpop.f32.mrb[0].mxu0
        %v3838 = vadd.f32 0.0, %v3837
        %v3839 = vpop.f32.mrb[0].mxu0
        %v3840 = vpop.f32.mrb[0].mxu0
        %v3841 = vadd.f32 0.0, %v3840
        %v3842 = vpop.f32.mrb[0].mxu0
        %3843 = vmatprep.mubr.bf16.mxu0 %v3245
        %3844 = vmatmul.mubr.bf16.gmra.mrb[0].mxu0 %v3181
        %v3845 = vpop.f32.mrb[0].mxu0
        %v3846 = vadd.f32 0.0, %v3845
        %v3847 = vpop.f32.mrb[0].mxu0
        %v3848 = vpop.f32.mrb[0].mxu0
        %v3849 = vadd.f32 0.0, %v3848
        %v3850 = vpop.f32.mrb[0].mxu0
        %3851 = vmatprep.mubr.bf16.mxu0 %v3249
        %3852 = vmatmul.mubr.bf16.gmra.mrb[0].mxu0 %v3185
        %v3853 = vpop.f32.mrb[0].mxu0
        %v3854 = vadd.f32 0.0, %v3853
        %v3855 = vpop.f32.mrb[0].mxu0
        %v3856 = vpop.f32.mrb[0].mxu0
        %v3857 = vadd.f32 0.0, %v3856
        %v3858 = vpop.f32.mrb[0].mxu0
        %3859 = vmatprep.mubr.bf16.mxu0 %v3253
        %3860 = vmatmul.mubr.bf16.gmra.mrb[0].mxu0 %v3189
        %v3861 = vpop.f32.mrb[0].mxu0
        %v3862 = vadd.f32 0.0, %v3861
        %v3863 = vpop.f32.mrb[0].mxu0
        %v3864 = vpop.f32.mrb[0].mxu0
        %v3865 = vadd.f32 0.0, %v3864
        %v3866 = vpop.f32.mrb[0].mxu0
        %3867 = vmatprep.mubr.bf16.mxu0 %v3257
        %3868 = vmatmul.mubr.bf16.gmra.mrb[0].mxu0 %v3193
        %v3869 = vpop.f32.mrb[0].mxu0
        %v3870 = vadd.f32 0.0, %v3869
        %v3871 = vpop.f32.mrb[0].mxu0
        %v3872 = vpop.f32.mrb[0].mxu0
        %v3873 = vadd.f32 0.0, %v3872
        %v3874 = vpop.f32.mrb[0].mxu0
        %3875 = vmatprep.mubr.bf16.mxu0 %v3261
        %3876 = vmatmul.mubr.bf16.gmra.mrb[0].mxu0 %v3197
        %v3877 = vpop.f32.mrb[0].mxu0
        %v3878 = vadd.f32 0.0, %v3877
        %v3879 = vpop.f32.mrb[0].mxu0
        %v3880 = vpop.f32.mrb[0].mxu0
        %v3881 = vadd.f32 0.0, %v3880
        %v3882 = vpop.f32.mrb[0].mxu0
        %3883 = vmatprep.mubr.bf16.mxu0 %v3265
        %3884 = vmatmul.mubr.bf16.gmra.mrb[0].mxu0 %v3201
        %v3885 = vpop.f32.mrb[0].mxu0
        %v3886 = vadd.f32 0.0, %v3885
        %v3887 = vpop.f32.mrb[0].mxu0
        %v3888 = vpop.f32.mrb[0].mxu0
        %v3889 = vadd.f32 0.0, %v3888
        %v3890 = vpop.f32.mrb[0].mxu0
        %3891 = vdwg.mxu0
        %3892 = vmatprep.subr.bf16.mxu0 0
        %3893 = vmatpush1.bf16.msra.mxu0 %v3627
        %3894 = vmatprep.subr.bf16.mxu0 0
        %3895 = vmatpush1.bf16.msra.mxu0 %v3628
        %3896 = vmatprep.subr.bf16.mxu0 0
        %3897 = vmatpush1.bf16.msra.mxu0 %v3629
        %3898 = vmatprep.subr.bf16.mxu0 0
        %3899 = vmatpush1.bf16.msra.mxu0 %v3630
        %3900 = vmatprep.subr.bf16.mxu0 0
        %3901 = vmatpush1.bf16.msra.mxu0 %v3631
        %3902 = vmatprep.subr.bf16.mxu0 0
        %3903 = vmatpush1.bf16.msra.mxu0 %v3632
        %3904 = vmatprep.subr.bf16.mxu0 0
        %3905 = vmatpush1.bf16.msra.mxu0 %v3633
        %3906 = vmatprep.subr.bf16.mxu0 0
        %3907 = vmatpush1.bf16.msra.mxu0 %v3634
        %3908 = vmatprep.subr.bf16.mxu0 0
        %3909 = vmatpush1.bf16.msra.mxu0 %v3635
        %3910 = vmatprep.subr.bf16.mxu0 0
        %3911 = vmatpush1.bf16.msra.mxu0 %v3636
        %3912 = vmatprep.subr.bf16.mxu0 0
        %3913 = vmatpush1.bf16.msra.mxu0 %v3637
        %3914 = vmatprep.subr.bf16.mxu0 0
        %3915 = vmatpush1.bf16.msra.mxu0 %v3638
        %3916 = vmatprep.subr.bf16.mxu0 0
        %3917 = vmatpush1.bf16.msra.mxu0 %v3639
        %3918 = vmatprep.subr.bf16.mxu0 0
        %3919 = vmatpush1.bf16.msra.mxu0 %v3640
        %3920 = vmatprep.subr.bf16.mxu0 0
        %3921 = vmatpush1.bf16.msra.mxu0 %v3641
        %3922 = vmatprep.subr.bf16.mxu0 0
        %3923 = vmatpush1.bf16.msra.mxu0 %v3642
        %3924 = vmatprep.mubr.bf16.mxu0 %v3333
        %3925 = vmatmul.mubr.bf16.gmra.mrb[0].mxu0 %v3269
        %v3926 = vpop.f32.mrb[0].mxu0
        %v3927 = vadd.f32 %v3766, %v3926
        %v3928 = vpop.f32.mrb[0].mxu0
        %v3929 = vpop.f32.mrb[0].mxu0
        %v3930 = vadd.f32 %v3769, %v3929
        %v3931 = vpop.f32.mrb[0].mxu0
        %3932 = vmatprep.mubr.bf16.mxu0 %v3337
        %3933 = vmatmul.mubr.bf16.gmra.mrb[0].mxu0 %v3273
        %v3934 = vpop.f32.mrb[0].mxu0
        %v3935 = vadd.f32 %v3774, %v3934
        %v3936 = vpop.f32.mrb[0].mxu0
        %v3937 = vpop.f32.mrb[0].mxu0
        %v3938 = vadd.f32 %v3777, %v3937
        %v3939 = vpop.f32.mrb[0].mxu0
        %3940 = vmatprep.mubr.bf16.mxu0 %v3341
        %3941 = vmatmul.mubr.bf16.gmra.mrb[0].mxu0 %v3277
        %v3942 = vpop.f32.mrb[0].mxu0
        %v3943 = vadd.f32 %v3782, %v3942
        %v3944 = vpop.f32.mrb[0].mxu0
        %v3945 = vpop.f32.mrb[0].mxu0
        %v3946 = vadd.f32 %v3785, %v3945
        %v3947 = vpop.f32.mrb[0].mxu0
        %3948 = vmatprep.mubr.bf16.mxu0 %v3345
        %3949 = vmatmul.mubr.bf16.gmra.mrb[0].mxu0 %v3281
        %v3950 = vpop.f32.mrb[0].mxu0
        %v3951 = vadd.f32 %v3790, %v3950
        %v3952 = vpop.f32.mrb[0].mxu0
        %v3953 = vpop.f32.mrb[0].mxu0
        %v3954 = vadd.f32 %v3793, %v3953
        %v3955 = vpop.f32.mrb[0].mxu0
        %3956 = vmatprep.mubr.bf16.mxu0 %v3349
        %3957 = vmatmul.mubr.bf16.gmra.mrb[0].mxu0 %v3285
        %v3958 = vpop.f32.mrb[0].mxu0
        %v3959 = vadd.f32 %v3798, %v3958
        %v3960 = vpop.f32.mrb[0].mxu0
        %v3961 = vpop.f32.mrb[0].mxu0
        %v3962 = vadd.f32 %v3801, %v3961
        %v3963 = vpop.f32.mrb[0].mxu0
        %3964 = vmatprep.mubr.bf16.mxu0 %v3353
        %3965 = vmatmul.mubr.bf16.gmra.mrb[0].mxu0 %v3289
        %v3966 = vpop.f32.mrb[0].mxu0
        %v3967 = vadd.f32 %v3806, %v3966
        %v3968 = vpop.f32.mrb[0].mxu0
        %v3969 = vpop.f32.mrb[0].mxu0
        %v3970 = vadd.f32 %v3809, %v3969
        %v3971 = vpop.f32.mrb[0].mxu0
        %3972 = vmatprep.mubr.bf16.mxu0 %v3357
        %3973 = vmatmul.mubr.bf16.gmra.mrb[0].mxu0 %v3293
        %v3974 = vpop.f32.mrb[0].mxu0
        %v3975 = vadd.f32 %v3814, %v3974
        %v3976 = vpop.f32.mrb[0].mxu0
        %v3977 = vpop.f32.mrb[0].mxu0
        %v3978 = vadd.f32 %v3817, %v3977
        %v3979 = vpop.f32.mrb[0].mxu0
        %3980 = vmatprep.mubr.bf16.mxu0 %v3361
        %3981 = vmatmul.mubr.bf16.gmra.mrb[0].mxu0 %v3297
        %v3982 = vpop.f32.mrb[0].mxu0
        %v3983 = vadd.f32 %v3822, %v3982
        %v3984 = vpop.f32.mrb[0].mxu0
        %v3985 = vpop.f32.mrb[0].mxu0
        %v3986 = vadd.f32 %v3825, %v3985
        %v3987 = vpop.f32.mrb[0].mxu0
        %3988 = vmatprep.mubr.bf16.mxu0 %v3365
        %3989 = vmatmul.mubr.bf16.gmra.mrb[0].mxu0 %v3301
        %v3990 = vpop.f32.mrb[0].mxu0
        %v3991 = vadd.f32 %v3830, %v3990
        %v3992 = vpop.f32.mrb[0].mxu0
        %v3993 = vpop.f32.mrb[0].mxu0
        %v3994 = vadd.f32 %v3833, %v3993
        %v3995 = vpop.f32.mrb[0].mxu0
        %3996 = vmatprep.mubr.bf16.mxu0 %v3369
        %3997 = vmatmul.mubr.bf16.gmra.mrb[0].mxu0 %v3305
        %v3998 = vpop.f32.mrb[0].mxu0
        %v3999 = vadd.f32 %v3838, %v3998
        %v4000 = vpop.f32.mrb[0].mxu0
        %v4001 = vpop.f32.mrb[0].mxu0
        %v4002 = vadd.f32 %v3841, %v4001
        %v4003 = vpop.f32.mrb[0].mxu0
        %4004 = vmatprep.mubr.bf16.mxu0 %v3373
        %4005 = vmatmul.mubr.bf16.gmra.mrb[0].mxu0 %v3309
        %v4006 = vpop.f32.mrb[0].mxu0
        %v4007 = vadd.f32 %v3846, %v4006
        %v4008 = vpop.f32.mrb[0].mxu0
        %v4009 = vpop.f32.mrb[0].mxu0
        %v4010 = vadd.f32 %v3849, %v4009
        %v4011 = vpop.f32.mrb[0].mxu0
        %4012 = vmatprep.mubr.bf16.mxu0 %v3377
        %4013 = vmatmul.mubr.bf16.gmra.mrb[0].mxu0 %v3313
        %v4014 = vpop.f32.mrb[0].mxu0
        %v4015 = vadd.f32 %v3854, %v4014
        %v4016 = vpop.f32.mrb[0].mxu0
        %v4017 = vpop.f32.mrb[0].mxu0
        %v4018 = vadd.f32 %v3857, %v4017
        %v4019 = vpop.f32.mrb[0].mxu0
        %4020 = vmatprep.mubr.bf16.mxu0 %v3381
        %4021 = vmatmul.mubr.bf16.gmra.mrb[0].mxu0 %v3317
        %v4022 = vpop.f32.mrb[0].mxu0
        %v4023 = vadd.f32 %v3862, %v4022
        %v4024 = vpop.f32.mrb[0].mxu0
        %v4025 = vpop.f32.mrb[0].mxu0
        %v4026 = vadd.f32 %v3865, %v4025
        %v4027 = vpop.f32.mrb[0].mxu0
        %4028 = vmatprep.mubr.bf16.mxu0 %v3385
        %4029 = vmatmul.mubr.bf16.gmra.mrb[0].mxu0 %v3321
        %v4030 = vpop.f32.mrb[0].mxu0
        %v4031 = vadd.f32 %v3870, %v4030
        %v4032 = vpop.f32.mrb[0].mxu0
        %v4033 = vpop.f32.mrb[0].mxu0
        %v4034 = vadd.f32 %v3873, %v4033
        %v4035 = vpop.f32.mrb[0].mxu0
        %4036 = vmatprep.mubr.bf16.mxu0 %v3389
        %4037 = vmatmul.mubr.bf16.gmra.mrb[0].mxu0 %v3325
        %v4038 = vpop.f32.mrb[0].mxu0
        %v4039 = vadd.f32 %v3878, %v4038
        %v4040 = vpop.f32.mrb[0].mxu0
        %v4041 = vpop.f32.mrb[0].mxu0
        %v4042 = vadd.f32 %v3881, %v4041
        %v4043 = vpop.f32.mrb[0].mxu0
        %4044 = vmatprep.mubr.bf16.mxu0 %v3393
        %4045 = vmatmul.mubr.bf16.gmra.mrb[0].mxu0 %v3329
        %v4046 = vpop.f32.mrb[0].mxu0
        %v4047 = vadd.f32 %v3886, %v4046
        %v4048 = vpop.f32.mrb[0].mxu0
        %v4049 = vpop.f32.mrb[0].mxu0
        %v4050 = vadd.f32 %v3889, %v4049
        %v4051 = vpop.f32.mrb[0].mxu0
        %4052 = vdwg.mxu0
        %4053 = vmatprep.subr.bf16.mxu0 0
        %4054 = vmatpush1.bf16.msra.mxu0 %v3643
        %4055 = vmatprep.subr.bf16.mxu0 0
        %4056 = vmatpush1.bf16.msra.mxu0 %v3644
        %4057 = vmatprep.subr.bf16.mxu0 0
        %4058 = vmatpush1.bf16.msra.mxu0 %v3645
        %4059 = vmatprep.subr.bf16.mxu0 0
        %4060 = vmatpush1.bf16.msra.mxu0 %v3646
        %4061 = vmatprep.subr.bf16.mxu0 0
        %4062 = vmatpush1.bf16.msra.mxu0 0
        %4063 = vmatprep.subr.bf16.mxu0 0
        %4064 = vmatpush1.bf16.msra.mxu0 0
        %4065 = vmatprep.subr.bf16.mxu0 0
        %4066 = vmatpush1.bf16.msra.mxu0 0
        %4067 = vmatprep.subr.bf16.mxu0 0
        %4068 = vmatpush1.bf16.msra.mxu0 0
        %4069 = vmatprep.subr.bf16.mxu0 0
        %4070 = vmatpush1.bf16.msra.mxu0 0
        %4071 = vmatprep.subr.bf16.mxu0 0
        %4072 = vmatpush1.bf16.msra.mxu0 0
        %4073 = vmatprep.subr.bf16.mxu0 0
        %4074 = vmatpush1.bf16.msra.mxu0 0
        %4075 = vmatprep.subr.bf16.mxu0 0
        %4076 = vmatpush1.bf16.msra.mxu0 0
        %4077 = vmatprep.subr.bf16.mxu0 0
        %4078 = vmatpush1.bf16.msra.mxu0 0
        %4079 = vmatprep.subr.bf16.mxu0 0
        %4080 = vmatpush1.bf16.msra.mxu0 0
        %4081 = vmatprep.subr.bf16.mxu0 0
        %4082 = vmatpush1.bf16.msra.mxu0 0
        %4083 = vmatprep.subr.bf16.mxu0 0
        %4084 = vmatpush1.bf16.msra.mxu0 0
        %4085 = vmatprep.mubr.bf16.mxu0 0
        %4086 = vmatmul.mubr.bf16.gmra.mrb[0].mxu0 %v3684
        %v4087 = vpop.f32.mrb[0].mxu0
        %v4088 = vadd.f32 %v3927, %v4087
        %v4089 = vpop.f32.mrb[0].mxu0
        %v4090 = vpop.f32.mrb[0].mxu0
        %v4091 = vadd.f32 %v3930, %v4090
        %v4092 = vpop.f32.mrb[0].mxu0
        %4093 = vmatprep.mubr.bf16.mxu0 0
        %4094 = vmatmul.mubr.bf16.gmra.mrb[0].mxu0 %v3687
        %v4095 = vpop.f32.mrb[0].mxu0
        %v4096 = vadd.f32 %v3935, %v4095
        %v4097 = vpop.f32.mrb[0].mxu0
        %v4098 = vpop.f32.mrb[0].mxu0
        %v4099 = vadd.f32 %v3938, %v4098
        %v4100 = vpop.f32.mrb[0].mxu0
        %4101 = vmatprep.mubr.bf16.mxu0 0
        %4102 = vmatmul.mubr.bf16.gmra.mrb[0].mxu0 %v3690
        %v4103 = vpop.f32.mrb[0].mxu0
        %v4104 = vadd.f32 %v3943, %v4103
        %v4105 = vpop.f32.mrb[0].mxu0
        %v4106 = vpop.f32.mrb[0].mxu0
        %v4107 = vadd.f32 %v3946, %v4106
        %v4108 = vpop.f32.mrb[0].mxu0
        %4109 = vmatprep.mubr.bf16.mxu0 0
        %4110 = vmatmul.mubr.bf16.gmra.mrb[0].mxu0 %v3693
        %v4111 = vpop.f32.mrb[0].mxu0
        %v4112 = vadd.f32 %v3951, %v4111
        %v4113 = vpop.f32.mrb[0].mxu0
        %v4114 = vpop.f32.mrb[0].mxu0
        %v4115 = vadd.f32 %v3954, %v4114
        %v4116 = vpop.f32.mrb[0].mxu0
        %4117 = vmatprep.mubr.bf16.mxu0 0
        %4118 = vmatmul.mubr.bf16.gmra.mrb[0].mxu0 %v3696
        %v4119 = vpop.f32.mrb[0].mxu0
        %v4120 = vadd.f32 %v3959, %v4119
        %v4121 = vpop.f32.mrb[0].mxu0
        %v4122 = vpop.f32.mrb[0].mxu0
        %v4123 = vadd.f32 %v3962, %v4122
        %v4124 = vpop.f32.mrb[0].mxu0
        %4125 = vmatprep.mubr.bf16.mxu0 0
        %4126 = vmatmul.mubr.bf16.gmra.mrb[0].mxu0 %v3699
        %v4127 = vpop.f32.mrb[0].mxu0
        %v4128 = vadd.f32 %v3967, %v4127
        %v4129 = vpop.f32.mrb[0].mxu0
        %v4130 = vpop.f32.mrb[0].mxu0
        %v4131 = vadd.f32 %v3970, %v4130
        %v4132 = vpop.f32.mrb[0].mxu0
        %4133 = vmatprep.mubr.bf16.mxu0 0
        %4134 = vmatmul.mubr.bf16.gmra.mrb[0].mxu0 %v3702
        %v4135 = vpop.f32.mrb[0].mxu0
        %v4136 = vadd.f32 %v3975, %v4135
        %v4137 = vpop.f32.mrb[0].mxu0
        %v4138 = vpop.f32.mrb[0].mxu0
        %v4139 = vadd.f32 %v3978, %v4138
        %v4140 = vpop.f32.mrb[0].mxu0
        %4141 = vmatprep.mubr.bf16.mxu0 0
        %4142 = vmatmul.mubr.bf16.gmra.mrb[0].mxu0 %v3705
        %v4143 = vpop.f32.mrb[0].mxu0
        %v4144 = vadd.f32 %v3983, %v4143
        %v4145 = vpop.f32.mrb[0].mxu0
        %v4146 = vpop.f32.mrb[0].mxu0
        %v4147 = vadd.f32 %v3986, %v4146
        %v4148 = vpop.f32.mrb[0].mxu0
        %4149 = vmatprep.mubr.bf16.mxu0 0
        %4150 = vmatmul.mubr.bf16.gmra.mrb[0].mxu0 %v3708
        %v4151 = vpop.f32.mrb[0].mxu0
        %v4152 = vadd.f32 %v3991, %v4151
        %v4153 = vpop.f32.mrb[0].mxu0
        %v4154 = vpop.f32.mrb[0].mxu0
        %v4155 = vadd.f32 %v3994, %v4154
        %v4156 = vpop.f32.mrb[0].mxu0
        %4157 = vmatprep.mubr.bf16.mxu0 0
        %4158 = vmatmul.mubr.bf16.gmra.mrb[0].mxu0 %v3711
        %v4159 = vpop.f32.mrb[0].mxu0
        %v4160 = vadd.f32 %v3999, %v4159
        %v4161 = vpop.f32.mrb[0].mxu0
        %v4162 = vpop.f32.mrb[0].mxu0
        %v4163 = vadd.f32 %v4002, %v4162
        %v4164 = vpop.f32.mrb[0].mxu0
        %4165 = vmatprep.mubr.bf16.mxu0 0
        %4166 = vmatmul.mubr.bf16.gmra.mrb[0].mxu0 %v3714
        %v4167 = vpop.f32.mrb[0].mxu0
        %v4168 = vadd.f32 %v4007, %v4167
        %v4169 = vpop.f32.mrb[0].mxu0
        %v4170 = vpop.f32.mrb[0].mxu0
        %v4171 = vadd.f32 %v4010, %v4170
        %v4172 = vpop.f32.mrb[0].mxu0
        %4173 = vmatprep.mubr.bf16.mxu0 0
        %4174 = vmatmul.mubr.bf16.gmra.mrb[0].mxu0 %v3717
        %v4175 = vpop.f32.mrb[0].mxu0
        %v4176 = vadd.f32 %v4015, %v4175
        %v4177 = vpop.f32.mrb[0].mxu0
        %v4178 = vpop.f32.mrb[0].mxu0
        %v4179 = vadd.f32 %v4018, %v4178
        %v4180 = vpop.f32.mrb[0].mxu0
        %4181 = vmatprep.mubr.bf16.mxu0 0
        %4182 = vmatmul.mubr.bf16.gmra.mrb[0].mxu0 %v3720
        %v4183 = vpop.f32.mrb[0].mxu0
        %v4184 = vadd.f32 %v4023, %v4183
        %v4185 = vpop.f32.mrb[0].mxu0
        %v4186 = vpop.f32.mrb[0].mxu0
        %v4187 = vadd.f32 %v4026, %v4186
        %v4188 = vpop.f32.mrb[0].mxu0
        %4189 = vmatprep.mubr.bf16.mxu0 0
        %4190 = vmatmul.mubr.bf16.gmra.mrb[0].mxu0 %v3723
        %v4191 = vpop.f32.mrb[0].mxu0
        %v4192 = vadd.f32 %v4031, %v4191
        %v4193 = vpop.f32.mrb[0].mxu0
        %v4194 = vpop.f32.mrb[0].mxu0
        %v4195 = vadd.f32 %v4034, %v4194
        %v4196 = vpop.f32.mrb[0].mxu0
        %4197 = vmatprep.mubr.bf16.mxu0 0
        %4198 = vmatmul.mubr.bf16.gmra.mrb[0].mxu0 %v3726
        %v4199 = vpop.f32.mrb[0].mxu0
        %v4200 = vadd.f32 %v4039, %v4199
        %v4201 = vpop.f32.mrb[0].mxu0
        %v4202 = vpop.f32.mrb[0].mxu0
        %v4203 = vadd.f32 %v4042, %v4202
        %v4204 = vpop.f32.mrb[0].mxu0
        %4205 = vmatprep.mubr.bf16.mxu0 0
        %4206 = vmatmul.mubr.bf16.gmra.mrb[0].mxu0 %v3729
        %v4207 = vpop.f32.mrb[0].mxu0
        %v4208 = vadd.f32 %v4047, %v4207
        %v4209 = vpop.f32.mrb[0].mxu0
        %v4210 = vpop.f32.mrb[0].mxu0
        %v4211 = vadd.f32 %v4050, %v4210
        %v4212 = vpop.f32.mrb[0].mxu0
        %4213 = vdwg.mxu0
        %v4214 = vmax.f32 %v4088, 0.0
        %v4215 = vmax.f32 %v4091, 0.0
        %v4216 = vmax.f32 %v4096, 0.0
        %v4217 = vmax.f32 %v4099, 0.0
        %v4218 = vmax.f32 %v4104, 0.0
        %v4219 = vmax.f32 %v4107, 0.0
        %v4220 = vmax.f32 %v4112, 0.0
        %v4221 = vmax.f32 %v4115, 0.0
        %v4222 = vmax.f32 %v4120, 0.0
        %v4223 = vmax.f32 %v4123, 0.0
        %v4224 = vmax.f32 %v4128, 0.0
        %v4225 = vmax.f32 %v4131, 0.0
        %v4226 = vmax.f32 %v4136, 0.0
        %v4227 = vmax.f32 %v4139, 0.0
        %v4228 = vmax.f32 %v4144, 0.0
        %v4229 = vmax.f32 %v4147, 0.0
        %v4230 = vmax.f32 %v4152, 0.0
        %v4231 = vmax.f32 %v4155, 0.0
        %v4232 = vmax.f32 %v4160, 0.0
        %v4233 = vmax.f32 %v4163, 0.0
        %v4234 = vmax.f32 %v4168, 0.0
        %v4235 = vmax.f32 %v4171, 0.0
        %v4236 = vmax.f32 %v4176, 0.0
        %v4237 = vmax.f32 %v4179, 0.0
        %v4238 = vmax.f32 %v4184, 0.0
        %v4239 = vmax.f32 %v4187, 0.0
        %v4240 = vmax.f32 %v4192, 0.0
        %v4241 = vmax.f32 %v4195, 0.0
        %v4242 = vmax.f32 %v4200, 0.0
        %v4243 = vmax.f32 %v4203, 0.0
        %v4244 = vmax.f32 %v4208, 0.0
        %v4245 = vmax.f32 %v4211, 0.0
        %v4246 = vpack.c.bf16 %v4215, %v4214
        %v4247 = vpack.c.bf16 %v4217, %v4216
        %v4248 = vpack.c.bf16 %v4219, %v4218
        %v4249 = vpack.c.bf16 %v4221, %v4220
        %v4250 = vpack.c.bf16 %v4223, %v4222
        %v4251 = vpack.c.bf16 %v4225, %v4224
        %v4252 = vpack.c.bf16 %v4227, %v4226
        %v4253 = vpack.c.bf16 %v4229, %v4228
        %v4254 = vpack.c.bf16 %v4231, %v4230
        %v4255 = vpack.c.bf16 %v4233, %v4232
        %v4256 = vpack.c.bf16 %v4235, %v4234
        %v4257 = vpack.c.bf16 %v4237, %v4236
        %v4258 = vpack.c.bf16 %v4239, %v4238
        %v4259 = vpack.c.bf16 %v4241, %v4240
        %v4260 = vpack.c.bf16 %v4243, %v4242
        %v4261 = vpack.c.bf16 %v4245, %v4244
        %v4278 = vunpack.c.l.b16 %v4246
        %v4279 = vunpack.c.h.b16 %v4246
        %v4280 = vunpack.c.l.b16 %v4247
        %v4281 = vunpack.c.h.b16 %v4247
        %v4282 = vunpack.c.l.b16 %v4248
        %v4283 = vunpack.c.h.b16 %v4248
        %v4284 = vunpack.c.l.b16 %v4249
        %v4285 = vunpack.c.h.b16 %v4249
        %v4286 = vunpack.c.l.b16 %v4250
        %v4287 = vunpack.c.h.b16 %v4250
        %v4288 = vunpack.c.l.b16 %v4251
        %v4289 = vunpack.c.h.b16 %v4251
        %v4290 = vunpack.c.l.b16 %v4252
        %v4291 = vunpack.c.h.b16 %v4252
        %v4292 = vunpack.c.l.b16 %v4253
        %v4293 = vunpack.c.h.b16 %v4253
        %v4294 = vunpack.c.l.b16 %v4254
        %v4295 = vunpack.c.h.b16 %v4254
        %v4296 = vunpack.c.l.b16 %v4255
        %v4297 = vunpack.c.h.b16 %v4255
        %v4298 = vunpack.c.l.b16 %v4256
        %v4299 = vunpack.c.h.b16 %v4256
        %v4300 = vunpack.c.l.b16 %v4257
        %v4301 = vunpack.c.h.b16 %v4257
        %v4302 = vunpack.c.l.b16 %v4258
        %v4303 = vunpack.c.h.b16 %v4258
        %v4304 = vunpack.c.l.b16 %v4259
        %v4305 = vunpack.c.h.b16 %v4259
        %v4306 = vunpack.c.l.b16 %v4260
        %v4307 = vunpack.c.h.b16 %v4260
        %v4308 = vunpack.c.l.b16 %v4261
        %v4309 = vunpack.c.h.b16 %v4261
        %v4310 = vpack.c.b16 %v4278, %v4278
        %v4311 = vpack.c.b16 %v4279, %v4279
        %v4312 = vpack.c.b16 %v4280, %v4280
        %v4313 = vpack.c.b16 %v4281, %v4281
        %v4314 = vpack.c.b16 %v4282, %v4282
        %v4315 = vpack.c.b16 %v4283, %v4283
        %v4316 = vpack.c.b16 %v4284, %v4284
        %v4317 = vpack.c.b16 %v4285, %v4285
        %v4318 = vpack.c.b16 %v4286, %v4286
        %v4319 = vpack.c.b16 %v4287, %v4287
        %v4320 = vpack.c.b16 %v4288, %v4288
        %v4321 = vpack.c.b16 %v4289, %v4289
        %v4322 = vpack.c.b16 %v4290, %v4290
        %v4323 = vpack.c.b16 %v4291, %v4291
        %v4324 = vpack.c.b16 %v4292, %v4292
        %v4325 = vpack.c.b16 %v4293, %v4293
        %v4326 = vpack.c.b16 %v4294, %v4294
        %v4327 = vpack.c.b16 %v4295, %v4295
        %v4328 = vpack.c.b16 %v4296, %v4296
        %v4329 = vpack.c.b16 %v4297, %v4297
        %v4330 = vpack.c.b16 %v4298, %v4298
        %v4331 = vpack.c.b16 %v4299, %v4299
        %v4332 = vpack.c.b16 %v4300, %v4300
        %v4333 = vpack.c.b16 %v4301, %v4301
        %v4334 = vpack.c.b16 %v4302, %v4302
        %v4335 = vpack.c.b16 %v4303, %v4303
        %v4336 = vpack.c.b16 %v4304, %v4304
        %v4337 = vpack.c.b16 %v4305, %v4305
        %v4338 = vpack.c.b16 %v4306, %v4306
        %v4339 = vpack.c.b16 %v4307, %v4307
        %v4340 = vpack.c.b16 %v4308, %v4308
        %v4341 = vpack.c.b16 %v4309, %v4309
        %v4343 = vshrl.u32 %v4310, 16
        %v4345 = vrot.slane %v4343, 7
        %v4346 = vshll.u32 %v4310, 16
        %v4348 = vor.u32 %v4345, %v4346
        %v4349 = vrot.slane %v4345, 4
        %v4351 = vshrl.u32 %v4311, 16
        %v4353 = vrot.slane %v4351, 7
        %v4354 = vshll.u32 %v4311, 16
        %v4356 = vor.u32 %v4353, %v4354
        %v4357 = vsel %vm260, %v4349, %v4356
        %v4358 = vrot.slane %v4353, 4
        %v4360 = vshrl.u32 %v4312, 16
        %v4362 = vrot.slane %v4360, 7
        %v4363 = vshll.u32 %v4312, 16
        %v4365 = vor.u32 %v4362, %v4363
        %v4366 = vrot.slane %v4362, 4
        %v4368 = vshrl.u32 %v4313, 16
        %v4370 = vrot.slane %v4368, 7
        %v4371 = vshll.u32 %v4313, 16
        %v4373 = vor.u32 %v4370, %v4371
        %v4374 = vsel %vm260, %v4366, %v4373
        %v4375 = vrot.slane %v4370, 4
        %v4377 = vshrl.u32 %v4314, 16
        %v4379 = vrot.slane %v4377, 7
        %v4380 = vshll.u32 %v4314, 16
        %v4382 = vor.u32 %v4379, %v4380
        %v4383 = vrot.slane %v4379, 4
        %v4385 = vshrl.u32 %v4315, 16
        %v4387 = vrot.slane %v4385, 7
        %v4388 = vshll.u32 %v4315, 16
        %v4390 = vor.u32 %v4387, %v4388
        %v4391 = vsel %vm260, %v4383, %v4390
        %v4392 = vrot.slane %v4387, 4
        %v4394 = vshrl.u32 %v4316, 16
        %v4396 = vrot.slane %v4394, 7
        %v4397 = vshll.u32 %v4316, 16
        %v4399 = vor.u32 %v4396, %v4397
        %v4400 = vrot.slane %v4396, 4
        %v4402 = vshrl.u32 %v4317, 16
        %v4404 = vrot.slane %v4402, 7
        %v4405 = vshll.u32 %v4317, 16
        %v4407 = vor.u32 %v4404, %v4405
        %v4408 = vsel %vm260, %v4400, %v4407
        %v4409 = vrot.slane %v4404, 4
        %v4411 = vshrl.u32 %v4318, 16
        %v4413 = vrot.slane %v4411, 7
        %v4414 = vshll.u32 %v4318, 16
        %v4416 = vor.u32 %v4413, %v4414
        %v4417 = vrot.slane %v4413, 4
        %v4419 = vshrl.u32 %v4319, 16
        %v4421 = vrot.slane %v4419, 7
        %v4422 = vshll.u32 %v4319, 16
        %v4424 = vor.u32 %v4421, %v4422
        %v4425 = vsel %vm260, %v4417, %v4424
        %v4426 = vrot.slane %v4421, 4
        %v4428 = vshrl.u32 %v4320, 16
        %v4430 = vrot.slane %v4428, 7
        %v4431 = vshll.u32 %v4320, 16
        %v4433 = vor.u32 %v4430, %v4431
        %v4434 = vrot.slane %v4430, 4
        %v4436 = vshrl.u32 %v4321, 16
        %v4438 = vrot.slane %v4436, 7
        %v4439 = vshll.u32 %v4321, 16
        %v4441 = vor.u32 %v4438, %v4439
        %v4442 = vsel %vm260, %v4434, %v4441
        %v4443 = vrot.slane %v4438, 4
        %v4445 = vshrl.u32 %v4322, 16
        %v4447 = vrot.slane %v4445, 7
        %v4448 = vshll.u32 %v4322, 16
        %v4450 = vor.u32 %v4447, %v4448
        %v4451 = vrot.slane %v4447, 4
        %v4453 = vshrl.u32 %v4323, 16
        %v4455 = vrot.slane %v4453, 7
        %v4456 = vshll.u32 %v4323, 16
        %v4458 = vor.u32 %v4455, %v4456
        %v4459 = vsel %vm260, %v4451, %v4458
        %v4460 = vrot.slane %v4455, 4
        %v4462 = vshrl.u32 %v4324, 16
        %v4464 = vrot.slane %v4462, 7
        %v4465 = vshll.u32 %v4324, 16
        %v4467 = vor.u32 %v4464, %v4465
        %v4468 = vrot.slane %v4464, 4
        %v4470 = vshrl.u32 %v4325, 16
        %v4472 = vrot.slane %v4470, 7
        %v4473 = vshll.u32 %v4325, 16
        %v4475 = vor.u32 %v4472, %v4473
        %v4476 = vsel %vm260, %v4468, %v4475
        %v4477 = vrot.slane %v4472, 4
        %v4479 = vshrl.u32 %v4326, 16
        %v4481 = vrot.slane %v4479, 7
        %v4482 = vshll.u32 %v4326, 16
        %v4484 = vor.u32 %v4481, %v4482
        %v4485 = vrot.slane %v4481, 4
        %v4487 = vshrl.u32 %v4327, 16
        %v4489 = vrot.slane %v4487, 7
        %v4490 = vshll.u32 %v4327, 16
        %v4492 = vor.u32 %v4489, %v4490
        %v4493 = vsel %vm260, %v4485, %v4492
        %v4494 = vrot.slane %v4489, 4
        %v4496 = vshrl.u32 %v4328, 16
        %v4498 = vrot.slane %v4496, 7
        %v4499 = vshll.u32 %v4328, 16
        %v4501 = vor.u32 %v4498, %v4499
        %v4502 = vrot.slane %v4498, 4
        %v4504 = vshrl.u32 %v4329, 16
        %v4506 = vrot.slane %v4504, 7
        %v4507 = vshll.u32 %v4329, 16
        %v4509 = vor.u32 %v4506, %v4507
        %v4510 = vsel %vm260, %v4502, %v4509
        %v4511 = vrot.slane %v4506, 4
        %v4513 = vshrl.u32 %v4330, 16
        %v4515 = vrot.slane %v4513, 7
        %v4516 = vshll.u32 %v4330, 16
        %v4518 = vor.u32 %v4515, %v4516
        %v4519 = vrot.slane %v4515, 4
        %v4521 = vshrl.u32 %v4331, 16
        %v4523 = vrot.slane %v4521, 7
        %v4524 = vshll.u32 %v4331, 16
        %v4526 = vor.u32 %v4523, %v4524
        %v4527 = vsel %vm260, %v4519, %v4526
        %v4528 = vrot.slane %v4523, 4
        %v4530 = vshrl.u32 %v4332, 16
        %v4532 = vrot.slane %v4530, 7
        %v4533 = vshll.u32 %v4332, 16
        %v4535 = vor.u32 %v4532, %v4533
        %v4536 = vrot.slane %v4532, 4
        %v4538 = vshrl.u32 %v4333, 16
        %v4540 = vrot.slane %v4538, 7
        %v4541 = vshll.u32 %v4333, 16
        %v4543 = vor.u32 %v4540, %v4541
        %v4544 = vsel %vm260, %v4536, %v4543
        %v4545 = vrot.slane %v4540, 4
        %v4547 = vshrl.u32 %v4334, 16
        %v4549 = vrot.slane %v4547, 7
        %v4550 = vshll.u32 %v4334, 16
        %v4552 = vor.u32 %v4549, %v4550
        %v4553 = vrot.slane %v4549, 4
        %v4555 = vshrl.u32 %v4335, 16
        %v4557 = vrot.slane %v4555, 7
        %v4558 = vshll.u32 %v4335, 16
        %v4560 = vor.u32 %v4557, %v4558
        %v4561 = vsel %vm260, %v4553, %v4560
        %v4562 = vrot.slane %v4557, 4
        %v4564 = vshrl.u32 %v4336, 16
        %v4566 = vrot.slane %v4564, 7
        %v4567 = vshll.u32 %v4336, 16
        %v4569 = vor.u32 %v4566, %v4567
        %v4570 = vrot.slane %v4566, 4
        %v4572 = vshrl.u32 %v4337, 16
        %v4574 = vrot.slane %v4572, 7
        %v4575 = vshll.u32 %v4337, 16
        %v4577 = vor.u32 %v4574, %v4575
        %v4578 = vsel %vm260, %v4570, %v4577
        %v4579 = vrot.slane %v4574, 4
        %v4581 = vshrl.u32 %v4338, 16
        %v4583 = vrot.slane %v4581, 7
        %v4584 = vshll.u32 %v4338, 16
        %v4586 = vor.u32 %v4583, %v4584
        %v4587 = vrot.slane %v4583, 4
        %v4589 = vshrl.u32 %v4339, 16
        %v4591 = vrot.slane %v4589, 7
        %v4592 = vshll.u32 %v4339, 16
        %v4594 = vor.u32 %v4591, %v4592
        %v4595 = vsel %vm260, %v4587, %v4594
        %v4596 = vrot.slane %v4591, 4
        %v4598 = vshrl.u32 %v4340, 16
        %v4600 = vrot.slane %v4598, 7
        %v4601 = vshll.u32 %v4340, 16
        %v4603 = vor.u32 %v4600, %v4601
        %v4604 = vrot.slane %v4600, 4
        %v4606 = vshrl.u32 %v4341, 16
        %v4608 = vrot.slane %v4606, 7
        %v4609 = vshll.u32 %v4341, 16
        %v4611 = vor.u32 %v4608, %v4609
        %v4612 = vsel %vm260, %v4604, %v4611
        %v4613 = vrot.slane %v4608, 4
        %v4662 = vsel %vm584, %v4348, %v1313
        %4663 = vst [vmem:[%s581] sm:$0xf] %v4662
        %4664 = vst.msk [vmem:[%s581 + $0x4] sm:$0xf] %vm170, %v4357
        %v4665 = vld [vmem:[%s581 + $0x8] sm:$0x1]
        %v4666 = vsel %vm590, %v4358, %v4665
        %4667 = vst [vmem:[%s581 + $0x8] sm:$0x1] %v4666
        %v4668 = vld [vmem:[%s581 + $0xc] sm:$0xf]
        %v4669 = vsel %vm584, %v4365, %v4668
        %4670 = vst [vmem:[%s581 + $0xc] sm:$0xf] %v4669
        %4671 = vst.msk [vmem:[%s581 + $0x10] sm:$0xf] %vm170, %v4374
        %v4672 = vld [vmem:[%s581 + $0x14] sm:$0x1]
        %v4673 = vsel %vm590, %v4375, %v4672
        %4674 = vst [vmem:[%s581 + $0x14] sm:$0x1] %v4673
        %v4675 = vld [vmem:[%s581 + $0x18] sm:$0xf]
        %v4676 = vsel %vm584, %v4382, %v4675
        %4677 = vst [vmem:[%s581 + $0x18] sm:$0xf] %v4676
        %4678 = vst.msk [vmem:[%s581 + $0x1c] sm:$0xf] %vm170, %v4391
        %v4679 = vld [vmem:[%s581 + $0x20] sm:$0x1]
        %v4680 = vsel %vm590, %v4392, %v4679
        %4681 = vst [vmem:[%s581 + $0x20] sm:$0x1] %v4680
        %v4682 = vld [vmem:[%s581 + $0x24] sm:$0xf]
        %v4683 = vsel %vm584, %v4399, %v4682
        %4684 = vst [vmem:[%s581 + $0x24] sm:$0xf] %v4683
        %4685 = vst.msk [vmem:[%s581 + $0x28] sm:$0xf] %vm170, %v4408
        %v4686 = vld [vmem:[%s581 + $0x2c] sm:$0x1]
        %v4687 = vsel %vm590, %v4409, %v4686
        %4688 = vst [vmem:[%s581 + $0x2c] sm:$0x1] %v4687
        %v4689 = vld [vmem:[%s581 + $0x30] sm:$0xf]
        %v4690 = vsel %vm584, %v4416, %v4689
        %4691 = vst [vmem:[%s581 + $0x30] sm:$0xf] %v4690
        %4692 = vst.msk [vmem:[%s581 + $0x34] sm:$0xf] %vm170, %v4425
        %v4693 = vld [vmem:[%s581 + $0x38] sm:$0x1]
        %v4694 = vsel %vm590, %v4426, %v4693
        %4695 = vst [vmem:[%s581 + $0x38] sm:$0x1] %v4694
        %v4696 = vld [vmem:[%s581 + $0x3c] sm:$0xf]
        %v4697 = vsel %vm584, %v4433, %v4696
        %4698 = vst [vmem:[%s581 + $0x3c] sm:$0xf] %v4697
        %4699 = vst.msk [vmem:[%s581 + $0x40] sm:$0xf] %vm170, %v4442
        %v4700 = vld [vmem:[%s581 + $0x44] sm:$0x1]
        %v4701 = vsel %vm590, %v4443, %v4700
        %4702 = vst [vmem:[%s581 + $0x44] sm:$0x1] %v4701
        %v4703 = vld [vmem:[%s581 + $0x48] sm:$0xf]
        %v4704 = vsel %vm584, %v4450, %v4703
        %4705 = vst [vmem:[%s581 + $0x48] sm:$0xf] %v4704
        %4706 = vst.msk [vmem:[%s581 + $0x4c] sm:$0xf] %vm170, %v4459
        %v4707 = vld [vmem:[%s581 + $0x50] sm:$0x1]
        %v4708 = vsel %vm590, %v4460, %v4707
        %4709 = vst [vmem:[%s581 + $0x50] sm:$0x1] %v4708
        %v4710 = vld [vmem:[%s581 + $0x54] sm:$0xf]
        %v4711 = vsel %vm584, %v4467, %v4710
        %4712 = vst [vmem:[%s581 + $0x54] sm:$0xf] %v4711
        %4713 = vst.msk [vmem:[%s581 + $0x58] sm:$0xf] %vm170, %v4476
        %v4714 = vld [vmem:[%s581 + $0x5c] sm:$0x1]
        %v4715 = vsel %vm590, %v4477, %v4714
        %4716 = vst [vmem:[%s581 + $0x5c] sm:$0x1] %v4715
        %v4717 = vld [vmem:[%s581 + $0x60] sm:$0xf]
        %v4718 = vsel %vm584, %v4484, %v4717
        %4719 = vst [vmem:[%s581 + $0x60] sm:$0xf] %v4718
        %4720 = vst.msk [vmem:[%s581 + $0x64] sm:$0xf] %vm170, %v4493
        %v4721 = vld [vmem:[%s581 + $0x68] sm:$0x1]
        %v4722 = vsel %vm590, %v4494, %v4721
        %4723 = vst [vmem:[%s581 + $0x68] sm:$0x1] %v4722
        %v4724 = vld [vmem:[%s581 + $0x6c] sm:$0xf]
        %v4725 = vsel %vm584, %v4501, %v4724
        %4726 = vst [vmem:[%s581 + $0x6c] sm:$0xf] %v4725
        %4727 = vst.msk [vmem:[%s581 + $0x70] sm:$0xf] %vm170, %v4510
        %v4728 = vld [vmem:[%s581 + $0x74] sm:$0x1]
        %v4729 = vsel %vm590, %v4511, %v4728
        %4730 = vst [vmem:[%s581 + $0x74] sm:$0x1] %v4729
        %v4731 = vld [vmem:[%s581 + $0x78] sm:$0xf]
        %v4732 = vsel %vm584, %v4518, %v4731
        %4733 = vst [vmem:[%s581 + $0x78] sm:$0xf] %v4732
        %4734 = vst.msk [vmem:[%s581 + $0x7c] sm:$0xf] %vm170, %v4527
        %v4735 = vld [vmem:[%s581 + $0x80] sm:$0x1]
        %v4736 = vsel %vm590, %v4528, %v4735
        %4737 = vst [vmem:[%s581 + $0x80] sm:$0x1] %v4736
        %v4738 = vld [vmem:[%s581 + $0x84] sm:$0xf]
        %v4739 = vsel %vm584, %v4535, %v4738
        %4740 = vst [vmem:[%s581 + $0x84] sm:$0xf] %v4739
        %4741 = vst.msk [vmem:[%s581 + $0x88] sm:$0xf] %vm170, %v4544
        %v4742 = vld [vmem:[%s581 + $0x8c] sm:$0x1]
        %v4743 = vsel %vm590, %v4545, %v4742
        %4744 = vst [vmem:[%s581 + $0x8c] sm:$0x1] %v4743
        %v4745 = vld [vmem:[%s581 + $0x90] sm:$0xf]
        %v4746 = vsel %vm584, %v4552, %v4745
        %4747 = vst [vmem:[%s581 + $0x90] sm:$0xf] %v4746
        %4748 = vst.msk [vmem:[%s581 + $0x94] sm:$0xf] %vm170, %v4561
        %v4749 = vld [vmem:[%s581 + $0x98] sm:$0x1]
        %v4750 = vsel %vm590, %v4562, %v4749
        %4751 = vst [vmem:[%s581 + $0x98] sm:$0x1] %v4750
        %v4752 = vld [vmem:[%s581 + $0x9c] sm:$0xf]
        %v4753 = vsel %vm584, %v4569, %v4752
        %4754 = vst [vmem:[%s581 + $0x9c] sm:$0xf] %v4753
        %4755 = vst.msk [vmem:[%s581 + $0xa0] sm:$0xf] %vm170, %v4578
        %v4756 = vld [vmem:[%s581 + $0xa4] sm:$0x1]
        %v4757 = vsel %vm590, %v4579, %v4756
        %4758 = vst [vmem:[%s581 + $0xa4] sm:$0x1] %v4757
        %v4759 = vld [vmem:[%s581 + $0xa8] sm:$0xf]
        %v4760 = vsel %vm584, %v4586, %v4759
        %4761 = vst [vmem:[%s581 + $0xa8] sm:$0xf] %v4760
        %4762 = vst.msk [vmem:[%s581 + $0xac] sm:$0xf] %vm170, %v4595
        %v4763 = vld [vmem:[%s581 + $0xb0] sm:$0x1]
        %v4764 = vsel %vm590, %v4596, %v4763
        %4765 = vst [vmem:[%s581 + $0xb0] sm:$0x1] %v4764
        %v4766 = vld [vmem:[%s581 + $0xb4] sm:$0xf]
        %v4767 = vsel %vm584, %v4603, %v4766
        %4768 = vst [vmem:[%s581 + $0xb4] sm:$0xf] %v4767
        %4769 = vst.msk [vmem:[%s581 + $0xb8] sm:$0xf] %vm170, %v4612
        %v4770 = vld [vmem:[%s581 + $0xbc] sm:$0x1]
        %v4771 = vsel %vm590, %v4613, %v4770
        %4772 = vst [vmem:[%s581 + $0xbc] sm:$0x1] %v4771
        %v4773 = vld [vmem:[#allocation2] sm:$0xf]
        %v4774 = vld [vmem:[#allocation2 + $0x4] sm:$0xf]
        %v4775 = vld [vmem:[#allocation2 + $0xc] sm:$0xf]
        %v4776 = vld [vmem:[#allocation2 + $0x10] sm:$0xf]
        %v4777 = vld [vmem:[#allocation2 + $0x18] sm:$0xf]
        %v4778 = vld [vmem:[#allocation2 + $0x1c] sm:$0xf]
        %v4779 = vld [vmem:[#allocation2 + $0x24] sm:$0xf]
        %v4780 = vld [vmem:[#allocation2 + $0x28] sm:$0xf]
        %v4781 = vld [vmem:[#allocation2 + $0x30] sm:$0xf]
        %v4782 = vld [vmem:[#allocation2 + $0x34] sm:$0xf]
        %v4783 = vld [vmem:[#allocation2 + $0x3c] sm:$0xf]
        %v4784 = vld [vmem:[#allocation2 + $0x40] sm:$0xf]
        %v4785 = vld [vmem:[#allocation2 + $0x48] sm:$0xf]
        %v4786 = vld [vmem:[#allocation2 + $0x4c] sm:$0xf]
        %v4787 = vld [vmem:[#allocation2 + $0x54] sm:$0xf]
        %v4788 = vld [vmem:[#allocation2 + $0x58] sm:$0xf]
        %v4789 = vld [vmem:[#allocation2 + $0x60] sm:$0xf]
        %v4790 = vld [vmem:[#allocation2 + $0x64] sm:$0xf]
        %v4791 = vld [vmem:[#allocation2 + $0x6c] sm:$0xf]
        %v4792 = vld [vmem:[#allocation2 + $0x70] sm:$0xf]
        %v4793 = vld [vmem:[#allocation2 + $0x78] sm:$0xf]
        %v4794 = vld [vmem:[#allocation2 + $0x7c] sm:$0xf]
        %v4795 = vld [vmem:[#allocation2 + $0x84] sm:$0xf]
        %v4796 = vld [vmem:[#allocation2 + $0x88] sm:$0xf]
        %v4797 = vld [vmem:[#allocation2 + $0x90] sm:$0xf]
        %v4798 = vld [vmem:[#allocation2 + $0x94] sm:$0xf]
        %v4799 = vld [vmem:[#allocation2 + $0x9c] sm:$0xf]
        %v4800 = vld [vmem:[#allocation2 + $0xa0] sm:$0xf]
        %v4801 = vld [vmem:[#allocation2 + $0xa8] sm:$0xf]
        %v4802 = vld [vmem:[#allocation2 + $0xac] sm:$0xf]
        %v4803 = vld [vmem:[#allocation2 + $0xb4] sm:$0xf]
        %v4804 = vld [vmem:[#allocation2 + $0xb8] sm:$0xf]
        %v4805 = vld [vmem:[#allocation2 + $0x8] sm:$0x1]
        %v4806 = vld [vmem:[#allocation2 + $0x14] sm:$0x1]
        %v4807 = vld [vmem:[#allocation2 + $0x20] sm:$0x1]
        %v4808 = vld [vmem:[#allocation2 + $0x2c] sm:$0x1]
        %v4809 = vld [vmem:[#allocation2 + $0x38] sm:$0x1]
        %v4810 = vld [vmem:[#allocation2 + $0x44] sm:$0x1]
        %v4811 = vld [vmem:[#allocation2 + $0x50] sm:$0x1]
        %v4812 = vld [vmem:[#allocation2 + $0x5c] sm:$0x1]
        %v4813 = vld [vmem:[#allocation2 + $0x68] sm:$0x1]
        %v4814 = vld [vmem:[#allocation2 + $0x74] sm:$0x1]
        %v4815 = vld [vmem:[#allocation2 + $0x80] sm:$0x1]
        %v4816 = vld [vmem:[#allocation2 + $0x8c] sm:$0x1]
        %v4817 = vld [vmem:[#allocation2 + $0x98] sm:$0x1]
        %v4818 = vld [vmem:[#allocation2 + $0xa4] sm:$0x1]
        %v4819 = vld [vmem:[#allocation2 + $0xb0] sm:$0x1]
        %v4820 = vld [vmem:[#allocation2 + $0xbc] sm:$0x1]
        %v4822 = vshrl.u32 %v4773, 16
        %v4824 = vrot.slane %v4822, 4
        %v4825 = vshll.u32 %v4773, 16
        %v4827 = vrot.slane %v4825, 5
        %v4828 = vor.u32 %v4824, %v4827
        %v4829 = vrot.slane %v4828, 4
        %v4831 = vshll.u32 %v4774, 16
        %v4833 = vrot.slane %v4831, 5
        %v4834 = vsel %vm749, %v4829, %v4833
        %v4835 = vshrl.u32 %v4774, 16
        %v4837 = vrot.slane %v4835, 4
        %v4838 = vor.u32 %v4837, %v4833
        %v4839 = vrot.slane %v4838, 4
        %v4841 = vshll.u32 %v4805, 16
        %v4843 = vrot.slane %v4841, 5
        %v4844 = vsel %vm749, %v4839, %v4843
        %v4846 = vshrl.u32 %v4775, 16
        %v4848 = vrot.slane %v4846, 4
        %v4849 = vshll.u32 %v4775, 16
        %v4851 = vrot.slane %v4849, 5
        %v4852 = vor.u32 %v4848, %v4851
        %v4853 = vrot.slane %v4852, 4
        %v4855 = vshll.u32 %v4776, 16
        %v4857 = vrot.slane %v4855, 5
        %v4858 = vsel %vm749, %v4853, %v4857
        %v4859 = vshrl.u32 %v4776, 16
        %v4861 = vrot.slane %v4859, 4
        %v4862 = vor.u32 %v4861, %v4857
        %v4863 = vrot.slane %v4862, 4
        %v4865 = vshll.u32 %v4806, 16
        %v4867 = vrot.slane %v4865, 5
        %v4868 = vsel %vm749, %v4863, %v4867
        %v4870 = vshrl.u32 %v4777, 16
        %v4872 = vrot.slane %v4870, 4
        %v4873 = vshll.u32 %v4777, 16
        %v4875 = vrot.slane %v4873, 5
        %v4876 = vor.u32 %v4872, %v4875
        %v4877 = vrot.slane %v4876, 4
        %v4879 = vshll.u32 %v4778, 16
        %v4881 = vrot.slane %v4879, 5
        %v4882 = vsel %vm749, %v4877, %v4881
        %v4883 = vshrl.u32 %v4778, 16
        %v4885 = vrot.slane %v4883, 4
        %v4886 = vor.u32 %v4885, %v4881
        %v4887 = vrot.slane %v4886, 4
        %v4889 = vshll.u32 %v4807, 16
        %v4891 = vrot.slane %v4889, 5
        %v4892 = vsel %vm749, %v4887, %v4891
        %v4894 = vshrl.u32 %v4779, 16
        %v4896 = vrot.slane %v4894, 4
        %v4897 = vshll.u32 %v4779, 16
        %v4899 = vrot.slane %v4897, 5
        %v4900 = vor.u32 %v4896, %v4899
        %v4901 = vrot.slane %v4900, 4
        %v4903 = vshll.u32 %v4780, 16
        %v4905 = vrot.slane %v4903, 5
        %v4906 = vsel %vm749, %v4901, %v4905
        %v4907 = vshrl.u32 %v4780, 16
        %v4909 = vrot.slane %v4907, 4
        %v4910 = vor.u32 %v4909, %v4905
        %v4911 = vrot.slane %v4910, 4
        %v4913 = vshll.u32 %v4808, 16
        %v4915 = vrot.slane %v4913, 5
        %v4916 = vsel %vm749, %v4911, %v4915
        %v4918 = vshrl.u32 %v4781, 16
        %v4920 = vrot.slane %v4918, 4
        %v4921 = vshll.u32 %v4781, 16
        %v4923 = vrot.slane %v4921, 5
        %v4924 = vor.u32 %v4920, %v4923
        %v4925 = vrot.slane %v4924, 4
        %v4927 = vshll.u32 %v4782, 16
        %v4929 = vrot.slane %v4927, 5
        %v4930 = vsel %vm749, %v4925, %v4929
        %v4931 = vshrl.u32 %v4782, 16
        %v4933 = vrot.slane %v4931, 4
        %v4934 = vor.u32 %v4933, %v4929
        %v4935 = vrot.slane %v4934, 4
        %v4937 = vshll.u32 %v4809, 16
        %v4939 = vrot.slane %v4937, 5
        %v4940 = vsel %vm749, %v4935, %v4939
        %v4942 = vshrl.u32 %v4783, 16
        %v4944 = vrot.slane %v4942, 4
        %v4945 = vshll.u32 %v4783, 16
        %v4947 = vrot.slane %v4945, 5
        %v4948 = vor.u32 %v4944, %v4947
        %v4949 = vrot.slane %v4948, 4
        %v4951 = vshll.u32 %v4784, 16
        %v4953 = vrot.slane %v4951, 5
        %v4954 = vsel %vm749, %v4949, %v4953
        %v4955 = vshrl.u32 %v4784, 16
        %v4957 = vrot.slane %v4955, 4
        %v4958 = vor.u32 %v4957, %v4953
        %v4959 = vrot.slane %v4958, 4
        %v4961 = vshll.u32 %v4810, 16
        %v4963 = vrot.slane %v4961, 5
        %v4964 = vsel %vm749, %v4959, %v4963
        %v4966 = vshrl.u32 %v4785, 16
        %v4968 = vrot.slane %v4966, 4
        %v4969 = vshll.u32 %v4785, 16
        %v4971 = vrot.slane %v4969, 5
        %v4972 = vor.u32 %v4968, %v4971
        %v4973 = vrot.slane %v4972, 4
        %v4975 = vshll.u32 %v4786, 16
        %v4977 = vrot.slane %v4975, 5
        %v4978 = vsel %vm749, %v4973, %v4977
        %v4979 = vshrl.u32 %v4786, 16
        %v4981 = vrot.slane %v4979, 4
        %v4982 = vor.u32 %v4981, %v4977
        %v4983 = vrot.slane %v4982, 4
        %v4985 = vshll.u32 %v4811, 16
        %v4987 = vrot.slane %v4985, 5
        %v4988 = vsel %vm749, %v4983, %v4987
        %v4990 = vshrl.u32 %v4787, 16
        %v4992 = vrot.slane %v4990, 4
        %v4993 = vshll.u32 %v4787, 16
        %v4995 = vrot.slane %v4993, 5
        %v4996 = vor.u32 %v4992, %v4995
        %v4997 = vrot.slane %v4996, 4
        %v4999 = vshll.u32 %v4788, 16
        %v5001 = vrot.slane %v4999, 5
        %v5002 = vsel %vm749, %v4997, %v5001
        %v5003 = vshrl.u32 %v4788, 16
        %v5005 = vrot.slane %v5003, 4
        %v5006 = vor.u32 %v5005, %v5001
        %v5007 = vrot.slane %v5006, 4
        %v5009 = vshll.u32 %v4812, 16
        %v5011 = vrot.slane %v5009, 5
        %v5012 = vsel %vm749, %v5007, %v5011
        %v5014 = vshrl.u32 %v4789, 16
        %v5016 = vrot.slane %v5014, 4
        %v5017 = vshll.u32 %v4789, 16
        %v5019 = vrot.slane %v5017, 5
        %v5020 = vor.u32 %v5016, %v5019
        %v5021 = vrot.slane %v5020, 4
        %v5023 = vshll.u32 %v4790, 16
        %v5025 = vrot.slane %v5023, 5
        %v5026 = vsel %vm749, %v5021, %v5025
        %v5027 = vshrl.u32 %v4790, 16
        %v5029 = vrot.slane %v5027, 4
        %v5030 = vor.u32 %v5029, %v5025
        %v5031 = vrot.slane %v5030, 4
        %v5033 = vshll.u32 %v4813, 16
        %v5035 = vrot.slane %v5033, 5
        %v5036 = vsel %vm749, %v5031, %v5035
        %v5038 = vshrl.u32 %v4791, 16
        %v5040 = vrot.slane %v5038, 4
        %v5041 = vshll.u32 %v4791, 16
        %v5043 = vrot.slane %v5041, 5
        %v5044 = vor.u32 %v5040, %v5043
        %v5045 = vrot.slane %v5044, 4
        %v5047 = vshll.u32 %v4792, 16
        %v5049 = vrot.slane %v5047, 5
        %v5050 = vsel %vm749, %v5045, %v5049
        %v5051 = vshrl.u32 %v4792, 16
        %v5053 = vrot.slane %v5051, 4
        %v5054 = vor.u32 %v5053, %v5049
        %v5055 = vrot.slane %v5054, 4
        %v5057 = vshll.u32 %v4814, 16
        %v5059 = vrot.slane %v5057, 5
        %v5060 = vsel %vm749, %v5055, %v5059
        %v5062 = vshrl.u32 %v4793, 16
        %v5064 = vrot.slane %v5062, 4
        %v5065 = vshll.u32 %v4793, 16
        %v5067 = vrot.slane %v5065, 5
        %v5068 = vor.u32 %v5064, %v5067
        %v5069 = vrot.slane %v5068, 4
        %v5071 = vshll.u32 %v4794, 16
        %v5073 = vrot.slane %v5071, 5
        %v5074 = vsel %vm749, %v5069, %v5073
        %v5075 = vshrl.u32 %v4794, 16
        %v5077 = vrot.slane %v5075, 4
        %v5078 = vor.u32 %v5077, %v5073
        %v5079 = vrot.slane %v5078, 4
        %v5081 = vshll.u32 %v4815, 16
        %v5083 = vrot.slane %v5081, 5
        %v5084 = vsel %vm749, %v5079, %v5083
        %v5086 = vshrl.u32 %v4795, 16
        %v5088 = vrot.slane %v5086, 4
        %v5089 = vshll.u32 %v4795, 16
        %v5091 = vrot.slane %v5089, 5
        %v5092 = vor.u32 %v5088, %v5091
        %v5093 = vrot.slane %v5092, 4
        %v5095 = vshll.u32 %v4796, 16
        %v5097 = vrot.slane %v5095, 5
        %v5098 = vsel %vm749, %v5093, %v5097
        %v5099 = vshrl.u32 %v4796, 16
        %v5101 = vrot.slane %v5099, 4
        %v5102 = vor.u32 %v5101, %v5097
        %v5103 = vrot.slane %v5102, 4
        %v5105 = vshll.u32 %v4816, 16
        %v5107 = vrot.slane %v5105, 5
        %v5108 = vsel %vm749, %v5103, %v5107
        %v5110 = vshrl.u32 %v4797, 16
        %v5112 = vrot.slane %v5110, 4
        %v5113 = vshll.u32 %v4797, 16
        %v5115 = vrot.slane %v5113, 5
        %v5116 = vor.u32 %v5112, %v5115
        %v5117 = vrot.slane %v5116, 4
        %v5119 = vshll.u32 %v4798, 16
        %v5121 = vrot.slane %v5119, 5
        %v5122 = vsel %vm749, %v5117, %v5121
        %v5123 = vshrl.u32 %v4798, 16
        %v5125 = vrot.slane %v5123, 4
        %v5126 = vor.u32 %v5125, %v5121
        %v5127 = vrot.slane %v5126, 4
        %v5129 = vshll.u32 %v4817, 16
        %v5131 = vrot.slane %v5129, 5
        %v5132 = vsel %vm749, %v5127, %v5131
        %v5134 = vshrl.u32 %v4799, 16
        %v5136 = vrot.slane %v5134, 4
        %v5137 = vshll.u32 %v4799, 16
        %v5139 = vrot.slane %v5137, 5
        %v5140 = vor.u32 %v5136, %v5139
        %v5141 = vrot.slane %v5140, 4
        %v5143 = vshll.u32 %v4800, 16
        %v5145 = vrot.slane %v5143, 5
        %v5146 = vsel %vm749, %v5141, %v5145
        %v5147 = vshrl.u32 %v4800, 16
        %v5149 = vrot.slane %v5147, 4
        %v5150 = vor.u32 %v5149, %v5145
        %v5151 = vrot.slane %v5150, 4
        %v5153 = vshll.u32 %v4818, 16
        %v5155 = vrot.slane %v5153, 5
        %v5156 = vsel %vm749, %v5151, %v5155
        %v5158 = vshrl.u32 %v4801, 16
        %v5160 = vrot.slane %v5158, 4
        %v5161 = vshll.u32 %v4801, 16
        %v5163 = vrot.slane %v5161, 5
        %v5164 = vor.u32 %v5160, %v5163
        %v5165 = vrot.slane %v5164, 4
        %v5167 = vshll.u32 %v4802, 16
        %v5169 = vrot.slane %v5167, 5
        %v5170 = vsel %vm749, %v5165, %v5169
        %v5171 = vshrl.u32 %v4802, 16
        %v5173 = vrot.slane %v5171, 4
        %v5174 = vor.u32 %v5173, %v5169
        %v5175 = vrot.slane %v5174, 4
        %v5177 = vshll.u32 %v4819, 16
        %v5179 = vrot.slane %v5177, 5
        %v5180 = vsel %vm749, %v5175, %v5179
        %v5182 = vshrl.u32 %v4803, 16
        %v5184 = vrot.slane %v5182, 4
        %v5185 = vshll.u32 %v4803, 16
        %v5187 = vrot.slane %v5185, 5
        %v5188 = vor.u32 %v5184, %v5187
        %v5189 = vrot.slane %v5188, 4
        %v5191 = vshll.u32 %v4804, 16
        %v5193 = vrot.slane %v5191, 5
        %v5194 = vsel %vm749, %v5189, %v5193
        %v5195 = vshrl.u32 %v4804, 16
        %v5197 = vrot.slane %v5195, 4
        %v5198 = vor.u32 %v5197, %v5193
        %v5199 = vrot.slane %v5198, 4
        %v5201 = vshll.u32 %v4820, 16
        %v5203 = vrot.slane %v5201, 5
        %v5204 = vsel %vm749, %v5199, %v5203
        %v5205 = vld [vmem:[#allocation2] sm:$0xe]
        %v5206 = vld [vmem:[#allocation2 + $0xc] sm:$0xe]
        %v5207 = vld [vmem:[#allocation2 + $0x18] sm:$0xe]
        %v5208 = vld [vmem:[#allocation2 + $0x24] sm:$0xe]
        %v5209 = vld [vmem:[#allocation2 + $0x30] sm:$0xe]
        %v5210 = vld [vmem:[#allocation2 + $0x3c] sm:$0xe]
        %v5211 = vld [vmem:[#allocation2 + $0x48] sm:$0xe]
        %v5212 = vld [vmem:[#allocation2 + $0x54] sm:$0xe]
        %v5213 = vld [vmem:[#allocation2 + $0x60] sm:$0xe]
        %v5214 = vld [vmem:[#allocation2 + $0x6c] sm:$0xe]
        %v5215 = vld [vmem:[#allocation2 + $0x78] sm:$0xe]
        %v5216 = vld [vmem:[#allocation2 + $0x84] sm:$0xe]
        %v5217 = vld [vmem:[#allocation2 + $0x90] sm:$0xe]
        %v5218 = vld [vmem:[#allocation2 + $0x9c] sm:$0xe]
        %v5219 = vld [vmem:[#allocation2 + $0xa8] sm:$0xe]
        %v5220 = vld [vmem:[#allocation2 + $0xb4] sm:$0xe]
        %v5269 = vrot.slane %v5205, 5
        %v5270 = vrot.slane %v5269, 4
        %v5271 = vrot.slane %v4774, 5
        %v5272 = vsel %vm1200, %v5270, %v5271
        %v5273 = vrot.slane %v5271, 4
        %v5274 = vrot.slane %v4805, 5
        %v5275 = vsel %vm1200, %v5273, %v5274
        %v5276 = vrot.slane %v5206, 5
        %v5277 = vrot.slane %v5276, 4
        %v5278 = vrot.slane %v4776, 5
        %v5279 = vsel %vm1200, %v5277, %v5278
        %v5280 = vrot.slane %v5278, 4
        %v5281 = vrot.slane %v4806, 5
        %v5282 = vsel %vm1200, %v5280, %v5281
        %v5283 = vrot.slane %v5207, 5
        %v5284 = vrot.slane %v5283, 4
        %v5285 = vrot.slane %v4778, 5
        %v5286 = vsel %vm1200, %v5284, %v5285
        %v5287 = vrot.slane %v5285, 4
        %v5288 = vrot.slane %v4807, 5
        %v5289 = vsel %vm1200, %v5287, %v5288
        %v5290 = vrot.slane %v5208, 5
        %v5291 = vrot.slane %v5290, 4
        %v5292 = vrot.slane %v4780, 5
        %v5293 = vsel %vm1200, %v5291, %v5292
        %v5294 = vrot.slane %v5292, 4
        %v5295 = vrot.slane %v4808, 5
        %v5296 = vsel %vm1200, %v5294, %v5295
        %v5297 = vrot.slane %v5209, 5
        %v5298 = vrot.slane %v5297, 4
        %v5299 = vrot.slane %v4782, 5
        %v5300 = vsel %vm1200, %v5298, %v5299
        %v5301 = vrot.slane %v5299, 4
        %v5302 = vrot.slane %v4809, 5
        %v5303 = vsel %vm1200, %v5301, %v5302
        %v5304 = vrot.slane %v5210, 5
        %v5305 = vrot.slane %v5304, 4
        %v5306 = vrot.slane %v4784, 5
        %v5307 = vsel %vm1200, %v5305, %v5306
        %v5308 = vrot.slane %v5306, 4
        %v5309 = vrot.slane %v4810, 5
        %v5310 = vsel %vm1200, %v5308, %v5309
        %v5311 = vrot.slane %v5211, 5
        %v5312 = vrot.slane %v5311, 4
        %v5313 = vrot.slane %v4786, 5
        %v5314 = vsel %vm1200, %v5312, %v5313
        %v5315 = vrot.slane %v5313, 4
        %v5316 = vrot.slane %v4811, 5
        %v5317 = vsel %vm1200, %v5315, %v5316
        %v5318 = vrot.slane %v5212, 5
        %v5319 = vrot.slane %v5318, 4
        %v5320 = vrot.slane %v4788, 5
        %v5321 = vsel %vm1200, %v5319, %v5320
        %v5322 = vrot.slane %v5320, 4
        %v5323 = vrot.slane %v4812, 5
        %v5324 = vsel %vm1200, %v5322, %v5323
        %v5325 = vrot.slane %v5213, 5
        %v5326 = vrot.slane %v5325, 4
        %v5327 = vrot.slane %v4790, 5
        %v5328 = vsel %vm1200, %v5326, %v5327
        %v5329 = vrot.slane %v5327, 4
        %v5330 = vrot.slane %v4813, 5
        %v5331 = vsel %vm1200, %v5329, %v5330
        %v5332 = vrot.slane %v5214, 5
        %v5333 = vrot.slane %v5332, 4
        %v5334 = vrot.slane %v4792, 5
        %v5335 = vsel %vm1200, %v5333, %v5334
        %v5336 = vrot.slane %v5334, 4
        %v5337 = vrot.slane %v4814, 5
        %v5338 = vsel %vm1200, %v5336, %v5337
        %v5339 = vrot.slane %v5215, 5
        %v5340 = vrot.slane %v5339, 4
        %v5341 = vrot.slane %v4794, 5
        %v5342 = vsel %vm1200, %v5340, %v5341
        %v5343 = vrot.slane %v5341, 4
        %v5344 = vrot.slane %v4815, 5
        %v5345 = vsel %vm1200, %v5343, %v5344
        %v5346 = vrot.slane %v5216, 5
        %v5347 = vrot.slane %v5346, 4
        %v5348 = vrot.slane %v4796, 5
        %v5349 = vsel %vm1200, %v5347, %v5348
        %v5350 = vrot.slane %v5348, 4
        %v5351 = vrot.slane %v4816, 5
        %v5352 = vsel %vm1200, %v5350, %v5351
        %v5353 = vrot.slane %v5217, 5
        %v5354 = vrot.slane %v5353, 4
        %v5355 = vrot.slane %v4798, 5
        %v5356 = vsel %vm1200, %v5354, %v5355
        %v5357 = vrot.slane %v5355, 4
        %v5358 = vrot.slane %v4817, 5
        %v5359 = vsel %vm1200, %v5357, %v5358
        %v5360 = vrot.slane %v5218, 5
        %v5361 = vrot.slane %v5360, 4
        %v5362 = vrot.slane %v4800, 5
        %v5363 = vsel %vm1200, %v5361, %v5362
        %v5364 = vrot.slane %v5362, 4
        %v5365 = vrot.slane %v4818, 5
        %v5366 = vsel %vm1200, %v5364, %v5365
        %v5367 = vrot.slane %v5219, 5
        %v5368 = vrot.slane %v5367, 4
        %v5369 = vrot.slane %v4802, 5
        %v5370 = vsel %vm1200, %v5368, %v5369
        %v5371 = vrot.slane %v5369, 4
        %v5372 = vrot.slane %v4819, 5
        %v5373 = vsel %vm1200, %v5371, %v5372
        %v5374 = vrot.slane %v5220, 5
        %v5375 = vrot.slane %v5374, 4
        %v5376 = vrot.slane %v4804, 5
        %v5377 = vsel %vm1200, %v5375, %v5376
        %v5378 = vrot.slane %v5376, 4
        %v5379 = vrot.slane %v4820, 5
        %v5380 = vsel %vm1200, %v5378, %v5379
        %v5381 = vld [vmem:[%s581] sm:$0xf]
        %v5382 = vld [vmem:[%s581 + $0x4] sm:$0xf]
        %v5383 = vld [vmem:[%s581 + $0xc] sm:$0xf]
        %v5384 = vld [vmem:[%s581 + $0x10] sm:$0xf]
        %v5385 = vld [vmem:[%s581 + $0x18] sm:$0xf]
        %v5386 = vld [vmem:[%s581 + $0x1c] sm:$0xf]
        %v5387 = vld [vmem:[%s581 + $0x24] sm:$0xf]
        %v5388 = vld [vmem:[%s581 + $0x28] sm:$0xf]
        %v5389 = vld [vmem:[%s581 + $0x30] sm:$0xf]
        %v5390 = vld [vmem:[%s581 + $0x34] sm:$0xf]
        %v5391 = vld [vmem:[%s581 + $0x3c] sm:$0xf]
        %v5392 = vld [vmem:[%s581 + $0x40] sm:$0xf]
        %v5393 = vld [vmem:[%s581 + $0x48] sm:$0xf]
        %v5394 = vld [vmem:[%s581 + $0x4c] sm:$0xf]
        %v5395 = vld [vmem:[%s581 + $0x54] sm:$0xf]
        %v5396 = vld [vmem:[%s581 + $0x58] sm:$0xf]
        %v5397 = vld [vmem:[%s581 + $0x60] sm:$0xf]
        %v5398 = vld [vmem:[%s581 + $0x64] sm:$0xf]
        %v5399 = vld [vmem:[%s581 + $0x6c] sm:$0xf]
        %v5400 = vld [vmem:[%s581 + $0x70] sm:$0xf]
        %v5401 = vld [vmem:[%s581 + $0x78] sm:$0xf]
        %v5402 = vld [vmem:[%s581 + $0x7c] sm:$0xf]
        %v5403 = vld [vmem:[%s581 + $0x84] sm:$0xf]
        %v5404 = vld [vmem:[%s581 + $0x88] sm:$0xf]
        %v5405 = vld [vmem:[%s581 + $0x90] sm:$0xf]
        %v5406 = vld [vmem:[%s581 + $0x94] sm:$0xf]
        %v5407 = vld [vmem:[%s581 + $0x9c] sm:$0xf]
        %v5408 = vld [vmem:[%s581 + $0xa0] sm:$0xf]
        %v5409 = vld [vmem:[%s581 + $0xa8] sm:$0xf]
        %v5410 = vld [vmem:[%s581 + $0xac] sm:$0xf]
        %v5411 = vld [vmem:[%s581 + $0xb4] sm:$0xf]
        %v5412 = vld [vmem:[%s581 + $0xb8] sm:$0xf]
        %v5413 = vld [vmem:[%s581 + $0x8] sm:$0x1]
        %v5414 = vld [vmem:[%s581 + $0x14] sm:$0x1]
        %v5415 = vld [vmem:[%s581 + $0x20] sm:$0x1]
        %v5416 = vld [vmem:[%s581 + $0x2c] sm:$0x1]
        %v5417 = vld [vmem:[%s581 + $0x38] sm:$0x1]
        %v5418 = vld [vmem:[%s581 + $0x44] sm:$0x1]
        %v5419 = vld [vmem:[%s581 + $0x50] sm:$0x1]
        %v5420 = vld [vmem:[%s581 + $0x5c] sm:$0x1]
        %v5421 = vld [vmem:[%s581 + $0x68] sm:$0x1]
        %v5422 = vld [vmem:[%s581 + $0x74] sm:$0x1]
        %v5423 = vld [vmem:[%s581 + $0x80] sm:$0x1]
        %v5424 = vld [vmem:[%s581 + $0x8c] sm:$0x1]
        %v5425 = vld [vmem:[%s581 + $0x98] sm:$0x1]
        %v5426 = vld [vmem:[%s581 + $0xa4] sm:$0x1]
        %v5427 = vld [vmem:[%s581 + $0xb0] sm:$0x1]
        %v5428 = vld [vmem:[%s581 + $0xbc] sm:$0x1]
        %v5430 = vshrl.u32 %v5381, 16
        %v5432 = vrot.slane %v5430, 4
        %v5433 = vshll.u32 %v5381, 16
        %v5435 = vrot.slane %v5433, 5
        %v5436 = vor.u32 %v5432, %v5435
        %v5437 = vrot.slane %v5436, 4
        %v5439 = vshll.u32 %v5382, 16
        %v5441 = vrot.slane %v5439, 5
        %v5442 = vsel %vm749, %v5437, %v5441
        %v5443 = vshrl.u32 %v5382, 16
        %v5445 = vrot.slane %v5443, 4
        %v5446 = vor.u32 %v5445, %v5441
        %v5447 = vrot.slane %v5446, 4
        %v5449 = vshll.u32 %v5413, 16
        %v5451 = vrot.slane %v5449, 5
        %v5452 = vsel %vm749, %v5447, %v5451
        %v5454 = vshrl.u32 %v5383, 16
        %v5456 = vrot.slane %v5454, 4
        %v5457 = vshll.u32 %v5383, 16
        %v5459 = vrot.slane %v5457, 5
        %v5460 = vor.u32 %v5456, %v5459
        %v5461 = vrot.slane %v5460, 4
        %v5463 = vshll.u32 %v5384, 16
        %v5465 = vrot.slane %v5463, 5
        %v5466 = vsel %vm749, %v5461, %v5465
        %v5467 = vshrl.u32 %v5384, 16
        %v5469 = vrot.slane %v5467, 4
        %v5470 = vor.u32 %v5469, %v5465
        %v5471 = vrot.slane %v5470, 4
        %v5473 = vshll.u32 %v5414, 16
        %v5475 = vrot.slane %v5473, 5
        %v5476 = vsel %vm749, %v5471, %v5475
        %v5478 = vshrl.u32 %v5385, 16
        %v5480 = vrot.slane %v5478, 4
        %v5481 = vshll.u32 %v5385, 16
        %v5483 = vrot.slane %v5481, 5
        %v5484 = vor.u32 %v5480, %v5483
        %v5485 = vrot.slane %v5484, 4
        %v5487 = vshll.u32 %v5386, 16
        %v5489 = vrot.slane %v5487, 5
        %v5490 = vsel %vm749, %v5485, %v5489
        %v5491 = vshrl.u32 %v5386, 16
        %v5493 = vrot.slane %v5491, 4
        %v5494 = vor.u32 %v5493, %v5489
        %v5495 = vrot.slane %v5494, 4
        %v5497 = vshll.u32 %v5415, 16
        %v5499 = vrot.slane %v5497, 5
        %v5500 = vsel %vm749, %v5495, %v5499
        %v5502 = vshrl.u32 %v5387, 16
        %v5504 = vrot.slane %v5502, 4
        %v5505 = vshll.u32 %v5387, 16
        %v5507 = vrot.slane %v5505, 5
        %v5508 = vor.u32 %v5504, %v5507
        %v5509 = vrot.slane %v5508, 4
        %v5511 = vshll.u32 %v5388, 16
        %v5513 = vrot.slane %v5511, 5
        %v5514 = vsel %vm749, %v5509, %v5513
        %v5515 = vshrl.u32 %v5388, 16
        %v5517 = vrot.slane %v5515, 4
        %v5518 = vor.u32 %v5517, %v5513
        %v5519 = vrot.slane %v5518, 4
        %v5521 = vshll.u32 %v5416, 16
        %v5523 = vrot.slane %v5521, 5
        %v5524 = vsel %vm749, %v5519, %v5523
        %v5526 = vshrl.u32 %v5389, 16
        %v5528 = vrot.slane %v5526, 4
        %v5529 = vshll.u32 %v5389, 16
        %v5531 = vrot.slane %v5529, 5
        %v5532 = vor.u32 %v5528, %v5531
        %v5533 = vrot.slane %v5532, 4
        %v5535 = vshll.u32 %v5390, 16
        %v5537 = vrot.slane %v5535, 5
        %v5538 = vsel %vm749, %v5533, %v5537
        %v5539 = vshrl.u32 %v5390, 16
        %v5541 = vrot.slane %v5539, 4
        %v5542 = vor.u32 %v5541, %v5537
        %v5543 = vrot.slane %v5542, 4
        %v5545 = vshll.u32 %v5417, 16
        %v5547 = vrot.slane %v5545, 5
        %v5548 = vsel %vm749, %v5543, %v5547
        %v5550 = vshrl.u32 %v5391, 16
        %v5552 = vrot.slane %v5550, 4
        %v5553 = vshll.u32 %v5391, 16
        %v5555 = vrot.slane %v5553, 5
        %v5556 = vor.u32 %v5552, %v5555
        %v5557 = vrot.slane %v5556, 4
        %v5559 = vshll.u32 %v5392, 16
        %v5561 = vrot.slane %v5559, 5
        %v5562 = vsel %vm749, %v5557, %v5561
        %v5563 = vshrl.u32 %v5392, 16
        %v5565 = vrot.slane %v5563, 4
        %v5566 = vor.u32 %v5565, %v5561
        %v5567 = vrot.slane %v5566, 4
        %v5569 = vshll.u32 %v5418, 16
        %v5571 = vrot.slane %v5569, 5
        %v5572 = vsel %vm749, %v5567, %v5571
        %v5574 = vshrl.u32 %v5393, 16
        %v5576 = vrot.slane %v5574, 4
        %v5577 = vshll.u32 %v5393, 16
        %v5579 = vrot.slane %v5577, 5
        %v5580 = vor.u32 %v5576, %v5579
        %v5581 = vrot.slane %v5580, 4
        %v5583 = vshll.u32 %v5394, 16
        %v5585 = vrot.slane %v5583, 5
        %v5586 = vsel %vm749, %v5581, %v5585
        %v5587 = vshrl.u32 %v5394, 16
        %v5589 = vrot.slane %v5587, 4
        %v5590 = vor.u32 %v5589, %v5585
        %v5591 = vrot.slane %v5590, 4
        %v5593 = vshll.u32 %v5419, 16
        %v5595 = vrot.slane %v5593, 5
        %v5596 = vsel %vm749, %v5591, %v5595
        %v5598 = vshrl.u32 %v5395, 16
        %v5600 = vrot.slane %v5598, 4
        %v5601 = vshll.u32 %v5395, 16
        %v5603 = vrot.slane %v5601, 5
        %v5604 = vor.u32 %v5600, %v5603
        %v5605 = vrot.slane %v5604, 4
        %v5607 = vshll.u32 %v5396, 16
        %v5609 = vrot.slane %v5607, 5
        %v5610 = vsel %vm749, %v5605, %v5609
        %v5611 = vshrl.u32 %v5396, 16
        %v5613 = vrot.slane %v5611, 4
        %v5614 = vor.u32 %v5613, %v5609
        %v5615 = vrot.slane %v5614, 4
        %v5617 = vshll.u32 %v5420, 16
        %v5619 = vrot.slane %v5617, 5
        %v5620 = vsel %vm749, %v5615, %v5619
        %v5622 = vshrl.u32 %v5397, 16
        %v5624 = vrot.slane %v5622, 4
        %v5625 = vshll.u32 %v5397, 16
        %v5627 = vrot.slane %v5625, 5
        %v5628 = vor.u32 %v5624, %v5627
        %v5629 = vrot.slane %v5628, 4
        %v5631 = vshll.u32 %v5398, 16
        %v5633 = vrot.slane %v5631, 5
        %v5634 = vsel %vm749, %v5629, %v5633
        %v5635 = vshrl.u32 %v5398, 16
        %v5637 = vrot.slane %v5635, 4
        %v5638 = vor.u32 %v5637, %v5633
        %v5639 = vrot.slane %v5638, 4
        %v5641 = vshll.u32 %v5421, 16
        %v5643 = vrot.slane %v5641, 5
        %v5644 = vsel %vm749, %v5639, %v5643
        %v5646 = vshrl.u32 %v5399, 16
        %v5648 = vrot.slane %v5646, 4
        %v5649 = vshll.u32 %v5399, 16
        %v5651 = vrot.slane %v5649, 5
        %v5652 = vor.u32 %v5648, %v5651
        %v5653 = vrot.slane %v5652, 4
        %v5655 = vshll.u32 %v5400, 16
        %v5657 = vrot.slane %v5655, 5
        %v5658 = vsel %vm749, %v5653, %v5657
        %v5659 = vshrl.u32 %v5400, 16
        %v5661 = vrot.slane %v5659, 4
        %v5662 = vor.u32 %v5661, %v5657
        %v5663 = vrot.slane %v5662, 4
        %v5665 = vshll.u32 %v5422, 16
        %v5667 = vrot.slane %v5665, 5
        %v5668 = vsel %vm749, %v5663, %v5667
        %v5670 = vshrl.u32 %v5401, 16
        %v5672 = vrot.slane %v5670, 4
        %v5673 = vshll.u32 %v5401, 16
        %v5675 = vrot.slane %v5673, 5
        %v5676 = vor.u32 %v5672, %v5675
        %v5677 = vrot.slane %v5676, 4
        %v5679 = vshll.u32 %v5402, 16
        %v5681 = vrot.slane %v5679, 5
        %v5682 = vsel %vm749, %v5677, %v5681
        %v5683 = vshrl.u32 %v5402, 16
        %v5685 = vrot.slane %v5683, 4
        %v5686 = vor.u32 %v5685, %v5681
        %v5687 = vrot.slane %v5686, 4
        %v5689 = vshll.u32 %v5423, 16
        %v5691 = vrot.slane %v5689, 5
        %v5692 = vsel %vm749, %v5687, %v5691
        %v5694 = vshrl.u32 %v5403, 16
        %v5696 = vrot.slane %v5694, 4
        %v5697 = vshll.u32 %v5403, 16
        %v5699 = vrot.slane %v5697, 5
        %v5700 = vor.u32 %v5696, %v5699
        %v5701 = vrot.slane %v5700, 4
        %v5703 = vshll.u32 %v5404, 16
        %v5705 = vrot.slane %v5703, 5
        %v5706 = vsel %vm749, %v5701, %v5705
        %v5707 = vshrl.u32 %v5404, 16
        %v5709 = vrot.slane %v5707, 4
        %v5710 = vor.u32 %v5709, %v5705
        %v5711 = vrot.slane %v5710, 4
        %v5713 = vshll.u32 %v5424, 16
        %v5715 = vrot.slane %v5713, 5
        %v5716 = vsel %vm749, %v5711, %v5715
        %v5718 = vshrl.u32 %v5405, 16
        %v5720 = vrot.slane %v5718, 4
        %v5721 = vshll.u32 %v5405, 16
        %v5723 = vrot.slane %v5721, 5
        %v5724 = vor.u32 %v5720, %v5723
        %v5725 = vrot.slane %v5724, 4
        %v5727 = vshll.u32 %v5406, 16
        %v5729 = vrot.slane %v5727, 5
        %v5730 = vsel %vm749, %v5725, %v5729
        %v5731 = vshrl.u32 %v5406, 16
        %v5733 = vrot.slane %v5731, 4
        %v5734 = vor.u32 %v5733, %v5729
        %v5735 = vrot.slane %v5734, 4
        %v5737 = vshll.u32 %v5425, 16
        %v5739 = vrot.slane %v5737, 5
        %v5740 = vsel %vm749, %v5735, %v5739
        %v5742 = vshrl.u32 %v5407, 16
        %v5744 = vrot.slane %v5742, 4
        %v5745 = vshll.u32 %v5407, 16
        %v5747 = vrot.slane %v5745, 5
        %v5748 = vor.u32 %v5744, %v5747
        %v5749 = vrot.slane %v5748, 4
        %v5751 = vshll.u32 %v5408, 16
        %v5753 = vrot.slane %v5751, 5
        %v5754 = vsel %vm749, %v5749, %v5753
        %v5755 = vshrl.u32 %v5408, 16
        %v5757 = vrot.slane %v5755, 4
        %v5758 = vor.u32 %v5757, %v5753
        %v5759 = vrot.slane %v5758, 4
        %v5761 = vshll.u32 %v5426, 16
        %v5763 = vrot.slane %v5761, 5
        %v5764 = vsel %vm749, %v5759, %v5763
        %v5766 = vshrl.u32 %v5409, 16
        %v5768 = vrot.slane %v5766, 4
        %v5769 = vshll.u32 %v5409, 16
        %v5771 = vrot.slane %v5769, 5
        %v5772 = vor.u32 %v5768, %v5771
        %v5773 = vrot.slane %v5772, 4
        %v5775 = vshll.u32 %v5410, 16
        %v5777 = vrot.slane %v5775, 5
        %v5778 = vsel %vm749, %v5773, %v5777
        %v5779 = vshrl.u32 %v5410, 16
        %v5781 = vrot.slane %v5779, 4
        %v5782 = vor.u32 %v5781, %v5777
        %v5783 = vrot.slane %v5782, 4
        %v5785 = vshll.u32 %v5427, 16
        %v5787 = vrot.slane %v5785, 5
        %v5788 = vsel %vm749, %v5783, %v5787
        %v5790 = vshrl.u32 %v5411, 16
        %v5792 = vrot.slane %v5790, 4
        %v5793 = vshll.u32 %v5411, 16
        %v5795 = vrot.slane %v5793, 5
        %v5796 = vor.u32 %v5792, %v5795
        %v5797 = vrot.slane %v5796, 4
        %v5799 = vshll.u32 %v5412, 16
        %v5801 = vrot.slane %v5799, 5
        %v5802 = vsel %vm749, %v5797, %v5801
        %v5803 = vshrl.u32 %v5412, 16
        %v5805 = vrot.slane %v5803, 4
        %v5806 = vor.u32 %v5805, %v5801
        %v5807 = vrot.slane %v5806, 4
        %v5809 = vshll.u32 %v5428, 16
        %v5811 = vrot.slane %v5809, 5
        %v5812 = vsel %vm749, %v5807, %v5811
        %v5813 = vld [vmem:[%s581] sm:$0xe]
        %v5814 = vld [vmem:[%s581 + $0xc] sm:$0xe]
        %v5815 = vld [vmem:[%s581 + $0x18] sm:$0xe]
        %v5816 = vld [vmem:[%s581 + $0x24] sm:$0xe]
        %v5817 = vld [vmem:[%s581 + $0x30] sm:$0xe]
        %v5818 = vld [vmem:[%s581 + $0x3c] sm:$0xe]
        %v5819 = vld [vmem:[%s581 + $0x48] sm:$0xe]
        %v5820 = vld [vmem:[%s581 + $0x54] sm:$0xe]
        %v5821 = vld [vmem:[%s581 + $0x60] sm:$0xe]
        %v5822 = vld [vmem:[%s581 + $0x6c] sm:$0xe]
        %v5823 = vld [vmem:[%s581 + $0x78] sm:$0xe]
        %v5824 = vld [vmem:[%s581 + $0x84] sm:$0xe]
        %v5825 = vld [vmem:[%s581 + $0x90] sm:$0xe]
        %v5826 = vld [vmem:[%s581 + $0x9c] sm:$0xe]
        %v5827 = vld [vmem:[%s581 + $0xa8] sm:$0xe]
        %v5828 = vld [vmem:[%s581 + $0xb4] sm:$0xe]
        %v5877 = vrot.slane %v5813, 5
        %v5878 = vrot.slane %v5877, 4
        %v5879 = vrot.slane %v5382, 5
        %v5880 = vsel %vm1200, %v5878, %v5879
        %v5881 = vrot.slane %v5879, 4
        %v5882 = vrot.slane %v5413, 5
        %v5883 = vsel %vm1200, %v5881, %v5882
        %v5884 = vrot.slane %v5814, 5
        %v5885 = vrot.slane %v5884, 4
        %v5886 = vrot.slane %v5384, 5
        %v5887 = vsel %vm1200, %v5885, %v5886
        %v5888 = vrot.slane %v5886, 4
        %v5889 = vrot.slane %v5414, 5
        %v5890 = vsel %vm1200, %v5888, %v5889
        %v5891 = vrot.slane %v5815, 5
        %v5892 = vrot.slane %v5891, 4
        %v5893 = vrot.slane %v5386, 5
        %v5894 = vsel %vm1200, %v5892, %v5893
        %v5895 = vrot.slane %v5893, 4
        %v5896 = vrot.slane %v5415, 5
        %v5897 = vsel %vm1200, %v5895, %v5896
        %v5898 = vrot.slane %v5816, 5
        %v5899 = vrot.slane %v5898, 4
        %v5900 = vrot.slane %v5388, 5
        %v5901 = vsel %vm1200, %v5899, %v5900
        %v5902 = vrot.slane %v5900, 4
        %v5903 = vrot.slane %v5416, 5
        %v5904 = vsel %vm1200, %v5902, %v5903
        %v5905 = vrot.slane %v5817, 5
        %v5906 = vrot.slane %v5905, 4
        %v5907 = vrot.slane %v5390, 5
        %v5908 = vsel %vm1200, %v5906, %v5907
        %v5909 = vrot.slane %v5907, 4
        %v5910 = vrot.slane %v5417, 5
        %v5911 = vsel %vm1200, %v5909, %v5910
        %v5912 = vrot.slane %v5818, 5
        %v5913 = vrot.slane %v5912, 4
        %v5914 = vrot.slane %v5392, 5
        %v5915 = vsel %vm1200, %v5913, %v5914
        %v5916 = vrot.slane %v5914, 4
        %v5917 = vrot.slane %v5418, 5
        %v5918 = vsel %vm1200, %v5916, %v5917
        %v5919 = vrot.slane %v5819, 5
        %v5920 = vrot.slane %v5919, 4
        %v5921 = vrot.slane %v5394, 5
        %v5922 = vsel %vm1200, %v5920, %v5921
        %v5923 = vrot.slane %v5921, 4
        %v5924 = vrot.slane %v5419, 5
        %v5925 = vsel %vm1200, %v5923, %v5924
        %v5926 = vrot.slane %v5820, 5
        %v5927 = vrot.slane %v5926, 4
        %v5928 = vrot.slane %v5396, 5
        %v5929 = vsel %vm1200, %v5927, %v5928
        %v5930 = vrot.slane %v5928, 4
        %v5931 = vrot.slane %v5420, 5
        %v5932 = vsel %vm1200, %v5930, %v5931
        %v5933 = vrot.slane %v5821, 5
        %v5934 = vrot.slane %v5933, 4
        %v5935 = vrot.slane %v5398, 5
        %v5936 = vsel %vm1200, %v5934, %v5935
        %v5937 = vrot.slane %v5935, 4
        %v5938 = vrot.slane %v5421, 5
        %v5939 = vsel %vm1200, %v5937, %v5938
        %v5940 = vrot.slane %v5822, 5
        %v5941 = vrot.slane %v5940, 4
        %v5942 = vrot.slane %v5400, 5
        %v5943 = vsel %vm1200, %v5941, %v5942
        %v5944 = vrot.slane %v5942, 4
        %v5945 = vrot.slane %v5422, 5
        %v5946 = vsel %vm1200, %v5944, %v5945
        %v5947 = vrot.slane %v5823, 5
        %v5948 = vrot.slane %v5947, 4
        %v5949 = vrot.slane %v5402, 5
        %v5950 = vsel %vm1200, %v5948, %v5949
        %v5951 = vrot.slane %v5949, 4
        %v5952 = vrot.slane %v5423, 5
        %v5953 = vsel %vm1200, %v5951, %v5952
        %v5954 = vrot.slane %v5824, 5
        %v5955 = vrot.slane %v5954, 4
        %v5956 = vrot.slane %v5404, 5
        %v5957 = vsel %vm1200, %v5955, %v5956
        %v5958 = vrot.slane %v5956, 4
        %v5959 = vrot.slane %v5424, 5
        %v5960 = vsel %vm1200, %v5958, %v5959
        %v5961 = vrot.slane %v5825, 5
        %v5962 = vrot.slane %v5961, 4
        %v5963 = vrot.slane %v5406, 5
        %v5964 = vsel %vm1200, %v5962, %v5963
        %v5965 = vrot.slane %v5963, 4
        %v5966 = vrot.slane %v5425, 5
        %v5967 = vsel %vm1200, %v5965, %v5966
        %v5968 = vrot.slane %v5826, 5
        %v5969 = vrot.slane %v5968, 4
        %v5970 = vrot.slane %v5408, 5
        %v5971 = vsel %vm1200, %v5969, %v5970
        %v5972 = vrot.slane %v5970, 4
        %v5973 = vrot.slane %v5426, 5
        %v5974 = vsel %vm1200, %v5972, %v5973
        %v5975 = vrot.slane %v5827, 5
        %v5976 = vrot.slane %v5975, 4
        %v5977 = vrot.slane %v5410, 5
        %v5978 = vsel %vm1200, %v5976, %v5977
        %v5979 = vrot.slane %v5977, 4
        %v5980 = vrot.slane %v5427, 5
        %v5981 = vsel %vm1200, %v5979, %v5980
        %v5982 = vrot.slane %v5828, 5
        %v5983 = vrot.slane %v5982, 4
        %v5984 = vrot.slane %v5412, 5
        %v5985 = vsel %vm1200, %v5983, %v5984
        %v5986 = vrot.slane %v5984, 4
        %v5987 = vrot.slane %v5428, 5
        %v5988 = vsel %vm1200, %v5986, %v5987
        %v5989 = vld [vmem:[%s1921] sm:$0xf]
        %v5990 = vld [vmem:[%s1921 + $0x4] sm:$0xf]
        %v5991 = vld [vmem:[%s1921 + $0xc] sm:$0xf]
        %v5992 = vld [vmem:[%s1921 + $0x10] sm:$0xf]
        %v5993 = vld [vmem:[%s1921 + $0x18] sm:$0xf]
        %v5994 = vld [vmem:[%s1921 + $0x1c] sm:$0xf]
        %v5995 = vld [vmem:[%s1921 + $0x24] sm:$0xf]
        %v5996 = vld [vmem:[%s1921 + $0x28] sm:$0xf]
        %v5997 = vld [vmem:[%s1921 + $0x30] sm:$0xf]
        %v5998 = vld [vmem:[%s1921 + $0x34] sm:$0xf]
        %v5999 = vld [vmem:[%s1921 + $0x3c] sm:$0xf]
        %v6000 = vld [vmem:[%s1921 + $0x40] sm:$0xf]
        %v6001 = vld [vmem:[%s1921 + $0x48] sm:$0xf]
        %v6002 = vld [vmem:[%s1921 + $0x4c] sm:$0xf]
        %v6003 = vld [vmem:[%s1921 + $0x54] sm:$0xf]
        %v6004 = vld [vmem:[%s1921 + $0x58] sm:$0xf]
        %v6005 = vld [vmem:[%s1921 + $0x60] sm:$0xf]
        %v6006 = vld [vmem:[%s1921 + $0x64] sm:$0xf]
        %v6007 = vld [vmem:[%s1921 + $0x6c] sm:$0xf]
        %v6008 = vld [vmem:[%s1921 + $0x70] sm:$0xf]
        %v6009 = vld [vmem:[%s1921 + $0x78] sm:$0xf]
        %v6010 = vld [vmem:[%s1921 + $0x7c] sm:$0xf]
        %v6011 = vld [vmem:[%s1921 + $0x84] sm:$0xf]
        %v6012 = vld [vmem:[%s1921 + $0x88] sm:$0xf]
        %v6013 = vld [vmem:[%s1921 + $0x90] sm:$0xf]
        %v6014 = vld [vmem:[%s1921 + $0x94] sm:$0xf]
        %v6015 = vld [vmem:[%s1921 + $0x9c] sm:$0xf]
        %v6016 = vld [vmem:[%s1921 + $0xa0] sm:$0xf]
        %v6017 = vld [vmem:[%s1921 + $0xa8] sm:$0xf]
        %v6018 = vld [vmem:[%s1921 + $0xac] sm:$0xf]
        %v6019 = vld [vmem:[%s1921 + $0xb4] sm:$0xf]
        %v6020 = vld [vmem:[%s1921 + $0xb8] sm:$0xf]
        %v6021 = vld [vmem:[%s1921 + $0x8] sm:$0x1]
        %v6022 = vld [vmem:[%s1921 + $0x14] sm:$0x1]
        %v6023 = vld [vmem:[%s1921 + $0x20] sm:$0x1]
        %v6024 = vld [vmem:[%s1921 + $0x2c] sm:$0x1]
        %v6025 = vld [vmem:[%s1921 + $0x38] sm:$0x1]
        %v6026 = vld [vmem:[%s1921 + $0x44] sm:$0x1]
        %v6027 = vld [vmem:[%s1921 + $0x50] sm:$0x1]
        %v6028 = vld [vmem:[%s1921 + $0x5c] sm:$0x1]
        %v6029 = vld [vmem:[%s1921 + $0x68] sm:$0x1]
        %v6030 = vld [vmem:[%s1921 + $0x74] sm:$0x1]
        %v6031 = vld [vmem:[%s1921 + $0x80] sm:$0x1]
        %v6032 = vld [vmem:[%s1921 + $0x8c] sm:$0x1]
        %v6033 = vld [vmem:[%s1921 + $0x98] sm:$0x1]
        %v6034 = vld [vmem:[%s1921 + $0xa4] sm:$0x1]
        %v6035 = vld [vmem:[%s1921 + $0xb0] sm:$0x1]
        %v6036 = vld [vmem:[%s1921 + $0xbc] sm:$0x1]
        %v6038 = vshrl.u32 %v5989, 16
        %v6040 = vrot.slane %v6038, 4
        %v6041 = vshll.u32 %v5989, 16
        %v6043 = vrot.slane %v6041, 5
        %v6044 = vor.u32 %v6040, %v6043
        %v6045 = vrot.slane %v6044, 4
        %v6047 = vshll.u32 %v5990, 16
        %v6049 = vrot.slane %v6047, 5
        %v6050 = vsel %vm749, %v6045, %v6049
        %v6051 = vshrl.u32 %v5990, 16
        %v6053 = vrot.slane %v6051, 4
        %v6054 = vor.u32 %v6053, %v6049
        %v6055 = vrot.slane %v6054, 4
        %v6057 = vshll.u32 %v6021, 16
        %v6059 = vrot.slane %v6057, 5
        %v6060 = vsel %vm749, %v6055, %v6059
        %v6062 = vshrl.u32 %v5991, 16
        %v6064 = vrot.slane %v6062, 4
        %v6065 = vshll.u32 %v5991, 16
        %v6067 = vrot.slane %v6065, 5
        %v6068 = vor.u32 %v6064, %v6067
        %v6069 = vrot.slane %v6068, 4
        %v6071 = vshll.u32 %v5992, 16
        %v6073 = vrot.slane %v6071, 5
        %v6074 = vsel %vm749, %v6069, %v6073
        %v6075 = vshrl.u32 %v5992, 16
        %v6077 = vrot.slane %v6075, 4
        %v6078 = vor.u32 %v6077, %v6073
        %v6079 = vrot.slane %v6078, 4
        %v6081 = vshll.u32 %v6022, 16
        %v6083 = vrot.slane %v6081, 5
        %v6084 = vsel %vm749, %v6079, %v6083
        %v6086 = vshrl.u32 %v5993, 16
        %v6088 = vrot.slane %v6086, 4
        %v6089 = vshll.u32 %v5993, 16
        %v6091 = vrot.slane %v6089, 5
        %v6092 = vor.u32 %v6088, %v6091
        %v6093 = vrot.slane %v6092, 4
        %v6095 = vshll.u32 %v5994, 16
        %v6097 = vrot.slane %v6095, 5
        %v6098 = vsel %vm749, %v6093, %v6097
        %v6099 = vshrl.u32 %v5994, 16
        %v6101 = vrot.slane %v6099, 4
        %v6102 = vor.u32 %v6101, %v6097
        %v6103 = vrot.slane %v6102, 4
        %v6105 = vshll.u32 %v6023, 16
        %v6107 = vrot.slane %v6105, 5
        %v6108 = vsel %vm749, %v6103, %v6107
        %v6110 = vshrl.u32 %v5995, 16
        %v6112 = vrot.slane %v6110, 4
        %v6113 = vshll.u32 %v5995, 16
        %v6115 = vrot.slane %v6113, 5
        %v6116 = vor.u32 %v6112, %v6115
        %v6117 = vrot.slane %v6116, 4
        %v6119 = vshll.u32 %v5996, 16
        %v6121 = vrot.slane %v6119, 5
        %v6122 = vsel %vm749, %v6117, %v6121
        %v6123 = vshrl.u32 %v5996, 16
        %v6125 = vrot.slane %v6123, 4
        %v6126 = vor.u32 %v6125, %v6121
        %v6127 = vrot.slane %v6126, 4
        %v6129 = vshll.u32 %v6024, 16
        %v6131 = vrot.slane %v6129, 5
        %v6132 = vsel %vm749, %v6127, %v6131
        %v6134 = vshrl.u32 %v5997, 16
        %v6136 = vrot.slane %v6134, 4
        %v6137 = vshll.u32 %v5997, 16
        %v6139 = vrot.slane %v6137, 5
        %v6140 = vor.u32 %v6136, %v6139
        %v6141 = vrot.slane %v6140, 4
        %v6143 = vshll.u32 %v5998, 16
        %v6145 = vrot.slane %v6143, 5
        %v6146 = vsel %vm749, %v6141, %v6145
        %v6147 = vshrl.u32 %v5998, 16
        %v6149 = vrot.slane %v6147, 4
        %v6150 = vor.u32 %v6149, %v6145
        %v6151 = vrot.slane %v6150, 4
        %v6153 = vshll.u32 %v6025, 16
        %v6155 = vrot.slane %v6153, 5
        %v6156 = vsel %vm749, %v6151, %v6155
        %v6158 = vshrl.u32 %v5999, 16
        %v6160 = vrot.slane %v6158, 4
        %v6161 = vshll.u32 %v5999, 16
        %v6163 = vrot.slane %v6161, 5
        %v6164 = vor.u32 %v6160, %v6163
        %v6165 = vrot.slane %v6164, 4
        %v6167 = vshll.u32 %v6000, 16
        %v6169 = vrot.slane %v6167, 5
        %v6170 = vsel %vm749, %v6165, %v6169
        %v6171 = vshrl.u32 %v6000, 16
        %v6173 = vrot.slane %v6171, 4
        %v6174 = vor.u32 %v6173, %v6169
        %v6175 = vrot.slane %v6174, 4
        %v6177 = vshll.u32 %v6026, 16
        %v6179 = vrot.slane %v6177, 5
        %v6180 = vsel %vm749, %v6175, %v6179
        %v6182 = vshrl.u32 %v6001, 16
        %v6184 = vrot.slane %v6182, 4
        %v6185 = vshll.u32 %v6001, 16
        %v6187 = vrot.slane %v6185, 5
        %v6188 = vor.u32 %v6184, %v6187
        %v6189 = vrot.slane %v6188, 4
        %v6191 = vshll.u32 %v6002, 16
        %v6193 = vrot.slane %v6191, 5
        %v6194 = vsel %vm749, %v6189, %v6193
        %v6195 = vshrl.u32 %v6002, 16
        %v6197 = vrot.slane %v6195, 4
        %v6198 = vor.u32 %v6197, %v6193
        %v6199 = vrot.slane %v6198, 4
        %v6201 = vshll.u32 %v6027, 16
        %v6203 = vrot.slane %v6201, 5
        %v6204 = vsel %vm749, %v6199, %v6203
        %v6206 = vshrl.u32 %v6003, 16
        %v6208 = vrot.slane %v6206, 4
        %v6209 = vshll.u32 %v6003, 16
        %v6211 = vrot.slane %v6209, 5
        %v6212 = vor.u32 %v6208, %v6211
        %v6213 = vrot.slane %v6212, 4
        %v6215 = vshll.u32 %v6004, 16
        %v6217 = vrot.slane %v6215, 5
        %v6218 = vsel %vm749, %v6213, %v6217
        %v6219 = vshrl.u32 %v6004, 16
        %v6221 = vrot.slane %v6219, 4
        %v6222 = vor.u32 %v6221, %v6217
        %v6223 = vrot.slane %v6222, 4
        %v6225 = vshll.u32 %v6028, 16
        %v6227 = vrot.slane %v6225, 5
        %v6228 = vsel %vm749, %v6223, %v6227
        %v6230 = vshrl.u32 %v6005, 16
        %v6232 = vrot.slane %v6230, 4
        %v6233 = vshll.u32 %v6005, 16
        %v6235 = vrot.slane %v6233, 5
        %v6236 = vor.u32 %v6232, %v6235
        %v6237 = vrot.slane %v6236, 4
        %v6239 = vshll.u32 %v6006, 16
        %v6241 = vrot.slane %v6239, 5
        %v6242 = vsel %vm749, %v6237, %v6241
        %v6243 = vshrl.u32 %v6006, 16
        %v6245 = vrot.slane %v6243, 4
        %v6246 = vor.u32 %v6245, %v6241
        %v6247 = vrot.slane %v6246, 4
        %v6249 = vshll.u32 %v6029, 16
        %v6251 = vrot.slane %v6249, 5
        %v6252 = vsel %vm749, %v6247, %v6251
        %v6254 = vshrl.u32 %v6007, 16
        %v6256 = vrot.slane %v6254, 4
        %v6257 = vshll.u32 %v6007, 16
        %v6259 = vrot.slane %v6257, 5
        %v6260 = vor.u32 %v6256, %v6259
        %v6261 = vrot.slane %v6260, 4
        %v6263 = vshll.u32 %v6008, 16
        %v6265 = vrot.slane %v6263, 5
        %v6266 = vsel %vm749, %v6261, %v6265
        %v6267 = vshrl.u32 %v6008, 16
        %v6269 = vrot.slane %v6267, 4
        %v6270 = vor.u32 %v6269, %v6265
        %v6271 = vrot.slane %v6270, 4
        %v6273 = vshll.u32 %v6030, 16
        %v6275 = vrot.slane %v6273, 5
        %v6276 = vsel %vm749, %v6271, %v6275
        %v6278 = vshrl.u32 %v6009, 16
        %v6280 = vrot.slane %v6278, 4
        %v6281 = vshll.u32 %v6009, 16
        %v6283 = vrot.slane %v6281, 5
        %v6284 = vor.u32 %v6280, %v6283
        %v6285 = vrot.slane %v6284, 4
        %v6287 = vshll.u32 %v6010, 16
        %v6289 = vrot.slane %v6287, 5
        %v6290 = vsel %vm749, %v6285, %v6289
        %v6291 = vshrl.u32 %v6010, 16
        %v6293 = vrot.slane %v6291, 4
        %v6294 = vor.u32 %v6293, %v6289
        %v6295 = vrot.slane %v6294, 4
        %v6297 = vshll.u32 %v6031, 16
        %v6299 = vrot.slane %v6297, 5
        %v6300 = vsel %vm749, %v6295, %v6299
        %v6302 = vshrl.u32 %v6011, 16
        %v6304 = vrot.slane %v6302, 4
        %v6305 = vshll.u32 %v6011, 16
        %v6307 = vrot.slane %v6305, 5
        %v6308 = vor.u32 %v6304, %v6307
        %v6309 = vrot.slane %v6308, 4
        %v6311 = vshll.u32 %v6012, 16
        %v6313 = vrot.slane %v6311, 5
        %v6314 = vsel %vm749, %v6309, %v6313
        %v6315 = vshrl.u32 %v6012, 16
        %v6317 = vrot.slane %v6315, 4
        %v6318 = vor.u32 %v6317, %v6313
        %v6319 = vrot.slane %v6318, 4
        %v6321 = vshll.u32 %v6032, 16
        %v6323 = vrot.slane %v6321, 5
        %v6324 = vsel %vm749, %v6319, %v6323
        %v6326 = vshrl.u32 %v6013, 16
        %v6328 = vrot.slane %v6326, 4
        %v6329 = vshll.u32 %v6013, 16
        %v6331 = vrot.slane %v6329, 5
        %v6332 = vor.u32 %v6328, %v6331
        %v6333 = vrot.slane %v6332, 4
        %v6335 = vshll.u32 %v6014, 16
        %v6337 = vrot.slane %v6335, 5
        %v6338 = vsel %vm749, %v6333, %v6337
        %v6339 = vshrl.u32 %v6014, 16
        %v6341 = vrot.slane %v6339, 4
        %v6342 = vor.u32 %v6341, %v6337
        %v6343 = vrot.slane %v6342, 4
        %v6345 = vshll.u32 %v6033, 16
        %v6347 = vrot.slane %v6345, 5
        %v6348 = vsel %vm749, %v6343, %v6347
        %v6350 = vshrl.u32 %v6015, 16
        %v6352 = vrot.slane %v6350, 4
        %v6353 = vshll.u32 %v6015, 16
        %v6355 = vrot.slane %v6353, 5
        %v6356 = vor.u32 %v6352, %v6355
        %v6357 = vrot.slane %v6356, 4
        %v6359 = vshll.u32 %v6016, 16
        %v6361 = vrot.slane %v6359, 5
        %v6362 = vsel %vm749, %v6357, %v6361
        %v6363 = vshrl.u32 %v6016, 16
        %v6365 = vrot.slane %v6363, 4
        %v6366 = vor.u32 %v6365, %v6361
        %v6367 = vrot.slane %v6366, 4
        %v6369 = vshll.u32 %v6034, 16
        %v6371 = vrot.slane %v6369, 5
        %v6372 = vsel %vm749, %v6367, %v6371
        %v6374 = vshrl.u32 %v6017, 16
        %v6376 = vrot.slane %v6374, 4
        %v6377 = vshll.u32 %v6017, 16
        %v6379 = vrot.slane %v6377, 5
        %v6380 = vor.u32 %v6376, %v6379
        %v6381 = vrot.slane %v6380, 4
        %v6383 = vshll.u32 %v6018, 16
        %v6385 = vrot.slane %v6383, 5
        %v6386 = vsel %vm749, %v6381, %v6385
        %v6387 = vshrl.u32 %v6018, 16
        %v6389 = vrot.slane %v6387, 4
        %v6390 = vor.u32 %v6389, %v6385
        %v6391 = vrot.slane %v6390, 4
        %v6393 = vshll.u32 %v6035, 16
        %v6395 = vrot.slane %v6393, 5
        %v6396 = vsel %vm749, %v6391, %v6395
        %v6398 = vshrl.u32 %v6019, 16
        %v6400 = vrot.slane %v6398, 4
        %v6401 = vshll.u32 %v6019, 16
        %v6403 = vrot.slane %v6401, 5
        %v6404 = vor.u32 %v6400, %v6403
        %v6405 = vrot.slane %v6404, 4
        %v6407 = vshll.u32 %v6020, 16
        %v6409 = vrot.slane %v6407, 5
        %v6410 = vsel %vm749, %v6405, %v6409
        %v6411 = vshrl.u32 %v6020, 16
        %v6413 = vrot.slane %v6411, 4
        %v6414 = vor.u32 %v6413, %v6409
        %v6415 = vrot.slane %v6414, 4
        %v6417 = vshll.u32 %v6036, 16
        %v6419 = vrot.slane %v6417, 5
        %v6420 = vsel %vm749, %v6415, %v6419
        %v6421 = vld [vmem:[%s1921] sm:$0xe]
        %v6422 = vld [vmem:[%s1921 + $0xc] sm:$0xe]
        %v6423 = vld [vmem:[%s1921 + $0x18] sm:$0xe]
        %v6424 = vld [vmem:[%s1921 + $0x24] sm:$0xe]
        %v6425 = vld [vmem:[%s1921 + $0x30] sm:$0xe]
        %v6426 = vld [vmem:[%s1921 + $0x3c] sm:$0xe]
        %v6427 = vld [vmem:[%s1921 + $0x48] sm:$0xe]
        %v6428 = vld [vmem:[%s1921 + $0x54] sm:$0xe]
        %v6429 = vld [vmem:[%s1921 + $0x60] sm:$0xe]
        %v6430 = vld [vmem:[%s1921 + $0x6c] sm:$0xe]
        %v6431 = vld [vmem:[%s1921 + $0x78] sm:$0xe]
        %v6432 = vld [vmem:[%s1921 + $0x84] sm:$0xe]
        %v6433 = vld [vmem:[%s1921 + $0x90] sm:$0xe]
        %v6434 = vld [vmem:[%s1921 + $0x9c] sm:$0xe]
        %v6435 = vld [vmem:[%s1921 + $0xa8] sm:$0xe]
        %v6436 = vld [vmem:[%s1921 + $0xb4] sm:$0xe]
        %v6485 = vrot.slane %v6421, 5
        %v6486 = vrot.slane %v6485, 4
        %v6487 = vrot.slane %v5990, 5
        %v6488 = vsel %vm1200, %v6486, %v6487
        %v6489 = vrot.slane %v6487, 4
        %v6490 = vrot.slane %v6021, 5
        %v6491 = vsel %vm1200, %v6489, %v6490
        %v6492 = vrot.slane %v6422, 5
        %v6493 = vrot.slane %v6492, 4
        %v6494 = vrot.slane %v5992, 5
        %v6495 = vsel %vm1200, %v6493, %v6494
        %v6496 = vrot.slane %v6494, 4
        %v6497 = vrot.slane %v6022, 5
        %v6498 = vsel %vm1200, %v6496, %v6497
        %v6499 = vrot.slane %v6423, 5
        %v6500 = vrot.slane %v6499, 4
        %v6501 = vrot.slane %v5994, 5
        %v6502 = vsel %vm1200, %v6500, %v6501
        %v6503 = vrot.slane %v6501, 4
        %v6504 = vrot.slane %v6023, 5
        %v6505 = vsel %vm1200, %v6503, %v6504
        %v6506 = vrot.slane %v6424, 5
        %v6507 = vrot.slane %v6506, 4
        %v6508 = vrot.slane %v5996, 5
        %v6509 = vsel %vm1200, %v6507, %v6508
        %v6510 = vrot.slane %v6508, 4
        %v6511 = vrot.slane %v6024, 5
        %v6512 = vsel %vm1200, %v6510, %v6511
        %v6513 = vrot.slane %v6425, 5
        %v6514 = vrot.slane %v6513, 4
        %v6515 = vrot.slane %v5998, 5
        %v6516 = vsel %vm1200, %v6514, %v6515
        %v6517 = vrot.slane %v6515, 4
        %v6518 = vrot.slane %v6025, 5
        %v6519 = vsel %vm1200, %v6517, %v6518
        %v6520 = vrot.slane %v6426, 5
        %v6521 = vrot.slane %v6520, 4
        %v6522 = vrot.slane %v6000, 5
        %v6523 = vsel %vm1200, %v6521, %v6522
        %v6524 = vrot.slane %v6522, 4
        %v6525 = vrot.slane %v6026, 5
        %v6526 = vsel %vm1200, %v6524, %v6525
        %v6527 = vrot.slane %v6427, 5
        %v6528 = vrot.slane %v6527, 4
        %v6529 = vrot.slane %v6002, 5
        %v6530 = vsel %vm1200, %v6528, %v6529
        %v6531 = vrot.slane %v6529, 4
        %v6532 = vrot.slane %v6027, 5
        %v6533 = vsel %vm1200, %v6531, %v6532
        %v6534 = vrot.slane %v6428, 5
        %v6535 = vrot.slane %v6534, 4
        %v6536 = vrot.slane %v6004, 5
        %v6537 = vsel %vm1200, %v6535, %v6536
        %v6538 = vrot.slane %v6536, 4
        %v6539 = vrot.slane %v6028, 5
        %v6540 = vsel %vm1200, %v6538, %v6539
        %v6541 = vrot.slane %v6429, 5
        %v6542 = vrot.slane %v6541, 4
        %v6543 = vrot.slane %v6006, 5
        %v6544 = vsel %vm1200, %v6542, %v6543
        %v6545 = vrot.slane %v6543, 4
        %v6546 = vrot.slane %v6029, 5
        %v6547 = vsel %vm1200, %v6545, %v6546
        %v6548 = vrot.slane %v6430, 5
        %v6549 = vrot.slane %v6548, 4
        %v6550 = vrot.slane %v6008, 5
        %v6551 = vsel %vm1200, %v6549, %v6550
        %v6552 = vrot.slane %v6550, 4
        %v6553 = vrot.slane %v6030, 5
        %v6554 = vsel %vm1200, %v6552, %v6553
        %v6555 = vrot.slane %v6431, 5
        %v6556 = vrot.slane %v6555, 4
        %v6557 = vrot.slane %v6010, 5
        %v6558 = vsel %vm1200, %v6556, %v6557
        %v6559 = vrot.slane %v6557, 4
        %v6560 = vrot.slane %v6031, 5
        %v6561 = vsel %vm1200, %v6559, %v6560
        %v6562 = vrot.slane %v6432, 5
        %v6563 = vrot.slane %v6562, 4
        %v6564 = vrot.slane %v6012, 5
        %v6565 = vsel %vm1200, %v6563, %v6564
        %v6566 = vrot.slane %v6564, 4
        %v6567 = vrot.slane %v6032, 5
        %v6568 = vsel %vm1200, %v6566, %v6567
        %v6569 = vrot.slane %v6433, 5
        %v6570 = vrot.slane %v6569, 4
        %v6571 = vrot.slane %v6014, 5
        %v6572 = vsel %vm1200, %v6570, %v6571
        %v6573 = vrot.slane %v6571, 4
        %v6574 = vrot.slane %v6033, 5
        %v6575 = vsel %vm1200, %v6573, %v6574
        %v6576 = vrot.slane %v6434, 5
        %v6577 = vrot.slane %v6576, 4
        %v6578 = vrot.slane %v6016, 5
        %v6579 = vsel %vm1200, %v6577, %v6578
        %v6580 = vrot.slane %v6578, 4
        %v6581 = vrot.slane %v6034, 5
        %v6582 = vsel %vm1200, %v6580, %v6581
        %v6583 = vrot.slane %v6435, 5
        %v6584 = vrot.slane %v6583, 4
        %v6585 = vrot.slane %v6018, 5
        %v6586 = vsel %vm1200, %v6584, %v6585
        %v6587 = vrot.slane %v6585, 4
        %v6588 = vrot.slane %v6035, 5
        %v6589 = vsel %vm1200, %v6587, %v6588
        %v6590 = vrot.slane %v6436, 5
        %v6591 = vrot.slane %v6590, 4
        %v6592 = vrot.slane %v6020, 5
        %v6593 = vsel %vm1200, %v6591, %v6592
        %v6594 = vrot.slane %v6592, 4
        %v6595 = vrot.slane %v6036, 5
        %v6596 = vsel %vm1200, %v6594, %v6595
        %v6613 = vunpack.c.l.b16 %v4773
        %v6614 = vunpack.c.l.b16 %v4774
        %v6615 = vunpack.c.l.b16 %v4775
        %v6616 = vunpack.c.l.b16 %v4776
        %v6617 = vunpack.c.l.b16 %v4777
        %v6618 = vunpack.c.l.b16 %v4778
        %v6619 = vunpack.c.l.b16 %v4779
        %v6620 = vunpack.c.l.b16 %v4780
        %v6621 = vunpack.c.l.b16 %v4781
        %v6622 = vunpack.c.l.b16 %v4782
        %v6623 = vunpack.c.l.b16 %v4783
        %v6624 = vunpack.c.l.b16 %v4784
        %v6625 = vunpack.c.l.b16 %v4785
        %v6626 = vunpack.c.l.b16 %v4786
        %v6627 = vunpack.c.l.b16 %v4787
        %v6628 = vunpack.c.l.b16 %v4788
        %v6629 = vunpack.c.l.b16 %v4789
        %v6630 = vunpack.c.l.b16 %v4790
        %v6631 = vunpack.c.l.b16 %v4791
        %v6632 = vunpack.c.l.b16 %v4792
        %v6633 = vunpack.c.l.b16 %v4793
        %v6634 = vunpack.c.l.b16 %v4794
        %v6635 = vunpack.c.l.b16 %v4795
        %v6636 = vunpack.c.l.b16 %v4796
        %v6637 = vunpack.c.l.b16 %v4797
        %v6638 = vunpack.c.l.b16 %v4798
        %v6639 = vunpack.c.l.b16 %v4799
        %v6640 = vunpack.c.l.b16 %v4800
        %v6641 = vunpack.c.l.b16 %v4801
        %v6642 = vunpack.c.l.b16 %v4802
        %v6643 = vunpack.c.l.b16 %v4803
        %v6644 = vunpack.c.l.b16 %v4804
        %v6645 = vpack.c.b16 %v6614, %v6613
        %v6646 = vpack.c.b16 %v6616, %v6615
        %v6647 = vpack.c.b16 %v6618, %v6617
        %v6648 = vpack.c.b16 %v6620, %v6619
        %v6649 = vpack.c.b16 %v6622, %v6621
        %v6650 = vpack.c.b16 %v6624, %v6623
        %v6651 = vpack.c.b16 %v6626, %v6625
        %v6652 = vpack.c.b16 %v6628, %v6627
        %v6653 = vpack.c.b16 %v6630, %v6629
        %v6654 = vpack.c.b16 %v6632, %v6631
        %v6655 = vpack.c.b16 %v6634, %v6633
        %v6656 = vpack.c.b16 %v6636, %v6635
        %v6657 = vpack.c.b16 %v6638, %v6637
        %v6658 = vpack.c.b16 %v6640, %v6639
        %v6659 = vpack.c.b16 %v6642, %v6641
        %v6660 = vpack.c.b16 %v6644, %v6643
        %v6661 = vunpack.c.l.b16 %v4834
        %v6662 = vunpack.c.l.b16 %v4844
        %v6663 = vunpack.c.l.b16 %v4858
        %v6664 = vunpack.c.l.b16 %v4868
        %v6665 = vunpack.c.l.b16 %v4882
        %v6666 = vunpack.c.l.b16 %v4892
        %v6667 = vunpack.c.l.b16 %v4906
        %v6668 = vunpack.c.l.b16 %v4916
        %v6669 = vunpack.c.l.b16 %v4930
        %v6670 = vunpack.c.l.b16 %v4940
        %v6671 = vunpack.c.l.b16 %v4954
        %v6672 = vunpack.c.l.b16 %v4964
        %v6673 = vunpack.c.l.b16 %v4978
        %v6674 = vunpack.c.l.b16 %v4988
        %v6675 = vunpack.c.l.b16 %v5002
        %v6676 = vunpack.c.l.b16 %v5012
        %v6677 = vunpack.c.l.b16 %v5026
        %v6678 = vunpack.c.l.b16 %v5036
        %v6679 = vunpack.c.l.b16 %v5050
        %v6680 = vunpack.c.l.b16 %v5060
        %v6681 = vunpack.c.l.b16 %v5074
        %v6682 = vunpack.c.l.b16 %v5084
        %v6683 = vunpack.c.l.b16 %v5098
        %v6684 = vunpack.c.l.b16 %v5108
        %v6685 = vunpack.c.l.b16 %v5122
        %v6686 = vunpack.c.l.b16 %v5132
        %v6687 = vunpack.c.l.b16 %v5146
        %v6688 = vunpack.c.l.b16 %v5156
        %v6689 = vunpack.c.l.b16 %v5170
        %v6690 = vunpack.c.l.b16 %v5180
        %v6691 = vunpack.c.l.b16 %v5194
        %v6692 = vunpack.c.l.b16 %v5204
        %v6693 = vpack.c.b16 %v6662, %v6661
        %v6694 = vpack.c.b16 %v6664, %v6663
        %v6695 = vpack.c.b16 %v6666, %v6665
        %v6696 = vpack.c.b16 %v6668, %v6667
        %v6697 = vpack.c.b16 %v6670, %v6669
        %v6698 = vpack.c.b16 %v6672, %v6671
        %v6699 = vpack.c.b16 %v6674, %v6673
        %v6700 = vpack.c.b16 %v6676, %v6675
        %v6701 = vpack.c.b16 %v6678, %v6677
        %v6702 = vpack.c.b16 %v6680, %v6679
        %v6703 = vpack.c.b16 %v6682, %v6681
        %v6704 = vpack.c.b16 %v6684, %v6683
        %v6705 = vpack.c.b16 %v6686, %v6685
        %v6706 = vpack.c.b16 %v6688, %v6687
        %v6707 = vpack.c.b16 %v6690, %v6689
        %v6708 = vpack.c.b16 %v6692, %v6691
        %6709 = vrot.lane.b32.xlu0 %v6693, 64
        %v6710 = vpop.permute.xlu0 %6709
        %6711 = vrot.lane.b32.xlu0 %v6694, 64
        %v6712 = vpop.permute.xlu0 %6711
        %6713 = vrot.lane.b32.xlu0 %v6695, 64
        %v6714 = vpop.permute.xlu0 %6713
        %6715 = vrot.lane.b32.xlu0 %v6696, 64
        %v6716 = vpop.permute.xlu0 %6715
        %6717 = vrot.lane.b32.xlu0 %v6697, 64
        %v6718 = vpop.permute.xlu0 %6717
        %6719 = vrot.lane.b32.xlu0 %v6698, 64
        %v6720 = vpop.permute.xlu0 %6719
        %6721 = vrot.lane.b32.xlu0 %v6699, 64
        %v6722 = vpop.permute.xlu0 %6721
        %6723 = vrot.lane.b32.xlu0 %v6700, 64
        %v6724 = vpop.permute.xlu0 %6723
        %6725 = vrot.lane.b32.xlu0 %v6701, 64
        %v6726 = vpop.permute.xlu0 %6725
        %6727 = vrot.lane.b32.xlu0 %v6702, 64
        %v6728 = vpop.permute.xlu0 %6727
        %6729 = vrot.lane.b32.xlu0 %v6703, 64
        %v6730 = vpop.permute.xlu0 %6729
        %6731 = vrot.lane.b32.xlu0 %v6704, 64
        %v6732 = vpop.permute.xlu0 %6731
        %6733 = vrot.lane.b32.xlu0 %v6705, 64
        %v6734 = vpop.permute.xlu0 %6733
        %6735 = vrot.lane.b32.xlu0 %v6706, 64
        %v6736 = vpop.permute.xlu0 %6735
        %6737 = vrot.lane.b32.xlu0 %v6707, 64
        %v6738 = vpop.permute.xlu0 %6737
        %6739 = vrot.lane.b32.xlu0 %v6708, 64
        %v6740 = vpop.permute.xlu0 %6739
        %v6741 = vunpack.c.l.b16 %v5272
        %v6742 = vunpack.c.l.b16 %v5275
        %v6743 = vunpack.c.l.b16 %v5279
        %v6744 = vunpack.c.l.b16 %v5282
        %v6745 = vunpack.c.l.b16 %v5286
        %v6746 = vunpack.c.l.b16 %v5289
        %v6747 = vunpack.c.l.b16 %v5293
        %v6748 = vunpack.c.l.b16 %v5296
        %v6749 = vunpack.c.l.b16 %v5300
        %v6750 = vunpack.c.l.b16 %v5303
        %v6751 = vunpack.c.l.b16 %v5307
        %v6752 = vunpack.c.l.b16 %v5310
        %v6753 = vunpack.c.l.b16 %v5314
        %v6754 = vunpack.c.l.b16 %v5317
        %v6755 = vunpack.c.l.b16 %v5321
        %v6756 = vunpack.c.l.b16 %v5324
        %v6757 = vunpack.c.l.b16 %v5328
        %v6758 = vunpack.c.l.b16 %v5331
        %v6759 = vunpack.c.l.b16 %v5335
        %v6760 = vunpack.c.l.b16 %v5338
        %v6761 = vunpack.c.l.b16 %v5342
        %v6762 = vunpack.c.l.b16 %v5345
        %v6763 = vunpack.c.l.b16 %v5349
        %v6764 = vunpack.c.l.b16 %v5352
        %v6765 = vunpack.c.l.b16 %v5356
        %v6766 = vunpack.c.l.b16 %v5359
        %v6767 = vunpack.c.l.b16 %v5363
        %v6768 = vunpack.c.l.b16 %v5366
        %v6769 = vunpack.c.l.b16 %v5370
        %v6770 = vunpack.c.l.b16 %v5373
        %v6771 = vunpack.c.l.b16 %v5377
        %v6772 = vunpack.c.l.b16 %v5380
        %v6773 = vpack.c.b16 %v6742, %v6741
        %v6774 = vpack.c.b16 %v6744, %v6743
        %v6775 = vpack.c.b16 %v6746, %v6745
        %v6776 = vpack.c.b16 %v6748, %v6747
        %v6777 = vpack.c.b16 %v6750, %v6749
        %v6778 = vpack.c.b16 %v6752, %v6751
        %v6779 = vpack.c.b16 %v6754, %v6753
        %v6780 = vpack.c.b16 %v6756, %v6755
        %v6781 = vpack.c.b16 %v6758, %v6757
        %v6782 = vpack.c.b16 %v6760, %v6759
        %v6783 = vpack.c.b16 %v6762, %v6761
        %v6784 = vpack.c.b16 %v6764, %v6763
        %v6785 = vpack.c.b16 %v6766, %v6765
        %v6786 = vpack.c.b16 %v6768, %v6767
        %v6787 = vpack.c.b16 %v6770, %v6769
        %v6788 = vpack.c.b16 %v6772, %v6771
        %v6805 = vunpack.c.l.b16 %v5381
        %v6806 = vunpack.c.l.b16 %v5382
        %v6807 = vunpack.c.l.b16 %v5383
        %v6808 = vunpack.c.l.b16 %v5384
        %v6809 = vunpack.c.l.b16 %v5385
        %v6810 = vunpack.c.l.b16 %v5386
        %v6811 = vunpack.c.l.b16 %v5387
        %v6812 = vunpack.c.l.b16 %v5388
        %v6813 = vunpack.c.l.b16 %v5389
        %v6814 = vunpack.c.l.b16 %v5390
        %v6815 = vunpack.c.l.b16 %v5391
        %v6816 = vunpack.c.l.b16 %v5392
        %v6817 = vunpack.c.l.b16 %v5393
        %v6818 = vunpack.c.l.b16 %v5394
        %v6819 = vunpack.c.l.b16 %v5395
        %v6820 = vunpack.c.l.b16 %v5396
        %v6821 = vunpack.c.l.b16 %v5397
        %v6822 = vunpack.c.l.b16 %v5398
        %v6823 = vunpack.c.l.b16 %v5399
        %v6824 = vunpack.c.l.b16 %v5400
        %v6825 = vunpack.c.l.b16 %v5401
        %v6826 = vunpack.c.l.b16 %v5402
        %v6827 = vunpack.c.l.b16 %v5403
        %v6828 = vunpack.c.l.b16 %v5404
        %v6829 = vunpack.c.l.b16 %v5405
        %v6830 = vunpack.c.l.b16 %v5406
        %v6831 = vunpack.c.l.b16 %v5407
        %v6832 = vunpack.c.l.b16 %v5408
        %v6833 = vunpack.c.l.b16 %v5409
        %v6834 = vunpack.c.l.b16 %v5410
        %v6835 = vunpack.c.l.b16 %v5411
        %v6836 = vunpack.c.l.b16 %v5412
        %v6837 = vpack.c.b16 %v6806, %v6805
        %v6838 = vpack.c.b16 %v6808, %v6807
        %v6839 = vpack.c.b16 %v6810, %v6809
        %v6840 = vpack.c.b16 %v6812, %v6811
        %v6841 = vpack.c.b16 %v6814, %v6813
        %v6842 = vpack.c.b16 %v6816, %v6815
        %v6843 = vpack.c.b16 %v6818, %v6817
        %v6844 = vpack.c.b16 %v6820, %v6819
        %v6845 = vpack.c.b16 %v6822, %v6821
        %v6846 = vpack.c.b16 %v6824, %v6823
        %v6847 = vpack.c.b16 %v6826, %v6825
        %v6848 = vpack.c.b16 %v6828, %v6827
        %v6849 = vpack.c.b16 %v6830, %v6829
        %v6850 = vpack.c.b16 %v6832, %v6831
        %v6851 = vpack.c.b16 %v6834, %v6833
        %v6852 = vpack.c.b16 %v6836, %v6835
        %6853 = vrot.lane.b32.xlu0 %v6837, 64
        %v6854 = vpop.permute.xlu0 %6853
        %6855 = vrot.lane.b32.xlu0 %v6838, 64
        %v6856 = vpop.permute.xlu0 %6855
        %6857 = vrot.lane.b32.xlu0 %v6839, 64
        %v6858 = vpop.permute.xlu0 %6857
        %6859 = vrot.lane.b32.xlu0 %v6840, 64
        %v6860 = vpop.permute.xlu0 %6859
        %6861 = vrot.lane.b32.xlu0 %v6841, 64
        %v6862 = vpop.permute.xlu0 %6861
        %6863 = vrot.lane.b32.xlu0 %v6842, 64
        %v6864 = vpop.permute.xlu0 %6863
        %6865 = vrot.lane.b32.xlu0 %v6843, 64
        %v6866 = vpop.permute.xlu0 %6865
        %6867 = vrot.lane.b32.xlu0 %v6844, 64
        %v6868 = vpop.permute.xlu0 %6867
        %6869 = vrot.lane.b32.xlu0 %v6845, 64
        %v6870 = vpop.permute.xlu0 %6869
        %6871 = vrot.lane.b32.xlu0 %v6846, 64
        %v6872 = vpop.permute.xlu0 %6871
        %6873 = vrot.lane.b32.xlu0 %v6847, 64
        %v6874 = vpop.permute.xlu0 %6873
        %6875 = vrot.lane.b32.xlu0 %v6848, 64
        %v6876 = vpop.permute.xlu0 %6875
        %6877 = vrot.lane.b32.xlu0 %v6849, 64
        %v6878 = vpop.permute.xlu0 %6877
        %6879 = vrot.lane.b32.xlu0 %v6850, 64
        %v6880 = vpop.permute.xlu0 %6879
        %6881 = vrot.lane.b32.xlu0 %v6851, 64
        %v6882 = vpop.permute.xlu0 %6881
        %6883 = vrot.lane.b32.xlu0 %v6852, 64
        %v6884 = vpop.permute.xlu0 %6883
        %v6885 = vunpack.c.l.b16 %v5442
        %v6886 = vunpack.c.l.b16 %v5452
        %v6887 = vunpack.c.l.b16 %v5466
        %v6888 = vunpack.c.l.b16 %v5476
        %v6889 = vunpack.c.l.b16 %v5490
        %v6890 = vunpack.c.l.b16 %v5500
        %v6891 = vunpack.c.l.b16 %v5514
        %v6892 = vunpack.c.l.b16 %v5524
        %v6893 = vunpack.c.l.b16 %v5538
        %v6894 = vunpack.c.l.b16 %v5548
        %v6895 = vunpack.c.l.b16 %v5562
        %v6896 = vunpack.c.l.b16 %v5572
        %v6897 = vunpack.c.l.b16 %v5586
        %v6898 = vunpack.c.l.b16 %v5596
        %v6899 = vunpack.c.l.b16 %v5610
        %v6900 = vunpack.c.l.b16 %v5620
        %v6901 = vunpack.c.l.b16 %v5634
        %v6902 = vunpack.c.l.b16 %v5644
        %v6903 = vunpack.c.l.b16 %v5658
        %v6904 = vunpack.c.l.b16 %v5668
        %v6905 = vunpack.c.l.b16 %v5682
        %v6906 = vunpack.c.l.b16 %v5692
        %v6907 = vunpack.c.l.b16 %v5706
        %v6908 = vunpack.c.l.b16 %v5716
        %v6909 = vunpack.c.l.b16 %v5730
        %v6910 = vunpack.c.l.b16 %v5740
        %v6911 = vunpack.c.l.b16 %v5754
        %v6912 = vunpack.c.l.b16 %v5764
        %v6913 = vunpack.c.l.b16 %v5778
        %v6914 = vunpack.c.l.b16 %v5788
        %v6915 = vunpack.c.l.b16 %v5802
        %v6916 = vunpack.c.l.b16 %v5812
        %v6917 = vpack.c.b16 %v6886, %v6885
        %v6918 = vpack.c.b16 %v6888, %v6887
        %v6919 = vpack.c.b16 %v6890, %v6889
        %v6920 = vpack.c.b16 %v6892, %v6891
        %v6921 = vpack.c.b16 %v6894, %v6893
        %v6922 = vpack.c.b16 %v6896, %v6895
        %v6923 = vpack.c.b16 %v6898, %v6897
        %v6924 = vpack.c.b16 %v6900, %v6899
        %v6925 = vpack.c.b16 %v6902, %v6901
        %v6926 = vpack.c.b16 %v6904, %v6903
        %v6927 = vpack.c.b16 %v6906, %v6905
        %v6928 = vpack.c.b16 %v6908, %v6907
        %v6929 = vpack.c.b16 %v6910, %v6909
        %v6930 = vpack.c.b16 %v6912, %v6911
        %v6931 = vpack.c.b16 %v6914, %v6913
        %v6932 = vpack.c.b16 %v6916, %v6915
        %v6933 = vunpack.c.l.b16 %v5880
        %v6934 = vunpack.c.l.b16 %v5883
        %v6935 = vunpack.c.l.b16 %v5887
        %v6936 = vunpack.c.l.b16 %v5890
        %v6937 = vunpack.c.l.b16 %v5894
        %v6938 = vunpack.c.l.b16 %v5897
        %v6939 = vunpack.c.l.b16 %v5901
        %v6940 = vunpack.c.l.b16 %v5904
        %v6941 = vunpack.c.l.b16 %v5908
        %v6942 = vunpack.c.l.b16 %v5911
        %v6943 = vunpack.c.l.b16 %v5915
        %v6944 = vunpack.c.l.b16 %v5918
        %v6945 = vunpack.c.l.b16 %v5922
        %v6946 = vunpack.c.l.b16 %v5925
        %v6947 = vunpack.c.l.b16 %v5929
        %v6948 = vunpack.c.l.b16 %v5932
        %v6949 = vunpack.c.l.b16 %v5936
        %v6950 = vunpack.c.l.b16 %v5939
        %v6951 = vunpack.c.l.b16 %v5943
        %v6952 = vunpack.c.l.b16 %v5946
        %v6953 = vunpack.c.l.b16 %v5950
        %v6954 = vunpack.c.l.b16 %v5953
        %v6955 = vunpack.c.l.b16 %v5957
        %v6956 = vunpack.c.l.b16 %v5960
        %v6957 = vunpack.c.l.b16 %v5964
        %v6958 = vunpack.c.l.b16 %v5967
        %v6959 = vunpack.c.l.b16 %v5971
        %v6960 = vunpack.c.l.b16 %v5974
        %v6961 = vunpack.c.l.b16 %v5978
        %v6962 = vunpack.c.l.b16 %v5981
        %v6963 = vunpack.c.l.b16 %v5985
        %v6964 = vunpack.c.l.b16 %v5988
        %v6965 = vpack.c.b16 %v6934, %v6933
        %v6966 = vpack.c.b16 %v6936, %v6935
        %v6967 = vpack.c.b16 %v6938, %v6937
        %v6968 = vpack.c.b16 %v6940, %v6939
        %v6969 = vpack.c.b16 %v6942, %v6941
        %v6970 = vpack.c.b16 %v6944, %v6943
        %v6971 = vpack.c.b16 %v6946, %v6945
        %v6972 = vpack.c.b16 %v6948, %v6947
        %v6973 = vpack.c.b16 %v6950, %v6949
        %v6974 = vpack.c.b16 %v6952, %v6951
        %v6975 = vpack.c.b16 %v6954, %v6953
        %v6976 = vpack.c.b16 %v6956, %v6955
        %v6977 = vpack.c.b16 %v6958, %v6957
        %v6978 = vpack.c.b16 %v6960, %v6959
        %v6979 = vpack.c.b16 %v6962, %v6961
        %v6980 = vpack.c.b16 %v6964, %v6963
        %6981 = vrot.lane.b32.xlu0 %v6965, 64
        %v6982 = vpop.permute.xlu0 %6981
        %6983 = vrot.lane.b32.xlu0 %v6966, 64
        %v6984 = vpop.permute.xlu0 %6983
        %6985 = vrot.lane.b32.xlu0 %v6967, 64
        %v6986 = vpop.permute.xlu0 %6985
        %6987 = vrot.lane.b32.xlu0 %v6968, 64
        %v6988 = vpop.permute.xlu0 %6987
        %6989 = vrot.lane.b32.xlu0 %v6969, 64
        %v6990 = vpop.permute.xlu0 %6989
        %6991 = vrot.lane.b32.xlu0 %v6970, 64
        %v6992 = vpop.permute.xlu0 %6991
        %6993 = vrot.lane.b32.xlu0 %v6971, 64
        %v6994 = vpop.permute.xlu0 %6993
        %6995 = vrot.lane.b32.xlu0 %v6972, 64
        %v6996 = vpop.permute.xlu0 %6995
        %6997 = vrot.lane.b32.xlu0 %v6973, 64
        %v6998 = vpop.permute.xlu0 %6997
        %6999 = vrot.lane.b32.xlu0 %v6974, 64
        %v7000 = vpop.permute.xlu0 %6999
        %7001 = vrot.lane.b32.xlu0 %v6975, 64
        %v7002 = vpop.permute.xlu0 %7001
        %7003 = vrot.lane.b32.xlu0 %v6976, 64
        %v7004 = vpop.permute.xlu0 %7003
        %7005 = vrot.lane.b32.xlu0 %v6977, 64
        %v7006 = vpop.permute.xlu0 %7005
        %7007 = vrot.lane.b32.xlu0 %v6978, 64
        %v7008 = vpop.permute.xlu0 %7007
        %7009 = vrot.lane.b32.xlu0 %v6979, 64
        %v7010 = vpop.permute.xlu0 %7009
        %7011 = vrot.lane.b32.xlu0 %v6980, 64
        %v7012 = vpop.permute.xlu0 %7011
        %v7029 = vunpack.c.l.b16 %v5989
        %v7030 = vunpack.c.l.b16 %v5990
        %v7031 = vunpack.c.l.b16 %v5991
        %v7032 = vunpack.c.l.b16 %v5992
        %v7033 = vunpack.c.l.b16 %v5993
        %v7034 = vunpack.c.l.b16 %v5994
        %v7035 = vunpack.c.l.b16 %v5995
        %v7036 = vunpack.c.l.b16 %v5996
        %v7037 = vunpack.c.l.b16 %v5997
        %v7038 = vunpack.c.l.b16 %v5998
        %v7039 = vunpack.c.l.b16 %v5999
        %v7040 = vunpack.c.l.b16 %v6000
        %v7041 = vunpack.c.l.b16 %v6001
        %v7042 = vunpack.c.l.b16 %v6002
        %v7043 = vunpack.c.l.b16 %v6003
        %v7044 = vunpack.c.l.b16 %v6004
        %v7045 = vunpack.c.l.b16 %v6005
        %v7046 = vunpack.c.l.b16 %v6006
        %v7047 = vunpack.c.l.b16 %v6007
        %v7048 = vunpack.c.l.b16 %v6008
        %v7049 = vunpack.c.l.b16 %v6009
        %v7050 = vunpack.c.l.b16 %v6010
        %v7051 = vunpack.c.l.b16 %v6011
        %v7052 = vunpack.c.l.b16 %v6012
        %v7053 = vunpack.c.l.b16 %v6013
        %v7054 = vunpack.c.l.b16 %v6014
        %v7055 = vunpack.c.l.b16 %v6015
        %v7056 = vunpack.c.l.b16 %v6016
        %v7057 = vunpack.c.l.b16 %v6017
        %v7058 = vunpack.c.l.b16 %v6018
        %v7059 = vunpack.c.l.b16 %v6019
        %v7060 = vunpack.c.l.b16 %v6020
        %v7061 = vpack.c.b16 %v7030, %v7029
        %v7062 = vpack.c.b16 %v7032, %v7031
        %v7063 = vpack.c.b16 %v7034, %v7033
        %v7064 = vpack.c.b16 %v7036, %v7035
        %v7065 = vpack.c.b16 %v7038, %v7037
        %v7066 = vpack.c.b16 %v7040, %v7039
        %v7067 = vpack.c.b16 %v7042, %v7041
        %v7068 = vpack.c.b16 %v7044, %v7043
        %v7069 = vpack.c.b16 %v7046, %v7045
        %v7070 = vpack.c.b16 %v7048, %v7047
        %v7071 = vpack.c.b16 %v7050, %v7049
        %v7072 = vpack.c.b16 %v7052, %v7051
        %v7073 = vpack.c.b16 %v7054, %v7053
        %v7074 = vpack.c.b16 %v7056, %v7055
        %v7075 = vpack.c.b16 %v7058, %v7057
        %v7076 = vpack.c.b16 %v7060, %v7059
        %v7077 = vunpack.c.l.b16 %v6050
        %v7078 = vunpack.c.l.b16 %v6060
        %v7079 = vunpack.c.l.b16 %v6074
        %v7080 = vunpack.c.l.b16 %v6084
        %v7081 = vunpack.c.l.b16 %v6098
        %v7082 = vunpack.c.l.b16 %v6108
        %v7083 = vunpack.c.l.b16 %v6122
        %v7084 = vunpack.c.l.b16 %v6132
        %v7085 = vunpack.c.l.b16 %v6146
        %v7086 = vunpack.c.l.b16 %v6156
        %v7087 = vunpack.c.l.b16 %v6170
        %v7088 = vunpack.c.l.b16 %v6180
        %v7089 = vunpack.c.l.b16 %v6194
        %v7090 = vunpack.c.l.b16 %v6204
        %v7091 = vunpack.c.l.b16 %v6218
        %v7092 = vunpack.c.l.b16 %v6228
        %v7093 = vunpack.c.l.b16 %v6242
        %v7094 = vunpack.c.l.b16 %v6252
        %v7095 = vunpack.c.l.b16 %v6266
        %v7096 = vunpack.c.l.b16 %v6276
        %v7097 = vunpack.c.l.b16 %v6290
        %v7098 = vunpack.c.l.b16 %v6300
        %v7099 = vunpack.c.l.b16 %v6314
        %v7100 = vunpack.c.l.b16 %v6324
        %v7101 = vunpack.c.l.b16 %v6338
        %v7102 = vunpack.c.l.b16 %v6348
        %v7103 = vunpack.c.l.b16 %v6362
        %v7104 = vunpack.c.l.b16 %v6372
        %v7105 = vunpack.c.l.b16 %v6386
        %v7106 = vunpack.c.l.b16 %v6396
        %v7107 = vunpack.c.l.b16 %v6410
        %v7108 = vunpack.c.l.b16 %v6420
        %v7109 = vpack.c.b16 %v7078, %v7077
        %v7110 = vpack.c.b16 %v7080, %v7079
        %v7111 = vpack.c.b16 %v7082, %v7081
        %v7112 = vpack.c.b16 %v7084, %v7083
        %v7113 = vpack.c.b16 %v7086, %v7085
        %v7114 = vpack.c.b16 %v7088, %v7087
        %v7115 = vpack.c.b16 %v7090, %v7089
        %v7116 = vpack.c.b16 %v7092, %v7091
        %v7117 = vpack.c.b16 %v7094, %v7093
        %v7118 = vpack.c.b16 %v7096, %v7095
        %v7119 = vpack.c.b16 %v7098, %v7097
        %v7120 = vpack.c.b16 %v7100, %v7099
        %v7121 = vpack.c.b16 %v7102, %v7101
        %v7122 = vpack.c.b16 %v7104, %v7103
        %v7123 = vpack.c.b16 %v7106, %v7105
        %v7124 = vpack.c.b16 %v7108, %v7107
        %7125 = vrot.lane.b32.xlu0 %v7109, 64
        %v7126 = vpop.permute.xlu0 %7125
        %7127 = vrot.lane.b32.xlu0 %v7110, 64
        %v7128 = vpop.permute.xlu0 %7127
        %7129 = vrot.lane.b32.xlu0 %v7111, 64
        %v7130 = vpop.permute.xlu0 %7129
        %7131 = vrot.lane.b32.xlu0 %v7112, 64
        %v7132 = vpop.permute.xlu0 %7131
        %7133 = vrot.lane.b32.xlu0 %v7113, 64
        %v7134 = vpop.permute.xlu0 %7133
        %7135 = vrot.lane.b32.xlu0 %v7114, 64
        %v7136 = vpop.permute.xlu0 %7135
        %7137 = vrot.lane.b32.xlu0 %v7115, 64
        %v7138 = vpop.permute.xlu0 %7137
        %7139 = vrot.lane.b32.xlu0 %v7116, 64
        %v7140 = vpop.permute.xlu0 %7139
        %7141 = vrot.lane.b32.xlu0 %v7117, 64
        %v7142 = vpop.permute.xlu0 %7141
        %7143 = vrot.lane.b32.xlu0 %v7118, 64
        %v7144 = vpop.permute.xlu0 %7143
        %7145 = vrot.lane.b32.xlu0 %v7119, 64
        %v7146 = vpop.permute.xlu0 %7145
        %7147 = vrot.lane.b32.xlu0 %v7120, 64
        %v7148 = vpop.permute.xlu0 %7147
        %7149 = vrot.lane.b32.xlu0 %v7121, 64
        %v7150 = vpop.permute.xlu0 %7149
        %7151 = vrot.lane.b32.xlu0 %v7122, 64
        %v7152 = vpop.permute.xlu0 %7151
        %7153 = vrot.lane.b32.xlu0 %v7123, 64
        %v7154 = vpop.permute.xlu0 %7153
        %7155 = vrot.lane.b32.xlu0 %v7124, 64
        %v7156 = vpop.permute.xlu0 %7155
        %v7157 = vunpack.c.l.b16 %v6488
        %v7158 = vunpack.c.l.b16 %v6491
        %v7159 = vunpack.c.l.b16 %v6495
        %v7160 = vunpack.c.l.b16 %v6498
        %v7161 = vunpack.c.l.b16 %v6502
        %v7162 = vunpack.c.l.b16 %v6505
        %v7163 = vunpack.c.l.b16 %v6509
        %v7164 = vunpack.c.l.b16 %v6512
        %v7165 = vunpack.c.l.b16 %v6516
        %v7166 = vunpack.c.l.b16 %v6519
        %v7167 = vunpack.c.l.b16 %v6523
        %v7168 = vunpack.c.l.b16 %v6526
        %v7169 = vunpack.c.l.b16 %v6530
        %v7170 = vunpack.c.l.b16 %v6533
        %v7171 = vunpack.c.l.b16 %v6537
        %v7172 = vunpack.c.l.b16 %v6540
        %v7173 = vunpack.c.l.b16 %v6544
        %v7174 = vunpack.c.l.b16 %v6547
        %v7175 = vunpack.c.l.b16 %v6551
        %v7176 = vunpack.c.l.b16 %v6554
        %v7177 = vunpack.c.l.b16 %v6558
        %v7178 = vunpack.c.l.b16 %v6561
        %v7179 = vunpack.c.l.b16 %v6565
        %v7180 = vunpack.c.l.b16 %v6568
        %v7181 = vunpack.c.l.b16 %v6572
        %v7182 = vunpack.c.l.b16 %v6575
        %v7183 = vunpack.c.l.b16 %v6579
        %v7184 = vunpack.c.l.b16 %v6582
        %v7185 = vunpack.c.l.b16 %v6586
        %v7186 = vunpack.c.l.b16 %v6589
        %v7187 = vunpack.c.l.b16 %v6593
        %v7188 = vunpack.c.l.b16 %v6596
        %v7189 = vpack.c.b16 %v7158, %v7157
        %v7190 = vpack.c.b16 %v7160, %v7159
        %v7191 = vpack.c.b16 %v7162, %v7161
        %v7192 = vpack.c.b16 %v7164, %v7163
        %v7193 = vpack.c.b16 %v7166, %v7165
        %v7194 = vpack.c.b16 %v7168, %v7167
        %v7195 = vpack.c.b16 %v7170, %v7169
        %v7196 = vpack.c.b16 %v7172, %v7171
        %v7197 = vpack.c.b16 %v7174, %v7173
        %v7198 = vpack.c.b16 %v7176, %v7175
        %v7199 = vpack.c.b16 %v7178, %v7177
        %v7200 = vpack.c.b16 %v7180, %v7179
        %v7201 = vpack.c.b16 %v7182, %v7181
        %v7202 = vpack.c.b16 %v7184, %v7183
        %v7203 = vpack.c.b16 %v7186, %v7185
        %v7204 = vpack.c.b16 %v7188, %v7187
        %v7207 = vsel %vm3138, %v6645, %v6710
        %v7211 = vsel %vm3138, %v6646, %v6712
        %v7215 = vsel %vm3138, %v6647, %v6714
        %v7219 = vsel %vm3138, %v6648, %v6716
        %v7223 = vsel %vm3138, %v6649, %v6718
        %v7227 = vsel %vm3138, %v6650, %v6720
        %v7231 = vsel %vm3138, %v6651, %v6722
        %v7235 = vsel %vm3138, %v6652, %v6724
        %v7239 = vsel %vm3138, %v6653, %v6726
        %v7243 = vsel %vm3138, %v6654, %v6728
        %v7247 = vsel %vm3138, %v6655, %v6730
        %v7251 = vsel %vm3138, %v6656, %v6732
        %v7255 = vsel %vm3138, %v6657, %v6734
        %v7259 = vsel %vm3138, %v6658, %v6736
        %v7263 = vsel %vm3138, %v6659, %v6738
        %v7267 = vsel %vm3138, %v6660, %v6740
        %v7271 = vsel %vm3138, %v6773, %v6854
        %v7275 = vsel %vm3138, %v6774, %v6856
        %v7279 = vsel %vm3138, %v6775, %v6858
        %v7283 = vsel %vm3138, %v6776, %v6860
        %v7287 = vsel %vm3138, %v6777, %v6862
        %v7291 = vsel %vm3138, %v6778, %v6864
        %v7295 = vsel %vm3138, %v6779, %v6866
        %v7299 = vsel %vm3138, %v6780, %v6868
        %v7303 = vsel %vm3138, %v6781, %v6870
        %v7307 = vsel %vm3138, %v6782, %v6872
        %v7311 = vsel %vm3138, %v6783, %v6874
        %v7315 = vsel %vm3138, %v6784, %v6876
        %v7319 = vsel %vm3138, %v6785, %v6878
        %v7323 = vsel %vm3138, %v6786, %v6880
        %v7327 = vsel %vm3138, %v6787, %v6882
        %v7331 = vsel %vm3138, %v6788, %v6884
        %v7335 = vsel %vm3138, %v6917, %v6982
        %v7339 = vsel %vm3138, %v6918, %v6984
        %v7343 = vsel %vm3138, %v6919, %v6986
        %v7347 = vsel %vm3138, %v6920, %v6988
        %v7351 = vsel %vm3138, %v6921, %v6990
        %v7355 = vsel %vm3138, %v6922, %v6992
        %v7359 = vsel %vm3138, %v6923, %v6994
        %v7363 = vsel %vm3138, %v6924, %v6996
        %v7367 = vsel %vm3138, %v6925, %v6998
        %v7371 = vsel %vm3138, %v6926, %v7000
        %v7375 = vsel %vm3138, %v6927, %v7002
        %v7379 = vsel %vm3138, %v6928, %v7004
        %v7383 = vsel %vm3138, %v6929, %v7006
        %v7387 = vsel %vm3138, %v6930, %v7008
        %v7391 = vsel %vm3138, %v6931, %v7010
        %v7395 = vsel %vm3138, %v6932, %v7012
        %v7399 = vsel %vm3138, %v7061, %v7126
        %v7403 = vsel %vm3138, %v7062, %v7128
        %v7407 = vsel %vm3138, %v7063, %v7130
        %v7411 = vsel %vm3138, %v7064, %v7132
        %v7415 = vsel %vm3138, %v7065, %v7134
        %v7419 = vsel %vm3138, %v7066, %v7136
        %v7423 = vsel %vm3138, %v7067, %v7138
        %v7427 = vsel %vm3138, %v7068, %v7140
        %v7431 = vsel %vm3138, %v7069, %v7142
        %v7435 = vsel %vm3138, %v7070, %v7144
        %v7439 = vsel %vm3138, %v7071, %v7146
        %v7443 = vsel %vm3138, %v7072, %v7148
        %v7447 = vsel %vm3138, %v7073, %v7150
        %v7451 = vsel %vm3138, %v7074, %v7152
        %v7455 = vsel %vm3138, %v7075, %v7154
        %v7459 = vsel %vm3138, %v7076, %v7156
        %v7461 = vld [vmem:[%s2] sm:$0xf]
        %v7462 = vld [vmem:[%s2 + $0x4] sm:$0xf]
        %v7463 = vld [vmem:[%s2 + $0x8] sm:$0xf]
        %v7464 = vld [vmem:[%s2 + $0xc] sm:$0xf]
        %v7465 = vld [vmem:[%s2 + $0x10] sm:$0xf]
        %v7466 = vld [vmem:[%s2 + $0x14] sm:$0xf]
        %v7467 = vld [vmem:[%s2 + $0x18] sm:$0xf]
        %v7468 = vld [vmem:[%s2 + $0x1c] sm:$0xf]
        %v7469 = vld [vmem:[%s2 + $0x20] sm:$0xf]
        %v7470 = vld [vmem:[%s2 + $0x24] sm:$0xf]
        %v7471 = vld [vmem:[%s2 + $0x28] sm:$0xf]
        %v7472 = vld [vmem:[%s2 + $0x2c] sm:$0xf]
        %v7473 = vld [vmem:[%s2 + $0x30] sm:$0xf]
        %v7474 = vld [vmem:[%s2 + $0x34] sm:$0xf]
        %v7475 = vld [vmem:[%s2 + $0x38] sm:$0xf]
        %v7476 = vld [vmem:[%s2 + $0x3c] sm:$0xf]
        %v7477 = vld [vmem:[%s2 + $0x40] sm:$0xf]
        %v7478 = vld [vmem:[%s2 + $0x44] sm:$0xf]
        %v7479 = vld [vmem:[%s2 + $0x48] sm:$0xf]
        %v7480 = vld [vmem:[%s2 + $0x4c] sm:$0xf]
        %v7481 = vld [vmem:[%s2 + $0x50] sm:$0xf]
        %v7482 = vld [vmem:[%s2 + $0x54] sm:$0xf]
        %v7483 = vld [vmem:[%s2 + $0x58] sm:$0xf]
        %v7484 = vld [vmem:[%s2 + $0x5c] sm:$0xf]
        %v7485 = vld [vmem:[%s2 + $0x60] sm:$0xf]
        %v7486 = vld [vmem:[%s2 + $0x64] sm:$0xf]
        %v7487 = vld [vmem:[%s2 + $0x68] sm:$0xf]
        %v7488 = vld [vmem:[%s2 + $0x6c] sm:$0xf]
        %v7489 = vld [vmem:[%s2 + $0x70] sm:$0xf]
        %v7490 = vld [vmem:[%s2 + $0x74] sm:$0xf]
        %v7491 = vld [vmem:[%s2 + $0x78] sm:$0xf]
        %v7492 = vld [vmem:[%s2 + $0x7c] sm:$0xf]
        %v7493 = vld [vmem:[%s2 + $0x80] sm:$0xf]
        %v7494 = vld [vmem:[%s2 + $0x84] sm:$0xf]
        %v7495 = vld [vmem:[%s2 + $0x88] sm:$0xf]
        %v7496 = vld [vmem:[%s2 + $0x8c] sm:$0xf]
        %v7497 = vld [vmem:[%s2 + $0x90] sm:$0xf]
        %v7498 = vld [vmem:[%s2 + $0x94] sm:$0xf]
        %v7499 = vld [vmem:[%s2 + $0x98] sm:$0xf]
        %v7500 = vld [vmem:[%s2 + $0x9c] sm:$0xf]
        %v7501 = vld [vmem:[%s2 + $0xa0] sm:$0xf]
        %v7502 = vld [vmem:[%s2 + $0xa4] sm:$0xf]
        %v7503 = vld [vmem:[%s2 + $0xa8] sm:$0xf]
        %v7504 = vld [vmem:[%s2 + $0xac] sm:$0xf]
        %v7505 = vld [vmem:[%s2 + $0xb0] sm:$0xf]
        %v7506 = vld [vmem:[%s2 + $0xb4] sm:$0xf]
        %v7507 = vld [vmem:[%s2 + $0xb8] sm:$0xf]
        %v7508 = vld [vmem:[%s2 + $0xbc] sm:$0xf]
        %v7509 = vld [vmem:[%s2 + $0xc0] sm:$0xf]
        %v7510 = vld [vmem:[%s2 + $0xc4] sm:$0xf]
        %v7511 = vld [vmem:[%s2 + $0xc8] sm:$0xf]
        %v7512 = vld [vmem:[%s2 + $0xcc] sm:$0xf]
        %v7513 = vld [vmem:[%s2 + $0xd0] sm:$0xf]
        %v7514 = vld [vmem:[%s2 + $0xd4] sm:$0xf]
        %v7515 = vld [vmem:[%s2 + $0xd8] sm:$0xf]
        %v7516 = vld [vmem:[%s2 + $0xdc] sm:$0xf]
        %v7517 = vld [vmem:[%s2 + $0xe0] sm:$0xf]
        %v7518 = vld [vmem:[%s2 + $0xe4] sm:$0xf]
        %v7519 = vld [vmem:[%s2 + $0xe8] sm:$0xf]
        %v7520 = vld [vmem:[%s2 + $0xec] sm:$0xf]
        %v7521 = vld [vmem:[%s2 + $0xf0] sm:$0xf]
        %v7522 = vld [vmem:[%s2 + $0xf4] sm:$0xf]
        %v7523 = vld [vmem:[%s2 + $0xf8] sm:$0xf]
        %v7524 = vld [vmem:[%s2 + $0xfc] sm:$0xf]
        %v7525 = vld [vmem:[%s2 + $0x100] sm:$0xf]
        %v7526 = vld [vmem:[%s2 + $0x104] sm:$0xf]
        %v7527 = vld [vmem:[%s2 + $0x108] sm:$0xf]
        %v7528 = vld [vmem:[%s2 + $0x10c] sm:$0xf]
        %v7529 = vld [vmem:[%s2 + $0x110] sm:$0xf]
        %v7530 = vld [vmem:[%s2 + $0x114] sm:$0xf]
        %v7531 = vld [vmem:[%s2 + $0x118] sm:$0xf]
        %v7532 = vld [vmem:[%s2 + $0x11c] sm:$0xf]
        %v7533 = vld [vmem:[%s168] sm:$0xf]
        %v7534 = vld [vmem:[%s168 + $0x4] sm:$0xf]
        %v7535 = vld [vmem:[%s168 + $0x8] sm:$0xf]
        %v7536 = vld [vmem:[%s168 + $0xc] sm:$0xf]
        %v7537 = vld [vmem:[%s168 + $0x10] sm:$0xf]
        %v7538 = vld [vmem:[%s168 + $0x14] sm:$0xf]
        %v7539 = vld [vmem:[%s168 + $0x18] sm:$0xf]
        %v7540 = vld [vmem:[%s168 + $0x1c] sm:$0xf]
        %v7541 = vld [vmem:[%s168 + $0x20] sm:$0xf]
        %v7542 = vld [vmem:[%s168 + $0x24] sm:$0xf]
        %v7543 = vld [vmem:[%s168 + $0x28] sm:$0xf]
        %v7544 = vld [vmem:[%s168 + $0x2c] sm:$0xf]
        %v7545 = vld [vmem:[%s168 + $0x30] sm:$0xf]
        %v7546 = vld [vmem:[%s168 + $0x34] sm:$0xf]
        %v7547 = vld [vmem:[%s168 + $0x38] sm:$0xf]
        %v7548 = vld [vmem:[%s168 + $0x3c] sm:$0xf]
        %v7549 = vld [vmem:[%s168 + $0x40] sm:$0xf]
        %v7550 = vld [vmem:[%s168 + $0x44] sm:$0xf]
        %v7551 = vld [vmem:[%s168 + $0x48] sm:$0xf]
        %v7552 = vld [vmem:[%s168 + $0x4c] sm:$0xf]
        %v7553 = vld [vmem:[%s168 + $0x50] sm:$0xf]
        %v7554 = vld [vmem:[%s168 + $0x54] sm:$0xf]
        %v7555 = vld [vmem:[%s168 + $0x58] sm:$0xf]
        %v7556 = vld [vmem:[%s168 + $0x5c] sm:$0xf]
        %v7557 = vld [vmem:[%s168 + $0x60] sm:$0xf]
        %v7558 = vld [vmem:[%s168 + $0x64] sm:$0xf]
        %v7559 = vld [vmem:[%s168 + $0x68] sm:$0xf]
        %v7560 = vld [vmem:[%s168 + $0x6c] sm:$0xf]
        %v7561 = vld [vmem:[%s168 + $0x70] sm:$0xf]
        %v7562 = vld [vmem:[%s168 + $0x74] sm:$0xf]
        %v7563 = vld [vmem:[%s168 + $0x78] sm:$0xf]
        %v7564 = vld [vmem:[%s168 + $0x7c] sm:$0xf]
        %v7565 = vunpack.c.l.bf16 %v7533
        %v7566 = vunpack.c.l.bf16 %v7534
        %v7567 = vunpack.c.l.bf16 %v7535
        %v7568 = vunpack.c.l.bf16 %v7536
        %v7569 = vunpack.c.l.bf16 %v7537
        %v7570 = vunpack.c.l.bf16 %v7538
        %v7571 = vunpack.c.l.bf16 %v7539
        %v7572 = vunpack.c.l.bf16 %v7540
        %v7573 = vunpack.c.l.bf16 %v7541
        %v7574 = vunpack.c.l.bf16 %v7542
        %v7575 = vunpack.c.l.bf16 %v7543
        %v7576 = vunpack.c.l.bf16 %v7544
        %v7577 = vunpack.c.l.bf16 %v7545
        %v7578 = vunpack.c.l.bf16 %v7546
        %v7579 = vunpack.c.l.bf16 %v7547
        %v7580 = vunpack.c.l.bf16 %v7548
        %v7581 = vunpack.c.l.bf16 %v7549
        %v7582 = vunpack.c.l.bf16 %v7550
        %v7583 = vunpack.c.l.bf16 %v7551
        %v7584 = vunpack.c.l.bf16 %v7552
        %v7585 = vunpack.c.l.bf16 %v7553
        %v7586 = vunpack.c.l.bf16 %v7554
        %v7587 = vunpack.c.l.bf16 %v7555
        %v7588 = vunpack.c.l.bf16 %v7556
        %v7589 = vunpack.c.l.bf16 %v7557
        %v7590 = vunpack.c.l.bf16 %v7558
        %v7591 = vunpack.c.l.bf16 %v7559
        %v7592 = vunpack.c.l.bf16 %v7560
        %v7593 = vunpack.c.l.bf16 %v7561
        %v7594 = vunpack.c.l.bf16 %v7562
        %v7595 = vunpack.c.l.bf16 %v7563
        %v7596 = vunpack.c.l.bf16 %v7564
        %v7669 = vunpack.c.l.b16 %v7461
        %v7670 = vunpack.c.l.b16 %v7462
        %v7671 = vunpack.c.l.b16 %v7463
        %v7672 = vunpack.c.l.b16 %v7464
        %v7673 = vunpack.c.l.b16 %v7465
        %v7674 = vunpack.c.l.b16 %v7466
        %v7675 = vunpack.c.l.b16 %v7467
        %v7676 = vunpack.c.l.b16 %v7468
        %v7677 = vunpack.c.l.b16 %v7469
        %v7678 = vunpack.c.l.b16 %v7470
        %v7679 = vunpack.c.l.b16 %v7471
        %v7680 = vunpack.c.l.b16 %v7472
        %v7681 = vunpack.c.l.b16 %v7473
        %v7682 = vunpack.c.l.b16 %v7474
        %v7683 = vunpack.c.l.b16 %v7475
        %v7684 = vunpack.c.l.b16 %v7476
        %v7685 = vunpack.c.l.b16 %v7477
        %v7686 = vunpack.c.l.b16 %v7478
        %v7687 = vunpack.c.l.b16 %v7479
        %v7688 = vunpack.c.l.b16 %v7480
        %v7689 = vunpack.c.l.b16 %v7481
        %v7690 = vunpack.c.l.b16 %v7482
        %v7691 = vunpack.c.l.b16 %v7483
        %v7692 = vunpack.c.l.b16 %v7484
        %v7693 = vunpack.c.l.b16 %v7485
        %v7694 = vunpack.c.l.b16 %v7486
        %v7695 = vunpack.c.l.b16 %v7487
        %v7696 = vunpack.c.l.b16 %v7488
        %v7697 = vunpack.c.l.b16 %v7489
        %v7698 = vunpack.c.l.b16 %v7490
        %v7699 = vunpack.c.l.b16 %v7491
        %v7700 = vunpack.c.l.b16 %v7492
        %v7701 = vunpack.c.l.b16 %v7493
        %v7702 = vunpack.c.l.b16 %v7494
        %v7703 = vunpack.c.l.b16 %v7495
        %v7704 = vunpack.c.l.b16 %v7496
        %v7705 = vunpack.c.l.b16 %v7497
        %v7706 = vunpack.c.l.b16 %v7498
        %v7707 = vunpack.c.l.b16 %v7499
        %v7708 = vunpack.c.l.b16 %v7500
        %v7709 = vunpack.c.l.b16 %v7501
        %v7710 = vunpack.c.l.b16 %v7502
        %v7711 = vunpack.c.l.b16 %v7503
        %v7712 = vunpack.c.l.b16 %v7504
        %v7713 = vunpack.c.l.b16 %v7505
        %v7714 = vunpack.c.l.b16 %v7506
        %v7715 = vunpack.c.l.b16 %v7507
        %v7716 = vunpack.c.l.b16 %v7508
        %v7717 = vunpack.c.l.b16 %v7509
        %v7718 = vunpack.c.l.b16 %v7510
        %v7719 = vunpack.c.l.b16 %v7511
        %v7720 = vunpack.c.l.b16 %v7512
        %v7721 = vunpack.c.l.b16 %v7513
        %v7722 = vunpack.c.l.b16 %v7514
        %v7723 = vunpack.c.l.b16 %v7515
        %v7724 = vunpack.c.l.b16 %v7516
        %v7725 = vunpack.c.l.b16 %v7517
        %v7726 = vunpack.c.l.b16 %v7518
        %v7727 = vunpack.c.l.b16 %v7519
        %v7728 = vunpack.c.l.b16 %v7520
        %v7729 = vunpack.c.l.b16 %v7521
        %v7730 = vunpack.c.l.b16 %v7522
        %v7731 = vunpack.c.l.b16 %v7523
        %v7732 = vunpack.c.l.b16 %v7524
        %v7733 = vunpack.c.l.b16 %v7525
        %v7734 = vunpack.c.l.b16 %v7526
        %v7735 = vunpack.c.l.b16 %v7527
        %v7736 = vunpack.c.l.b16 %v7528
        %v7737 = vunpack.c.l.b16 %v7529
        %v7738 = vunpack.c.l.b16 %v7530
        %v7739 = vunpack.c.l.b16 %v7531
        %v7740 = vunpack.c.l.b16 %v7532
        %v7741 = vpack.c.b16 %v7670, %v7669
        %v7742 = vpack.c.b16 %v7672, %v7671
        %v7743 = vpack.c.b16 %v7674, %v7673
        %v7744 = vpack.c.b16 %v7676, %v7675
        %v7745 = vpack.c.b16 %v7678, %v7677
        %v7746 = vpack.c.b16 %v7680, %v7679
        %v7747 = vpack.c.b16 %v7682, %v7681
        %v7748 = vpack.c.b16 %v7684, %v7683
        %v7749 = vpack.c.b16 %v7686, %v7685
        %v7750 = vpack.c.b16 %v7688, %v7687
        %v7751 = vpack.c.b16 %v7690, %v7689
        %v7752 = vpack.c.b16 %v7692, %v7691
        %v7753 = vpack.c.b16 %v7694, %v7693
        %v7754 = vpack.c.b16 %v7696, %v7695
        %v7755 = vpack.c.b16 %v7698, %v7697
        %v7756 = vpack.c.b16 %v7700, %v7699
        %v7757 = vpack.c.b16 %v7702, %v7701
        %v7758 = vpack.c.b16 %v7704, %v7703
        %v7759 = vpack.c.b16 %v7706, %v7705
        %v7760 = vpack.c.b16 %v7708, %v7707
        %v7761 = vpack.c.b16 %v7710, %v7709
        %v7762 = vpack.c.b16 %v7712, %v7711
        %v7763 = vpack.c.b16 %v7714, %v7713
        %v7764 = vpack.c.b16 %v7716, %v7715
        %v7765 = vpack.c.b16 %v7718, %v7717
        %v7766 = vpack.c.b16 %v7720, %v7719
        %v7767 = vpack.c.b16 %v7722, %v7721
        %v7768 = vpack.c.b16 %v7724, %v7723
        %v7769 = vpack.c.b16 %v7726, %v7725
        %v7770 = vpack.c.b16 %v7728, %v7727
        %v7771 = vpack.c.b16 %v7730, %v7729
        %v7772 = vpack.c.b16 %v7732, %v7731
        %v7773 = vpack.c.b16 %v7734, %v7733
        %v7774 = vpack.c.b16 %v7736, %v7735
        %v7775 = vpack.c.b16 %v7738, %v7737
        %v7776 = vpack.c.b16 %v7740, %v7739
        %v7814 = vsel %vm3138, %v7189, 0
        %v7817 = vsel %vm3138, %v7190, 0
        %v7820 = vsel %vm3138, %v7191, 0
        %v7823 = vsel %vm3138, %v7192, 0
        %v7826 = vsel %vm3138, %v7193, 0
        %v7829 = vsel %vm3138, %v7194, 0
        %v7832 = vsel %vm3138, %v7195, 0
        %v7835 = vsel %vm3138, %v7196, 0
        %v7838 = vsel %vm3138, %v7197, 0
        %v7841 = vsel %vm3138, %v7198, 0
        %v7844 = vsel %vm3138, %v7199, 0
        %v7847 = vsel %vm3138, %v7200, 0
        %v7850 = vsel %vm3138, %v7201, 0
        %v7853 = vsel %vm3138, %v7202, 0
        %v7856 = vsel %vm3138, %v7203, 0
        %v7859 = vsel %vm3138, %v7204, 0
        %7861 = vmatprep.subr.bf16.mxu0 0
        %7862 = vmatpush1.bf16.msra.mxu0 %v7741
        %7863 = vmatprep.subr.bf16.mxu0 0
        %7864 = vmatpush1.bf16.msra.mxu0 %v7742
        %7865 = vmatprep.subr.bf16.mxu0 0
        %7866 = vmatpush1.bf16.msra.mxu0 %v7743
        %7867 = vmatprep.subr.bf16.mxu0 0
        %7868 = vmatpush1.bf16.msra.mxu0 %v7744
        %7869 = vmatprep.subr.bf16.mxu0 0
        %7870 = vmatpush1.bf16.msra.mxu0 %v7745
        %7871 = vmatprep.subr.bf16.mxu0 0
        %7872 = vmatpush1.bf16.msra.mxu0 %v7746
        %7873 = vmatprep.subr.bf16.mxu0 0
        %7874 = vmatpush1.bf16.msra.mxu0 %v7747
        %7875 = vmatprep.subr.bf16.mxu0 0
        %7876 = vmatpush1.bf16.msra.mxu0 %v7748
        %7877 = vmatprep.subr.bf16.mxu0 0
        %7878 = vmatpush1.bf16.msra.mxu0 %v7749
        %7879 = vmatprep.subr.bf16.mxu0 0
        %7880 = vmatpush1.bf16.msra.mxu0 %v7750
        %7881 = vmatprep.subr.bf16.mxu0 0
        %7882 = vmatpush1.bf16.msra.mxu0 %v7751
        %7883 = vmatprep.subr.bf16.mxu0 0
        %7884 = vmatpush1.bf16.msra.mxu0 %v7752
        %7885 = vmatprep.subr.bf16.mxu0 0
        %7886 = vmatpush1.bf16.msra.mxu0 %v7753
        %7887 = vmatprep.subr.bf16.mxu0 0
        %7888 = vmatpush1.bf16.msra.mxu0 %v7754
        %7889 = vmatprep.subr.bf16.mxu0 0
        %7890 = vmatpush1.bf16.msra.mxu0 %v7755
        %7891 = vmatprep.subr.bf16.mxu0 0
        %7892 = vmatpush1.bf16.msra.mxu0 %v7756
        %7893 = vmatprep.mubr.bf16.mxu0 %v7271
        %7894 = vmatmul.mubr.bf16.gmra.mrb[0].mxu0 %v7207
        %v7895 = vpop.f32.mrb[0].mxu0
        %v7896 = vadd.f32 %v7565, %v7895
        %v7897 = vpop.f32.mrb[0].mxu0
        %v7898 = vpop.f32.mrb[0].mxu0
        %v7899 = vadd.f32 %v7566, %v7898
        %v7900 = vpop.f32.mrb[0].mxu0
        %7901 = vmatprep.mubr.bf16.mxu0 %v7275
        %7902 = vmatmul.mubr.bf16.gmra.mrb[0].mxu0 %v7211
        %v7903 = vpop.f32.mrb[0].mxu0
        %v7904 = vadd.f32 %v7567, %v7903
        %v7905 = vpop.f32.mrb[0].mxu0
        %v7906 = vpop.f32.mrb[0].mxu0
        %v7907 = vadd.f32 %v7568, %v7906
        %v7908 = vpop.f32.mrb[0].mxu0
        %7909 = vmatprep.mubr.bf16.mxu0 %v7279
        %7910 = vmatmul.mubr.bf16.gmra.mrb[0].mxu0 %v7215
        %v7911 = vpop.f32.mrb[0].mxu0
        %v7912 = vadd.f32 %v7569, %v7911
        %v7913 = vpop.f32.mrb[0].mxu0
        %v7914 = vpop.f32.mrb[0].mxu0
        %v7915 = vadd.f32 %v7570, %v7914
        %v7916 = vpop.f32.mrb[0].mxu0
        %7917 = vmatprep.mubr.bf16.mxu0 %v7283
        %7918 = vmatmul.mubr.bf16.gmra.mrb[0].mxu0 %v7219
        %v7919 = vpop.f32.mrb[0].mxu0
        %v7920 = vadd.f32 %v7571, %v7919
        %v7921 = vpop.f32.mrb[0].mxu0
        %v7922 = vpop.f32.mrb[0].mxu0
        %v7923 = vadd.f32 %v7572, %v7922
        %v7924 = vpop.f32.mrb[0].mxu0
        %7925 = vmatprep.mubr.bf16.mxu0 %v7287
        %7926 = vmatmul.mubr.bf16.gmra.mrb[0].mxu0 %v7223
        %v7927 = vpop.f32.mrb[0].mxu0
        %v7928 = vadd.f32 %v7573, %v7927
        %v7929 = vpop.f32.mrb[0].mxu0
        %v7930 = vpop.f32.mrb[0].mxu0
        %v7931 = vadd.f32 %v7574, %v7930
        %v7932 = vpop.f32.mrb[0].mxu0
        %7933 = vmatprep.mubr.bf16.mxu0 %v7291
        %7934 = vmatmul.mubr.bf16.gmra.mrb[0].mxu0 %v7227
        %v7935 = vpop.f32.mrb[0].mxu0
        %v7936 = vadd.f32 %v7575, %v7935
        %v7937 = vpop.f32.mrb[0].mxu0
        %v7938 = vpop.f32.mrb[0].mxu0
        %v7939 = vadd.f32 %v7576, %v7938
        %v7940 = vpop.f32.mrb[0].mxu0
        %7941 = vmatprep.mubr.bf16.mxu0 %v7295
        %7942 = vmatmul.mubr.bf16.gmra.mrb[0].mxu0 %v7231
        %v7943 = vpop.f32.mrb[0].mxu0
        %v7944 = vadd.f32 %v7577, %v7943
        %v7945 = vpop.f32.mrb[0].mxu0
        %v7946 = vpop.f32.mrb[0].mxu0
        %v7947 = vadd.f32 %v7578, %v7946
        %v7948 = vpop.f32.mrb[0].mxu0
        %7949 = vmatprep.mubr.bf16.mxu0 %v7299
        %7950 = vmatmul.mubr.bf16.gmra.mrb[0].mxu0 %v7235
        %v7951 = vpop.f32.mrb[0].mxu0
        %v7952 = vadd.f32 %v7579, %v7951
        %v7953 = vpop.f32.mrb[0].mxu0
        %v7954 = vpop.f32.mrb[0].mxu0
        %v7955 = vadd.f32 %v7580, %v7954
        %v7956 = vpop.f32.mrb[0].mxu0
        %7957 = vmatprep.mubr.bf16.mxu0 %v7303
        %7958 = vmatmul.mubr.bf16.gmra.mrb[0].mxu0 %v7239
        %v7959 = vpop.f32.mrb[0].mxu0
        %v7960 = vadd.f32 %v7581, %v7959
        %v7961 = vpop.f32.mrb[0].mxu0
        %v7962 = vpop.f32.mrb[0].mxu0
        %v7963 = vadd.f32 %v7582, %v7962
        %v7964 = vpop.f32.mrb[0].mxu0
        %7965 = vmatprep.mubr.bf16.mxu0 %v7307
        %7966 = vmatmul.mubr.bf16.gmra.mrb[0].mxu0 %v7243
        %v7967 = vpop.f32.mrb[0].mxu0
        %v7968 = vadd.f32 %v7583, %v7967
        %v7969 = vpop.f32.mrb[0].mxu0
        %v7970 = vpop.f32.mrb[0].mxu0
        %v7971 = vadd.f32 %v7584, %v7970
        %v7972 = vpop.f32.mrb[0].mxu0
        %7973 = vmatprep.mubr.bf16.mxu0 %v7311
        %7974 = vmatmul.mubr.bf16.gmra.mrb[0].mxu0 %v7247
        %v7975 = vpop.f32.mrb[0].mxu0
        %v7976 = vadd.f32 %v7585, %v7975
        %v7977 = vpop.f32.mrb[0].mxu0
        %v7978 = vpop.f32.mrb[0].mxu0
        %v7979 = vadd.f32 %v7586, %v7978
        %v7980 = vpop.f32.mrb[0].mxu0
        %7981 = vmatprep.mubr.bf16.mxu0 %v7315
        %7982 = vmatmul.mubr.bf16.gmra.mrb[0].mxu0 %v7251
        %v7983 = vpop.f32.mrb[0].mxu0
        %v7984 = vadd.f32 %v7587, %v7983
        %v7985 = vpop.f32.mrb[0].mxu0
        %v7986 = vpop.f32.mrb[0].mxu0
        %v7987 = vadd.f32 %v7588, %v7986
        %v7988 = vpop.f32.mrb[0].mxu0
        %7989 = vmatprep.mubr.bf16.mxu0 %v7319
        %7990 = vmatmul.mubr.bf16.gmra.mrb[0].mxu0 %v7255
        %v7991 = vpop.f32.mrb[0].mxu0
        %v7992 = vadd.f32 %v7589, %v7991
        %v7993 = vpop.f32.mrb[0].mxu0
        %v7994 = vpop.f32.mrb[0].mxu0
        %v7995 = vadd.f32 %v7590, %v7994
        %v7996 = vpop.f32.mrb[0].mxu0
        %7997 = vmatprep.mubr.bf16.mxu0 %v7323
        %7998 = vmatmul.mubr.bf16.gmra.mrb[0].mxu0 %v7259
        %v7999 = vpop.f32.mrb[0].mxu0
        %v8000 = vadd.f32 %v7591, %v7999
        %v8001 = vpop.f32.mrb[0].mxu0
        %v8002 = vpop.f32.mrb[0].mxu0
        %v8003 = vadd.f32 %v7592, %v8002
        %v8004 = vpop.f32.mrb[0].mxu0
        %8005 = vmatprep.mubr.bf16.mxu0 %v7327
        %8006 = vmatmul.mubr.bf16.gmra.mrb[0].mxu0 %v7263
        %v8007 = vpop.f32.mrb[0].mxu0
        %v8008 = vadd.f32 %v7593, %v8007
        %v8009 = vpop.f32.mrb[0].mxu0
        %v8010 = vpop.f32.mrb[0].mxu0
        %v8011 = vadd.f32 %v7594, %v8010
        %v8012 = vpop.f32.mrb[0].mxu0
        %8013 = vmatprep.mubr.bf16.mxu0 %v7331
        %8014 = vmatmul.mubr.bf16.gmra.mrb[0].mxu0 %v7267
        %v8015 = vpop.f32.mrb[0].mxu0
        %v8016 = vadd.f32 %v7595, %v8015
        %v8017 = vpop.f32.mrb[0].mxu0
        %v8018 = vpop.f32.mrb[0].mxu0
        %v8019 = vadd.f32 %v7596, %v8018
        %v8020 = vpop.f32.mrb[0].mxu0
        %8021 = vdwg.mxu0
        %8022 = vmatprep.subr.bf16.mxu0 0
        %8023 = vmatpush1.bf16.msra.mxu0 %v7757
        %8024 = vmatprep.subr.bf16.mxu0 0
        %8025 = vmatpush1.bf16.msra.mxu0 %v7758
        %8026 = vmatprep.subr.bf16.mxu0 0
        %8027 = vmatpush1.bf16.msra.mxu0 %v7759
        %8028 = vmatprep.subr.bf16.mxu0 0
        %8029 = vmatpush1.bf16.msra.mxu0 %v7760
        %8030 = vmatprep.subr.bf16.mxu0 0
        %8031 = vmatpush1.bf16.msra.mxu0 %v7761
        %8032 = vmatprep.subr.bf16.mxu0 0
        %8033 = vmatpush1.bf16.msra.mxu0 %v7762
        %8034 = vmatprep.subr.bf16.mxu0 0
        %8035 = vmatpush1.bf16.msra.mxu0 %v7763
        %8036 = vmatprep.subr.bf16.mxu0 0
        %8037 = vmatpush1.bf16.msra.mxu0 %v7764
        %8038 = vmatprep.subr.bf16.mxu0 0
        %8039 = vmatpush1.bf16.msra.mxu0 %v7765
        %8040 = vmatprep.subr.bf16.mxu0 0
        %8041 = vmatpush1.bf16.msra.mxu0 %v7766
        %8042 = vmatprep.subr.bf16.mxu0 0
        %8043 = vmatpush1.bf16.msra.mxu0 %v7767
        %8044 = vmatprep.subr.bf16.mxu0 0
        %8045 = vmatpush1.bf16.msra.mxu0 %v7768
        %8046 = vmatprep.subr.bf16.mxu0 0
        %8047 = vmatpush1.bf16.msra.mxu0 %v7769
        %8048 = vmatprep.subr.bf16.mxu0 0
        %8049 = vmatpush1.bf16.msra.mxu0 %v7770
        %8050 = vmatprep.subr.bf16.mxu0 0
        %8051 = vmatpush1.bf16.msra.mxu0 %v7771
        %8052 = vmatprep.subr.bf16.mxu0 0
        %8053 = vmatpush1.bf16.msra.mxu0 %v7772
        %8054 = vmatprep.mubr.bf16.mxu0 %v7399
        %8055 = vmatmul.mubr.bf16.gmra.mrb[0].mxu0 %v7335
        %v8056 = vpop.f32.mrb[0].mxu0
        %v8057 = vadd.f32 %v7896, %v8056
        %v8058 = vpop.f32.mrb[0].mxu0
        %v8059 = vpop.f32.mrb[0].mxu0
        %v8060 = vadd.f32 %v7899, %v8059
        %v8061 = vpop.f32.mrb[0].mxu0
        %8062 = vmatprep.mubr.bf16.mxu0 %v7403
        %8063 = vmatmul.mubr.bf16.gmra.mrb[0].mxu0 %v7339
        %v8064 = vpop.f32.mrb[0].mxu0
        %v8065 = vadd.f32 %v7904, %v8064
        %v8066 = vpop.f32.mrb[0].mxu0
        %v8067 = vpop.f32.mrb[0].mxu0
        %v8068 = vadd.f32 %v7907, %v8067
        %v8069 = vpop.f32.mrb[0].mxu0
        %8070 = vmatprep.mubr.bf16.mxu0 %v7407
        %8071 = vmatmul.mubr.bf16.gmra.mrb[0].mxu0 %v7343
        %v8072 = vpop.f32.mrb[0].mxu0
        %v8073 = vadd.f32 %v7912, %v8072
        %v8074 = vpop.f32.mrb[0].mxu0
        %v8075 = vpop.f32.mrb[0].mxu0
        %v8076 = vadd.f32 %v7915, %v8075
        %v8077 = vpop.f32.mrb[0].mxu0
        %8078 = vmatprep.mubr.bf16.mxu0 %v7411
        %8079 = vmatmul.mubr.bf16.gmra.mrb[0].mxu0 %v7347
        %v8080 = vpop.f32.mrb[0].mxu0
        %v8081 = vadd.f32 %v7920, %v8080
        %v8082 = vpop.f32.mrb[0].mxu0
        %v8083 = vpop.f32.mrb[0].mxu0
        %v8084 = vadd.f32 %v7923, %v8083
        %v8085 = vpop.f32.mrb[0].mxu0
        %8086 = vmatprep.mubr.bf16.mxu0 %v7415
        %8087 = vmatmul.mubr.bf16.gmra.mrb[0].mxu0 %v7351
        %v8088 = vpop.f32.mrb[0].mxu0
        %v8089 = vadd.f32 %v7928, %v8088
        %v8090 = vpop.f32.mrb[0].mxu0
        %v8091 = vpop.f32.mrb[0].mxu0
        %v8092 = vadd.f32 %v7931, %v8091
        %v8093 = vpop.f32.mrb[0].mxu0
        %8094 = vmatprep.mubr.bf16.mxu0 %v7419
        %8095 = vmatmul.mubr.bf16.gmra.mrb[0].mxu0 %v7355
        %v8096 = vpop.f32.mrb[0].mxu0
        %v8097 = vadd.f32 %v7936, %v8096
        %v8098 = vpop.f32.mrb[0].mxu0
        %v8099 = vpop.f32.mrb[0].mxu0
        %v8100 = vadd.f32 %v7939, %v8099
        %v8101 = vpop.f32.mrb[0].mxu0
        %8102 = vmatprep.mubr.bf16.mxu0 %v7423
        %8103 = vmatmul.mubr.bf16.gmra.mrb[0].mxu0 %v7359
        %v8104 = vpop.f32.mrb[0].mxu0
        %v8105 = vadd.f32 %v7944, %v8104
        %v8106 = vpop.f32.mrb[0].mxu0
        %v8107 = vpop.f32.mrb[0].mxu0
        %v8108 = vadd.f32 %v7947, %v8107
        %v8109 = vpop.f32.mrb[0].mxu0
        %8110 = vmatprep.mubr.bf16.mxu0 %v7427
        %8111 = vmatmul.mubr.bf16.gmra.mrb[0].mxu0 %v7363
        %v8112 = vpop.f32.mrb[0].mxu0
        %v8113 = vadd.f32 %v7952, %v8112
        %v8114 = vpop.f32.mrb[0].mxu0
        %v8115 = vpop.f32.mrb[0].mxu0
        %v8116 = vadd.f32 %v7955, %v8115
        %v8117 = vpop.f32.mrb[0].mxu0
        %8118 = vmatprep.mubr.bf16.mxu0 %v7431
        %8119 = vmatmul.mubr.bf16.gmra.mrb[0].mxu0 %v7367
        %v8120 = vpop.f32.mrb[0].mxu0
        %v8121 = vadd.f32 %v7960, %v8120
        %v8122 = vpop.f32.mrb[0].mxu0
        %v8123 = vpop.f32.mrb[0].mxu0
        %v8124 = vadd.f32 %v7963, %v8123
        %v8125 = vpop.f32.mrb[0].mxu0
        %8126 = vmatprep.mubr.bf16.mxu0 %v7435
        %8127 = vmatmul.mubr.bf16.gmra.mrb[0].mxu0 %v7371
        %v8128 = vpop.f32.mrb[0].mxu0
        %v8129 = vadd.f32 %v7968, %v8128
        %v8130 = vpop.f32.mrb[0].mxu0
        %v8131 = vpop.f32.mrb[0].mxu0
        %v8132 = vadd.f32 %v7971, %v8131
        %v8133 = vpop.f32.mrb[0].mxu0
        %8134 = vmatprep.mubr.bf16.mxu0 %v7439
        %8135 = vmatmul.mubr.bf16.gmra.mrb[0].mxu0 %v7375
        %v8136 = vpop.f32.mrb[0].mxu0
        %v8137 = vadd.f32 %v7976, %v8136
        %v8138 = vpop.f32.mrb[0].mxu0
        %v8139 = vpop.f32.mrb[0].mxu0
        %v8140 = vadd.f32 %v7979, %v8139
        %v8141 = vpop.f32.mrb[0].mxu0
        %8142 = vmatprep.mubr.bf16.mxu0 %v7443
        %8143 = vmatmul.mubr.bf16.gmra.mrb[0].mxu0 %v7379
        %v8144 = vpop.f32.mrb[0].mxu0
        %v8145 = vadd.f32 %v7984, %v8144
        %v8146 = vpop.f32.mrb[0].mxu0
        %v8147 = vpop.f32.mrb[0].mxu0
        %v8148 = vadd.f32 %v7987, %v8147
        %v8149 = vpop.f32.mrb[0].mxu0
        %8150 = vmatprep.mubr.bf16.mxu0 %v7447
        %8151 = vmatmul.mubr.bf16.gmra.mrb[0].mxu0 %v7383
        %v8152 = vpop.f32.mrb[0].mxu0
        %v8153 = vadd.f32 %v7992, %v8152
        %v8154 = vpop.f32.mrb[0].mxu0
        %v8155 = vpop.f32.mrb[0].mxu0
        %v8156 = vadd.f32 %v7995, %v8155
        %v8157 = vpop.f32.mrb[0].mxu0
        %8158 = vmatprep.mubr.bf16.mxu0 %v7451
        %8159 = vmatmul.mubr.bf16.gmra.mrb[0].mxu0 %v7387
        %v8160 = vpop.f32.mrb[0].mxu0
        %v8161 = vadd.f32 %v8000, %v8160
        %v8162 = vpop.f32.mrb[0].mxu0
        %v8163 = vpop.f32.mrb[0].mxu0
        %v8164 = vadd.f32 %v8003, %v8163
        %v8165 = vpop.f32.mrb[0].mxu0
        %8166 = vmatprep.mubr.bf16.mxu0 %v7455
        %8167 = vmatmul.mubr.bf16.gmra.mrb[0].mxu0 %v7391
        %v8168 = vpop.f32.mrb[0].mxu0
        %v8169 = vadd.f32 %v8008, %v8168
        %v8170 = vpop.f32.mrb[0].mxu0
        %v8171 = vpop.f32.mrb[0].mxu0
        %v8172 = vadd.f32 %v8011, %v8171
        %v8173 = vpop.f32.mrb[0].mxu0
        %8174 = vmatprep.mubr.bf16.mxu0 %v7459
        %8175 = vmatmul.mubr.bf16.gmra.mrb[0].mxu0 %v7395
        %v8176 = vpop.f32.mrb[0].mxu0
        %v8177 = vadd.f32 %v8016, %v8176
        %v8178 = vpop.f32.mrb[0].mxu0
        %v8179 = vpop.f32.mrb[0].mxu0
        %v8180 = vadd.f32 %v8019, %v8179
        %v8181 = vpop.f32.mrb[0].mxu0
        %8182 = vdwg.mxu0
        %8183 = vmatprep.subr.bf16.mxu0 0
        %8184 = vmatpush1.bf16.msra.mxu0 %v7773
        %8185 = vmatprep.subr.bf16.mxu0 0
        %8186 = vmatpush1.bf16.msra.mxu0 %v7774
        %8187 = vmatprep.subr.bf16.mxu0 0
        %8188 = vmatpush1.bf16.msra.mxu0 %v7775
        %8189 = vmatprep.subr.bf16.mxu0 0
        %8190 = vmatpush1.bf16.msra.mxu0 %v7776
        %8191 = vmatprep.subr.bf16.mxu0 0
        %8192 = vmatpush1.bf16.msra.mxu0 0
        %8193 = vmatprep.subr.bf16.mxu0 0
        %8194 = vmatpush1.bf16.msra.mxu0 0
        %8195 = vmatprep.subr.bf16.mxu0 0
        %8196 = vmatpush1.bf16.msra.mxu0 0
        %8197 = vmatprep.subr.bf16.mxu0 0
        %8198 = vmatpush1.bf16.msra.mxu0 0
        %8199 = vmatprep.subr.bf16.mxu0 0
        %8200 = vmatpush1.bf16.msra.mxu0 0
        %8201 = vmatprep.subr.bf16.mxu0 0
        %8202 = vmatpush1.bf16.msra.mxu0 0
        %8203 = vmatprep.subr.bf16.mxu0 0
        %8204 = vmatpush1.bf16.msra.mxu0 0
        %8205 = vmatprep.subr.bf16.mxu0 0
        %8206 = vmatpush1.bf16.msra.mxu0 0
        %8207 = vmatprep.subr.bf16.mxu0 0
        %8208 = vmatpush1.bf16.msra.mxu0 0
        %8209 = vmatprep.subr.bf16.mxu0 0
        %8210 = vmatpush1.bf16.msra.mxu0 0
        %8211 = vmatprep.subr.bf16.mxu0 0
        %8212 = vmatpush1.bf16.msra.mxu0 0
        %8213 = vmatprep.subr.bf16.mxu0 0
        %8214 = vmatpush1.bf16.msra.mxu0 0
        %8215 = vmatprep.mubr.bf16.mxu0 0
        %8216 = vmatmul.mubr.bf16.gmra.mrb[0].mxu0 %v7814
        %v8217 = vpop.f32.mrb[0].mxu0
        %v8218 = vadd.f32 %v8057, %v8217
        %v8219 = vpop.f32.mrb[0].mxu0
        %v8220 = vpop.f32.mrb[0].mxu0
        %v8221 = vadd.f32 %v8060, %v8220
        %v8222 = vpop.f32.mrb[0].mxu0
        %8223 = vmatprep.mubr.bf16.mxu0 0
        %8224 = vmatmul.mubr.bf16.gmra.mrb[0].mxu0 %v7817
        %v8225 = vpop.f32.mrb[0].mxu0
        %v8226 = vadd.f32 %v8065, %v8225
        %v8227 = vpop.f32.mrb[0].mxu0
        %v8228 = vpop.f32.mrb[0].mxu0
        %v8229 = vadd.f32 %v8068, %v8228
        %v8230 = vpop.f32.mrb[0].mxu0
        %8231 = vmatprep.mubr.bf16.mxu0 0
        %8232 = vmatmul.mubr.bf16.gmra.mrb[0].mxu0 %v7820
        %v8233 = vpop.f32.mrb[0].mxu0
        %v8234 = vadd.f32 %v8073, %v8233
        %v8235 = vpop.f32.mrb[0].mxu0
        %v8236 = vpop.f32.mrb[0].mxu0
        %v8237 = vadd.f32 %v8076, %v8236
        %v8238 = vpop.f32.mrb[0].mxu0
        %8239 = vmatprep.mubr.bf16.mxu0 0
        %8240 = vmatmul.mubr.bf16.gmra.mrb[0].mxu0 %v7823
        %v8241 = vpop.f32.mrb[0].mxu0
        %v8242 = vadd.f32 %v8081, %v8241
        %v8243 = vpop.f32.mrb[0].mxu0
        %v8244 = vpop.f32.mrb[0].mxu0
        %v8245 = vadd.f32 %v8084, %v8244
        %v8246 = vpop.f32.mrb[0].mxu0
        %8247 = vmatprep.mubr.bf16.mxu0 0
        %8248 = vmatmul.mubr.bf16.gmra.mrb[0].mxu0 %v7826
        %v8249 = vpop.f32.mrb[0].mxu0
        %v8250 = vadd.f32 %v8089, %v8249
        %v8251 = vpop.f32.mrb[0].mxu0
        %v8252 = vpop.f32.mrb[0].mxu0
        %v8253 = vadd.f32 %v8092, %v8252
        %v8254 = vpop.f32.mrb[0].mxu0
        %8255 = vmatprep.mubr.bf16.mxu0 0
        %8256 = vmatmul.mubr.bf16.gmra.mrb[0].mxu0 %v7829
        %v8257 = vpop.f32.mrb[0].mxu0
        %v8258 = vadd.f32 %v8097, %v8257
        %v8259 = vpop.f32.mrb[0].mxu0
        %v8260 = vpop.f32.mrb[0].mxu0
        %v8261 = vadd.f32 %v8100, %v8260
        %v8262 = vpop.f32.mrb[0].mxu0
        %8263 = vmatprep.mubr.bf16.mxu0 0
        %8264 = vmatmul.mubr.bf16.gmra.mrb[0].mxu0 %v7832
        %v8265 = vpop.f32.mrb[0].mxu0
        %v8266 = vadd.f32 %v8105, %v8265
        %v8267 = vpop.f32.mrb[0].mxu0
        %v8268 = vpop.f32.mrb[0].mxu0
        %v8269 = vadd.f32 %v8108, %v8268
        %v8270 = vpop.f32.mrb[0].mxu0
        %8271 = vmatprep.mubr.bf16.mxu0 0
        %8272 = vmatmul.mubr.bf16.gmra.mrb[0].mxu0 %v7835
        %v8273 = vpop.f32.mrb[0].mxu0
        %v8274 = vadd.f32 %v8113, %v8273
        %v8275 = vpop.f32.mrb[0].mxu0
        %v8276 = vpop.f32.mrb[0].mxu0
        %v8277 = vadd.f32 %v8116, %v8276
        %v8278 = vpop.f32.mrb[0].mxu0
        %8279 = vmatprep.mubr.bf16.mxu0 0
        %8280 = vmatmul.mubr.bf16.gmra.mrb[0].mxu0 %v7838
        %v8281 = vpop.f32.mrb[0].mxu0
        %v8282 = vadd.f32 %v8121, %v8281
        %v8283 = vpop.f32.mrb[0].mxu0
        %v8284 = vpop.f32.mrb[0].mxu0
        %v8285 = vadd.f32 %v8124, %v8284
        %v8286 = vpop.f32.mrb[0].mxu0
        %8287 = vmatprep.mubr.bf16.mxu0 0
        %8288 = vmatmul.mubr.bf16.gmra.mrb[0].mxu0 %v7841
        %v8289 = vpop.f32.mrb[0].mxu0
        %v8290 = vadd.f32 %v8129, %v8289
        %v8291 = vpop.f32.mrb[0].mxu0
        %v8292 = vpop.f32.mrb[0].mxu0
        %v8293 = vadd.f32 %v8132, %v8292
        %v8294 = vpop.f32.mrb[0].mxu0
        %8295 = vmatprep.mubr.bf16.mxu0 0
        %8296 = vmatmul.mubr.bf16.gmra.mrb[0].mxu0 %v7844
        %v8297 = vpop.f32.mrb[0].mxu0
        %v8298 = vadd.f32 %v8137, %v8297
        %v8299 = vpop.f32.mrb[0].mxu0
        %v8300 = vpop.f32.mrb[0].mxu0
        %v8301 = vadd.f32 %v8140, %v8300
        %v8302 = vpop.f32.mrb[0].mxu0
        %8303 = vmatprep.mubr.bf16.mxu0 0
        %8304 = vmatmul.mubr.bf16.gmra.mrb[0].mxu0 %v7847
        %v8305 = vpop.f32.mrb[0].mxu0
        %v8306 = vadd.f32 %v8145, %v8305
        %v8307 = vpop.f32.mrb[0].mxu0
        %v8308 = vpop.f32.mrb[0].mxu0
        %v8309 = vadd.f32 %v8148, %v8308
        %v8310 = vpop.f32.mrb[0].mxu0
        %8311 = vmatprep.mubr.bf16.mxu0 0
        %8312 = vmatmul.mubr.bf16.gmra.mrb[0].mxu0 %v7850
        %v8313 = vpop.f32.mrb[0].mxu0
        %v8314 = vadd.f32 %v8153, %v8313
        %v8315 = vpop.f32.mrb[0].mxu0
        %v8316 = vpop.f32.mrb[0].mxu0
        %v8317 = vadd.f32 %v8156, %v8316
        %v8318 = vpop.f32.mrb[0].mxu0
        %8319 = vmatprep.mubr.bf16.mxu0 0
        %8320 = vmatmul.mubr.bf16.gmra.mrb[0].mxu0 %v7853
        %v8321 = vpop.f32.mrb[0].mxu0
        %v8322 = vadd.f32 %v8161, %v8321
        %v8323 = vpop.f32.mrb[0].mxu0
        %v8324 = vpop.f32.mrb[0].mxu0
        %v8325 = vadd.f32 %v8164, %v8324
        %v8326 = vpop.f32.mrb[0].mxu0
        %8327 = vmatprep.mubr.bf16.mxu0 0
        %8328 = vmatmul.mubr.bf16.gmra.mrb[0].mxu0 %v7856
        %v8329 = vpop.f32.mrb[0].mxu0
        %v8330 = vadd.f32 %v8169, %v8329
        %v8331 = vpop.f32.mrb[0].mxu0
        %v8332 = vpop.f32.mrb[0].mxu0
        %v8333 = vadd.f32 %v8172, %v8332
        %v8334 = vpop.f32.mrb[0].mxu0
        %8335 = vmatprep.mubr.bf16.mxu0 0
        %8336 = vmatmul.mubr.bf16.gmra.mrb[0].mxu0 %v7859
        %v8337 = vpop.f32.mrb[0].mxu0
        %v8338 = vadd.f32 %v8177, %v8337
        %v8339 = vpop.f32.mrb[0].mxu0
        %v8340 = vpop.f32.mrb[0].mxu0
        %v8341 = vadd.f32 %v8180, %v8340
        %v8342 = vpop.f32.mrb[0].mxu0
        %8343 = vdwg.mxu0
        %8344 = vst.msk [vmem:[%s163] sm:$0xff] %vm3138, %v8218
        %8345 = vst.msk [vmem:[%s163 + $0x8] sm:$0xff] %vm3138, %v8221
        %8346 = vst.msk [vmem:[%s163 + $0x10] sm:$0xff] %vm3138, %v8226
        %8347 = vst.msk [vmem:[%s163 + $0x18] sm:$0xff] %vm3138, %v8229
        %8348 = vst.msk [vmem:[%s163 + $0x20] sm:$0xff] %vm3138, %v8234
        %8349 = vst.msk [vmem:[%s163 + $0x28] sm:$0xff] %vm3138, %v8237
        %8350 = vst.msk [vmem:[%s163 + $0x30] sm:$0xff] %vm3138, %v8242
        %8351 = vst.msk [vmem:[%s163 + $0x38] sm:$0xff] %vm3138, %v8245
        %8352 = vst.msk [vmem:[%s163 + $0x40] sm:$0xff] %vm3138, %v8250
        %8353 = vst.msk [vmem:[%s163 + $0x48] sm:$0xff] %vm3138, %v8253
        %8354 = vst.msk [vmem:[%s163 + $0x50] sm:$0xff] %vm3138, %v8258
        %8355 = vst.msk [vmem:[%s163 + $0x58] sm:$0xff] %vm3138, %v8261
        %8356 = vst.msk [vmem:[%s163 + $0x60] sm:$0xff] %vm3138, %v8266
        %8357 = vst.msk [vmem:[%s163 + $0x68] sm:$0xff] %vm3138, %v8269
        %8358 = vst.msk [vmem:[%s163 + $0x70] sm:$0xff] %vm3138, %v8274
        %8359 = vst.msk [vmem:[%s163 + $0x78] sm:$0xff] %vm3138, %v8277
        %8360 = vst.msk [vmem:[%s163 + $0x80] sm:$0xff] %vm3138, %v8282
        %8361 = vst.msk [vmem:[%s163 + $0x88] sm:$0xff] %vm3138, %v8285
        %8362 = vst.msk [vmem:[%s163 + $0x90] sm:$0xff] %vm3138, %v8290
        %8363 = vst.msk [vmem:[%s163 + $0x98] sm:$0xff] %vm3138, %v8293
        %8364 = vst.msk [vmem:[%s163 + $0xa0] sm:$0xff] %vm3138, %v8298
        %8365 = vst.msk [vmem:[%s163 + $0xa8] sm:$0xff] %vm3138, %v8301
        %8366 = vst.msk [vmem:[%s163 + $0xb0] sm:$0xff] %vm3138, %v8306
        %8367 = vst.msk [vmem:[%s163 + $0xb8] sm:$0xff] %vm3138, %v8309
        %8368 = vst.msk [vmem:[%s163 + $0xc0] sm:$0xff] %vm3138, %v8314
        %8369 = vst.msk [vmem:[%s163 + $0xc8] sm:$0xff] %vm3138, %v8317
        %8370 = vst.msk [vmem:[%s163 + $0xd0] sm:$0xff] %vm3138, %v8322
        %8371 = vst.msk [vmem:[%s163 + $0xd8] sm:$0xff] %vm3138, %v8325
        %8372 = vst.msk [vmem:[%s163 + $0xe0] sm:$0xff] %vm3138, %v8330
        %8373 = vst.msk [vmem:[%s163 + $0xe8] sm:$0xff] %vm3138, %v8333
        %8374 = vst.msk [vmem:[%s163 + $0xf0] sm:$0xff] %vm3138, %v8338
        %8375 = vst.msk [vmem:[%s163 + $0xf8] sm:$0xff] %vm3138, %v8341
        %s8376 = sand.u32 %s93, 1
        %s8377 = scalar_lea.sflag [#allocation4], %s8376
        %s8378 = sand.u32 %s93, 1
        %s8379 = smul.addr %s8378, 256
        %s8380 = scalar_lea.vmem [#allocation3], %s8379
        // Predicated region
        $region33: #{tpu_custom_call.1} parent=31 // pred_check
          %p8381 = pneg %p103
        $region34: #{tpu_custom_call.1} parent=31 // pred_check_branch
          %8383 = sbr.rel (%p8381) target = $region36
        $region35: #{tpu_custom_call.1} parent=31 // pred_region
          %s8385 = ssub.s32 4096, 4096
          %8386 = vsyncadd %s8377, %s8385
          %s8387 = smul.addr %s17, 32
          %s8388 = smul.addr %s8387, 128
          %s8389 = scalar_lea.hbm %s3, %s8388
          %s8390 = sshll.u32 %s8380, 4
          %s8391 = int_to_ptr.vmem [resolvable:$true] %s8390
          %8396 = dma.vmem_to_hbm [thread:$0]  %s8391, 4096, %s8389, %s8377, 128, 128, 8
        $region36: #{tpu_custom_call.1} parent=31 // pred_fallthru
          _
      $region32: #{tpu_custom_call.1} parent=5 // pred_fallthru
        _
      %p8397 = scmp.le.s32.totalorder 2, %s12
      // Predicated region
      $region37: #{tpu_custom_call.1} parent=5 // pred_check
        %p8398 = pneg %p8397
      $region38: #{tpu_custom_call.1} parent=5 // pred_check_branch
        %8400 = sbr.rel (%p8398) target = $region40
      $region39: #{tpu_custom_call.1} parent=5 // pred_region
        %s8401 = ssub.s32 %s12, 2
        // Predicated region
        $region41: #{tpu_custom_call.1} parent=39 // pred_check
          %p8402 = pneg %p109
        $region42: #{tpu_custom_call.1} parent=39 // pred_check_branch
          %8404 = sbr.rel (%p8402) target = $region44
        $region43: #{tpu_custom_call.1} parent=39 // pred_region
          %s8405 = sand.u32 %s94, 1
          %s8406 = scalar_lea.sflag [#allocation4], %s8405
          %s8407 = sand.u32 %s94, 1
          %s8408 = smul.addr %s8407, 256
          %s8409 = scalar_lea.vmem [#allocation3], %s8408
          %8410 = dma.done %s8406, 4096
        $region44: #{tpu_custom_call.1} parent=39 // pred_fallthru
          _
      $region40: #{tpu_custom_call.1} parent=5 // pred_fallthru
        _
    $region6: #{tpu_custom_call.1} parent=1 // loop_footer
      %s16 = sadd.s32 1, %s12
    $region7: #{tpu_custom_call.1} parent=1 // loop_footer_branch
      %11 = sbr.rel target = $region3
    $region8: #{tpu_custom_call.1} parent=1 // loop_exit
      _
    %8411 = vsyncpa [#allocation4], 1
    %s8412 = scalar_lea.sflag [#allocation4], 1
    %8413 = vsyncpa %s8412, 1

</llo_original>
